<compile_context>
chip_gen: v6e
topology: v6e:2x2x1
jax: 0.10.0
libtpu: 0.0.40
codegen_flags: <defaults>
</compile_context>

<pallas_src>
import functools

import jax
import jax.numpy as jnp
from jax.experimental import pallas as pl
from jax.experimental.pallas import tpu as pltpu

EPS = 1e-5          # BatchNorm eps (PyTorch default)
NEG_SLOPE = 0.2     # LeakyReLU negative slope
BIG = 1e30          # finite "-inf" for maxpool padding (no 0*inf -> NaN)
DIM_Y = 10
HEAD_PAD = 128      # pad fc logits to a full lane group


# ----------------------------------------------------------------------------
# Pallas kernels
# ----------------------------------------------------------------------------
def _conv_tower_kernel(
        s1_ref,                                            # (B*28, 28) input, Cin=1
        v1_ref, w1_ref, m1_ref, m1t_ref, g1_ref, b1_ref,   # conv1 / bn1
        pv_ref, pvb_ref, qh_ref, qhb_ref,                  # maxpool select mats
        v23_ref,                                           # vertical shifts (14x14)
        w2_ref, m2_ref, m2t_ref, g2_ref, b2_ref,           # conv2 / bn2
        w3_ref, m3_ref, m3t_ref, g3_ref, b3_ref,           # conv3 / bn3
        out_ref,                                           # (B*14, 14*32) bf16
        *, n1, n23):
    # TODO(synk): at large batch this whole-array-VMEM kernel needs a row-tiled
    #             grid with explicit cross-tile BN stat accumulation.

    def conv(x, v_ref, w_ref):
        # 3x3 / pad 1 conv: sum over vertical taps of (row-shift) @ (Toeplitz W).
        y = None
        for dy in range(3):
            t = jnp.dot(jnp.dot(v_ref[dy], x, preferred_element_type=jnp.float32),
                        w_ref[dy], preferred_element_type=jnp.float32)
            y = t if y is None else y + t
        return y

    def bn_lrelu(y, m_ref, mt_ref, g_ref, b_ref, n):
        # One-pass BN stats: per-channel sum / sum-of-squares via a 0/1 matmul
        # that pools the w-groups out of the lane dim.
        s1 = jnp.dot(jnp.sum(y, axis=0, keepdims=True), m_ref[...],
                     preferred_element_type=jnp.float32) / n
        s2 = jnp.dot(jnp.sum(y * y, axis=0, keepdims=True), m_ref[...],
                     preferred_element_type=jnp.float32) / n
        var = jnp.maximum(s2 - s1 * s1, 0.0)             # biased var, clamp fp noise
        scale = g_ref[...] * jax.lax.rsqrt(var + EPS)    # (1, C)
        shift = b_ref[...] - s1 * scale                  # (1, C)
        scale_l = jnp.dot(scale, mt_ref[...], preferred_element_type=jnp.float32)
        shift_l = jnp.dot(shift, mt_ref[...], preferred_element_type=jnp.float32)
        z = y * scale_l + shift_l
        return jnp.where(z > 0, z, NEG_SLOPE * z)        # LeakyReLU(0.2)

    # stage 1: Conv2d(1,8,3,p1) + BN2d + LeakyReLU on 28x28
    a1 = bn_lrelu(conv(s1_ref[...], v1_ref, w1_ref),
                  m1_ref, m1t_ref, g1_ref, b1_ref, n1)           # (B*28, 224)

    # MaxPool2d(3, stride=2, padding=1): separable select-matmuls + max.
    vmax = None
    for d in range(3):
        t = jnp.dot(pv_ref[d], a1, preferred_element_type=jnp.float32) + pvb_ref[d]
        vmax = t if vmax is None else jnp.maximum(vmax, t)        # (B*14, 224)
    pooled = None
    for d in range(3):
        t = jnp.dot(vmax, qh_ref[d], preferred_element_type=jnp.float32) + qhb_ref[d]
        pooled = t if pooled is None else jnp.maximum(pooled, t)  # (B*14, 112)

    # stage 2: Conv2d(8,16,3,p1) + BN2d + LeakyReLU on 14x14
    a2 = bn_lrelu(conv(pooled, v23_ref, w2_ref),
                  m2_ref, m2t_ref, g2_ref, b2_ref, n23)          # (B*14, 224)

    # stage 3: Conv2d(16,32,3,p1) + BN2d + LeakyReLU on 14x14
    a3 = bn_lrelu(conv(a2, v23_ref, w3_ref),
                  m3_ref, m3t_ref, g3_ref, b3_ref, n23)          # (B*14, 448)

    out_ref[...] = a3.astype(out_ref.dtype)                      # bf16 for the Linear


def _linear_bn_lrelu_kernel(x_ref, w_ref, b_ref, g_ref, be_ref, out_ref, acc_ref):
    # Feature-tiled (parallel, axis 0) x K-tiled (arbitrary, axis 1)
    # Linear(6272 -> 1024) with BatchNorm1d + LeakyReLU fused at the end.
    k = pl.program_id(1)

    @pl.when(k == 0)
    def _():
        acc_ref[...] = jnp.zeros_like(acc_ref)

    # bf16 x bf16 -> f32 accumulate on the MXU.
    acc_ref[...] += jnp.dot(x_ref[...], w_ref[...],
                            preferred_element_type=jnp.float32)

    @pl.when(k == pl.num_programs(1) - 1)
    def _():
        y = acc_ref[...] + b_ref[...]
        n = y.shape[0]
        mu = jnp.sum(y, axis=0, keepdims=True) / n          # one-pass BN1d stats
        msq = jnp.sum(y * y, axis=0, keepdims=True) / n
        var = jnp.maximum(msq - mu * mu, 0.0)
        yn = (y - mu) * jax.lax.rsqrt(var + EPS)
        yn = yn * g_ref[...] + be_ref[...]
        out_ref[...] = jnp.where(yn > 0, yn, NEG_SLOPE * yn)


def _head_kernel(h_ref, w_ref, b_ref, g_ref, qy_ref, pi_ref, *, tau):
    # fc(1024 -> dim_y padded to 128) + gumbel-softmax(soft) + softmax.
    logits = jnp.dot(h_ref[...], w_ref[...],
                     preferred_element_type=jnp.float32) + b_ref[...]

    def _softmax(z):
        m = jnp.max(z, axis=-1, keepdims=True)
        e = jnp.exp(z - m)
        return e / jnp.sum(e, axis=-1, keepdims=True)

    pi_ref[...] = _softmax(logits)                        # F.softmax(logits, -1)
    qy_ref[...] = _softmax((logits + g_ref[...]) / tau)   # gumbel_softmax (soft)


# ----------------------------------------------------------------------------
# pallas_call wrappers
# ----------------------------------------------------------------------------
def _vmem_spec():
    return pl.BlockSpec(memory_space=pltpu.MemorySpace.VMEM)


def conv_tower(s1, consts):
    rows_in = s1.shape[0]                    # B*28
    b = rows_in // 28
    n1 = b * 28 * 28
    n23 = b * 14 * 14
    args = (s1,
            consts["v1"], consts["w1t"], consts["m1"], consts["m1t"],
            consts["g1"], consts["b1"],
            consts["pv"], consts["pvb"], consts["qh"], consts["qhb"],
            consts["v23"],
            consts["w2t"], consts["m2"], consts["m2t"], consts["g2"], consts["b2"],
            consts["w3t"], consts["m3"], consts["m3t"], consts["g3"], consts["b3"])
    return pl.pallas_call(
        functools.partial(_conv_tower_kernel, n1=float(n1), n23=float(n23)),
        out_shape=jax.ShapeDtypeStruct((b * 14, 14 * 32), jnp.bfloat16),
        in_specs=[_vmem_spec()] * len(args),
        out_specs=_vmem_spec(),
    )(*args)


def linear_bn_lrelu(x, w, b, gamma, beta, *, tk=896, tn=512):
    bsz, kdim = x.shape
    feat = w.shape[1]
    assert kdim % tk == 0 and tk % 128 == 0
    assert feat % tn == 0 and tn % 128 == 0
    nk, nj = kdim // tk, feat // tn
    return pl.pallas_call(
        _linear_bn_lrelu_kernel,
        out_shape=jax.ShapeDtypeStruct((bsz, feat), jnp.float32),
        grid=(nj, nk),
        in_specs=[
            pl.BlockSpec((bsz, tk), lambda j, k: (0, k)),
            pl.BlockSpec((tk, tn), lambda j, k: (k, j)),
            pl.BlockSpec((1, tn), lambda j, k: (0, j)),
            pl.BlockSpec((1, tn), lambda j, k: (0, j)),
            pl.BlockSpec((1, tn), lambda j, k: (0, j)),
        ],
        out_specs=pl.BlockSpec((bsz, tn), lambda j, k: (0, j)),
        scratch_shapes=[pltpu.VMEM((bsz, tn), jnp.float32)],
        compiler_params=pltpu.CompilerParams(
            dimension_semantics=("parallel", "arbitrary")),
    )(x, w, b[None, :], gamma[None, :], beta[None, :])


def head(h, w_pad, b_pad, g_pad, tau):
    bsz = h.shape[0]
    d = w_pad.shape[1]
    return pl.pallas_call(
        functools.partial(_head_kernel, tau=tau),
        out_shape=(jax.ShapeDtypeStruct((bsz, d), jnp.float32),
                   jax.ShapeDtypeStruct((bsz, d), jnp.float32)),
        in_specs=[_vmem_spec()] * 4,
        out_specs=(_vmem_spec(), _vmem_spec()),
    )(h, w_pad, b_pad, g_pad)


# ----------------------------------------------------------------------------
# Parameters (deterministic synthetic init; shapes from the module __init__)
# ----------------------------------------------------------------------------
def init_params(key):
    ks = jax.random.split(key, 7)
    return dict(
        # conv kernels stored (kh, kw, cin, cout); a PyTorch (cout,cin,kh,kw)
        # state-dict entry would be transposed into this layout.
        k1=jax.random.normal(ks[0], (3, 3, 1, 8), jnp.float32) * 0.2,
        k2=jax.random.normal(ks[1], (3, 3, 8, 16), jnp.float32) * 0.1,
        k3=jax.random.normal(ks[2], (3, 3, 16, 32), jnp.float32) * 0.08,
        bn1_g=jnp.ones(8), bn1_b=jnp.zeros(8),
        bn2_g=jnp.ones(16), bn2_b=jnp.zeros(16),
        bn3_g=jnp.ones(32), bn3_b=jnp.zeros(32),
        # Linear(6272,1024): rows in PyTorch Flatten order (c*196 + h*14 + w).
        wl=jax.random.normal(ks[3], (6272, 1024), jnp.float32) * 0.02,
        bl=jax.random.normal(ks[4], (1024,), jnp.float32) * 0.01,
        bnl_g=jnp.ones(1024), bnl_b=jnp.zeros(1024),
        wf=jax.random.normal(ks[5], (1024, DIM_Y), jnp.float32) * 0.05,
        bf=jax.random.normal(ks[6], (DIM_Y,), jnp.float32) * 0.01,
    )


def build_consts(params, batch):
    """Kernel-ready derived constants (built once, outside the jitted forward)."""
    f32 = jnp.float32
    B = batch

    def shift_eye(n, k):
        return jnp.eye(n, k=k, dtype=f32)

    def conv_toeplitz(kernel, w):
        # kernel: (3, 3, Cin, Cout) -> (3, w*Cin, w*Cout), one mat per vertical tap.
        return jnp.stack([
            sum(jnp.kron(shift_eye(w, 1 - dx), kernel[dy, dx]) for dx in range(3))
            for dy in range(3)])

    def vshift(h):
        # per-image vertical row shifts with zero fill: (3, B*h, B*h)
        return jnp.stack([jnp.kron(jnp.eye(B, dtype=f32), shift_eye(h, dy - 1))
                          for dy in range(3)])

    def chan_pool(w, c):
        m = jnp.kron(jnp.ones((w, 1), f32), jnp.eye(c, dtype=f32))   # (w*c, c)
        return m, m.T

    def pool_mats(h, w, c, ho, wo):
        pv, pvb, qh, qhb = [], [], [], []
        for d in (-1, 0, 1):
            r = 2 * jnp.arange(ho) + d
            vr = ((r >= 0) & (r < h)).astype(f32)
            base_v = jax.nn.one_hot(r, h, dtype=f32) * vr[:, None]
            pv.append(jnp.kron(jnp.eye(B, dtype=f32), base_v))
            pvb.append(jnp.kron(jnp.ones((B,), f32),
                                jnp.where(vr > 0, 0.0, -BIG))[:, None])
            ci = 2 * jnp.arange(wo) + d
            vc = ((ci >= 0) & (ci < w)).astype(f32)
            base_h = jax.nn.one_hot(ci, w, dtype=f32) * vc[:, None]
            qh.append(jnp.kron(base_h.T, jnp.eye(c, dtype=f32)))
            qhb.append(jnp.kron(jnp.where(vc > 0, 0.0, -BIG),
                                jnp.ones((c,), f32))[None, :])
        return jnp.stack(pv), jnp.stack(pvb), jnp.stack(qh), jnp.stack(qhb)

    m1, m1t = chan_pool(28, 8)
    m2, m2t = chan_pool(14, 16)
    m3, m3t = chan_pool(14, 32)
    pv, pvb, qh, qhb = pool_mats(28, 28, 8, 14, 14)

    # Permute Linear rows: PyTorch flatten order (c*196+h*14+w) -> our slab order
    # (h*448 + w*32 + c).  One-time; lets the conv output feed the Linear with a
    # plain reshape (no NCHW transpose).  Stream the big weight as bf16.
    hh = jnp.arange(14)[:, None, None]
    ww = jnp.arange(14)[None, :, None]
    cc = jnp.arange(32)[None, None, :]
    perm = (cc * 196 + hh * 14 + ww).reshape(-1)
    wl_bf16 = params["wl"][perm, :].astype(jnp.bfloat16)

    # Head: pad dim_y to 128 lanes; padded logits get -1e30 via the bias.
    wf_pad = jnp.pad(params["wf"], ((0, 0), (0, HEAD_PAD - DIM_Y)))
    bf_pad = jnp.concatenate(
        [params["bf"], jnp.full((HEAD_PAD - DIM_Y,), -BIG, f32)])[None, :]

    return dict(
        v1=vshift(28), w1t=conv_toeplitz(params["k1"], 28),
        m1=m1, m1t=m1t, g1=params["bn1_g"][None, :], b1=params["bn1_b"][None, :],
        pv=pv, pvb=pvb, qh=qh, qhb=qhb,
        v23=vshift(14),
        w2t=conv_toeplitz(params["k2"], 14),
        m2=m2, m2t=m2t, g2=params["bn2_g"][None, :], b2=params["bn2_b"][None, :],
        w3t=conv_toeplitz(params["k3"], 14),
        m3=m3, m3t=m3t, g3=params["bn3_g"][None, :], b3=params["bn3_b"][None, :],
        wl=wl_bf16, bl=params["bl"], gl=params["bnl_g"], betal=params["bnl_b"],
        wf=wf_pad, bf=bf_pad,
    )


# ----------------------------------------------------------------------------
# Qy_x forward
# ----------------------------------------------------------------------------
def qy_x_forward(x_nchw, consts, gumbel_key, hard=False, tau=0.5):
    # x_nchw: (B, 1, 28, 28), same convention as the PyTorch module.
    b = x_nchw.shape[0]
    s1 = x_nchw.reshape(b * 28, 28)                  # Cin=1 -> rows=(b,h), lanes=w

    # Fused conv tower -> (B*14, 14*32) bf16 slab.
    a3 = conv_tower(s1, consts)
    flat = a3.reshape(b, 14 * 14 * 32)               # (B, 6272) bf16, (h,w,c) order

    # Linear(6272,1024) + BN1d + LeakyReLU (bf16 weight stream, f32 accumulate).
    henc = linear_bn_lrelu(flat, consts["wl"], consts["bl"],
                           consts["gl"], consts["betal"])

    # fc Linear(1024,10) + gumbel_softmax(tau) + softmax (padded to 128 lanes).
    g = jax.random.gumbel(gumbel_key, (b, DIM_Y), jnp.float32)
    g_pad = jnp.pad(g, ((0, 0), (0, HEAD_PAD - DIM_Y)))
    qy_p, pi_p = head(henc, consts["wf"], consts["bf"], g_pad, tau)
    qy, pi = qy_p[:, :DIM_Y], pi_p[:, :DIM_Y]

    if hard:
        # Straight-through hard gumbel-softmax (matches F.gumbel_softmax hard=True).
        onehot = jax.nn.one_hot(jnp.argmax(qy, axis=-1), DIM_Y, dtype=qy.dtype)
        qy = onehot + qy - jax.lax.stop_gradient(qy)
    return qy, pi


# ----------------------------------------------------------------------------
if __name__ == "__main__":
    key = jax.random.PRNGKey(0)
    pkey, xkey, gkey = jax.random.split(key, 3)
    params = init_params(pkey)

    B = 2
    consts = build_consts(params, B)
    x = jax.random.normal(xkey, (B, 1, 28, 28), jnp.float32)      # NCHW input

    fwd = jax.jit(qy_x_forward, static_argnames=("hard", "tau"))
    qy, pi = fwd(x, consts, gkey, hard=False, tau=0.5)
    jax.block_until_ready((qy, pi))

    assert qy.shape == (B, DIM_Y) and pi.shape == (B, DIM_Y)
    assert bool(jnp.all(jnp.isfinite(qy))) and bool(jnp.all(jnp.isfinite(pi)))
    assert bool(jnp.all(jnp.abs(jnp.sum(pi, -1) - 1.0) < 1e-3))
    assert bool(jnp.all(jnp.abs(jnp.sum(qy, -1) - 1.0) < 1e-3))
    print("KERNEL_OK")
</pallas_src>

<mosaic_0001>
module attributes {stable_mosaic.version = 11 : i64} {
  func.func @_conv_tower_kernel(%arg0: memref<56x28xf32, #tpu.memory_space<vmem>>, %arg1: memref<3x56x56xf32, #tpu.memory_space<vmem>>, %arg2: memref<3x28x224xf32, #tpu.memory_space<vmem>>, %arg3: memref<224x8xf32, #tpu.memory_space<vmem>>, %arg4: memref<8x224xf32, #tpu.memory_space<vmem>>, %arg5: memref<1x8xf32, #tpu.memory_space<vmem>>, %arg6: memref<1x8xf32, #tpu.memory_space<vmem>>, %arg7: memref<3x28x56xf32, #tpu.memory_space<vmem>>, %arg8: memref<3x28x1xf32, #tpu.memory_space<vmem>>, %arg9: memref<3x224x112xf32, #tpu.memory_space<vmem>>, %arg10: memref<3x1x112xf32, #tpu.memory_space<vmem>>, %arg11: memref<3x28x28xf32, #tpu.memory_space<vmem>>, %arg12: memref<3x112x224xf32, #tpu.memory_space<vmem>>, %arg13: memref<224x16xf32, #tpu.memory_space<vmem>>, %arg14: memref<16x224xf32, #tpu.memory_space<vmem>>, %arg15: memref<1x16xf32, #tpu.memory_space<vmem>>, %arg16: memref<1x16xf32, #tpu.memory_space<vmem>>, %arg17: memref<3x224x448xf32, #tpu.memory_space<vmem>>, %arg18: memref<448x32xf32, #tpu.memory_space<vmem>>, %arg19: memref<32x448xf32, #tpu.memory_space<vmem>>, %arg20: memref<1x32xf32, #tpu.memory_space<vmem>>, %arg21: memref<1x32xf32, #tpu.memory_space<vmem>>, %arg22: memref<28x448xbf16, #tpu.memory_space<vmem>>) attributes {dimension_semantics = [], scalar_prefetch = 0 : i64, scratch_operands = 0 : i64, tpu.core_type = #tpu.core_type<tc>} {
    %c0 = arith.constant 0 : index
    %c0_0 = arith.constant 0 : index
    %0 = vector.load %arg0[%c0, %c0_0] : memref<56x28xf32, #tpu.memory_space<vmem>>, vector<56x28xf32>
    %c0_1 = arith.constant 0 : index
    %c0_2 = arith.constant 0 : index
    %c0_3 = arith.constant 0 : index
    %1 = vector.load %arg1[%c0_1, %c0_2, %c0_3] : memref<3x56x56xf32, #tpu.memory_space<vmem>>, vector<1x56x56xf32>
    %2 = vector.shape_cast %1 : vector<1x56x56xf32> to vector<56x56xf32>
    %cst = arith.constant dense<0.000000e+00> : vector<56x28xf32>
    %3 = tpu.matmul %2, %0, %cst {dimension_numbers = #tpu.dot_dimension_numbers<[1], [0], [0], [1], [0, 0, 1, 1], [], []>} : vector<56x56xf32>, vector<56x28xf32>, vector<56x28xf32> -> vector<56x28xf32>
    %c0_4 = arith.constant 0 : index
    %c0_5 = arith.constant 0 : index
    %c0_6 = arith.constant 0 : index
    %4 = vector.load %arg2[%c0_4, %c0_5, %c0_6] : memref<3x28x224xf32, #tpu.memory_space<vmem>>, vector<1x28x224xf32>
    %5 = vector.shape_cast %4 : vector<1x28x224xf32> to vector<28x224xf32>
    %cst_7 = arith.constant dense<0.000000e+00> : vector<56x224xf32>
    %6 = tpu.matmul %3, %5, %cst_7 {dimension_numbers = #tpu.dot_dimension_numbers<[1], [0], [0], [1], [0, 0, 1, 1], [], []>} : vector<56x28xf32>, vector<28x224xf32>, vector<56x224xf32> -> vector<56x224xf32>
    %c1 = arith.constant 1 : index
    %c0_8 = arith.constant 0 : index
    %c0_9 = arith.constant 0 : index
    %7 = vector.load %arg1[%c1, %c0_8, %c0_9] : memref<3x56x56xf32, #tpu.memory_space<vmem>>, vector<1x56x56xf32>
    %8 = vector.shape_cast %7 : vector<1x56x56xf32> to vector<56x56xf32>
    %cst_10 = arith.constant dense<0.000000e+00> : vector<56x28xf32>
    %9 = tpu.matmul %8, %0, %cst_10 {dimension_numbers = #tpu.dot_dimension_numbers<[1], [0], [0], [1], [0, 0, 1, 1], [], []>} : vector<56x56xf32>, vector<56x28xf32>, vector<56x28xf32> -> vector<56x28xf32>
    %c1_11 = arith.constant 1 : index
    %c0_12 = arith.constant 0 : index
    %c0_13 = arith.constant 0 : index
    %10 = vector.load %arg2[%c1_11, %c0_12, %c0_13] : memref<3x28x224xf32, #tpu.memory_space<vmem>>, vector<1x28x224xf32>
    %11 = vector.shape_cast %10 : vector<1x28x224xf32> to vector<28x224xf32>
    %cst_14 = arith.constant dense<0.000000e+00> : vector<56x224xf32>
    %12 = tpu.matmul %9, %11, %cst_14 {dimension_numbers = #tpu.dot_dimension_numbers<[1], [0], [0], [1], [0, 0, 1, 1], [], []>} : vector<56x28xf32>, vector<28x224xf32>, vector<56x224xf32> -> vector<56x224xf32>
    %13 = arith.addf %6, %12 : vector<56x224xf32>
    %c2 = arith.constant 2 : index
    %c0_15 = arith.constant 0 : index
    %c0_16 = arith.constant 0 : index
    %14 = vector.load %arg1[%c2, %c0_15, %c0_16] : memref<3x56x56xf32, #tpu.memory_space<vmem>>, vector<1x56x56xf32>
    %15 = vector.shape_cast %14 : vector<1x56x56xf32> to vector<56x56xf32>
    %cst_17 = arith.constant dense<0.000000e+00> : vector<56x28xf32>
    %16 = tpu.matmul %15, %0, %cst_17 {dimension_numbers = #tpu.dot_dimension_numbers<[1], [0], [0], [1], [0, 0, 1, 1], [], []>} : vector<56x56xf32>, vector<56x28xf32>, vector<56x28xf32> -> vector<56x28xf32>
    %c2_18 = arith.constant 2 : index
    %c0_19 = arith.constant 0 : index
    %c0_20 = arith.constant 0 : index
    %17 = vector.load %arg2[%c2_18, %c0_19, %c0_20] : memref<3x28x224xf32, #tpu.memory_space<vmem>>, vector<1x28x224xf32>
    %18 = vector.shape_cast %17 : vector<1x28x224xf32> to vector<28x224xf32>
    %cst_21 = arith.constant dense<0.000000e+00> : vector<56x224xf32>
    %19 = tpu.matmul %16, %18, %cst_21 {dimension_numbers = #tpu.dot_dimension_numbers<[1], [0], [0], [1], [0, 0, 1, 1], [], []>} : vector<56x28xf32>, vector<28x224xf32>, vector<56x224xf32> -> vector<56x224xf32>
    %20 = arith.addf %13, %19 : vector<56x224xf32>
    %cst_22 = arith.constant dense<0.000000e+00> : vector<224xf32>
    %21 = vector.multi_reduction <add>, %20, %cst_22 [0] : vector<56x224xf32> to vector<224xf32>
    %22 = vector.shape_cast %21 : vector<224xf32> to vector<1x224xf32>
    %c0_23 = arith.constant 0 : index
    %c0_24 = arith.constant 0 : index
    %23 = vector.load %arg3[%c0_23, %c0_24] : memref<224x8xf32, #tpu.memory_space<vmem>>, vector<224x8xf32>
    %cst_25 = arith.constant dense<0.000000e+00> : vector<1x8xf32>
    %24 = tpu.matmul %22, %23, %cst_25 {dimension_numbers = #tpu.dot_dimension_numbers<[1], [0], [0], [1], [0, 0, 1, 1], [], []>} : vector<1x224xf32>, vector<224x8xf32>, vector<1x8xf32> -> vector<1x8xf32>
    %cst_26 = arith.constant 1.568000e+03 : f32
    %25 = vector.broadcast %cst_26 : f32 to vector<1x8xf32>
    %26 = arith.divf %24, %25 : vector<1x8xf32>
    %27 = arith.mulf %20, %20 : vector<56x224xf32>
    %cst_27 = arith.constant dense<0.000000e+00> : vector<224xf32>
    %28 = vector.multi_reduction <add>, %27, %cst_27 [0] : vector<56x224xf32> to vector<224xf32>
    %29 = vector.shape_cast %28 : vector<224xf32> to vector<1x224xf32>
    %c0_28 = arith.constant 0 : index
    %c0_29 = arith.constant 0 : index
    %30 = vector.load %arg3[%c0_28, %c0_29] : memref<224x8xf32, #tpu.memory_space<vmem>>, vector<224x8xf32>
    %cst_30 = arith.constant dense<0.000000e+00> : vector<1x8xf32>
    %31 = tpu.matmul %29, %30, %cst_30 {dimension_numbers = #tpu.dot_dimension_numbers<[1], [0], [0], [1], [0, 0, 1, 1], [], []>} : vector<1x224xf32>, vector<224x8xf32>, vector<1x8xf32> -> vector<1x8xf32>
    %cst_31 = arith.constant 1.568000e+03 : f32
    %32 = vector.broadcast %cst_31 : f32 to vector<1x8xf32>
    %33 = arith.divf %31, %32 : vector<1x8xf32>
    %34 = arith.mulf %26, %26 : vector<1x8xf32>
    %35 = arith.subf %33, %34 : vector<1x8xf32>
    %cst_32 = arith.constant 0.000000e+00 : f32
    %36 = vector.broadcast %cst_32 : f32 to vector<1x8xf32>
    %37 = arith.maximumf %35, %36 : vector<1x8xf32>
    %c0_33 = arith.constant 0 : index
    %c0_34 = arith.constant 0 : index
    %38 = vector.load %arg5[%c0_33, %c0_34] : memref<1x8xf32, #tpu.memory_space<vmem>>, vector<1x8xf32>
    %cst_35 = arith.constant 9.99999974E-6 : f32
    %39 = vector.broadcast %cst_35 : f32 to vector<1x8xf32>
    %40 = arith.addf %37, %39 : vector<1x8xf32>
    %41 = math.rsqrt %40 : vector<1x8xf32>
    %42 = arith.mulf %38, %41 : vector<1x8xf32>
    %c0_36 = arith.constant 0 : index
    %c0_37 = arith.constant 0 : index
    %43 = vector.load %arg6[%c0_36, %c0_37] : memref<1x8xf32, #tpu.memory_space<vmem>>, vector<1x8xf32>
    %44 = arith.mulf %26, %42 : vector<1x8xf32>
    %45 = arith.subf %43, %44 : vector<1x8xf32>
    %c0_38 = arith.constant 0 : index
    %c0_39 = arith.constant 0 : index
    %46 = vector.load %arg4[%c0_38, %c0_39] : memref<8x224xf32, #tpu.memory_space<vmem>>, vector<8x224xf32>
    %cst_40 = arith.constant dense<0.000000e+00> : vector<1x224xf32>
    %47 = tpu.matmul %42, %46, %cst_40 {dimension_numbers = #tpu.dot_dimension_numbers<[1], [0], [0], [1], [0, 0, 1, 1], [], []>} : vector<1x8xf32>, vector<8x224xf32>, vector<1x224xf32> -> vector<1x224xf32>
    %c0_41 = arith.constant 0 : index
    %c0_42 = arith.constant 0 : index
    %48 = vector.load %arg4[%c0_41, %c0_42] : memref<8x224xf32, #tpu.memory_space<vmem>>, vector<8x224xf32>
    %cst_43 = arith.constant dense<0.000000e+00> : vector<1x224xf32>
    %49 = tpu.matmul %45, %48, %cst_43 {dimension_numbers = #tpu.dot_dimension_numbers<[1], [0], [0], [1], [0, 0, 1, 1], [], []>} : vector<1x8xf32>, vector<8x224xf32>, vector<1x224xf32> -> vector<1x224xf32>
    %50 = vector.broadcast %47 : vector<1x224xf32> to vector<56x224xf32>
    %51 = arith.mulf %20, %50 : vector<56x224xf32>
    %52 = vector.broadcast %49 : vector<1x224xf32> to vector<56x224xf32>
    %53 = arith.addf %51, %52 : vector<56x224xf32>
    %cst_44 = arith.constant 0.000000e+00 : f32
    %54 = vector.broadcast %cst_44 : f32 to vector<56x224xf32>
    %55 = arith.cmpf ogt, %53, %54 : vector<56x224xf32>
    %cst_45 = arith.constant 2.000000e-01 : f32
    %56 = vector.broadcast %cst_45 : f32 to vector<56x224xf32>
    %57 = arith.mulf %56, %53 : vector<56x224xf32>
    %58 = arith.select %55, %53, %57 : vector<56x224xi1>, vector<56x224xf32>
    %c0_46 = arith.constant 0 : index
    %c0_47 = arith.constant 0 : index
    %c0_48 = arith.constant 0 : index
    %59 = vector.load %arg7[%c0_46, %c0_47, %c0_48] : memref<3x28x56xf32, #tpu.memory_space<vmem>>, vector<1x28x56xf32>
    %60 = vector.shape_cast %59 : vector<1x28x56xf32> to vector<28x56xf32>
    %cst_49 = arith.constant dense<0.000000e+00> : vector<28x224xf32>
    %61 = tpu.matmul %60, %58, %cst_49 {dimension_numbers = #tpu.dot_dimension_numbers<[1], [0], [0], [1], [0, 0, 1, 1], [], []>} : vector<28x56xf32>, vector<56x224xf32>, vector<28x224xf32> -> vector<28x224xf32>
    %c0_50 = arith.constant 0 : index
    %c0_51 = arith.constant 0 : index
    %c0_52 = arith.constant 0 : index
    %62 = vector.load %arg8[%c0_50, %c0_51, %c0_52] : memref<3x28x1xf32, #tpu.memory_space<vmem>>, vector<1x28x1xf32>
    %63 = vector.shape_cast %62 : vector<1x28x1xf32> to vector<28x1xf32>
    %64 = vector.broadcast %63 : vector<28x1xf32> to vector<28x224xf32>
    %65 = arith.addf %61, %64 : vector<28x224xf32>
    %c1_53 = arith.constant 1 : index
    %c0_54 = arith.constant 0 : index
    %c0_55 = arith.constant 0 : index
    %66 = vector.load %arg7[%c1_53, %c0_54, %c0_55] : memref<3x28x56xf32, #tpu.memory_space<vmem>>, vector<1x28x56xf32>
    %67 = vector.shape_cast %66 : vector<1x28x56xf32> to vector<28x56xf32>
    %cst_56 = arith.constant dense<0.000000e+00> : vector<28x224xf32>
    %68 = tpu.matmul %67, %58, %cst_56 {dimension_numbers = #tpu.dot_dimension_numbers<[1], [0], [0], [1], [0, 0, 1, 1], [], []>} : vector<28x56xf32>, vector<56x224xf32>, vector<28x224xf32> -> vector<28x224xf32>
    %c1_57 = arith.constant 1 : index
    %c0_58 = arith.constant 0 : index
    %c0_59 = arith.constant 0 : index
    %69 = vector.load %arg8[%c1_57, %c0_58, %c0_59] : memref<3x28x1xf32, #tpu.memory_space<vmem>>, vector<1x28x1xf32>
    %70 = vector.shape_cast %69 : vector<1x28x1xf32> to vector<28x1xf32>
    %71 = vector.broadcast %70 : vector<28x1xf32> to vector<28x224xf32>
    %72 = arith.addf %68, %71 : vector<28x224xf32>
    %73 = arith.maximumf %65, %72 : vector<28x224xf32>
    %c2_60 = arith.constant 2 : index
    %c0_61 = arith.constant 0 : index
    %c0_62 = arith.constant 0 : index
    %74 = vector.load %arg7[%c2_60, %c0_61, %c0_62] : memref<3x28x56xf32, #tpu.memory_space<vmem>>, vector<1x28x56xf32>
    %75 = vector.shape_cast %74 : vector<1x28x56xf32> to vector<28x56xf32>
    %cst_63 = arith.constant dense<0.000000e+00> : vector<28x224xf32>
    %76 = tpu.matmul %75, %58, %cst_63 {dimension_numbers = #tpu.dot_dimension_numbers<[1], [0], [0], [1], [0, 0, 1, 1], [], []>} : vector<28x56xf32>, vector<56x224xf32>, vector<28x224xf32> -> vector<28x224xf32>
    %c2_64 = arith.constant 2 : index
    %c0_65 = arith.constant 0 : index
    %c0_66 = arith.constant 0 : index
    %77 = vector.load %arg8[%c2_64, %c0_65, %c0_66] : memref<3x28x1xf32, #tpu.memory_space<vmem>>, vector<1x28x1xf32>
    %78 = vector.shape_cast %77 : vector<1x28x1xf32> to vector<28x1xf32>
    %79 = vector.broadcast %78 : vector<28x1xf32> to vector<28x224xf32>
    %80 = arith.addf %76, %79 : vector<28x224xf32>
    %81 = arith.maximumf %73, %80 : vector<28x224xf32>
    %c0_67 = arith.constant 0 : index
    %c0_68 = arith.constant 0 : index
    %c0_69 = arith.constant 0 : index
    %82 = vector.load %arg9[%c0_67, %c0_68, %c0_69] : memref<3x224x112xf32, #tpu.memory_space<vmem>>, vector<1x224x112xf32>
    %83 = vector.shape_cast %82 : vector<1x224x112xf32> to vector<224x112xf32>
    %cst_70 = arith.constant dense<0.000000e+00> : vector<28x112xf32>
    %84 = tpu.matmul %81, %83, %cst_70 {dimension_numbers = #tpu.dot_dimension_numbers<[1], [0], [0], [1], [0, 0, 1, 1], [], []>} : vector<28x224xf32>, vector<224x112xf32>, vector<28x112xf32> -> vector<28x112xf32>
    %c0_71 = arith.constant 0 : index
    %c0_72 = arith.constant 0 : index
    %c0_73 = arith.constant 0 : index
    %85 = vector.load %arg10[%c0_71, %c0_72, %c0_73] : memref<3x1x112xf32, #tpu.memory_space<vmem>>, vector<1x1x112xf32>
    %86 = vector.shape_cast %85 : vector<1x1x112xf32> to vector<1x112xf32>
    %87 = vector.broadcast %86 : vector<1x112xf32> to vector<28x112xf32>
    %88 = arith.addf %84, %87 : vector<28x112xf32>
    %c1_74 = arith.constant 1 : index
    %c0_75 = arith.constant 0 : index
    %c0_76 = arith.constant 0 : index
    %89 = vector.load %arg9[%c1_74, %c0_75, %c0_76] : memref<3x224x112xf32, #tpu.memory_space<vmem>>, vector<1x224x112xf32>
    %90 = vector.shape_cast %89 : vector<1x224x112xf32> to vector<224x112xf32>
    %cst_77 = arith.constant dense<0.000000e+00> : vector<28x112xf32>
    %91 = tpu.matmul %81, %90, %cst_77 {dimension_numbers = #tpu.dot_dimension_numbers<[1], [0], [0], [1], [0, 0, 1, 1], [], []>} : vector<28x224xf32>, vector<224x112xf32>, vector<28x112xf32> -> vector<28x112xf32>
    %c1_78 = arith.constant 1 : index
    %c0_79 = arith.constant 0 : index
    %c0_80 = arith.constant 0 : index
    %92 = vector.load %arg10[%c1_78, %c0_79, %c0_80] : memref<3x1x112xf32, #tpu.memory_space<vmem>>, vector<1x1x112xf32>
    %93 = vector.shape_cast %92 : vector<1x1x112xf32> to vector<1x112xf32>
    %94 = vector.broadcast %93 : vector<1x112xf32> to vector<28x112xf32>
    %95 = arith.addf %91, %94 : vector<28x112xf32>
    %96 = arith.maximumf %88, %95 : vector<28x112xf32>
    %c2_81 = arith.constant 2 : index
    %c0_82 = arith.constant 0 : index
    %c0_83 = arith.constant 0 : index
    %97 = vector.load %arg9[%c2_81, %c0_82, %c0_83] : memref<3x224x112xf32, #tpu.memory_space<vmem>>, vector<1x224x112xf32>
    %98 = vector.shape_cast %97 : vector<1x224x112xf32> to vector<224x112xf32>
    %cst_84 = arith.constant dense<0.000000e+00> : vector<28x112xf32>
    %99 = tpu.matmul %81, %98, %cst_84 {dimension_numbers = #tpu.dot_dimension_numbers<[1], [0], [0], [1], [0, 0, 1, 1], [], []>} : vector<28x224xf32>, vector<224x112xf32>, vector<28x112xf32> -> vector<28x112xf32>
    %c2_85 = arith.constant 2 : index
    %c0_86 = arith.constant 0 : index
    %c0_87 = arith.constant 0 : index
    %100 = vector.load %arg10[%c2_85, %c0_86, %c0_87] : memref<3x1x112xf32, #tpu.memory_space<vmem>>, vector<1x1x112xf32>
    %101 = vector.shape_cast %100 : vector<1x1x112xf32> to vector<1x112xf32>
    %102 = vector.broadcast %101 : vector<1x112xf32> to vector<28x112xf32>
    %103 = arith.addf %99, %102 : vector<28x112xf32>
    %104 = arith.maximumf %96, %103 : vector<28x112xf32>
    %c0_88 = arith.constant 0 : index
    %c0_89 = arith.constant 0 : index
    %c0_90 = arith.constant 0 : index
    %105 = vector.load %arg11[%c0_88, %c0_89, %c0_90] : memref<3x28x28xf32, #tpu.memory_space<vmem>>, vector<1x28x28xf32>
    %106 = vector.shape_cast %105 : vector<1x28x28xf32> to vector<28x28xf32>
    %cst_91 = arith.constant dense<0.000000e+00> : vector<28x112xf32>
    %107 = tpu.matmul %106, %104, %cst_91 {dimension_numbers = #tpu.dot_dimension_numbers<[1], [0], [0], [1], [0, 0, 1, 1], [], []>} : vector<28x28xf32>, vector<28x112xf32>, vector<28x112xf32> -> vector<28x112xf32>
    %c0_92 = arith.constant 0 : index
    %c0_93 = arith.constant 0 : index
    %c0_94 = arith.constant 0 : index
    %108 = vector.load %arg12[%c0_92, %c0_93, %c0_94] : memref<3x112x224xf32, #tpu.memory_space<vmem>>, vector<1x112x224xf32>
    %109 = vector.shape_cast %108 : vector<1x112x224xf32> to vector<112x224xf32>
    %cst_95 = arith.constant dense<0.000000e+00> : vector<28x224xf32>
    %110 = tpu.matmul %107, %109, %cst_95 {dimension_numbers = #tpu.dot_dimension_numbers<[1], [0], [0], [1], [0, 0, 1, 1], [], []>} : vector<28x112xf32>, vector<112x224xf32>, vector<28x224xf32> -> vector<28x224xf32>
    %c1_96 = arith.constant 1 : index
    %c0_97 = arith.constant 0 : index
    %c0_98 = arith.constant 0 : index
    %111 = vector.load %arg11[%c1_96, %c0_97, %c0_98] : memref<3x28x28xf32, #tpu.memory_space<vmem>>, vector<1x28x28xf32>
    %112 = vector.shape_cast %111 : vector<1x28x28xf32> to vector<28x28xf32>
    %cst_99 = arith.constant dense<0.000000e+00> : vector<28x112xf32>
    %113 = tpu.matmul %112, %104, %cst_99 {dimension_numbers = #tpu.dot_dimension_numbers<[1], [0], [0], [1], [0, 0, 1, 1], [], []>} : vector<28x28xf32>, vector<28x112xf32>, vector<28x112xf32> -> vector<28x112xf32>
    %c1_100 = arith.constant 1 : index
    %c0_101 = arith.constant 0 : index
    %c0_102 = arith.constant 0 : index
    %114 = vector.load %arg12[%c1_100, %c0_101, %c0_102] : memref<3x112x224xf32, #tpu.memory_space<vmem>>, vector<1x112x224xf32>
    %115 = vector.shape_cast %114 : vector<1x112x224xf32> to vector<112x224xf32>
    %cst_103 = arith.constant dense<0.000000e+00> : vector<28x224xf32>
    %116 = tpu.matmul %113, %115, %cst_103 {dimension_numbers = #tpu.dot_dimension_numbers<[1], [0], [0], [1], [0, 0, 1, 1], [], []>} : vector<28x112xf32>, vector<112x224xf32>, vector<28x224xf32> -> vector<28x224xf32>
    %117 = arith.addf %110, %116 : vector<28x224xf32>
    %c2_104 = arith.constant 2 : index
    %c0_105 = arith.constant 0 : index
    %c0_106 = arith.constant 0 : index
    %118 = vector.load %arg11[%c2_104, %c0_105, %c0_106] : memref<3x28x28xf32, #tpu.memory_space<vmem>>, vector<1x28x28xf32>
    %119 = vector.shape_cast %118 : vector<1x28x28xf32> to vector<28x28xf32>
    %cst_107 = arith.constant dense<0.000000e+00> : vector<28x112xf32>
    %120 = tpu.matmul %119, %104, %cst_107 {dimension_numbers = #tpu.dot_dimension_numbers<[1], [0], [0], [1], [0, 0, 1, 1], [], []>} : vector<28x28xf32>, vector<28x112xf32>, vector<28x112xf32> -> vector<28x112xf32>
    %c2_108 = arith.constant 2 : index
    %c0_109 = arith.constant 0 : index
    %c0_110 = arith.constant 0 : index
    %121 = vector.load %arg12[%c2_108, %c0_109, %c0_110] : memref<3x112x224xf32, #tpu.memory_space<vmem>>, vector<1x112x224xf32>
    %122 = vector.shape_cast %121 : vector<1x112x224xf32> to vector<112x224xf32>
    %cst_111 = arith.constant dense<0.000000e+00> : vector<28x224xf32>
    %123 = tpu.matmul %120, %122, %cst_111 {dimension_numbers = #tpu.dot_dimension_numbers<[1], [0], [0], [1], [0, 0, 1, 1], [], []>} : vector<28x112xf32>, vector<112x224xf32>, vector<28x224xf32> -> vector<28x224xf32>
    %124 = arith.addf %117, %123 : vector<28x224xf32>
    %cst_112 = arith.constant dense<0.000000e+00> : vector<224xf32>
    %125 = vector.multi_reduction <add>, %124, %cst_112 [0] : vector<28x224xf32> to vector<224xf32>
    %126 = vector.shape_cast %125 : vector<224xf32> to vector<1x224xf32>
    %c0_113 = arith.constant 0 : index
    %c0_114 = arith.constant 0 : index
    %127 = vector.load %arg13[%c0_113, %c0_114] : memref<224x16xf32, #tpu.memory_space<vmem>>, vector<224x16xf32>
    %cst_115 = arith.constant dense<0.000000e+00> : vector<1x16xf32>
    %128 = tpu.matmul %126, %127, %cst_115 {dimension_numbers = #tpu.dot_dimension_numbers<[1], [0], [0], [1], [0, 0, 1, 1], [], []>} : vector<1x224xf32>, vector<224x16xf32>, vector<1x16xf32> -> vector<1x16xf32>
    %cst_116 = arith.constant 3.920000e+02 : f32
    %129 = vector.broadcast %cst_116 : f32 to vector<1x16xf32>
    %130 = arith.divf %128, %129 : vector<1x16xf32>
    %131 = arith.mulf %124, %124 : vector<28x224xf32>
    %cst_117 = arith.constant dense<0.000000e+00> : vector<224xf32>
    %132 = vector.multi_reduction <add>, %131, %cst_117 [0] : vector<28x224xf32> to vector<224xf32>
    %133 = vector.shape_cast %132 : vector<224xf32> to vector<1x224xf32>
    %c0_118 = arith.constant 0 : index
    %c0_119 = arith.constant 0 : index
    %134 = vector.load %arg13[%c0_118, %c0_119] : memref<224x16xf32, #tpu.memory_space<vmem>>, vector<224x16xf32>
    %cst_120 = arith.constant dense<0.000000e+00> : vector<1x16xf32>
    %135 = tpu.matmul %133, %134, %cst_120 {dimension_numbers = #tpu.dot_dimension_numbers<[1], [0], [0], [1], [0, 0, 1, 1], [], []>} : vector<1x224xf32>, vector<224x16xf32>, vector<1x16xf32> -> vector<1x16xf32>
    %cst_121 = arith.constant 3.920000e+02 : f32
    %136 = vector.broadcast %cst_121 : f32 to vector<1x16xf32>
    %137 = arith.divf %135, %136 : vector<1x16xf32>
    %138 = arith.mulf %130, %130 : vector<1x16xf32>
    %139 = arith.subf %137, %138 : vector<1x16xf32>
    %cst_122 = arith.constant 0.000000e+00 : f32
    %140 = vector.broadcast %cst_122 : f32 to vector<1x16xf32>
    %141 = arith.maximumf %139, %140 : vector<1x16xf32>
    %c0_123 = arith.constant 0 : index
    %c0_124 = arith.constant 0 : index
    %142 = vector.load %arg15[%c0_123, %c0_124] : memref<1x16xf32, #tpu.memory_space<vmem>>, vector<1x16xf32>
    %cst_125 = arith.constant 9.99999974E-6 : f32
    %143 = vector.broadcast %cst_125 : f32 to vector<1x16xf32>
    %144 = arith.addf %141, %143 : vector<1x16xf32>
    %145 = math.rsqrt %144 : vector<1x16xf32>
    %146 = arith.mulf %142, %145 : vector<1x16xf32>
    %c0_126 = arith.constant 0 : index
    %c0_127 = arith.constant 0 : index
    %147 = vector.load %arg16[%c0_126, %c0_127] : memref<1x16xf32, #tpu.memory_space<vmem>>, vector<1x16xf32>
    %148 = arith.mulf %130, %146 : vector<1x16xf32>
    %149 = arith.subf %147, %148 : vector<1x16xf32>
    %c0_128 = arith.constant 0 : index
    %c0_129 = arith.constant 0 : index
    %150 = vector.load %arg14[%c0_128, %c0_129] : memref<16x224xf32, #tpu.memory_space<vmem>>, vector<16x224xf32>
    %cst_130 = arith.constant dense<0.000000e+00> : vector<1x224xf32>
    %151 = tpu.matmul %146, %150, %cst_130 {dimension_numbers = #tpu.dot_dimension_numbers<[1], [0], [0], [1], [0, 0, 1, 1], [], []>} : vector<1x16xf32>, vector<16x224xf32>, vector<1x224xf32> -> vector<1x224xf32>
    %c0_131 = arith.constant 0 : index
    %c0_132 = arith.constant 0 : index
    %152 = vector.load %arg14[%c0_131, %c0_132] : memref<16x224xf32, #tpu.memory_space<vmem>>, vector<16x224xf32>
    %cst_133 = arith.constant dense<0.000000e+00> : vector<1x224xf32>
    %153 = tpu.matmul %149, %152, %cst_133 {dimension_numbers = #tpu.dot_dimension_numbers<[1], [0], [0], [1], [0, 0, 1, 1], [], []>} : vector<1x16xf32>, vector<16x224xf32>, vector<1x224xf32> -> vector<1x224xf32>
    %154 = vector.broadcast %151 : vector<1x224xf32> to vector<28x224xf32>
    %155 = arith.mulf %124, %154 : vector<28x224xf32>
    %156 = vector.broadcast %153 : vector<1x224xf32> to vector<28x224xf32>
    %157 = arith.addf %155, %156 : vector<28x224xf32>
    %cst_134 = arith.constant 0.000000e+00 : f32
    %158 = vector.broadcast %cst_134 : f32 to vector<28x224xf32>
    %159 = arith.cmpf ogt, %157, %158 : vector<28x224xf32>
    %cst_135 = arith.constant 2.000000e-01 : f32
    %160 = vector.broadcast %cst_135 : f32 to vector<28x224xf32>
    %161 = arith.mulf %160, %157 : vector<28x224xf32>
    %162 = arith.select %159, %157, %161 : vector<28x224xi1>, vector<28x224xf32>
    %c0_136 = arith.constant 0 : index
    %c0_137 = arith.constant 0 : index
    %c0_138 = arith.constant 0 : index
    %163 = vector.load %arg11[%c0_136, %c0_137, %c0_138] : memref<3x28x28xf32, #tpu.memory_space<vmem>>, vector<1x28x28xf32>
    %164 = vector.shape_cast %163 : vector<1x28x28xf32> to vector<28x28xf32>
    %cst_139 = arith.constant dense<0.000000e+00> : vector<28x224xf32>
    %165 = tpu.matmul %164, %162, %cst_139 {dimension_numbers = #tpu.dot_dimension_numbers<[1], [0], [0], [1], [0, 0, 1, 1], [], []>} : vector<28x28xf32>, vector<28x224xf32>, vector<28x224xf32> -> vector<28x224xf32>
    %c0_140 = arith.constant 0 : index
    %c0_141 = arith.constant 0 : index
    %c0_142 = arith.constant 0 : index
    %166 = vector.load %arg17[%c0_140, %c0_141, %c0_142] : memref<3x224x448xf32, #tpu.memory_space<vmem>>, vector<1x224x448xf32>
    %167 = vector.shape_cast %166 : vector<1x224x448xf32> to vector<224x448xf32>
    %cst_143 = arith.constant dense<0.000000e+00> : vector<28x448xf32>
    %168 = tpu.matmul %165, %167, %cst_143 {dimension_numbers = #tpu.dot_dimension_numbers<[1], [0], [0], [1], [0, 0, 1, 1], [], []>} : vector<28x224xf32>, vector<224x448xf32>, vector<28x448xf32> -> vector<28x448xf32>
    %c1_144 = arith.constant 1 : index
    %c0_145 = arith.constant 0 : index
    %c0_146 = arith.constant 0 : index
    %169 = vector.load %arg11[%c1_144, %c0_145, %c0_146] : memref<3x28x28xf32, #tpu.memory_space<vmem>>, vector<1x28x28xf32>
    %170 = vector.shape_cast %169 : vector<1x28x28xf32> to vector<28x28xf32>
    %cst_147 = arith.constant dense<0.000000e+00> : vector<28x224xf32>
    %171 = tpu.matmul %170, %162, %cst_147 {dimension_numbers = #tpu.dot_dimension_numbers<[1], [0], [0], [1], [0, 0, 1, 1], [], []>} : vector<28x28xf32>, vector<28x224xf32>, vector<28x224xf32> -> vector<28x224xf32>
    %c1_148 = arith.constant 1 : index
    %c0_149 = arith.constant 0 : index
    %c0_150 = arith.constant 0 : index
    %172 = vector.load %arg17[%c1_148, %c0_149, %c0_150] : memref<3x224x448xf32, #tpu.memory_space<vmem>>, vector<1x224x448xf32>
    %173 = vector.shape_cast %172 : vector<1x224x448xf32> to vector<224x448xf32>
    %cst_151 = arith.constant dense<0.000000e+00> : vector<28x448xf32>
    %174 = tpu.matmul %171, %173, %cst_151 {dimension_numbers = #tpu.dot_dimension_numbers<[1], [0], [0], [1], [0, 0, 1, 1], [], []>} : vector<28x224xf32>, vector<224x448xf32>, vector<28x448xf32> -> vector<28x448xf32>
    %175 = arith.addf %168, %174 : vector<28x448xf32>
    %c2_152 = arith.constant 2 : index
    %c0_153 = arith.constant 0 : index
    %c0_154 = arith.constant 0 : index
    %176 = vector.load %arg11[%c2_152, %c0_153, %c0_154] : memref<3x28x28xf32, #tpu.memory_space<vmem>>, vector<1x28x28xf32>
    %177 = vector.shape_cast %176 : vector<1x28x28xf32> to vector<28x28xf32>
    %cst_155 = arith.constant dense<0.000000e+00> : vector<28x224xf32>
    %178 = tpu.matmul %177, %162, %cst_155 {dimension_numbers = #tpu.dot_dimension_numbers<[1], [0], [0], [1], [0, 0, 1, 1], [], []>} : vector<28x28xf32>, vector<28x224xf32>, vector<28x224xf32> -> vector<28x224xf32>
    %c2_156 = arith.constant 2 : index
    %c0_157 = arith.constant 0 : index
    %c0_158 = arith.constant 0 : index
    %179 = vector.load %arg17[%c2_156, %c0_157, %c0_158] : memref<3x224x448xf32, #tpu.memory_space<vmem>>, vector<1x224x448xf32>
    %180 = vector.shape_cast %179 : vector<1x224x448xf32> to vector<224x448xf32>
    %cst_159 = arith.constant dense<0.000000e+00> : vector<28x448xf32>
    %181 = tpu.matmul %178, %180, %cst_159 {dimension_numbers = #tpu.dot_dimension_numbers<[1], [0], [0], [1], [0, 0, 1, 1], [], []>} : vector<28x224xf32>, vector<224x448xf32>, vector<28x448xf32> -> vector<28x448xf32>
    %182 = arith.addf %175, %181 : vector<28x448xf32>
    %cst_160 = arith.constant dense<0.000000e+00> : vector<448xf32>
    %183 = vector.multi_reduction <add>, %182, %cst_160 [0] : vector<28x448xf32> to vector<448xf32>
    %184 = vector.shape_cast %183 : vector<448xf32> to vector<1x448xf32>
    %c0_161 = arith.constant 0 : index
    %c0_162 = arith.constant 0 : index
    %185 = vector.load %arg18[%c0_161, %c0_162] : memref<448x32xf32, #tpu.memory_space<vmem>>, vector<448x32xf32>
    %cst_163 = arith.constant dense<0.000000e+00> : vector<1x32xf32>
    %186 = tpu.matmul %184, %185, %cst_163 {dimension_numbers = #tpu.dot_dimension_numbers<[1], [0], [0], [1], [0, 0, 1, 1], [], []>} : vector<1x448xf32>, vector<448x32xf32>, vector<1x32xf32> -> vector<1x32xf32>
    %cst_164 = arith.constant 3.920000e+02 : f32
    %187 = vector.broadcast %cst_164 : f32 to vector<1x32xf32>
    %188 = arith.divf %186, %187 : vector<1x32xf32>
    %189 = arith.mulf %182, %182 : vector<28x448xf32>
    %cst_165 = arith.constant dense<0.000000e+00> : vector<448xf32>
    %190 = vector.multi_reduction <add>, %189, %cst_165 [0] : vector<28x448xf32> to vector<448xf32>
    %191 = vector.shape_cast %190 : vector<448xf32> to vector<1x448xf32>
    %c0_166 = arith.constant 0 : index
    %c0_167 = arith.constant 0 : index
    %192 = vector.load %arg18[%c0_166, %c0_167] : memref<448x32xf32, #tpu.memory_space<vmem>>, vector<448x32xf32>
    %cst_168 = arith.constant dense<0.000000e+00> : vector<1x32xf32>
    %193 = tpu.matmul %191, %192, %cst_168 {dimension_numbers = #tpu.dot_dimension_numbers<[1], [0], [0], [1], [0, 0, 1, 1], [], []>} : vector<1x448xf32>, vector<448x32xf32>, vector<1x32xf32> -> vector<1x32xf32>
    %cst_169 = arith.constant 3.920000e+02 : f32
    %194 = vector.broadcast %cst_169 : f32 to vector<1x32xf32>
    %195 = arith.divf %193, %194 : vector<1x32xf32>
    %196 = arith.mulf %188, %188 : vector<1x32xf32>
    %197 = arith.subf %195, %196 : vector<1x32xf32>
    %cst_170 = arith.constant 0.000000e+00 : f32
    %198 = vector.broadcast %cst_170 : f32 to vector<1x32xf32>
    %199 = arith.maximumf %197, %198 : vector<1x32xf32>
    %c0_171 = arith.constant 0 : index
    %c0_172 = arith.constant 0 : index
    %200 = vector.load %arg20[%c0_171, %c0_172] : memref<1x32xf32, #tpu.memory_space<vmem>>, vector<1x32xf32>
    %cst_173 = arith.constant 9.99999974E-6 : f32
    %201 = vector.broadcast %cst_173 : f32 to vector<1x32xf32>
    %202 = arith.addf %199, %201 : vector<1x32xf32>
    %203 = math.rsqrt %202 : vector<1x32xf32>
    %204 = arith.mulf %200, %203 : vector<1x32xf32>
    %c0_174 = arith.constant 0 : index
    %c0_175 = arith.constant 0 : index
    %205 = vector.load %arg21[%c0_174, %c0_175] : memref<1x32xf32, #tpu.memory_space<vmem>>, vector<1x32xf32>
    %206 = arith.mulf %188, %204 : vector<1x32xf32>
    %207 = arith.subf %205, %206 : vector<1x32xf32>
    %c0_176 = arith.constant 0 : index
    %c0_177 = arith.constant 0 : index
    %208 = vector.load %arg19[%c0_176, %c0_177] : memref<32x448xf32, #tpu.memory_space<vmem>>, vector<32x448xf32>
    %cst_178 = arith.constant dense<0.000000e+00> : vector<1x448xf32>
    %209 = tpu.matmul %204, %208, %cst_178 {dimension_numbers = #tpu.dot_dimension_numbers<[1], [0], [0], [1], [0, 0, 1, 1], [], []>} : vector<1x32xf32>, vector<32x448xf32>, vector<1x448xf32> -> vector<1x448xf32>
    %c0_179 = arith.constant 0 : index
    %c0_180 = arith.constant 0 : index
    %210 = vector.load %arg19[%c0_179, %c0_180] : memref<32x448xf32, #tpu.memory_space<vmem>>, vector<32x448xf32>
    %cst_181 = arith.constant dense<0.000000e+00> : vector<1x448xf32>
    %211 = tpu.matmul %207, %210, %cst_181 {dimension_numbers = #tpu.dot_dimension_numbers<[1], [0], [0], [1], [0, 0, 1, 1], [], []>} : vector<1x32xf32>, vector<32x448xf32>, vector<1x448xf32> -> vector<1x448xf32>
    %212 = vector.broadcast %209 : vector<1x448xf32> to vector<28x448xf32>
    %213 = arith.mulf %182, %212 : vector<28x448xf32>
    %214 = vector.broadcast %211 : vector<1x448xf32> to vector<28x448xf32>
    %215 = arith.addf %213, %214 : vector<28x448xf32>
    %cst_182 = arith.constant 0.000000e+00 : f32
    %216 = vector.broadcast %cst_182 : f32 to vector<28x448xf32>
    %217 = arith.cmpf ogt, %215, %216 : vector<28x448xf32>
    %cst_183 = arith.constant 2.000000e-01 : f32
    %218 = vector.broadcast %cst_183 : f32 to vector<28x448xf32>
    %219 = arith.mulf %218, %215 : vector<28x448xf32>
    %220 = arith.select %217, %215, %219 : vector<28x448xi1>, vector<28x448xf32>
    %221 = arith.truncf %220 : vector<28x448xf32> to vector<28x448xbf16>
    %c0_184 = arith.constant 0 : index
    %c0_185 = arith.constant 0 : index
    %222 = vector.load %arg22[%c0_184, %c0_185] : memref<28x448xbf16, #tpu.memory_space<vmem>>, vector<28x448xbf16>
    tpu.vector_store %arg22[%c0_184, %c0_185], %221 {strides = array<i32>} : memref<28x448xbf16, #tpu.memory_space<vmem>>, vector<28x448xbf16>,
    return
  }
}

module attributes {stable_mosaic.version = 11 : i64} {
  func.func @_linear_bn_lrelu_kernel(%arg0: i32, %arg1: i32, %arg2: memref<2x896xbf16, #tpu.memory_space<vmem>>, %arg3: memref<896x512xbf16, #tpu.memory_space<vmem>>, %arg4: memref<1x512xf32, #tpu.memory_space<vmem>>, %arg5: memref<1x512xf32, #tpu.memory_space<vmem>>, %arg6: memref<1x512xf32, #tpu.memory_space<vmem>>, %arg7: memref<2x512xf32, #tpu.memory_space<vmem>>, %arg8: memref<2x512xf32, #tpu.memory_space<vmem>>) attributes {dimension_semantics = [#tpu.dimension_semantics<parallel>, #tpu.dimension_semantics<arbitrary>], iteration_bounds = array<i64: 2, 7>, scalar_prefetch = 0 : i64, scratch_operands = 1 : i64, tpu.core_type = #tpu.core_type<tc>, window_params = [{transform_indices = @transform_0, window_bounds = array<i64: 2, 896>}, {transform_indices = @transform_1, window_bounds = array<i64: 896, 512>}, {transform_indices = @transform_2, window_bounds = array<i64: 1, 512>}, {transform_indices = @transform_3, window_bounds = array<i64: 1, 512>}, {transform_indices = @transform_4, window_bounds = array<i64: 1, 512>}, {transform_indices = @transform_5, window_bounds = array<i64: 2, 512>}]} {
    %c0_i32 = arith.constant 0 : i32
    %0 = arith.cmpi eq, %arg1, %c0_i32 : i32
    %1 = arith.extui %0 : i1 to i32
    %c0_i32_0 = arith.constant 0 : i32
    %2 = arith.cmpi ne, %1, %c0_i32_0 : i32
    scf.if %2 {
      %cst_9 = arith.constant 0.000000e+00 : f32
      %12 = vector.broadcast %cst_9 : f32 to vector<2x512xf32>
      %c0_10 = arith.constant 0 : index
      %c0_11 = arith.constant 0 : index
      %13 = vector.load %arg8[%c0_10, %c0_11] : memref<2x512xf32, #tpu.memory_space<vmem>>, vector<2x512xf32>
      tpu.vector_store %arg8[%c0_10, %c0_11], %12 {strides = array<i32>} : memref<2x512xf32, #tpu.memory_space<vmem>>, vector<2x512xf32>,
    } else {
    }
    %c0 = arith.constant 0 : index
    %c0_1 = arith.constant 0 : index
    %3 = vector.load %arg8[%c0, %c0_1] : memref<2x512xf32, #tpu.memory_space<vmem>>, vector<2x512xf32>
    %c0_2 = arith.constant 0 : index
    %c0_3 = arith.constant 0 : index
    %4 = vector.load %arg2[%c0_2, %c0_3] : memref<2x896xbf16, #tpu.memory_space<vmem>>, vector<2x896xbf16>
    %c0_4 = arith.constant 0 : index
    %c0_5 = arith.constant 0 : index
    %5 = vector.load %arg3[%c0_4, %c0_5] : memref<896x512xbf16, #tpu.memory_space<vmem>>, vector<896x512xbf16>
    %cst = arith.constant dense<0.000000e+00> : vector<2x512xf32>
    %6 = tpu.matmul %4, %5, %cst {dimension_numbers = #tpu.dot_dimension_numbers<[1], [0], [0], [1], [0, 0, 1, 1], [], []>} : vector<2x896xbf16>, vector<896x512xbf16>, vector<2x512xf32> -> vector<2x512xf32>
    %7 = arith.addf %3, %6 : vector<2x512xf32>
    %c0_6 = arith.constant 0 : index
    %c0_7 = arith.constant 0 : index
    %8 = vector.load %arg8[%c0_6, %c0_7] : memref<2x512xf32, #tpu.memory_space<vmem>>, vector<2x512xf32>
    tpu.vector_store %arg8[%c0_6, %c0_7], %7 {strides = array<i32>} : memref<2x512xf32, #tpu.memory_space<vmem>>, vector<2x512xf32>,
    %c6_i32 = arith.constant 6 : i32
    %9 = arith.cmpi eq, %arg1, %c6_i32 : i32
    %10 = arith.extui %9 : i1 to i32
    %c0_i32_8 = arith.constant 0 : i32
    %11 = arith.cmpi ne, %10, %c0_i32_8 : i32
    scf.if %11 {
      %c0_9 = arith.constant 0 : index
      %c0_10 = arith.constant 0 : index
      %12 = vector.load %arg8[%c0_9, %c0_10] : memref<2x512xf32, #tpu.memory_space<vmem>>, vector<2x512xf32>
      %c0_11 = arith.constant 0 : index
      %c0_12 = arith.constant 0 : index
      %13 = vector.load %arg4[%c0_11, %c0_12] : memref<1x512xf32, #tpu.memory_space<vmem>>, vector<1x512xf32>
      %14 = vector.broadcast %13 : vector<1x512xf32> to vector<2x512xf32>
      %15 = arith.addf %12, %14 : vector<2x512xf32>
      %cst_13 = arith.constant dense<0.000000e+00> : vector<512xf32>
      %16 = vector.multi_reduction <add>, %15, %cst_13 [0] : vector<2x512xf32> to vector<512xf32>
      %17 = vector.shape_cast %16 : vector<512xf32> to vector<1x512xf32>
      %cst_14 = arith.constant 2.000000e+00 : f32
      %18 = vector.broadcast %cst_14 : f32 to vector<1x512xf32>
      %19 = arith.divf %17, %18 : vector<1x512xf32>
      %20 = arith.mulf %15, %15 : vector<2x512xf32>
      %cst_15 = arith.constant dense<0.000000e+00> : vector<512xf32>
      %21 = vector.multi_reduction <add>, %20, %cst_15 [0] : vector<2x512xf32> to vector<512xf32>
      %22 = vector.shape_cast %21 : vector<512xf32> to vector<1x512xf32>
      %cst_16 = arith.constant 2.000000e+00 : f32
      %23 = vector.broadcast %cst_16 : f32 to vector<1x512xf32>
      %24 = arith.divf %22, %23 : vector<1x512xf32>
      %25 = arith.mulf %19, %19 : vector<1x512xf32>
      %26 = arith.subf %24, %25 : vector<1x512xf32>
      %cst_17 = arith.constant 0.000000e+00 : f32
      %27 = vector.broadcast %cst_17 : f32 to vector<1x512xf32>
      %28 = arith.maximumf %26, %27 : vector<1x512xf32>
      %29 = vector.broadcast %19 : vector<1x512xf32> to vector<2x512xf32>
      %30 = arith.subf %15, %29 : vector<2x512xf32>
      %cst_18 = arith.constant 9.99999974E-6 : f32
      %31 = vector.broadcast %cst_18 : f32 to vector<1x512xf32>
      %32 = arith.addf %28, %31 : vector<1x512xf32>
      %33 = math.rsqrt %32 : vector<1x512xf32>
      %34 = vector.broadcast %33 : vector<1x512xf32> to vector<2x512xf32>
      %35 = arith.mulf %30, %34 : vector<2x512xf32>
      %c0_19 = arith.constant 0 : index
      %c0_20 = arith.constant 0 : index
      %36 = vector.load %arg5[%c0_19, %c0_20] : memref<1x512xf32, #tpu.memory_space<vmem>>, vector<1x512xf32>
      %37 = vector.broadcast %36 : vector<1x512xf32> to vector<2x512xf32>
      %38 = arith.mulf %35, %37 : vector<2x512xf32>
      %c0_21 = arith.constant 0 : index
      %c0_22 = arith.constant 0 : index
      %39 = vector.load %arg6[%c0_21, %c0_22] : memref<1x512xf32, #tpu.memory_space<vmem>>, vector<1x512xf32>
      %40 = vector.broadcast %39 : vector<1x512xf32> to vector<2x512xf32>
      %41 = arith.addf %38, %40 : vector<2x512xf32>
      %cst_23 = arith.constant 0.000000e+00 : f32
      %42 = vector.broadcast %cst_23 : f32 to vector<2x512xf32>
      %43 = arith.cmpf ogt, %41, %42 : vector<2x512xf32>
      %cst_24 = arith.constant 2.000000e-01 : f32
      %44 = vector.broadcast %cst_24 : f32 to vector<2x512xf32>
      %45 = arith.mulf %44, %41 : vector<2x512xf32>
      %46 = arith.select %43, %41, %45 : vector<2x512xi1>, vector<2x512xf32>
      %c0_25 = arith.constant 0 : index
      %c0_26 = arith.constant 0 : index
      %47 = vector.load %arg7[%c0_25, %c0_26] : memref<2x512xf32, #tpu.memory_space<vmem>>, vector<2x512xf32>
      tpu.vector_store %arg7[%c0_25, %c0_26], %46 {strides = array<i32>} : memref<2x512xf32, #tpu.memory_space<vmem>>, vector<2x512xf32>,
    } else {
    }
    return
  }
  func.func @transform_0(%arg0: i32, %arg1: i32) -> (i32, i32) {
    %c0_i32 = arith.constant 0 : i32
    %c0_i32_0 = arith.constant 0 : i32
    return %c0_i32, %arg1 : i32, i32
  }
  func.func @transform_1(%arg0: i32, %arg1: i32) -> (i32, i32) {
    %c0_i32 = arith.constant 0 : i32
    return %arg1, %arg0 : i32, i32
  }
  func.func @transform_2(%arg0: i32, %arg1: i32) -> (i32, i32) {
    %c0_i32 = arith.constant 0 : i32
    %c0_i32_0 = arith.constant 0 : i32
    return %c0_i32, %arg0 : i32, i32
  }
  func.func @transform_3(%arg0: i32, %arg1: i32) -> (i32, i32) {
    %c0_i32 = arith.constant 0 : i32
    %c0_i32_0 = arith.constant 0 : i32
    return %c0_i32, %arg0 : i32, i32
  }
  func.func @transform_4(%arg0: i32, %arg1: i32) -> (i32, i32) {
    %c0_i32 = arith.constant 0 : i32
    %c0_i32_0 = arith.constant 0 : i32
    return %c0_i32, %arg0 : i32, i32
  }
  func.func @transform_5(%arg0: i32, %arg1: i32) -> (i32, i32) {
    %c0_i32 = arith.constant 0 : i32
    %c0_i32_0 = arith.constant 0 : i32
    return %c0_i32, %arg0 : i32, i32
  }
}

module attributes {stable_mosaic.version = 11 : i64} {
  func.func @_head_kernel(%arg0: memref<2x1024xf32, #tpu.memory_space<vmem>>, %arg1: memref<1024x128xf32, #tpu.memory_space<vmem>>, %arg2: memref<1x128xf32, #tpu.memory_space<vmem>>, %arg3: memref<2x128xf32, #tpu.memory_space<vmem>>, %arg4: memref<2x128xf32, #tpu.memory_space<vmem>>, %arg5: memref<2x128xf32, #tpu.memory_space<vmem>>) attributes {dimension_semantics = [], scalar_prefetch = 0 : i64, scratch_operands = 0 : i64, tpu.core_type = #tpu.core_type<tc>} {
    %c0 = arith.constant 0 : index
    %c0_0 = arith.constant 0 : index
    %0 = vector.load %arg0[%c0, %c0_0] : memref<2x1024xf32, #tpu.memory_space<vmem>>, vector<2x1024xf32>
    %c0_1 = arith.constant 0 : index
    %c0_2 = arith.constant 0 : index
    %1 = vector.load %arg1[%c0_1, %c0_2] : memref<1024x128xf32, #tpu.memory_space<vmem>>, vector<1024x128xf32>
    %cst = arith.constant dense<0.000000e+00> : vector<2x128xf32>
    %2 = tpu.matmul %0, %1, %cst {dimension_numbers = #tpu.dot_dimension_numbers<[1], [0], [0], [1], [0, 0, 1, 1], [], []>} : vector<2x1024xf32>, vector<1024x128xf32>, vector<2x128xf32> -> vector<2x128xf32>
    %c0_3 = arith.constant 0 : index
    %c0_4 = arith.constant 0 : index
    %3 = vector.load %arg2[%c0_3, %c0_4] : memref<1x128xf32, #tpu.memory_space<vmem>>, vector<1x128xf32>
    %4 = vector.broadcast %3 : vector<1x128xf32> to vector<2x128xf32>
    %5 = arith.addf %2, %4 : vector<2x128xf32>
    %cst_5 = arith.constant dense<0xFF800000> : vector<2xf32>
    %6 = vector.multi_reduction <maximumf>, %5, %cst_5 [1] : vector<2x128xf32> to vector<2xf32>
    %7 = vector.shape_cast %6 : vector<2xf32> to vector<2x1xf32>
    %8 = vector.broadcast %7 : vector<2x1xf32> to vector<2x128xf32>
    %9 = arith.subf %5, %8 : vector<2x128xf32>
    %10 = math.exp %9 : vector<2x128xf32>
    %cst_6 = arith.constant dense<0.000000e+00> : vector<2xf32>
    %11 = vector.multi_reduction <add>, %10, %cst_6 [1] : vector<2x128xf32> to vector<2xf32>
    %12 = vector.shape_cast %11 : vector<2xf32> to vector<2x1xf32>
    %13 = vector.broadcast %12 : vector<2x1xf32> to vector<2x128xf32>
    %14 = arith.divf %10, %13 : vector<2x128xf32>
    %c0_7 = arith.constant 0 : index
    %c0_8 = arith.constant 0 : index
    %15 = vector.load %arg5[%c0_7, %c0_8] : memref<2x128xf32, #tpu.memory_space<vmem>>, vector<2x128xf32>
    tpu.vector_store %arg5[%c0_7, %c0_8], %14 {strides = array<i32>} : memref<2x128xf32, #tpu.memory_space<vmem>>, vector<2x128xf32>,
    %c0_9 = arith.constant 0 : index
    %c0_10 = arith.constant 0 : index
    %16 = vector.load %arg3[%c0_9, %c0_10] : memref<2x128xf32, #tpu.memory_space<vmem>>, vector<2x128xf32>
    %17 = arith.addf %5, %16 : vector<2x128xf32>
    %cst_11 = arith.constant 5.000000e-01 : f32
    %18 = vector.broadcast %cst_11 : f32 to vector<2x128xf32>
    %19 = arith.divf %17, %18 : vector<2x128xf32>
    %cst_12 = arith.constant dense<0xFF800000> : vector<2xf32>
    %20 = vector.multi_reduction <maximumf>, %19, %cst_12 [1] : vector<2x128xf32> to vector<2xf32>
    %21 = vector.shape_cast %20 : vector<2xf32> to vector<2x1xf32>
    %22 = vector.broadcast %21 : vector<2x1xf32> to vector<2x128xf32>
    %23 = arith.subf %19, %22 : vector<2x128xf32>
    %24 = math.exp %23 : vector<2x128xf32>
    %cst_13 = arith.constant dense<0.000000e+00> : vector<2xf32>
    %25 = vector.multi_reduction <add>, %24, %cst_13 [1] : vector<2x128xf32> to vector<2xf32>
    %26 = vector.shape_cast %25 : vector<2xf32> to vector<2x1xf32>
    %27 = vector.broadcast %26 : vector<2x1xf32> to vector<2x128xf32>
    %28 = arith.divf %24, %27 : vector<2x128xf32>
    %c0_14 = arith.constant 0 : index
    %c0_15 = arith.constant 0 : index
    %29 = vector.load %arg4[%c0_14, %c0_15] : memref<2x128xf32, #tpu.memory_space<vmem>>, vector<2x128xf32>
    tpu.vector_store %arg4[%c0_14, %c0_15], %28 {strides = array<i32>} : memref<2x128xf32, #tpu.memory_space<vmem>>, vector<2x128xf32>,
    return
  }
}

</mosaic_0001>

<llo_original>
// kernel: qy_x_forward.5
$region0: #{qy_x_forward.5}
  #allocation0 [shape = 'u32[]', space=smem, size = 0x4, offset = 0x4, fixed_abs, tag = 'smem constant byte address 0x4 - core index']
  #allocation1 [shape = 'u32[144,128]{1,0:T(1,128)}', space=vmem, size = 0x12000, scoped, tag = 'internal scratch']
  %s0 = inlined_call_operand.vmem [shape: f32[2,1024], index: 0, kind: input, shape index: {}]
  %s1 = inlined_call_operand.vmem [shape: f32[1024,128], index: 1, kind: input, shape index: {}]
  %s2 = inlined_call_operand.vmem [shape: f32[1,128], index: 2, kind: input, shape index: {}]
  %s3 = inlined_call_operand.vmem [shape: f32[2,128], index: 3, kind: input, shape index: {}]
  %s4 = inlined_call_operand.hbm [shape: f32[2,128], index: 4, kind: output, shape index: {0}]
  %s5 = inlined_call_operand.hbm [shape: f32[2,128], index: 5, kind: output, shape index: {1}]
  %6 = xla_tuple %s4, %s5
  %s7 = sld [smem:[#allocation0]]
  $region34: #{qy_x_forward.5} parent=0
    _
  %s9 = ssub.s32 1, %s7
  %s10 = scalar_select 0, %s9, %s7
  $region1: #{qy_x_forward.5} parent=0
    #allocation2 [shape = 'u8[1024]{0}', space=vmem, size = 0x400, scoped, tag = 'output window, operand 0, single buffered']
    #allocation3 [shape = 's32[1]{0}', space=sflag, size = 0x4, scoped, tag = 'scoped memory for qy_x_forward.5']
    #allocation4 [shape = 'u8[1024]{0}', space=vmem, size = 0x400, scoped, tag = 'output window, operand 1, single buffered']
    #allocation5 [shape = 's32[1]{0}', space=sflag, size = 0x4, scoped, tag = 'scoped memory for qy_x_forward.5']
    %11 = vsyncpa [#allocation3], 0
    %12 = vsyncpa [#allocation5], 0
    // Predicated region
    $region2: #{qy_x_forward.5} parent=1 // pred_check
      _
    $region3: #{qy_x_forward.5} parent=1 // pred_check_branch
      %14 = sbr.rel (0) target = $region5
    $region4: #{qy_x_forward.5} parent=1 // pred_region
      _
    $region5: #{qy_x_forward.5} parent=1 // pred_fallthru
      _
    // Predicated region
    $region6: #{qy_x_forward.5} parent=1 // pred_check
      _
    $region7: #{qy_x_forward.5} parent=1 // pred_check_branch
      %16 = sbr.rel (0) target = $region9
    $region8: #{qy_x_forward.5} parent=1 // pred_region
      _
    $region9: #{qy_x_forward.5} parent=1 // pred_fallthru
      _
    // Predicated region
    $region10: #{qy_x_forward.5} parent=1 // pred_check
      _
    $region11: #{qy_x_forward.5} parent=1 // pred_check_branch
      %18 = sbr.rel (0) target = $region13
    $region12: #{qy_x_forward.5} parent=1 // pred_region
      _
    $region13: #{qy_x_forward.5} parent=1 // pred_fallthru
      _
    // Predicated region
    $region14: #{qy_x_forward.5} parent=1 // pred_check
      _
    $region15: #{qy_x_forward.5} parent=1 // pred_check_branch
      %20 = sbr.rel (0) target = $region17
    $region16: #{qy_x_forward.5} parent=1 // pred_region
      _
    $region17: #{qy_x_forward.5} parent=1 // pred_fallthru
      _
    %v21 = vld [vmem:[%s0] sm:$0xff]
    %v22 = vld [vmem:[%s0 + $0x8] sm:$0xff]
    %v23 = vld [vmem:[%s1] sm:$0xff]
    %v24 = vld [vmem:[%s1 + $0x8] sm:$0xff]
    %v25 = vld [vmem:[%s1 + $0x10] sm:$0xff]
    %v26 = vld [vmem:[%s1 + $0x18] sm:$0xff]
    %v27 = vld [vmem:[%s1 + $0x20] sm:$0xff]
    %v28 = vld [vmem:[%s1 + $0x28] sm:$0xff]
    %v29 = vld [vmem:[%s1 + $0x30] sm:$0xff]
    %v30 = vld [vmem:[%s1 + $0x38] sm:$0xff]
    %v31 = vld [vmem:[%s1 + $0x40] sm:$0xff]
    %v32 = vld [vmem:[%s1 + $0x48] sm:$0xff]
    %v33 = vld [vmem:[%s1 + $0x50] sm:$0xff]
    %v34 = vld [vmem:[%s1 + $0x58] sm:$0xff]
    %v35 = vld [vmem:[%s1 + $0x60] sm:$0xff]
    %v36 = vld [vmem:[%s1 + $0x68] sm:$0xff]
    %v37 = vld [vmem:[%s1 + $0x70] sm:$0xff]
    %v38 = vld [vmem:[%s1 + $0x78] sm:$0xff]
    %v39 = vld [vmem:[%s1 + $0x80] sm:$0xff]
    %v40 = vld [vmem:[%s1 + $0x88] sm:$0xff]
    %v41 = vld [vmem:[%s1 + $0x90] sm:$0xff]
    %v42 = vld [vmem:[%s1 + $0x98] sm:$0xff]
    %v43 = vld [vmem:[%s1 + $0xa0] sm:$0xff]
    %v44 = vld [vmem:[%s1 + $0xa8] sm:$0xff]
    %v45 = vld [vmem:[%s1 + $0xb0] sm:$0xff]
    %v46 = vld [vmem:[%s1 + $0xb8] sm:$0xff]
    %v47 = vld [vmem:[%s1 + $0xc0] sm:$0xff]
    %v48 = vld [vmem:[%s1 + $0xc8] sm:$0xff]
    %v49 = vld [vmem:[%s1 + $0xd0] sm:$0xff]
    %v50 = vld [vmem:[%s1 + $0xd8] sm:$0xff]
    %v51 = vld [vmem:[%s1 + $0xe0] sm:$0xff]
    %v52 = vld [vmem:[%s1 + $0xe8] sm:$0xff]
    %v53 = vld [vmem:[%s1 + $0xf0] sm:$0xff]
    %v54 = vld [vmem:[%s1 + $0xf8] sm:$0xff]
    %v55 = vld [vmem:[%s1 + $0x100] sm:$0xff]
    %v56 = vld [vmem:[%s1 + $0x108] sm:$0xff]
    %v57 = vld [vmem:[%s1 + $0x110] sm:$0xff]
    %v58 = vld [vmem:[%s1 + $0x118] sm:$0xff]
    %v59 = vld [vmem:[%s1 + $0x120] sm:$0xff]
    %v60 = vld [vmem:[%s1 + $0x128] sm:$0xff]
    %v61 = vld [vmem:[%s1 + $0x130] sm:$0xff]
    %v62 = vld [vmem:[%s1 + $0x138] sm:$0xff]
    %v63 = vld [vmem:[%s1 + $0x140] sm:$0xff]
    %v64 = vld [vmem:[%s1 + $0x148] sm:$0xff]
    %v65 = vld [vmem:[%s1 + $0x150] sm:$0xff]
    %v66 = vld [vmem:[%s1 + $0x158] sm:$0xff]
    %v67 = vld [vmem:[%s1 + $0x160] sm:$0xff]
    %v68 = vld [vmem:[%s1 + $0x168] sm:$0xff]
    %v69 = vld [vmem:[%s1 + $0x170] sm:$0xff]
    %v70 = vld [vmem:[%s1 + $0x178] sm:$0xff]
    %v71 = vld [vmem:[%s1 + $0x180] sm:$0xff]
    %v72 = vld [vmem:[%s1 + $0x188] sm:$0xff]
    %v73 = vld [vmem:[%s1 + $0x190] sm:$0xff]
    %v74 = vld [vmem:[%s1 + $0x198] sm:$0xff]
    %v75 = vld [vmem:[%s1 + $0x1a0] sm:$0xff]
    %v76 = vld [vmem:[%s1 + $0x1a8] sm:$0xff]
    %v77 = vld [vmem:[%s1 + $0x1b0] sm:$0xff]
    %v78 = vld [vmem:[%s1 + $0x1b8] sm:$0xff]
    %v79 = vld [vmem:[%s1 + $0x1c0] sm:$0xff]
    %v80 = vld [vmem:[%s1 + $0x1c8] sm:$0xff]
    %v81 = vld [vmem:[%s1 + $0x1d0] sm:$0xff]
    %v82 = vld [vmem:[%s1 + $0x1d8] sm:$0xff]
    %v83 = vld [vmem:[%s1 + $0x1e0] sm:$0xff]
    %v84 = vld [vmem:[%s1 + $0x1e8] sm:$0xff]
    %v85 = vld [vmem:[%s1 + $0x1f0] sm:$0xff]
    %v86 = vld [vmem:[%s1 + $0x1f8] sm:$0xff]
    %v87 = vld [vmem:[%s1 + $0x200] sm:$0xff]
    %v88 = vld [vmem:[%s1 + $0x208] sm:$0xff]
    %v89 = vld [vmem:[%s1 + $0x210] sm:$0xff]
    %v90 = vld [vmem:[%s1 + $0x218] sm:$0xff]
    %v91 = vld [vmem:[%s1 + $0x220] sm:$0xff]
    %v92 = vld [vmem:[%s1 + $0x228] sm:$0xff]
    %v93 = vld [vmem:[%s1 + $0x230] sm:$0xff]
    %v94 = vld [vmem:[%s1 + $0x238] sm:$0xff]
    %v95 = vld [vmem:[%s1 + $0x240] sm:$0xff]
    %v96 = vld [vmem:[%s1 + $0x248] sm:$0xff]
    %v97 = vld [vmem:[%s1 + $0x250] sm:$0xff]
    %v98 = vld [vmem:[%s1 + $0x258] sm:$0xff]
    %v99 = vld [vmem:[%s1 + $0x260] sm:$0xff]
    %v100 = vld [vmem:[%s1 + $0x268] sm:$0xff]
    %v101 = vld [vmem:[%s1 + $0x270] sm:$0xff]
    %v102 = vld [vmem:[%s1 + $0x278] sm:$0xff]
    %v103 = vld [vmem:[%s1 + $0x280] sm:$0xff]
    %v104 = vld [vmem:[%s1 + $0x288] sm:$0xff]
    %v105 = vld [vmem:[%s1 + $0x290] sm:$0xff]
    %v106 = vld [vmem:[%s1 + $0x298] sm:$0xff]
    %v107 = vld [vmem:[%s1 + $0x2a0] sm:$0xff]
    %v108 = vld [vmem:[%s1 + $0x2a8] sm:$0xff]
    %v109 = vld [vmem:[%s1 + $0x2b0] sm:$0xff]
    %v110 = vld [vmem:[%s1 + $0x2b8] sm:$0xff]
    %v111 = vld [vmem:[%s1 + $0x2c0] sm:$0xff]
    %v112 = vld [vmem:[%s1 + $0x2c8] sm:$0xff]
    %v113 = vld [vmem:[%s1 + $0x2d0] sm:$0xff]
    %v114 = vld [vmem:[%s1 + $0x2d8] sm:$0xff]
    %v115 = vld [vmem:[%s1 + $0x2e0] sm:$0xff]
    %v116 = vld [vmem:[%s1 + $0x2e8] sm:$0xff]
    %v117 = vld [vmem:[%s1 + $0x2f0] sm:$0xff]
    %v118 = vld [vmem:[%s1 + $0x2f8] sm:$0xff]
    %v119 = vld [vmem:[%s1 + $0x300] sm:$0xff]
    %v120 = vld [vmem:[%s1 + $0x308] sm:$0xff]
    %v121 = vld [vmem:[%s1 + $0x310] sm:$0xff]
    %v122 = vld [vmem:[%s1 + $0x318] sm:$0xff]
    %v123 = vld [vmem:[%s1 + $0x320] sm:$0xff]
    %v124 = vld [vmem:[%s1 + $0x328] sm:$0xff]
    %v125 = vld [vmem:[%s1 + $0x330] sm:$0xff]
    %v126 = vld [vmem:[%s1 + $0x338] sm:$0xff]
    %v127 = vld [vmem:[%s1 + $0x340] sm:$0xff]
    %v128 = vld [vmem:[%s1 + $0x348] sm:$0xff]
    %v129 = vld [vmem:[%s1 + $0x350] sm:$0xff]
    %v130 = vld [vmem:[%s1 + $0x358] sm:$0xff]
    %v131 = vld [vmem:[%s1 + $0x360] sm:$0xff]
    %v132 = vld [vmem:[%s1 + $0x368] sm:$0xff]
    %v133 = vld [vmem:[%s1 + $0x370] sm:$0xff]
    %v134 = vld [vmem:[%s1 + $0x378] sm:$0xff]
    %v135 = vld [vmem:[%s1 + $0x380] sm:$0xff]
    %v136 = vld [vmem:[%s1 + $0x388] sm:$0xff]
    %v137 = vld [vmem:[%s1 + $0x390] sm:$0xff]
    %v138 = vld [vmem:[%s1 + $0x398] sm:$0xff]
    %v139 = vld [vmem:[%s1 + $0x3a0] sm:$0xff]
    %v140 = vld [vmem:[%s1 + $0x3a8] sm:$0xff]
    %v141 = vld [vmem:[%s1 + $0x3b0] sm:$0xff]
    %v142 = vld [vmem:[%s1 + $0x3b8] sm:$0xff]
    %v143 = vld [vmem:[%s1 + $0x3c0] sm:$0xff]
    %v144 = vld [vmem:[%s1 + $0x3c8] sm:$0xff]
    %v145 = vld [vmem:[%s1 + $0x3d0] sm:$0xff]
    %v146 = vld [vmem:[%s1 + $0x3d8] sm:$0xff]
    %v147 = vld [vmem:[%s1 + $0x3e0] sm:$0xff]
    %v148 = vld [vmem:[%s1 + $0x3e8] sm:$0xff]
    %v149 = vld [vmem:[%s1 + $0x3f0] sm:$0xff]
    %v150 = vld [vmem:[%s1 + $0x3f8] sm:$0xff]
    %v151 = vld [vmem:[%s2] sm:$0x1]
    %v153 = vlaneseq
    %v154 = vshrl.u32 %v153, 7
    %v155 = vsub.s32 0, %v154
    %v156 = vrot.slane %v151, %v155
    %v160 = vcombine.high %v21, %v21
    %v162 = vunpack.c.l.s4 1983009808
    %v163 = vunpack.c.0.s8 %v162
    %v164 = vlaneseq
    %v165 = vshrl.u32 %v164, 7
    %v166 = vsub.s32 %v163, %v165
    %v167 = vrot.slane %v21, %v166
    %v169 = vunpack.c.l.s4 1983009808
    %v170 = vunpack.c.0.s8 %v169
    %v171 = vlaneseq
    %v172 = vshrl.u32 %v171, 7
    %v173 = vsub.s32 %v170, %v172
    %v174 = vrot.slane %v160, %v173
    %v175 = vcombine.high %v167, %v167
    %v176 = vcombine.high %v174, %v174
    %v177 = vcombine.high %v22, %v22
    %v179 = vunpack.c.l.s4 1983009808
    %v180 = vunpack.c.0.s8 %v179
    %v181 = vlaneseq
    %v182 = vshrl.u32 %v181, 7
    %v183 = vsub.s32 %v180, %v182
    %v184 = vrot.slane %v22, %v183
    %v186 = vunpack.c.l.s4 1983009808
    %v187 = vunpack.c.0.s8 %v186
    %v188 = vlaneseq
    %v189 = vshrl.u32 %v188, 7
    %v190 = vsub.s32 %v187, %v189
    %v191 = vrot.slane %v177, %v190
    %v192 = vcombine.high %v184, %v184
    %v193 = vcombine.high %v191, %v191
    %202 = vmatprep.subr.mxu0 0.0
    %203 = vmatpush1.msra.mxu0 %v38
    %204 = vmatprep.subr.mxu0 0.0
    %205 = vmatpush1.msra.mxu0 %v37
    %206 = vmatprep.subr.mxu0 0.0
    %207 = vmatpush1.msra.mxu0 %v36
    %208 = vmatprep.subr.mxu0 0.0
    %209 = vmatpush1.msra.mxu0 %v35
    %210 = vmatprep.subr.mxu0 0.0
    %211 = vmatpush1.msra.mxu0 %v34
    %212 = vmatprep.subr.mxu0 0.0
    %213 = vmatpush1.msra.mxu0 %v33
    %214 = vmatprep.subr.mxu0 0.0
    %215 = vmatpush1.msra.mxu0 %v32
    %216 = vmatprep.subr.mxu0 0.0
    %217 = vmatpush1.msra.mxu0 %v31
    %218 = vmatprep.subr.mxu0 0.0
    %219 = vmatpush1.msra.mxu0 %v30
    %220 = vmatprep.subr.mxu0 0.0
    %221 = vmatpush1.msra.mxu0 %v29
    %222 = vmatprep.subr.mxu0 0.0
    %223 = vmatpush1.msra.mxu0 %v28
    %224 = vmatprep.subr.mxu0 0.0
    %225 = vmatpush1.msra.mxu0 %v27
    %226 = vmatprep.subr.mxu0 0.0
    %227 = vmatpush1.msra.mxu0 %v26
    %228 = vmatprep.subr.mxu0 0.0
    %229 = vmatpush1.msra.mxu0 %v25
    %230 = vmatprep.subr.mxu0 0.0
    %231 = vmatpush1.msra.mxu0 %v24
    %232 = vmatprep.subr.mxu0 0.0
    %233 = vmatpush1.msra.mxu0 %v23
    %234 = vmatprep.subr.mxu0 0.0
    %235 = vmatpush2.msra.mxu0 %v54
    %236 = vmatprep.subr.mxu0 0.0
    %237 = vmatpush2.msra.mxu0 %v53
    %238 = vmatprep.subr.mxu0 0.0
    %239 = vmatpush2.msra.mxu0 %v52
    %240 = vmatprep.subr.mxu0 0.0
    %241 = vmatpush2.msra.mxu0 %v51
    %242 = vmatprep.subr.mxu0 0.0
    %243 = vmatpush2.msra.mxu0 %v50
    %244 = vmatprep.subr.mxu0 0.0
    %245 = vmatpush2.msra.mxu0 %v49
    %246 = vmatprep.subr.mxu0 0.0
    %247 = vmatpush2.msra.mxu0 %v48
    %248 = vmatprep.subr.mxu0 0.0
    %249 = vmatpush2.msra.mxu0 %v47
    %250 = vmatprep.subr.mxu0 0.0
    %251 = vmatpush2.msra.mxu0 %v46
    %252 = vmatprep.subr.mxu0 0.0
    %253 = vmatpush2.msra.mxu0 %v45
    %254 = vmatprep.subr.mxu0 0.0
    %255 = vmatpush2.msra.mxu0 %v44
    %256 = vmatprep.subr.mxu0 0.0
    %257 = vmatpush2.msra.mxu0 %v43
    %258 = vmatprep.subr.mxu0 0.0
    %259 = vmatpush2.msra.mxu0 %v42
    %260 = vmatprep.subr.mxu0 0.0
    %261 = vmatpush2.msra.mxu0 %v41
    %262 = vmatprep.subr.mxu0 0.0
    %263 = vmatpush2.msra.mxu0 %v40
    %264 = vmatprep.subr.mxu0 0.0
    %265 = vmatpush2.msra.mxu0 %v39
    %266 = vmatprep.mubr.f32.mxu0 %v175
    %267 = vmatmul.mubr.f32.gmra.mxu0 %v167
    %v268 = vpop.f32.mrf.mxu0
    %v269 = vadd.f32 %v156, %v268
    %v270 = vpop.f32.mrf.mxu0
    %271 = vdwg.mxu0
    %272 = vmatprep.subr.mxu0 0.0
    %273 = vmatpush1.msra.mxu0 %v70
    %274 = vmatprep.subr.mxu0 0.0
    %275 = vmatpush1.msra.mxu0 %v69
    %276 = vmatprep.subr.mxu0 0.0
    %277 = vmatpush1.msra.mxu0 %v68
    %278 = vmatprep.subr.mxu0 0.0
    %279 = vmatpush1.msra.mxu0 %v67
    %280 = vmatprep.subr.mxu0 0.0
    %281 = vmatpush1.msra.mxu0 %v66
    %282 = vmatprep.subr.mxu0 0.0
    %283 = vmatpush1.msra.mxu0 %v65
    %284 = vmatprep.subr.mxu0 0.0
    %285 = vmatpush1.msra.mxu0 %v64
    %286 = vmatprep.subr.mxu0 0.0
    %287 = vmatpush1.msra.mxu0 %v63
    %288 = vmatprep.subr.mxu0 0.0
    %289 = vmatpush1.msra.mxu0 %v62
    %290 = vmatprep.subr.mxu0 0.0
    %291 = vmatpush1.msra.mxu0 %v61
    %292 = vmatprep.subr.mxu0 0.0
    %293 = vmatpush1.msra.mxu0 %v60
    %294 = vmatprep.subr.mxu0 0.0
    %295 = vmatpush1.msra.mxu0 %v59
    %296 = vmatprep.subr.mxu0 0.0
    %297 = vmatpush1.msra.mxu0 %v58
    %298 = vmatprep.subr.mxu0 0.0
    %299 = vmatpush1.msra.mxu0 %v57
    %300 = vmatprep.subr.mxu0 0.0
    %301 = vmatpush1.msra.mxu0 %v56
    %302 = vmatprep.subr.mxu0 0.0
    %303 = vmatpush1.msra.mxu0 %v55
    %304 = vmatprep.subr.mxu0 0.0
    %305 = vmatpush2.msra.mxu0 %v86
    %306 = vmatprep.subr.mxu0 0.0
    %307 = vmatpush2.msra.mxu0 %v85
    %308 = vmatprep.subr.mxu0 0.0
    %309 = vmatpush2.msra.mxu0 %v84
    %310 = vmatprep.subr.mxu0 0.0
    %311 = vmatpush2.msra.mxu0 %v83
    %312 = vmatprep.subr.mxu0 0.0
    %313 = vmatpush2.msra.mxu0 %v82
    %314 = vmatprep.subr.mxu0 0.0
    %315 = vmatpush2.msra.mxu0 %v81
    %316 = vmatprep.subr.mxu0 0.0
    %317 = vmatpush2.msra.mxu0 %v80
    %318 = vmatprep.subr.mxu0 0.0
    %319 = vmatpush2.msra.mxu0 %v79
    %320 = vmatprep.subr.mxu0 0.0
    %321 = vmatpush2.msra.mxu0 %v78
    %322 = vmatprep.subr.mxu0 0.0
    %323 = vmatpush2.msra.mxu0 %v77
    %324 = vmatprep.subr.mxu0 0.0
    %325 = vmatpush2.msra.mxu0 %v76
    %326 = vmatprep.subr.mxu0 0.0
    %327 = vmatpush2.msra.mxu0 %v75
    %328 = vmatprep.subr.mxu0 0.0
    %329 = vmatpush2.msra.mxu0 %v74
    %330 = vmatprep.subr.mxu0 0.0
    %331 = vmatpush2.msra.mxu0 %v73
    %332 = vmatprep.subr.mxu0 0.0
    %333 = vmatpush2.msra.mxu0 %v72
    %334 = vmatprep.subr.mxu0 0.0
    %335 = vmatpush2.msra.mxu0 %v71
    %336 = vmatprep.mubr.f32.mxu0 %v176
    %337 = vmatmul.mubr.f32.gmra.mxu0 %v174
    %v338 = vpop.f32.mrf.mxu0
    %v339 = vadd.f32 %v269, %v338
    %v340 = vpop.f32.mrf.mxu0
    %341 = vdwg.mxu0
    %342 = vmatprep.subr.mxu0 0.0
    %343 = vmatpush1.msra.mxu0 %v102
    %344 = vmatprep.subr.mxu0 0.0
    %345 = vmatpush1.msra.mxu0 %v101
    %346 = vmatprep.subr.mxu0 0.0
    %347 = vmatpush1.msra.mxu0 %v100
    %348 = vmatprep.subr.mxu0 0.0
    %349 = vmatpush1.msra.mxu0 %v99
    %350 = vmatprep.subr.mxu0 0.0
    %351 = vmatpush1.msra.mxu0 %v98
    %352 = vmatprep.subr.mxu0 0.0
    %353 = vmatpush1.msra.mxu0 %v97
    %354 = vmatprep.subr.mxu0 0.0
    %355 = vmatpush1.msra.mxu0 %v96
    %356 = vmatprep.subr.mxu0 0.0
    %357 = vmatpush1.msra.mxu0 %v95
    %358 = vmatprep.subr.mxu0 0.0
    %359 = vmatpush1.msra.mxu0 %v94
    %360 = vmatprep.subr.mxu0 0.0
    %361 = vmatpush1.msra.mxu0 %v93
    %362 = vmatprep.subr.mxu0 0.0
    %363 = vmatpush1.msra.mxu0 %v92
    %364 = vmatprep.subr.mxu0 0.0
    %365 = vmatpush1.msra.mxu0 %v91
    %366 = vmatprep.subr.mxu0 0.0
    %367 = vmatpush1.msra.mxu0 %v90
    %368 = vmatprep.subr.mxu0 0.0
    %369 = vmatpush1.msra.mxu0 %v89
    %370 = vmatprep.subr.mxu0 0.0
    %371 = vmatpush1.msra.mxu0 %v88
    %372 = vmatprep.subr.mxu0 0.0
    %373 = vmatpush1.msra.mxu0 %v87
    %374 = vmatprep.subr.mxu0 0.0
    %375 = vmatpush2.msra.mxu0 %v118
    %376 = vmatprep.subr.mxu0 0.0
    %377 = vmatpush2.msra.mxu0 %v117
    %378 = vmatprep.subr.mxu0 0.0
    %379 = vmatpush2.msra.mxu0 %v116
    %380 = vmatprep.subr.mxu0 0.0
    %381 = vmatpush2.msra.mxu0 %v115
    %382 = vmatprep.subr.mxu0 0.0
    %383 = vmatpush2.msra.mxu0 %v114
    %384 = vmatprep.subr.mxu0 0.0
    %385 = vmatpush2.msra.mxu0 %v113
    %386 = vmatprep.subr.mxu0 0.0
    %387 = vmatpush2.msra.mxu0 %v112
    %388 = vmatprep.subr.mxu0 0.0
    %389 = vmatpush2.msra.mxu0 %v111
    %390 = vmatprep.subr.mxu0 0.0
    %391 = vmatpush2.msra.mxu0 %v110
    %392 = vmatprep.subr.mxu0 0.0
    %393 = vmatpush2.msra.mxu0 %v109
    %394 = vmatprep.subr.mxu0 0.0
    %395 = vmatpush2.msra.mxu0 %v108
    %396 = vmatprep.subr.mxu0 0.0
    %397 = vmatpush2.msra.mxu0 %v107
    %398 = vmatprep.subr.mxu0 0.0
    %399 = vmatpush2.msra.mxu0 %v106
    %400 = vmatprep.subr.mxu0 0.0
    %401 = vmatpush2.msra.mxu0 %v105
    %402 = vmatprep.subr.mxu0 0.0
    %403 = vmatpush2.msra.mxu0 %v104
    %404 = vmatprep.subr.mxu0 0.0
    %405 = vmatpush2.msra.mxu0 %v103
    %406 = vmatprep.mubr.f32.mxu0 %v192
    %407 = vmatmul.mubr.f32.gmra.mxu0 %v184
    %v408 = vpop.f32.mrf.mxu0
    %v409 = vadd.f32 %v339, %v408
    %v410 = vpop.f32.mrf.mxu0
    %411 = vdwg.mxu0
    %412 = vmatprep.subr.mxu0 0.0
    %413 = vmatpush1.msra.mxu0 %v134
    %414 = vmatprep.subr.mxu0 0.0
    %415 = vmatpush1.msra.mxu0 %v133
    %416 = vmatprep.subr.mxu0 0.0
    %417 = vmatpush1.msra.mxu0 %v132
    %418 = vmatprep.subr.mxu0 0.0
    %419 = vmatpush1.msra.mxu0 %v131
    %420 = vmatprep.subr.mxu0 0.0
    %421 = vmatpush1.msra.mxu0 %v130
    %422 = vmatprep.subr.mxu0 0.0
    %423 = vmatpush1.msra.mxu0 %v129
    %424 = vmatprep.subr.mxu0 0.0
    %425 = vmatpush1.msra.mxu0 %v128
    %426 = vmatprep.subr.mxu0 0.0
    %427 = vmatpush1.msra.mxu0 %v127
    %428 = vmatprep.subr.mxu0 0.0
    %429 = vmatpush1.msra.mxu0 %v126
    %430 = vmatprep.subr.mxu0 0.0
    %431 = vmatpush1.msra.mxu0 %v125
    %432 = vmatprep.subr.mxu0 0.0
    %433 = vmatpush1.msra.mxu0 %v124
    %434 = vmatprep.subr.mxu0 0.0
    %435 = vmatpush1.msra.mxu0 %v123
    %436 = vmatprep.subr.mxu0 0.0
    %437 = vmatpush1.msra.mxu0 %v122
    %438 = vmatprep.subr.mxu0 0.0
    %439 = vmatpush1.msra.mxu0 %v121
    %440 = vmatprep.subr.mxu0 0.0
    %441 = vmatpush1.msra.mxu0 %v120
    %442 = vmatprep.subr.mxu0 0.0
    %443 = vmatpush1.msra.mxu0 %v119
    %444 = vmatprep.subr.mxu0 0.0
    %445 = vmatpush2.msra.mxu0 %v150
    %446 = vmatprep.subr.mxu0 0.0
    %447 = vmatpush2.msra.mxu0 %v149
    %448 = vmatprep.subr.mxu0 0.0
    %449 = vmatpush2.msra.mxu0 %v148
    %450 = vmatprep.subr.mxu0 0.0
    %451 = vmatpush2.msra.mxu0 %v147
    %452 = vmatprep.subr.mxu0 0.0
    %453 = vmatpush2.msra.mxu0 %v146
    %454 = vmatprep.subr.mxu0 0.0
    %455 = vmatpush2.msra.mxu0 %v145
    %456 = vmatprep.subr.mxu0 0.0
    %457 = vmatpush2.msra.mxu0 %v144
    %458 = vmatprep.subr.mxu0 0.0
    %459 = vmatpush2.msra.mxu0 %v143
    %460 = vmatprep.subr.mxu0 0.0
    %461 = vmatpush2.msra.mxu0 %v142
    %462 = vmatprep.subr.mxu0 0.0
    %463 = vmatpush2.msra.mxu0 %v141
    %464 = vmatprep.subr.mxu0 0.0
    %465 = vmatpush2.msra.mxu0 %v140
    %466 = vmatprep.subr.mxu0 0.0
    %467 = vmatpush2.msra.mxu0 %v139
    %468 = vmatprep.subr.mxu0 0.0
    %469 = vmatpush2.msra.mxu0 %v138
    %470 = vmatprep.subr.mxu0 0.0
    %471 = vmatpush2.msra.mxu0 %v137
    %472 = vmatprep.subr.mxu0 0.0
    %473 = vmatpush2.msra.mxu0 %v136
    %474 = vmatprep.subr.mxu0 0.0
    %475 = vmatpush2.msra.mxu0 %v135
    %476 = vmatprep.mubr.f32.mxu0 %v193
    %477 = vmatmul.mubr.f32.gmra.mxu0 %v191
    %v478 = vpop.f32.mrf.mxu0
    %v479 = vadd.f32 %v409, %v478
    %v480 = vpop.f32.mrf.mxu0
    %481 = vdwg.mxu0
    %vm482 = vcmask 1041408
    %v483 = vsel %vm482, %v479, -inf
    %484 = vmax.xlane.f32.xlu0 %v483
    %v485 = vpop.xlane.xlu0 %484
    %v486 = vsub.f32 %v479, %v485
    %v487 = vmul.f32 %v486, 1.442695
    %v488 = vpow.pop %v487
    %v489 = vsel %vm482, %v488, 0.0
    %490 = vadd.xlane.f32.xlu0 %v489
    %v491 = vpop.xlane.xlu0 %490
    %v492 = vrcp.pop %v491
    %v493 = vmul.f32 %v488, %v492
    %494 = vst [vmem:[#allocation4] sm:$0x3] %v493
    %v495 = vld [vmem:[%s3] sm:$0x3]
    %v496 = vadd.f32 %v479, %v495
    %v497 = vrcp.pop 0.5
    %v498 = vmul.f32 %v496, %v497
    %v499 = vsel %vm482, %v498, -inf
    %500 = vmax.xlane.f32.xlu0 %v499
    %v501 = vpop.xlane.xlu0 %500
    %v502 = vsub.f32 %v498, %v501
    %v503 = vmul.f32 %v502, 1.442695
    %v504 = vpow.pop %v503
    %v505 = vsel %vm482, %v504, 0.0
    %506 = vadd.xlane.f32.xlu0 %v505
    %v507 = vpop.xlane.xlu0 %506
    %v508 = vrcp.pop %v507
    %v509 = vmul.f32 %v504, %v508
    %510 = vst [vmem:[#allocation2] sm:$0x3] %v509
    // Predicated region
    $region18: #{qy_x_forward.5} parent=1 // pred_check
      _
    $region19: #{qy_x_forward.5} parent=1 // pred_check_branch
      %512 = sbr.rel (0) target = $region21
    $region20: #{qy_x_forward.5} parent=1 // pred_region
      %s514 = ssub.s32 32, 32
      %515 = vsyncadd [#allocation3], %s514
      %s517 = sshll.u32 [#allocation2], 4
      %s518 = int_to_ptr.vmem [resolvable:$true] %s517
      %520 = dma.vmem_to_hbm [thread:$0]  %s518, 32, %s4, [#allocation3]
    $region21: #{qy_x_forward.5} parent=1 // pred_fallthru
      _
    // Predicated region
    $region22: #{qy_x_forward.5} parent=1 // pred_check
      _
    $region23: #{qy_x_forward.5} parent=1 // pred_check_branch
      %522 = sbr.rel (0) target = $region25
    $region24: #{qy_x_forward.5} parent=1 // pred_region
      %s524 = ssub.s32 32, 32
      %525 = vsyncadd [#allocation5], %s524
      %s527 = sshll.u32 [#allocation4], 4
      %s528 = int_to_ptr.vmem [resolvable:$true] %s527
      %530 = dma.vmem_to_hbm [thread:$0]  %s528, 32, %s5, [#allocation5]
    $region25: #{qy_x_forward.5} parent=1 // pred_fallthru
      _
    // Predicated region
    $region26: #{qy_x_forward.5} parent=1 // pred_check
      _
    $region27: #{qy_x_forward.5} parent=1 // pred_check_branch
      %532 = sbr.rel (0) target = $region29
    $region28: #{qy_x_forward.5} parent=1 // pred_region
      %533 = dma.done [#allocation3], 32
    $region29: #{qy_x_forward.5} parent=1 // pred_fallthru
      _
    // Predicated region
    $region30: #{qy_x_forward.5} parent=1 // pred_check
      _
    $region31: #{qy_x_forward.5} parent=1 // pred_check_branch
      %535 = sbr.rel (0) target = $region33
    $region32: #{qy_x_forward.5} parent=1 // pred_region
      %536 = dma.done [#allocation5], 32
    $region33: #{qy_x_forward.5} parent=1 // pred_fallthru
      _
    %537 = vsyncpa [#allocation3], 1
    %538 = vsyncpa [#allocation5], 1

// kernel: qy_x_forward.4
$region0: #{qy_x_forward.4}
  #allocation0 [shape = 'u32[]', space=smem, size = 0x4, offset = 0x4, fixed_abs, tag = 'smem constant byte address 0x4 - core index']
  #allocation1 [shape = 'u32[144,128]{1,0:T(1,128)}', space=vmem, size = 0x12000, scoped, tag = 'internal scratch']
  #allocation2 [shape = 'f32[2,512]{1,0:T(2,128)}', space=vmem, size = 0x1000, scoped, tag = 'scratch operand']
  %s0 = inlined_call_operand.vmem [shape: bf16[2,6272], index: 0, kind: input, shape index: {}]
  %s1 = inlined_call_operand.hbm [shape: bf16[6272,1024], index: 1, kind: input, shape index: {}]
  %s2 = inlined_call_operand.hbm [shape: f32[1,1024], index: 2, kind: input, shape index: {}]
  %s3 = inlined_call_operand.hbm [shape: f32[1,1024], index: 3, kind: input, shape index: {}]
  %s4 = inlined_call_operand.hbm [shape: f32[1,1024], index: 4, kind: input, shape index: {}]
  %s5 = inlined_call_operand.vmem [shape: f32[2,1024], index: 5, kind: output, shape index: {}]
  %s6 = sld [smem:[#allocation0]]
  $region77: #{qy_x_forward.4} parent=0
    _
  %s8 = ssub.s32 1, %s6
  %s9 = scalar_select 0, %s8, %s6
  $region1: #{qy_x_forward.4} parent=0
    #allocation3 [shape = 'u8[1835008]{0}', space=vmem, size = 0x1c0000, scoped, tag = 'input window, operand 1']
    #allocation4 [shape = 's32[2]{0}', space=sflag, size = 0x8, scoped, tag = 'scoped memory for qy_x_forward.4']
    #allocation5 [shape = 'u8[4096]{0}', space=vmem, size = 0x1000, scoped, tag = 'input window, operand 2']
    #allocation6 [shape = 's32[2]{0}', space=sflag, size = 0x8, scoped, tag = 'scoped memory for qy_x_forward.4']
    #allocation7 [shape = 'u8[4096]{0}', space=vmem, size = 0x1000, scoped, tag = 'input window, operand 3']
    #allocation8 [shape = 'u8[4096]{0}', space=vmem, size = 0x1000, scoped, tag = 'input window, operand 4']
    #allocation9 [shape = 's32[2]{0}', space=sflag, size = 0x8, scoped, tag = 'scoped memory for qy_x_forward.4']
    %10 = vsyncpa [#allocation4], 0
    %s11 = scalar_lea.sflag [#allocation4], 1
    %12 = vsyncpa %s11, 0
    %13 = vsyncpa [#allocation6], 0
    %s14 = scalar_lea.sflag [#allocation6], 1
    %15 = vsyncpa %s14, 0
    %16 = vsyncpa [#allocation9], 0
    %s17 = scalar_lea.sflag [#allocation9], 1
    %18 = vsyncpa %s17, 0
    loop: start=0, step=1, limit=16
    $region2: #{qy_x_forward.4} parent=1 // loop_pre_header
      _
    $region3: #{qy_x_forward.4} parent=1 // loop_header
      %s20 = sphi 0, %s24
      %p21 = scmp.ge.s32.totalorder %s20, 16
      %s27 = sphi 0, %s39
      %s28 = sphi 0, %s35
      %s29 = sphi 0, %s27
      %s30 = sphi 0, %s28
      %s31 = sphi 0, %s29
      %s32 = sphi 0, %s30
      %s42 = sphi 0, %s44
      %s45 = sphi 0, %s42
      %s46 = sphi 0, %s45
      %s62 = sphi 0, %s46
      %s70 = sphi 0, %s72
      %s73 = sphi 0, %s70
      %s74 = sphi 0, %s73
      %s90 = sphi 0, %s74
      %s96 = sphi 0, %s98
      %s99 = sphi 0, %s96
      %s100 = sphi 0, %s99
      %s116 = sphi 0, %s100
      %s122 = sphi 0, %s124
      %s125 = sphi 0, %s122
      %s126 = sphi 0, %s125
      %s142 = sphi 0, %s126
      %s148 = sphi 0, %s150
      %s151 = sphi 0, %s148
      %s152 = sphi 0, %s151
      %s168 = sphi 0, %s152
      %s174 = sphi 0, %s176
      %s177 = sphi 0, %s174
      %s178 = sphi 0, %s177
      %s194 = sphi 0, %s178
    $region4: #{qy_x_forward.4} parent=1 // loop_header_branch
      %23 = sbr.rel (%p21) target = $region8
    $region5: #{qy_x_forward.4} parent=1 // loop_body
      %s25 = ssub.s32 %s20, 1
      %s26 = ssub.s32 %s20, 2
      %s33 = sadd.s32 1, %s28
      %p34 = scmp.ge.s32.totalorder %s33, 7
      %s35 = scalar_select %p34, 0, %s33
      %s36 = sadd.s32 1, %s27
      %s37 = scalar_select %p34, %s36, %s27
      %p38 = scmp.ge.s32.totalorder %s37, 2
      %s39 = scalar_select %p38, 0, %s37
      %s40 = ssub.s32 %s28, %s35
      %p41 = scmp.eq.s32.totalorder %s40, 0
      %s43 = sadd.s32 %s42, 1
      %s44 = scalar_select %p41, %s42, %s43
      %p47 = pneg %p41
      %p48 = scmp.eq.s32.totalorder %s20, 13
      %p49 = por %p47, %p48
      %p50 = scmp.ne.s32.totalorder %s42, %s45
      %p51 = scmp.eq.s32.totalorder %s20, 0
      %p52 = por %p50, %p51
      %p53 = scmp.ne.s32.totalorder %s42, %s45
      %p54 = scmp.eq.s32.totalorder %s25, 13
      %p55 = por %p53, %p54
      %p56 = scmp.ne.s32.totalorder %s45, %s46
      %p57 = scmp.eq.s32.totalorder %s25, 0
      %p58 = por %p56, %p57
      %p59 = scmp.ne.s32.totalorder %s45, %s46
      %p60 = scmp.eq.s32.totalorder %s26, 13
      %p61 = por %p59, %p60
      %p63 = scmp.ne.s32.totalorder %s46, %s62
      %p64 = scmp.eq.s32.totalorder %s26, 0
      %p65 = por %p63, %p64
      %s66 = ssub.s32 %s28, %s35
      %s67 = ssub.s32 %s27, %s39
      %s68 = sor.u32 %s66, %s67
      %p69 = scmp.eq.s32.totalorder %s68, 0
      %s71 = sadd.s32 %s70, 1
      %s72 = scalar_select %p69, %s70, %s71
      %p75 = pneg %p69
      %p76 = scmp.eq.s32.totalorder %s20, 13
      %p77 = por %p75, %p76
      %p78 = scmp.ne.s32.totalorder %s70, %s73
      %p79 = scmp.eq.s32.totalorder %s20, 0
      %p80 = por %p78, %p79
      %p81 = scmp.ne.s32.totalorder %s70, %s73
      %p82 = scmp.eq.s32.totalorder %s25, 13
      %p83 = por %p81, %p82
      %p84 = scmp.ne.s32.totalorder %s73, %s74
      %p85 = scmp.eq.s32.totalorder %s25, 0
      %p86 = por %p84, %p85
      %p87 = scmp.ne.s32.totalorder %s73, %s74
      %p88 = scmp.eq.s32.totalorder %s26, 13
      %p89 = por %p87, %p88
      %p91 = scmp.ne.s32.totalorder %s74, %s90
      %p92 = scmp.eq.s32.totalorder %s26, 0
      %p93 = por %p91, %p92
      %s94 = ssub.s32 %s27, %s39
      %p95 = scmp.eq.s32.totalorder %s94, 0
      %s97 = sadd.s32 %s96, 1
      %s98 = scalar_select %p95, %s96, %s97
      %p101 = pneg %p95
      %p102 = scmp.eq.s32.totalorder %s20, 13
      %p103 = por %p101, %p102
      %p104 = scmp.ne.s32.totalorder %s96, %s99
      %p105 = scmp.eq.s32.totalorder %s20, 0
      %p106 = por %p104, %p105
      %p107 = scmp.ne.s32.totalorder %s96, %s99
      %p108 = scmp.eq.s32.totalorder %s25, 13
      %p109 = por %p107, %p108
      %p110 = scmp.ne.s32.totalorder %s99, %s100
      %p111 = scmp.eq.s32.totalorder %s25, 0
      %p112 = por %p110, %p111
      %p113 = scmp.ne.s32.totalorder %s99, %s100
      %p114 = scmp.eq.s32.totalorder %s26, 13
      %p115 = por %p113, %p114
      %p117 = scmp.ne.s32.totalorder %s100, %s116
      %p118 = scmp.eq.s32.totalorder %s26, 0
      %p119 = por %p117, %p118
      %s120 = ssub.s32 %s27, %s39
      %p121 = scmp.eq.s32.totalorder %s120, 0
      %s123 = sadd.s32 %s122, 1
      %s124 = scalar_select %p121, %s122, %s123
      %p127 = pneg %p121
      %p128 = scmp.eq.s32.totalorder %s20, 13
      %p129 = por %p127, %p128
      %p130 = scmp.ne.s32.totalorder %s122, %s125
      %p131 = scmp.eq.s32.totalorder %s20, 0
      %p132 = por %p130, %p131
      %p133 = scmp.ne.s32.totalorder %s122, %s125
      %p134 = scmp.eq.s32.totalorder %s25, 13
      %p135 = por %p133, %p134
      %p136 = scmp.ne.s32.totalorder %s125, %s126
      %p137 = scmp.eq.s32.totalorder %s25, 0
      %p138 = por %p136, %p137
      %p139 = scmp.ne.s32.totalorder %s125, %s126
      %p140 = scmp.eq.s32.totalorder %s26, 13
      %p141 = por %p139, %p140
      %p143 = scmp.ne.s32.totalorder %s126, %s142
      %p144 = scmp.eq.s32.totalorder %s26, 0
      %p145 = por %p143, %p144
      %s146 = ssub.s32 %s27, %s39
      %p147 = scmp.eq.s32.totalorder %s146, 0
      %s149 = sadd.s32 %s148, 1
      %s150 = scalar_select %p147, %s148, %s149
      %p153 = pneg %p147
      %p154 = scmp.eq.s32.totalorder %s20, 13
      %p155 = por %p153, %p154
      %p156 = scmp.ne.s32.totalorder %s148, %s151
      %p157 = scmp.eq.s32.totalorder %s20, 0
      %p158 = por %p156, %p157
      %p159 = scmp.ne.s32.totalorder %s148, %s151
      %p160 = scmp.eq.s32.totalorder %s25, 13
      %p161 = por %p159, %p160
      %p162 = scmp.ne.s32.totalorder %s151, %s152
      %p163 = scmp.eq.s32.totalorder %s25, 0
      %p164 = por %p162, %p163
      %p165 = scmp.ne.s32.totalorder %s151, %s152
      %p166 = scmp.eq.s32.totalorder %s26, 13
      %p167 = por %p165, %p166
      %p169 = scmp.ne.s32.totalorder %s152, %s168
      %p170 = scmp.eq.s32.totalorder %s26, 0
      %p171 = por %p169, %p170
      %s172 = ssub.s32 %s27, %s39
      %p173 = scmp.eq.s32.totalorder %s172, 0
      %s175 = sadd.s32 %s174, 1
      %s176 = scalar_select %p173, %s174, %s175
      %p179 = pneg %p173
      %p180 = scmp.eq.s32.totalorder %s20, 13
      %p181 = por %p179, %p180
      %p182 = scmp.ne.s32.totalorder %s174, %s177
      %p183 = scmp.eq.s32.totalorder %s20, 0
      %p184 = por %p182, %p183
      %p185 = scmp.ne.s32.totalorder %s174, %s177
      %p186 = scmp.eq.s32.totalorder %s25, 13
      %p187 = por %p185, %p186
      %p188 = scmp.ne.s32.totalorder %s177, %s178
      %p189 = scmp.eq.s32.totalorder %s25, 0
      %p190 = por %p188, %p189
      %p191 = scmp.ne.s32.totalorder %s177, %s178
      %p192 = scmp.eq.s32.totalorder %s26, 13
      %p193 = por %p191, %p192
      %p195 = scmp.ne.s32.totalorder %s178, %s194
      %p196 = scmp.eq.s32.totalorder %s26, 0
      %p197 = por %p195, %p196
      %p198 = scmp.le.s32.totalorder 1, %s20
      %p199 = scmp.lt.s32.totalorder %s20, 15
      %p200 = pnand %p198, %p199
      %p201 = pneg %p200
      // Predicated region
      $region9: #{qy_x_forward.4} parent=5 // pred_check
        _
      $region10: #{qy_x_forward.4} parent=5 // pred_check_branch
        %203 = sbr.rel (%p200) target = $region12
      $region11: #{qy_x_forward.4} parent=5 // pred_region
        %s204 = ssub.s32 %s20, 1
      $region12: #{qy_x_forward.4} parent=5 // pred_fallthru
        _
      %p205 = scmp.lt.s32.totalorder %s20, 14
      // Predicated region
      $region13: #{qy_x_forward.4} parent=5 // pred_check
        %p206 = pneg %p205
      $region14: #{qy_x_forward.4} parent=5 // pred_check_branch
        %208 = sbr.rel (%p206) target = $region16
      $region15: #{qy_x_forward.4} parent=5 // pred_region
        // Predicated region
        $region17: #{qy_x_forward.4} parent=15 // pred_check
          %p209 = pneg %p52
        $region18: #{qy_x_forward.4} parent=15 // pred_check_branch
          %211 = sbr.rel (%p209) target = $region20
        $region19: #{qy_x_forward.4} parent=15 // pred_region
          %s212 = smul.u32 7, %s28
          %p213 = scmp.lt.s32.totalorder %s212, 48
          %s214 = scalar_select %p213, %s212, 48
          %s215 = scalar_lea.vmem %s0, %s214
          %s216 = smul.u32 7, %s28
        $region20: #{qy_x_forward.4} parent=15 // pred_fallthru
          _
        // Predicated region
        $region21: #{qy_x_forward.4} parent=15 // pred_check
          %p217 = pneg %p80
        $region22: #{qy_x_forward.4} parent=15 // pred_check_branch
          %219 = sbr.rel (%p217) target = $region24
        $region23: #{qy_x_forward.4} parent=15 // pred_region
          %s220 = sand.u32 %s70, 1
          %s221 = scalar_lea.sflag [#allocation4], %s220
          %s222 = sand.u32 %s70, 1
          %s223 = smul.addr %s222, 1792
          %s224 = scalar_lea.vmem [#allocation3], %s223
          %s225 = smul.u32 112, %s28
          %s226 = smul.u32 4, %s27
          %s228 = ssub.s32 28672, 28672
          %229 = vsyncadd %s221, %s228
          %s230 = smul.addr %s225, 8
          %s231 = sadd.s32 %s226, %s230
          %s232 = smul.addr %s231, 64
          %s233 = scalar_lea.hbm %s1, %s232
          %s234 = sshll.u32 %s224, 4
          %s235 = int_to_ptr.vmem [resolvable:$true] %s234
          %240 = dma.hbm_to_vmem [thread:$0]  %s233, 28672, %s235, %s221, 512, 256, 16
        $region24: #{qy_x_forward.4} parent=15 // pred_fallthru
          _
        // Predicated region
        $region25: #{qy_x_forward.4} parent=15 // pred_check
          %p241 = pneg %p106
        $region26: #{qy_x_forward.4} parent=15 // pred_check_branch
          %243 = sbr.rel (%p241) target = $region28
        $region27: #{qy_x_forward.4} parent=15 // pred_region
          %s244 = sand.u32 %s20, 1
          %s245 = scalar_lea.sflag [#allocation6], %s244
          %s246 = sand.u32 %s96, 1
          %s247 = smul.addr %s246, 4
          %s248 = scalar_lea.vmem [#allocation5], %s247
          %s249 = smul.u32 4, %s27
          %s251 = ssub.s32 64, 64
          %252 = vsyncadd %s245, %s251
          %s253 = smul.addr %s249, 16
          %s254 = scalar_lea.hbm %s2, %s253
          %s256 = sshll.u32 %s248, 4
          %s257 = int_to_ptr.vmem [resolvable:$true] %s256
          %259 = dma.hbm_to_vmem [thread:$0]  %s254, 64, %s257, %s245
        $region28: #{qy_x_forward.4} parent=15 // pred_fallthru
          _
        // Predicated region
        $region29: #{qy_x_forward.4} parent=15 // pred_check
          %p260 = pneg %p132
        $region30: #{qy_x_forward.4} parent=15 // pred_check_branch
          %262 = sbr.rel (%p260) target = $region32
        $region31: #{qy_x_forward.4} parent=15 // pred_region
          %s263 = sand.u32 %s20, 1
          %s264 = scalar_lea.sflag [#allocation6], %s263
          %s265 = sand.u32 %s122, 1
          %s266 = smul.addr %s265, 4
          %s267 = scalar_lea.vmem [#allocation7], %s266
          %s268 = smul.u32 4, %s27
          %s270 = ssub.s32 64, 64
          %271 = vsyncadd %s264, %s270
          %s272 = smul.addr %s268, 16
          %s273 = scalar_lea.hbm %s3, %s272
          %s275 = sshll.u32 %s267, 4
          %s276 = int_to_ptr.vmem [resolvable:$true] %s275
          %278 = dma.hbm_to_vmem [thread:$0]  %s273, 64, %s276, %s264
        $region32: #{qy_x_forward.4} parent=15 // pred_fallthru
          _
        // Predicated region
        $region33: #{qy_x_forward.4} parent=15 // pred_check
          %p279 = pneg %p158
        $region34: #{qy_x_forward.4} parent=15 // pred_check_branch
          %281 = sbr.rel (%p279) target = $region36
        $region35: #{qy_x_forward.4} parent=15 // pred_region
          %s282 = sand.u32 %s148, 1
          %s283 = scalar_lea.sflag [#allocation9], %s282
          %s284 = sand.u32 %s148, 1
          %s285 = smul.addr %s284, 4
          %s286 = scalar_lea.vmem [#allocation8], %s285
          %s287 = smul.u32 4, %s27
          %s289 = ssub.s32 64, 64
          %290 = vsyncadd %s283, %s289
          %s291 = smul.addr %s287, 16
          %s292 = scalar_lea.hbm %s4, %s291
          %s294 = sshll.u32 %s286, 4
          %s295 = int_to_ptr.vmem [resolvable:$true] %s294
          %297 = dma.hbm_to_vmem [thread:$0]  %s292, 64, %s295, %s283
        $region36: #{qy_x_forward.4} parent=15 // pred_fallthru
          _
      $region16: #{qy_x_forward.4} parent=5 // pred_fallthru
        _
      %p298 = scmp.le.s32.totalorder 1, %s20
      %p299 = scmp.lt.s32.totalorder %s20, 15
      %p300 = pnand %p298, %p299
      %p301 = pneg %p300
      // Predicated region
      $region37: #{qy_x_forward.4} parent=5 // pred_check
        _
      $region38: #{qy_x_forward.4} parent=5 // pred_check_branch
        %303 = sbr.rel (%p300) target = $region40
      $region39: #{qy_x_forward.4} parent=5 // pred_region
        %s304 = ssub.s32 %s20, 1
        %s305 = sand.u32 %s73, 1
        %s306 = scalar_lea.sflag [#allocation4], %s305
        %s307 = sand.u32 %s73, 1
        %s308 = smul.addr %s307, 1792
        %s309 = scalar_lea.vmem [#allocation3], %s308
        // Predicated region
        $region41: #{qy_x_forward.4} parent=39 // pred_check
          %p310 = pneg %p86
        $region42: #{qy_x_forward.4} parent=39 // pred_check_branch
          %312 = sbr.rel (%p310) target = $region44
        $region43: #{qy_x_forward.4} parent=39 // pred_region
          %313 = dma.done %s306, 28672
        $region44: #{qy_x_forward.4} parent=39 // pred_fallthru
          _
        %s314 = sand.u32 %s25, 1
        %s315 = scalar_lea.sflag [#allocation6], %s314
        %s316 = sand.u32 %s99, 1
        %s317 = smul.addr %s316, 4
        %s318 = scalar_lea.vmem [#allocation5], %s317
        // Predicated region
        $region45: #{qy_x_forward.4} parent=39 // pred_check
          %p319 = pneg %p112
        $region46: #{qy_x_forward.4} parent=39 // pred_check_branch
          %321 = sbr.rel (%p319) target = $region48
        $region47: #{qy_x_forward.4} parent=39 // pred_region
          %322 = dma.done %s315, 64
        $region48: #{qy_x_forward.4} parent=39 // pred_fallthru
          _
        %s323 = sand.u32 %s25, 1
        %s324 = scalar_lea.sflag [#allocation6], %s323
        %s325 = sand.u32 %s125, 1
        %s326 = smul.addr %s325, 4
        %s327 = scalar_lea.vmem [#allocation7], %s326
        // Predicated region
        $region49: #{qy_x_forward.4} parent=39 // pred_check
          %p328 = pneg %p138
        $region50: #{qy_x_forward.4} parent=39 // pred_check_branch
          %330 = sbr.rel (%p328) target = $region52
        $region51: #{qy_x_forward.4} parent=39 // pred_region
          %331 = dma.done %s324, 64
        $region52: #{qy_x_forward.4} parent=39 // pred_fallthru
          _
        %s332 = sand.u32 %s151, 1
        %s333 = scalar_lea.sflag [#allocation9], %s332
        %s334 = sand.u32 %s151, 1
        %s335 = smul.addr %s334, 4
        %s336 = scalar_lea.vmem [#allocation8], %s335
        // Predicated region
        $region53: #{qy_x_forward.4} parent=39 // pred_check
          %p337 = pneg %p164
        $region54: #{qy_x_forward.4} parent=39 // pred_check_branch
          %339 = sbr.rel (%p337) target = $region56
        $region55: #{qy_x_forward.4} parent=39 // pred_region
          %340 = dma.done %s333, 64
        $region56: #{qy_x_forward.4} parent=39 // pred_fallthru
          _
        %s341 = smul.u32 7, %s30
        %p342 = scmp.lt.s32.totalorder %s341, 48
        %s343 = scalar_select %p342, %s341, 48
        %s344 = scalar_lea.vmem %s0, %s343
        %p345 = pneg %p58
        %p346 = pneg %p55
        %s347 = sand.u32 %s73, 1
        %s348 = scalar_lea.sflag [#allocation4], %s347
        %s349 = sand.u32 %s73, 1
        %s350 = smul.addr %s349, 1792
        %s351 = scalar_lea.vmem [#allocation3], %s350
        %p352 = pneg %p86
        %p353 = pneg %p83
        %s354 = sand.u32 %s25, 1
        %s355 = scalar_lea.sflag [#allocation6], %s354
        %s356 = sand.u32 %s99, 1
        %s357 = smul.addr %s356, 4
        %s358 = scalar_lea.vmem [#allocation5], %s357
        %p359 = pneg %p112
        %p360 = pneg %p109
        %s361 = sand.u32 %s25, 1
        %s362 = scalar_lea.sflag [#allocation6], %s361
        %s363 = sand.u32 %s125, 1
        %s364 = smul.addr %s363, 4
        %s365 = scalar_lea.vmem [#allocation7], %s364
        %p366 = pneg %p138
        %p367 = pneg %p135
        %s368 = sand.u32 %s151, 1
        %s369 = scalar_lea.sflag [#allocation9], %s368
        %s370 = sand.u32 %s151, 1
        %s371 = smul.addr %s370, 4
        %s372 = scalar_lea.vmem [#allocation8], %s371
        %p373 = pneg %p164
        %p374 = pneg %p161
        %p375 = pneg %p190
        %p376 = pneg %p187
        %s377 = smul.u32 4, %s29
        %p378 = scmp.lt.s32.totalorder %s377, 7
        %s379 = scalar_select %p378, %s377, 7
        %s380 = smul.addr %s379, 2
        %s381 = scalar_lea.vmem %s5, %s380
        %s382 = smul.u32 7, %s30
        %p383 = scmp.lt.s32.totalorder %s382, 48
        %s384 = scalar_select %p383, %s382, 48
        %s385 = scalar_lea.vmem %s0, %s384
        %s386 = smul.u32 7, %s30
        %s387 = smul.u32 112, %s30
        %s388 = smul.u32 4, %s29
        %s389 = smul.u32 4, %s29
        %s390 = smul.u32 4, %s29
        %s391 = smul.u32 4, %s29
        %s392 = smul.u32 4, %s29
        %p393 = scmp.lt.s32.totalorder %s392, 7
        %s394 = scalar_select %p393, %s392, 7
        %s395 = smul.addr %s394, 2
        %s396 = scalar_lea.vmem %s5, %s395
        %s397 = smul.u32 4, %s29
        %p399 = scmp.eq.s32.totalorder %s30, 0
        // Predicated region
        $region57: #{qy_x_forward.4} parent=39 // pred_check
          %p400 = pneg %p399
        $region58: #{qy_x_forward.4} parent=39 // pred_check_branch
          %402 = sbr.rel (%p400) target = $region60
        $region59: #{qy_x_forward.4} parent=39 // pred_region
          %403 = vst [vmem:[#allocation2] sm:$0xff] 0.0
        $region60: #{qy_x_forward.4} parent=39 // pred_fallthru
          _
        %v404 = vld [vmem:[#allocation2] sm:$0xff]
        %v405 = vld [vmem:[%s385] sm:$0x7f]
        %v406 = vld [vmem:[%s309] sm:$0xff]
        %v407 = vld [vmem:[%s309 + $0x8] sm:$0xff]
        %v408 = vld [vmem:[%s309 + $0x10] sm:$0xff]
        %v409 = vld [vmem:[%s309 + $0x18] sm:$0xff]
        %v410 = vld [vmem:[%s309 + $0x20] sm:$0xff]
        %v411 = vld [vmem:[%s309 + $0x28] sm:$0xff]
        %v412 = vld [vmem:[%s309 + $0x30] sm:$0xff]
        %v413 = vld [vmem:[%s309 + $0x38] sm:$0xff]
        %v414 = vld [vmem:[%s309 + $0x40] sm:$0xff]
        %v415 = vld [vmem:[%s309 + $0x48] sm:$0xff]
        %v416 = vld [vmem:[%s309 + $0x50] sm:$0xff]
        %v417 = vld [vmem:[%s309 + $0x58] sm:$0xff]
        %v418 = vld [vmem:[%s309 + $0x60] sm:$0xff]
        %v419 = vld [vmem:[%s309 + $0x68] sm:$0xff]
        %v420 = vld [vmem:[%s309 + $0x70] sm:$0xff]
        %v421 = vld [vmem:[%s309 + $0x78] sm:$0xff]
        %v422 = vld [vmem:[%s309 + $0x80] sm:$0xff]
        %v423 = vld [vmem:[%s309 + $0x88] sm:$0xff]
        %v424 = vld [vmem:[%s309 + $0x90] sm:$0xff]
        %v425 = vld [vmem:[%s309 + $0x98] sm:$0xff]
        %v426 = vld [vmem:[%s309 + $0xa0] sm:$0xff]
        %v427 = vld [vmem:[%s309 + $0xa8] sm:$0xff]
        %v428 = vld [vmem:[%s309 + $0xb0] sm:$0xff]
        %v429 = vld [vmem:[%s309 + $0xb8] sm:$0xff]
        %v430 = vld [vmem:[%s309 + $0xc0] sm:$0xff]
        %v431 = vld [vmem:[%s309 + $0xc8] sm:$0xff]
        %v432 = vld [vmem:[%s309 + $0xd0] sm:$0xff]
        %v433 = vld [vmem:[%s309 + $0xd8] sm:$0xff]
        %v434 = vld [vmem:[%s309 + $0xe0] sm:$0xff]
        %v435 = vld [vmem:[%s309 + $0xe8] sm:$0xff]
        %v436 = vld [vmem:[%s309 + $0xf0] sm:$0xff]
        %v437 = vld [vmem:[%s309 + $0xf8] sm:$0xff]
        %v438 = vld [vmem:[%s309 + $0x100] sm:$0xff]
        %v439 = vld [vmem:[%s309 + $0x108] sm:$0xff]
        %v440 = vld [vmem:[%s309 + $0x110] sm:$0xff]
        %v441 = vld [vmem:[%s309 + $0x118] sm:$0xff]
        %v442 = vld [vmem:[%s309 + $0x120] sm:$0xff]
        %v443 = vld [vmem:[%s309 + $0x128] sm:$0xff]
        %v444 = vld [vmem:[%s309 + $0x130] sm:$0xff]
        %v445 = vld [vmem:[%s309 + $0x138] sm:$0xff]
        %v446 = vld [vmem:[%s309 + $0x140] sm:$0xff]
        %v447 = vld [vmem:[%s309 + $0x148] sm:$0xff]
        %v448 = vld [vmem:[%s309 + $0x150] sm:$0xff]
        %v449 = vld [vmem:[%s309 + $0x158] sm:$0xff]
        %v450 = vld [vmem:[%s309 + $0x160] sm:$0xff]
        %v451 = vld [vmem:[%s309 + $0x168] sm:$0xff]
        %v452 = vld [vmem:[%s309 + $0x170] sm:$0xff]
        %v453 = vld [vmem:[%s309 + $0x178] sm:$0xff]
        %v454 = vld [vmem:[%s309 + $0x180] sm:$0xff]
        %v455 = vld [vmem:[%s309 + $0x188] sm:$0xff]
        %v456 = vld [vmem:[%s309 + $0x190] sm:$0xff]
        %v457 = vld [vmem:[%s309 + $0x198] sm:$0xff]
        %v458 = vld [vmem:[%s309 + $0x1a0] sm:$0xff]
        %v459 = vld [vmem:[%s309 + $0x1a8] sm:$0xff]
        %v460 = vld [vmem:[%s309 + $0x1b0] sm:$0xff]
        %v461 = vld [vmem:[%s309 + $0x1b8] sm:$0xff]
        %v462 = vld [vmem:[%s309 + $0x1c0] sm:$0xff]
        %v463 = vld [vmem:[%s309 + $0x1c8] sm:$0xff]
        %v464 = vld [vmem:[%s309 + $0x1d0] sm:$0xff]
        %v465 = vld [vmem:[%s309 + $0x1d8] sm:$0xff]
        %v466 = vld [vmem:[%s309 + $0x1e0] sm:$0xff]
        %v467 = vld [vmem:[%s309 + $0x1e8] sm:$0xff]
        %v468 = vld [vmem:[%s309 + $0x1f0] sm:$0xff]
        %v469 = vld [vmem:[%s309 + $0x1f8] sm:$0xff]
        %v470 = vld [vmem:[%s309 + $0x200] sm:$0xff]
        %v471 = vld [vmem:[%s309 + $0x208] sm:$0xff]
        %v472 = vld [vmem:[%s309 + $0x210] sm:$0xff]
        %v473 = vld [vmem:[%s309 + $0x218] sm:$0xff]
        %v474 = vld [vmem:[%s309 + $0x220] sm:$0xff]
        %v475 = vld [vmem:[%s309 + $0x228] sm:$0xff]
        %v476 = vld [vmem:[%s309 + $0x230] sm:$0xff]
        %v477 = vld [vmem:[%s309 + $0x238] sm:$0xff]
        %v478 = vld [vmem:[%s309 + $0x240] sm:$0xff]
        %v479 = vld [vmem:[%s309 + $0x248] sm:$0xff]
        %v480 = vld [vmem:[%s309 + $0x250] sm:$0xff]
        %v481 = vld [vmem:[%s309 + $0x258] sm:$0xff]
        %v482 = vld [vmem:[%s309 + $0x260] sm:$0xff]
        %v483 = vld [vmem:[%s309 + $0x268] sm:$0xff]
        %v484 = vld [vmem:[%s309 + $0x270] sm:$0xff]
        %v485 = vld [vmem:[%s309 + $0x278] sm:$0xff]
        %v486 = vld [vmem:[%s309 + $0x280] sm:$0xff]
        %v487 = vld [vmem:[%s309 + $0x288] sm:$0xff]
        %v488 = vld [vmem:[%s309 + $0x290] sm:$0xff]
        %v489 = vld [vmem:[%s309 + $0x298] sm:$0xff]
        %v490 = vld [vmem:[%s309 + $0x2a0] sm:$0xff]
        %v491 = vld [vmem:[%s309 + $0x2a8] sm:$0xff]
        %v492 = vld [vmem:[%s309 + $0x2b0] sm:$0xff]
        %v493 = vld [vmem:[%s309 + $0x2b8] sm:$0xff]
        %v494 = vld [vmem:[%s309 + $0x2c0] sm:$0xff]
        %v495 = vld [vmem:[%s309 + $0x2c8] sm:$0xff]
        %v496 = vld [vmem:[%s309 + $0x2d0] sm:$0xff]
        %v497 = vld [vmem:[%s309 + $0x2d8] sm:$0xff]
        %v498 = vld [vmem:[%s309 + $0x2e0] sm:$0xff]
        %v499 = vld [vmem:[%s309 + $0x2e8] sm:$0xff]
        %v500 = vld [vmem:[%s309 + $0x2f0] sm:$0xff]
        %v501 = vld [vmem:[%s309 + $0x2f8] sm:$0xff]
        %v502 = vld [vmem:[%s309 + $0x300] sm:$0xff]
        %v503 = vld [vmem:[%s309 + $0x308] sm:$0xff]
        %v504 = vld [vmem:[%s309 + $0x310] sm:$0xff]
        %v505 = vld [vmem:[%s309 + $0x318] sm:$0xff]
        %v506 = vld [vmem:[%s309 + $0x320] sm:$0xff]
        %v507 = vld [vmem:[%s309 + $0x328] sm:$0xff]
        %v508 = vld [vmem:[%s309 + $0x330] sm:$0xff]
        %v509 = vld [vmem:[%s309 + $0x338] sm:$0xff]
        %v510 = vld [vmem:[%s309 + $0x340] sm:$0xff]
        %v511 = vld [vmem:[%s309 + $0x348] sm:$0xff]
        %v512 = vld [vmem:[%s309 + $0x350] sm:$0xff]
        %v513 = vld [vmem:[%s309 + $0x358] sm:$0xff]
        %v514 = vld [vmem:[%s309 + $0x360] sm:$0xff]
        %v515 = vld [vmem:[%s309 + $0x368] sm:$0xff]
        %v516 = vld [vmem:[%s309 + $0x370] sm:$0xff]
        %v517 = vld [vmem:[%s309 + $0x378] sm:$0xff]
        %v518 = vld [vmem:[%s309 + $0x380] sm:$0xff]
        %v519 = vld [vmem:[%s309 + $0x388] sm:$0xff]
        %v520 = vld [vmem:[%s309 + $0x390] sm:$0xff]
        %v521 = vld [vmem:[%s309 + $0x398] sm:$0xff]
        %v522 = vld [vmem:[%s309 + $0x3a0] sm:$0xff]
        %v523 = vld [vmem:[%s309 + $0x3a8] sm:$0xff]
        %v524 = vld [vmem:[%s309 + $0x3b0] sm:$0xff]
        %v525 = vld [vmem:[%s309 + $0x3b8] sm:$0xff]
        %v526 = vld [vmem:[%s309 + $0x3c0] sm:$0xff]
        %v527 = vld [vmem:[%s309 + $0x3c8] sm:$0xff]
        %v528 = vld [vmem:[%s309 + $0x3d0] sm:$0xff]
        %v529 = vld [vmem:[%s309 + $0x3d8] sm:$0xff]
        %v530 = vld [vmem:[%s309 + $0x3e0] sm:$0xff]
        %v531 = vld [vmem:[%s309 + $0x3e8] sm:$0xff]
        %v532 = vld [vmem:[%s309 + $0x3f0] sm:$0xff]
        %v533 = vld [vmem:[%s309 + $0x3f8] sm:$0xff]
        %v534 = vld [vmem:[%s309 + $0x400] sm:$0xff]
        %v535 = vld [vmem:[%s309 + $0x408] sm:$0xff]
        %v536 = vld [vmem:[%s309 + $0x410] sm:$0xff]
        %v537 = vld [vmem:[%s309 + $0x418] sm:$0xff]
        %v538 = vld [vmem:[%s309 + $0x420] sm:$0xff]
        %v539 = vld [vmem:[%s309 + $0x428] sm:$0xff]
        %v540 = vld [vmem:[%s309 + $0x430] sm:$0xff]
        %v541 = vld [vmem:[%s309 + $0x438] sm:$0xff]
        %v542 = vld [vmem:[%s309 + $0x440] sm:$0xff]
        %v543 = vld [vmem:[%s309 + $0x448] sm:$0xff]
        %v544 = vld [vmem:[%s309 + $0x450] sm:$0xff]
        %v545 = vld [vmem:[%s309 + $0x458] sm:$0xff]
        %v546 = vld [vmem:[%s309 + $0x460] sm:$0xff]
        %v547 = vld [vmem:[%s309 + $0x468] sm:$0xff]
        %v548 = vld [vmem:[%s309 + $0x470] sm:$0xff]
        %v549 = vld [vmem:[%s309 + $0x478] sm:$0xff]
        %v550 = vld [vmem:[%s309 + $0x480] sm:$0xff]
        %v551 = vld [vmem:[%s309 + $0x488] sm:$0xff]
        %v552 = vld [vmem:[%s309 + $0x490] sm:$0xff]
        %v553 = vld [vmem:[%s309 + $0x498] sm:$0xff]
        %v554 = vld [vmem:[%s309 + $0x4a0] sm:$0xff]
        %v555 = vld [vmem:[%s309 + $0x4a8] sm:$0xff]
        %v556 = vld [vmem:[%s309 + $0x4b0] sm:$0xff]
        %v557 = vld [vmem:[%s309 + $0x4b8] sm:$0xff]
        %v558 = vld [vmem:[%s309 + $0x4c0] sm:$0xff]
        %v559 = vld [vmem:[%s309 + $0x4c8] sm:$0xff]
        %v560 = vld [vmem:[%s309 + $0x4d0] sm:$0xff]
        %v561 = vld [vmem:[%s309 + $0x4d8] sm:$0xff]
        %v562 = vld [vmem:[%s309 + $0x4e0] sm:$0xff]
        %v563 = vld [vmem:[%s309 + $0x4e8] sm:$0xff]
        %v564 = vld [vmem:[%s309 + $0x4f0] sm:$0xff]
        %v565 = vld [vmem:[%s309 + $0x4f8] sm:$0xff]
        %v566 = vld [vmem:[%s309 + $0x500] sm:$0xff]
        %v567 = vld [vmem:[%s309 + $0x508] sm:$0xff]
        %v568 = vld [vmem:[%s309 + $0x510] sm:$0xff]
        %v569 = vld [vmem:[%s309 + $0x518] sm:$0xff]
        %v570 = vld [vmem:[%s309 + $0x520] sm:$0xff]
        %v571 = vld [vmem:[%s309 + $0x528] sm:$0xff]
        %v572 = vld [vmem:[%s309 + $0x530] sm:$0xff]
        %v573 = vld [vmem:[%s309 + $0x538] sm:$0xff]
        %v574 = vld [vmem:[%s309 + $0x540] sm:$0xff]
        %v575 = vld [vmem:[%s309 + $0x548] sm:$0xff]
        %v576 = vld [vmem:[%s309 + $0x550] sm:$0xff]
        %v577 = vld [vmem:[%s309 + $0x558] sm:$0xff]
        %v578 = vld [vmem:[%s309 + $0x560] sm:$0xff]
        %v579 = vld [vmem:[%s309 + $0x568] sm:$0xff]
        %v580 = vld [vmem:[%s309 + $0x570] sm:$0xff]
        %v581 = vld [vmem:[%s309 + $0x578] sm:$0xff]
        %v582 = vld [vmem:[%s309 + $0x580] sm:$0xff]
        %v583 = vld [vmem:[%s309 + $0x588] sm:$0xff]
        %v584 = vld [vmem:[%s309 + $0x590] sm:$0xff]
        %v585 = vld [vmem:[%s309 + $0x598] sm:$0xff]
        %v586 = vld [vmem:[%s309 + $0x5a0] sm:$0xff]
        %v587 = vld [vmem:[%s309 + $0x5a8] sm:$0xff]
        %v588 = vld [vmem:[%s309 + $0x5b0] sm:$0xff]
        %v589 = vld [vmem:[%s309 + $0x5b8] sm:$0xff]
        %v590 = vld [vmem:[%s309 + $0x5c0] sm:$0xff]
        %v591 = vld [vmem:[%s309 + $0x5c8] sm:$0xff]
        %v592 = vld [vmem:[%s309 + $0x5d0] sm:$0xff]
        %v593 = vld [vmem:[%s309 + $0x5d8] sm:$0xff]
        %v594 = vld [vmem:[%s309 + $0x5e0] sm:$0xff]
        %v595 = vld [vmem:[%s309 + $0x5e8] sm:$0xff]
        %v596 = vld [vmem:[%s309 + $0x5f0] sm:$0xff]
        %v597 = vld [vmem:[%s309 + $0x5f8] sm:$0xff]
        %v598 = vld [vmem:[%s309 + $0x600] sm:$0xff]
        %v599 = vld [vmem:[%s309 + $0x608] sm:$0xff]
        %v600 = vld [vmem:[%s309 + $0x610] sm:$0xff]
        %v601 = vld [vmem:[%s309 + $0x618] sm:$0xff]
        %v602 = vld [vmem:[%s309 + $0x620] sm:$0xff]
        %v603 = vld [vmem:[%s309 + $0x628] sm:$0xff]
        %v604 = vld [vmem:[%s309 + $0x630] sm:$0xff]
        %v605 = vld [vmem:[%s309 + $0x638] sm:$0xff]
        %v606 = vld [vmem:[%s309 + $0x640] sm:$0xff]
        %v607 = vld [vmem:[%s309 + $0x648] sm:$0xff]
        %v608 = vld [vmem:[%s309 + $0x650] sm:$0xff]
        %v609 = vld [vmem:[%s309 + $0x658] sm:$0xff]
        %v610 = vld [vmem:[%s309 + $0x660] sm:$0xff]
        %v611 = vld [vmem:[%s309 + $0x668] sm:$0xff]
        %v612 = vld [vmem:[%s309 + $0x670] sm:$0xff]
        %v613 = vld [vmem:[%s309 + $0x678] sm:$0xff]
        %v614 = vld [vmem:[%s309 + $0x680] sm:$0xff]
        %v615 = vld [vmem:[%s309 + $0x688] sm:$0xff]
        %v616 = vld [vmem:[%s309 + $0x690] sm:$0xff]
        %v617 = vld [vmem:[%s309 + $0x698] sm:$0xff]
        %v618 = vld [vmem:[%s309 + $0x6a0] sm:$0xff]
        %v619 = vld [vmem:[%s309 + $0x6a8] sm:$0xff]
        %v620 = vld [vmem:[%s309 + $0x6b0] sm:$0xff]
        %v621 = vld [vmem:[%s309 + $0x6b8] sm:$0xff]
        %v622 = vld [vmem:[%s309 + $0x6c0] sm:$0xff]
        %v623 = vld [vmem:[%s309 + $0x6c8] sm:$0xff]
        %v624 = vld [vmem:[%s309 + $0x6d0] sm:$0xff]
        %v625 = vld [vmem:[%s309 + $0x6d8] sm:$0xff]
        %v626 = vld [vmem:[%s309 + $0x6e0] sm:$0xff]
        %v627 = vld [vmem:[%s309 + $0x6e8] sm:$0xff]
        %v628 = vld [vmem:[%s309 + $0x6f0] sm:$0xff]
        %v629 = vld [vmem:[%s309 + $0x6f8] sm:$0xff]
        %v631 = vcombine.high %v405, %v405
        %v633 = vunpack.c.l.s4 1966171168
        %v634 = vunpack.c.0.s8 %v633
        %v635 = vlaneseq
        %v636 = vshrl.u32 %v635, 7
        %v637 = vsub.s32 %v634, %v636
        %v638 = vrot.slane %v405, %v637
        %v640 = vunpack.c.l.s4 1966171168
        %v641 = vunpack.c.0.s8 %v640
        %v642 = vlaneseq
        %v643 = vshrl.u32 %v642, 7
        %v644 = vsub.s32 %v641, %v643
        %v645 = vrot.slane %v631, %v644
        %v646 = vcombine.high %v638, %v638
        %v647 = vcombine.high %v645, %v645
        %v649 = vunpack.c.l.s4 1966171168
        %v650 = vunpack.c.0.s8 %v649
        %v651 = vlaneseq
        %v652 = vshrl.u32 %v651, 7
        %v653 = vsub.s32 %v650, %v652
        %v654 = vrot.slane %v638, %v653
        %v656 = vunpack.c.l.s4 1966171168
        %v657 = vunpack.c.0.s8 %v656
        %v658 = vlaneseq
        %v659 = vshrl.u32 %v658, 7
        %v660 = vsub.s32 %v657, %v659
        %v661 = vrot.slane %v645, %v660
        %v663 = vunpack.c.l.s4 1966171168
        %v664 = vunpack.c.0.s8 %v663
        %v665 = vlaneseq
        %v666 = vshrl.u32 %v665, 7
        %v667 = vsub.s32 %v664, %v666
        %v668 = vrot.slane %v646, %v667
        %v670 = vunpack.c.l.s4 1966171168
        %v671 = vunpack.c.0.s8 %v670
        %v672 = vlaneseq
        %v673 = vshrl.u32 %v672, 7
        %v674 = vsub.s32 %v671, %v673
        %v675 = vrot.slane %v647, %v674
        %v676 = vcombine.high %v654, %v654
        %v677 = vcombine.high %v661, %v661
        %v678 = vcombine.high %v668, %v668
        %v910 = vunpack.c.l.b16 %v406
        %v911 = vunpack.c.h.b16 %v406
        %v912 = vunpack.c.l.b16 %v407
        %v913 = vunpack.c.h.b16 %v407
        %v914 = vunpack.c.l.b16 %v408
        %v915 = vunpack.c.h.b16 %v408
        %v916 = vunpack.c.l.b16 %v409
        %v917 = vunpack.c.h.b16 %v409
        %v918 = vunpack.c.l.b16 %v410
        %v919 = vunpack.c.h.b16 %v410
        %v920 = vunpack.c.l.b16 %v411
        %v921 = vunpack.c.h.b16 %v411
        %v922 = vunpack.c.l.b16 %v412
        %v923 = vunpack.c.h.b16 %v412
        %v924 = vunpack.c.l.b16 %v413
        %v925 = vunpack.c.h.b16 %v413
        %v926 = vunpack.c.l.b16 %v414
        %v927 = vunpack.c.h.b16 %v414
        %v928 = vunpack.c.l.b16 %v415
        %v929 = vunpack.c.h.b16 %v415
        %v930 = vunpack.c.l.b16 %v416
        %v931 = vunpack.c.h.b16 %v416
        %v932 = vunpack.c.l.b16 %v417
        %v933 = vunpack.c.h.b16 %v417
        %v934 = vunpack.c.l.b16 %v418
        %v935 = vunpack.c.h.b16 %v418
        %v936 = vunpack.c.l.b16 %v419
        %v937 = vunpack.c.h.b16 %v419
        %v938 = vunpack.c.l.b16 %v420
        %v939 = vunpack.c.h.b16 %v420
        %v940 = vunpack.c.l.b16 %v421
        %v941 = vunpack.c.h.b16 %v421
        %v942 = vunpack.c.l.b16 %v422
        %v943 = vunpack.c.h.b16 %v422
        %v944 = vunpack.c.l.b16 %v423
        %v945 = vunpack.c.h.b16 %v423
        %v946 = vunpack.c.l.b16 %v424
        %v947 = vunpack.c.h.b16 %v424
        %v948 = vunpack.c.l.b16 %v425
        %v949 = vunpack.c.h.b16 %v425
        %v950 = vunpack.c.l.b16 %v426
        %v951 = vunpack.c.h.b16 %v426
        %v952 = vunpack.c.l.b16 %v427
        %v953 = vunpack.c.h.b16 %v427
        %v954 = vunpack.c.l.b16 %v428
        %v955 = vunpack.c.h.b16 %v428
        %v956 = vunpack.c.l.b16 %v429
        %v957 = vunpack.c.h.b16 %v429
        %v958 = vunpack.c.l.b16 %v430
        %v959 = vunpack.c.h.b16 %v430
        %v960 = vunpack.c.l.b16 %v431
        %v961 = vunpack.c.h.b16 %v431
        %v962 = vunpack.c.l.b16 %v432
        %v963 = vunpack.c.h.b16 %v432
        %v964 = vunpack.c.l.b16 %v433
        %v965 = vunpack.c.h.b16 %v433
        %v966 = vunpack.c.l.b16 %v434
        %v967 = vunpack.c.h.b16 %v434
        %v968 = vunpack.c.l.b16 %v435
        %v969 = vunpack.c.h.b16 %v435
        %v970 = vunpack.c.l.b16 %v436
        %v971 = vunpack.c.h.b16 %v436
        %v972 = vunpack.c.l.b16 %v437
        %v973 = vunpack.c.h.b16 %v437
        %v974 = vunpack.c.l.b16 %v438
        %v975 = vunpack.c.h.b16 %v438
        %v976 = vunpack.c.l.b16 %v439
        %v977 = vunpack.c.h.b16 %v439
        %v978 = vunpack.c.l.b16 %v440
        %v979 = vunpack.c.h.b16 %v440
        %v980 = vunpack.c.l.b16 %v441
        %v981 = vunpack.c.h.b16 %v441
        %v982 = vunpack.c.l.b16 %v442
        %v983 = vunpack.c.h.b16 %v442
        %v984 = vunpack.c.l.b16 %v443
        %v985 = vunpack.c.h.b16 %v443
        %v986 = vunpack.c.l.b16 %v444
        %v987 = vunpack.c.h.b16 %v444
        %v988 = vunpack.c.l.b16 %v445
        %v989 = vunpack.c.h.b16 %v445
        %v990 = vunpack.c.l.b16 %v446
        %v991 = vunpack.c.h.b16 %v446
        %v992 = vunpack.c.l.b16 %v447
        %v993 = vunpack.c.h.b16 %v447
        %v994 = vunpack.c.l.b16 %v448
        %v995 = vunpack.c.h.b16 %v448
        %v996 = vunpack.c.l.b16 %v449
        %v997 = vunpack.c.h.b16 %v449
        %v998 = vunpack.c.l.b16 %v450
        %v999 = vunpack.c.h.b16 %v450
        %v1000 = vunpack.c.l.b16 %v451
        %v1001 = vunpack.c.h.b16 %v451
        %v1002 = vunpack.c.l.b16 %v452
        %v1003 = vunpack.c.h.b16 %v452
        %v1004 = vunpack.c.l.b16 %v453
        %v1005 = vunpack.c.h.b16 %v453
        %v1006 = vunpack.c.l.b16 %v454
        %v1007 = vunpack.c.h.b16 %v454
        %v1008 = vunpack.c.l.b16 %v455
        %v1009 = vunpack.c.h.b16 %v455
        %v1010 = vunpack.c.l.b16 %v456
        %v1011 = vunpack.c.h.b16 %v456
        %v1012 = vunpack.c.l.b16 %v457
        %v1013 = vunpack.c.h.b16 %v457
        %v1014 = vunpack.c.l.b16 %v458
        %v1015 = vunpack.c.h.b16 %v458
        %v1016 = vunpack.c.l.b16 %v459
        %v1017 = vunpack.c.h.b16 %v459
        %v1018 = vunpack.c.l.b16 %v460
        %v1019 = vunpack.c.h.b16 %v460
        %v1020 = vunpack.c.l.b16 %v461
        %v1021 = vunpack.c.h.b16 %v461
        %v1022 = vunpack.c.l.b16 %v462
        %v1023 = vunpack.c.h.b16 %v462
        %v1024 = vunpack.c.l.b16 %v463
        %v1025 = vunpack.c.h.b16 %v463
        %v1026 = vunpack.c.l.b16 %v464
        %v1027 = vunpack.c.h.b16 %v464
        %v1028 = vunpack.c.l.b16 %v465
        %v1029 = vunpack.c.h.b16 %v465
        %v1030 = vunpack.c.l.b16 %v466
        %v1031 = vunpack.c.h.b16 %v466
        %v1032 = vunpack.c.l.b16 %v467
        %v1033 = vunpack.c.h.b16 %v467
        %v1034 = vunpack.c.l.b16 %v468
        %v1035 = vunpack.c.h.b16 %v468
        %v1036 = vunpack.c.l.b16 %v469
        %v1037 = vunpack.c.h.b16 %v469
        %v1038 = vunpack.c.l.b16 %v470
        %v1039 = vunpack.c.h.b16 %v470
        %v1040 = vunpack.c.l.b16 %v471
        %v1041 = vunpack.c.h.b16 %v471
        %v1042 = vunpack.c.l.b16 %v472
        %v1043 = vunpack.c.h.b16 %v472
        %v1044 = vunpack.c.l.b16 %v473
        %v1045 = vunpack.c.h.b16 %v473
        %v1046 = vunpack.c.l.b16 %v474
        %v1047 = vunpack.c.h.b16 %v474
        %v1048 = vunpack.c.l.b16 %v475
        %v1049 = vunpack.c.h.b16 %v475
        %v1050 = vunpack.c.l.b16 %v476
        %v1051 = vunpack.c.h.b16 %v476
        %v1052 = vunpack.c.l.b16 %v477
        %v1053 = vunpack.c.h.b16 %v477
        %v1054 = vunpack.c.l.b16 %v478
        %v1055 = vunpack.c.h.b16 %v478
        %v1056 = vunpack.c.l.b16 %v479
        %v1057 = vunpack.c.h.b16 %v479
        %v1058 = vunpack.c.l.b16 %v480
        %v1059 = vunpack.c.h.b16 %v480
        %v1060 = vunpack.c.l.b16 %v481
        %v1061 = vunpack.c.h.b16 %v481
        %v1062 = vunpack.c.l.b16 %v482
        %v1063 = vunpack.c.h.b16 %v482
        %v1064 = vunpack.c.l.b16 %v483
        %v1065 = vunpack.c.h.b16 %v483
        %v1066 = vunpack.c.l.b16 %v484
        %v1067 = vunpack.c.h.b16 %v484
        %v1068 = vunpack.c.l.b16 %v485
        %v1069 = vunpack.c.h.b16 %v485
        %v1070 = vunpack.c.l.b16 %v486
        %v1071 = vunpack.c.h.b16 %v486
        %v1072 = vunpack.c.l.b16 %v487
        %v1073 = vunpack.c.h.b16 %v487
        %v1074 = vunpack.c.l.b16 %v488
        %v1075 = vunpack.c.h.b16 %v488
        %v1076 = vunpack.c.l.b16 %v489
        %v1077 = vunpack.c.h.b16 %v489
        %v1078 = vunpack.c.l.b16 %v490
        %v1079 = vunpack.c.h.b16 %v490
        %v1080 = vunpack.c.l.b16 %v491
        %v1081 = vunpack.c.h.b16 %v491
        %v1082 = vunpack.c.l.b16 %v492
        %v1083 = vunpack.c.h.b16 %v492
        %v1084 = vunpack.c.l.b16 %v493
        %v1085 = vunpack.c.h.b16 %v493
        %v1086 = vunpack.c.l.b16 %v494
        %v1087 = vunpack.c.h.b16 %v494
        %v1088 = vunpack.c.l.b16 %v495
        %v1089 = vunpack.c.h.b16 %v495
        %v1090 = vunpack.c.l.b16 %v496
        %v1091 = vunpack.c.h.b16 %v496
        %v1092 = vunpack.c.l.b16 %v497
        %v1093 = vunpack.c.h.b16 %v497
        %v1094 = vunpack.c.l.b16 %v498
        %v1095 = vunpack.c.h.b16 %v498
        %v1096 = vunpack.c.l.b16 %v499
        %v1097 = vunpack.c.h.b16 %v499
        %v1098 = vunpack.c.l.b16 %v500
        %v1099 = vunpack.c.h.b16 %v500
        %v1100 = vunpack.c.l.b16 %v501
        %v1101 = vunpack.c.h.b16 %v501
        %v1102 = vunpack.c.l.b16 %v502
        %v1103 = vunpack.c.h.b16 %v502
        %v1104 = vunpack.c.l.b16 %v503
        %v1105 = vunpack.c.h.b16 %v503
        %v1106 = vunpack.c.l.b16 %v504
        %v1107 = vunpack.c.h.b16 %v504
        %v1108 = vunpack.c.l.b16 %v505
        %v1109 = vunpack.c.h.b16 %v505
        %v1110 = vunpack.c.l.b16 %v506
        %v1111 = vunpack.c.h.b16 %v506
        %v1112 = vunpack.c.l.b16 %v507
        %v1113 = vunpack.c.h.b16 %v507
        %v1114 = vunpack.c.l.b16 %v508
        %v1115 = vunpack.c.h.b16 %v508
        %v1116 = vunpack.c.l.b16 %v509
        %v1117 = vunpack.c.h.b16 %v509
        %v1118 = vunpack.c.l.b16 %v510
        %v1119 = vunpack.c.h.b16 %v510
        %v1120 = vunpack.c.l.b16 %v511
        %v1121 = vunpack.c.h.b16 %v511
        %v1122 = vunpack.c.l.b16 %v512
        %v1123 = vunpack.c.h.b16 %v512
        %v1124 = vunpack.c.l.b16 %v513
        %v1125 = vunpack.c.h.b16 %v513
        %v1126 = vunpack.c.l.b16 %v514
        %v1127 = vunpack.c.h.b16 %v514
        %v1128 = vunpack.c.l.b16 %v515
        %v1129 = vunpack.c.h.b16 %v515
        %v1130 = vunpack.c.l.b16 %v516
        %v1131 = vunpack.c.h.b16 %v516
        %v1132 = vunpack.c.l.b16 %v517
        %v1133 = vunpack.c.h.b16 %v517
        %v1134 = vunpack.c.l.b16 %v518
        %v1135 = vunpack.c.h.b16 %v518
        %v1136 = vunpack.c.l.b16 %v519
        %v1137 = vunpack.c.h.b16 %v519
        %v1138 = vunpack.c.l.b16 %v520
        %v1139 = vunpack.c.h.b16 %v520
        %v1140 = vunpack.c.l.b16 %v521
        %v1141 = vunpack.c.h.b16 %v521
        %v1142 = vunpack.c.l.b16 %v522
        %v1143 = vunpack.c.h.b16 %v522
        %v1144 = vunpack.c.l.b16 %v523
        %v1145 = vunpack.c.h.b16 %v523
        %v1146 = vunpack.c.l.b16 %v524
        %v1147 = vunpack.c.h.b16 %v524
        %v1148 = vunpack.c.l.b16 %v525
        %v1149 = vunpack.c.h.b16 %v525
        %v1150 = vunpack.c.l.b16 %v526
        %v1151 = vunpack.c.h.b16 %v526
        %v1152 = vunpack.c.l.b16 %v527
        %v1153 = vunpack.c.h.b16 %v527
        %v1154 = vunpack.c.l.b16 %v528
        %v1155 = vunpack.c.h.b16 %v528
        %v1156 = vunpack.c.l.b16 %v529
        %v1157 = vunpack.c.h.b16 %v529
        %v1158 = vunpack.c.l.b16 %v530
        %v1159 = vunpack.c.h.b16 %v530
        %v1160 = vunpack.c.l.b16 %v531
        %v1161 = vunpack.c.h.b16 %v531
        %v1162 = vunpack.c.l.b16 %v532
        %v1163 = vunpack.c.h.b16 %v532
        %v1164 = vunpack.c.l.b16 %v533
        %v1165 = vunpack.c.h.b16 %v533
        %v1166 = vunpack.c.l.b16 %v534
        %v1167 = vunpack.c.h.b16 %v534
        %v1168 = vunpack.c.l.b16 %v535
        %v1169 = vunpack.c.h.b16 %v535
        %v1170 = vunpack.c.l.b16 %v536
        %v1171 = vunpack.c.h.b16 %v536
        %v1172 = vunpack.c.l.b16 %v537
        %v1173 = vunpack.c.h.b16 %v537
        %v1174 = vunpack.c.l.b16 %v538
        %v1175 = vunpack.c.h.b16 %v538
        %v1176 = vunpack.c.l.b16 %v539
        %v1177 = vunpack.c.h.b16 %v539
        %v1178 = vunpack.c.l.b16 %v540
        %v1179 = vunpack.c.h.b16 %v540
        %v1180 = vunpack.c.l.b16 %v541
        %v1181 = vunpack.c.h.b16 %v541
        %v1182 = vunpack.c.l.b16 %v542
        %v1183 = vunpack.c.h.b16 %v542
        %v1184 = vunpack.c.l.b16 %v543
        %v1185 = vunpack.c.h.b16 %v543
        %v1186 = vunpack.c.l.b16 %v544
        %v1187 = vunpack.c.h.b16 %v544
        %v1188 = vunpack.c.l.b16 %v545
        %v1189 = vunpack.c.h.b16 %v545
        %v1190 = vunpack.c.l.b16 %v546
        %v1191 = vunpack.c.h.b16 %v546
        %v1192 = vunpack.c.l.b16 %v547
        %v1193 = vunpack.c.h.b16 %v547
        %v1194 = vunpack.c.l.b16 %v548
        %v1195 = vunpack.c.h.b16 %v548
        %v1196 = vunpack.c.l.b16 %v549
        %v1197 = vunpack.c.h.b16 %v549
        %v1198 = vunpack.c.l.b16 %v550
        %v1199 = vunpack.c.h.b16 %v550
        %v1200 = vunpack.c.l.b16 %v551
        %v1201 = vunpack.c.h.b16 %v551
        %v1202 = vunpack.c.l.b16 %v552
        %v1203 = vunpack.c.h.b16 %v552
        %v1204 = vunpack.c.l.b16 %v553
        %v1205 = vunpack.c.h.b16 %v553
        %v1206 = vunpack.c.l.b16 %v554
        %v1207 = vunpack.c.h.b16 %v554
        %v1208 = vunpack.c.l.b16 %v555
        %v1209 = vunpack.c.h.b16 %v555
        %v1210 = vunpack.c.l.b16 %v556
        %v1211 = vunpack.c.h.b16 %v556
        %v1212 = vunpack.c.l.b16 %v557
        %v1213 = vunpack.c.h.b16 %v557
        %v1214 = vunpack.c.l.b16 %v558
        %v1215 = vunpack.c.h.b16 %v558
        %v1216 = vunpack.c.l.b16 %v559
        %v1217 = vunpack.c.h.b16 %v559
        %v1218 = vunpack.c.l.b16 %v560
        %v1219 = vunpack.c.h.b16 %v560
        %v1220 = vunpack.c.l.b16 %v561
        %v1221 = vunpack.c.h.b16 %v561
        %v1222 = vunpack.c.l.b16 %v562
        %v1223 = vunpack.c.h.b16 %v562
        %v1224 = vunpack.c.l.b16 %v563
        %v1225 = vunpack.c.h.b16 %v563
        %v1226 = vunpack.c.l.b16 %v564
        %v1227 = vunpack.c.h.b16 %v564
        %v1228 = vunpack.c.l.b16 %v565
        %v1229 = vunpack.c.h.b16 %v565
        %v1230 = vunpack.c.l.b16 %v566
        %v1231 = vunpack.c.h.b16 %v566
        %v1232 = vunpack.c.l.b16 %v567
        %v1233 = vunpack.c.h.b16 %v567
        %v1234 = vunpack.c.l.b16 %v568
        %v1235 = vunpack.c.h.b16 %v568
        %v1236 = vunpack.c.l.b16 %v569
        %v1237 = vunpack.c.h.b16 %v569
        %v1238 = vunpack.c.l.b16 %v570
        %v1239 = vunpack.c.h.b16 %v570
        %v1240 = vunpack.c.l.b16 %v571
        %v1241 = vunpack.c.h.b16 %v571
        %v1242 = vunpack.c.l.b16 %v572
        %v1243 = vunpack.c.h.b16 %v572
        %v1244 = vunpack.c.l.b16 %v573
        %v1245 = vunpack.c.h.b16 %v573
        %v1246 = vunpack.c.l.b16 %v574
        %v1247 = vunpack.c.h.b16 %v574
        %v1248 = vunpack.c.l.b16 %v575
        %v1249 = vunpack.c.h.b16 %v575
        %v1250 = vunpack.c.l.b16 %v576
        %v1251 = vunpack.c.h.b16 %v576
        %v1252 = vunpack.c.l.b16 %v577
        %v1253 = vunpack.c.h.b16 %v577
        %v1254 = vunpack.c.l.b16 %v578
        %v1255 = vunpack.c.h.b16 %v578
        %v1256 = vunpack.c.l.b16 %v579
        %v1257 = vunpack.c.h.b16 %v579
        %v1258 = vunpack.c.l.b16 %v580
        %v1259 = vunpack.c.h.b16 %v580
        %v1260 = vunpack.c.l.b16 %v581
        %v1261 = vunpack.c.h.b16 %v581
        %v1262 = vunpack.c.l.b16 %v582
        %v1263 = vunpack.c.h.b16 %v582
        %v1264 = vunpack.c.l.b16 %v583
        %v1265 = vunpack.c.h.b16 %v583
        %v1266 = vunpack.c.l.b16 %v584
        %v1267 = vunpack.c.h.b16 %v584
        %v1268 = vunpack.c.l.b16 %v585
        %v1269 = vunpack.c.h.b16 %v585
        %v1270 = vunpack.c.l.b16 %v586
        %v1271 = vunpack.c.h.b16 %v586
        %v1272 = vunpack.c.l.b16 %v587
        %v1273 = vunpack.c.h.b16 %v587
        %v1274 = vunpack.c.l.b16 %v588
        %v1275 = vunpack.c.h.b16 %v588
        %v1276 = vunpack.c.l.b16 %v589
        %v1277 = vunpack.c.h.b16 %v589
        %v1278 = vunpack.c.l.b16 %v590
        %v1279 = vunpack.c.h.b16 %v590
        %v1280 = vunpack.c.l.b16 %v591
        %v1281 = vunpack.c.h.b16 %v591
        %v1282 = vunpack.c.l.b16 %v592
        %v1283 = vunpack.c.h.b16 %v592
        %v1284 = vunpack.c.l.b16 %v593
        %v1285 = vunpack.c.h.b16 %v593
        %v1286 = vunpack.c.l.b16 %v594
        %v1287 = vunpack.c.h.b16 %v594
        %v1288 = vunpack.c.l.b16 %v595
        %v1289 = vunpack.c.h.b16 %v595
        %v1290 = vunpack.c.l.b16 %v596
        %v1291 = vunpack.c.h.b16 %v596
        %v1292 = vunpack.c.l.b16 %v597
        %v1293 = vunpack.c.h.b16 %v597
        %v1294 = vunpack.c.l.b16 %v598
        %v1295 = vunpack.c.h.b16 %v598
        %v1296 = vunpack.c.l.b16 %v599
        %v1297 = vunpack.c.h.b16 %v599
        %v1298 = vunpack.c.l.b16 %v600
        %v1299 = vunpack.c.h.b16 %v600
        %v1300 = vunpack.c.l.b16 %v601
        %v1301 = vunpack.c.h.b16 %v601
        %v1302 = vunpack.c.l.b16 %v602
        %v1303 = vunpack.c.h.b16 %v602
        %v1304 = vunpack.c.l.b16 %v603
        %v1305 = vunpack.c.h.b16 %v603
        %v1306 = vunpack.c.l.b16 %v604
        %v1307 = vunpack.c.h.b16 %v604
        %v1308 = vunpack.c.l.b16 %v605
        %v1309 = vunpack.c.h.b16 %v605
        %v1310 = vunpack.c.l.b16 %v606
        %v1311 = vunpack.c.h.b16 %v606
        %v1312 = vunpack.c.l.b16 %v607
        %v1313 = vunpack.c.h.b16 %v607
        %v1314 = vunpack.c.l.b16 %v608
        %v1315 = vunpack.c.h.b16 %v608
        %v1316 = vunpack.c.l.b16 %v609
        %v1317 = vunpack.c.h.b16 %v609
        %v1318 = vunpack.c.l.b16 %v610
        %v1319 = vunpack.c.h.b16 %v610
        %v1320 = vunpack.c.l.b16 %v611
        %v1321 = vunpack.c.h.b16 %v611
        %v1322 = vunpack.c.l.b16 %v612
        %v1323 = vunpack.c.h.b16 %v612
        %v1324 = vunpack.c.l.b16 %v613
        %v1325 = vunpack.c.h.b16 %v613
        %v1326 = vunpack.c.l.b16 %v614
        %v1327 = vunpack.c.h.b16 %v614
        %v1328 = vunpack.c.l.b16 %v615
        %v1329 = vunpack.c.h.b16 %v615
        %v1330 = vunpack.c.l.b16 %v616
        %v1331 = vunpack.c.h.b16 %v616
        %v1332 = vunpack.c.l.b16 %v617
        %v1333 = vunpack.c.h.b16 %v617
        %v1334 = vunpack.c.l.b16 %v618
        %v1335 = vunpack.c.h.b16 %v618
        %v1336 = vunpack.c.l.b16 %v619
        %v1337 = vunpack.c.h.b16 %v619
        %v1338 = vunpack.c.l.b16 %v620
        %v1339 = vunpack.c.h.b16 %v620
        %v1340 = vunpack.c.l.b16 %v621
        %v1341 = vunpack.c.h.b16 %v621
        %v1342 = vunpack.c.l.b16 %v622
        %v1343 = vunpack.c.h.b16 %v622
        %v1344 = vunpack.c.l.b16 %v623
        %v1345 = vunpack.c.h.b16 %v623
        %v1346 = vunpack.c.l.b16 %v624
        %v1347 = vunpack.c.h.b16 %v624
        %v1348 = vunpack.c.l.b16 %v625
        %v1349 = vunpack.c.h.b16 %v625
        %v1350 = vunpack.c.l.b16 %v626
        %v1351 = vunpack.c.h.b16 %v626
        %v1352 = vunpack.c.l.b16 %v627
        %v1353 = vunpack.c.h.b16 %v627
        %v1354 = vunpack.c.l.b16 %v628
        %v1355 = vunpack.c.h.b16 %v628
        %v1356 = vunpack.c.l.b16 %v629
        %v1357 = vunpack.c.h.b16 %v629
        %v1358 = vpack.c.b16 %v914, %v910
        %v1359 = vpack.c.b16 %v915, %v911
        %v1360 = vpack.c.b16 %v916, %v912
        %v1361 = vpack.c.b16 %v917, %v913
        %v1362 = vpack.c.b16 %v922, %v918
        %v1363 = vpack.c.b16 %v923, %v919
        %v1364 = vpack.c.b16 %v924, %v920
        %v1365 = vpack.c.b16 %v925, %v921
        %v1366 = vpack.c.b16 %v930, %v926
        %v1367 = vpack.c.b16 %v931, %v927
        %v1368 = vpack.c.b16 %v932, %v928
        %v1369 = vpack.c.b16 %v933, %v929
        %v1370 = vpack.c.b16 %v938, %v934
        %v1371 = vpack.c.b16 %v939, %v935
        %v1372 = vpack.c.b16 %v940, %v936
        %v1373 = vpack.c.b16 %v941, %v937
        %v1374 = vpack.c.b16 %v946, %v942
        %v1375 = vpack.c.b16 %v947, %v943
        %v1376 = vpack.c.b16 %v948, %v944
        %v1377 = vpack.c.b16 %v949, %v945
        %v1378 = vpack.c.b16 %v954, %v950
        %v1379 = vpack.c.b16 %v955, %v951
        %v1380 = vpack.c.b16 %v956, %v952
        %v1381 = vpack.c.b16 %v957, %v953
        %v1382 = vpack.c.b16 %v962, %v958
        %v1383 = vpack.c.b16 %v963, %v959
        %v1384 = vpack.c.b16 %v964, %v960
        %v1385 = vpack.c.b16 %v965, %v961
        %v1386 = vpack.c.b16 %v970, %v966
        %v1387 = vpack.c.b16 %v971, %v967
        %v1388 = vpack.c.b16 %v972, %v968
        %v1389 = vpack.c.b16 %v973, %v969
        %v1390 = vpack.c.b16 %v978, %v974
        %v1391 = vpack.c.b16 %v979, %v975
        %v1392 = vpack.c.b16 %v980, %v976
        %v1393 = vpack.c.b16 %v981, %v977
        %v1394 = vpack.c.b16 %v986, %v982
        %v1395 = vpack.c.b16 %v987, %v983
        %v1396 = vpack.c.b16 %v988, %v984
        %v1397 = vpack.c.b16 %v989, %v985
        %v1398 = vpack.c.b16 %v994, %v990
        %v1399 = vpack.c.b16 %v995, %v991
        %v1400 = vpack.c.b16 %v996, %v992
        %v1401 = vpack.c.b16 %v997, %v993
        %v1402 = vpack.c.b16 %v1002, %v998
        %v1403 = vpack.c.b16 %v1003, %v999
        %v1404 = vpack.c.b16 %v1004, %v1000
        %v1405 = vpack.c.b16 %v1005, %v1001
        %v1406 = vpack.c.b16 %v1010, %v1006
        %v1407 = vpack.c.b16 %v1011, %v1007
        %v1408 = vpack.c.b16 %v1012, %v1008
        %v1409 = vpack.c.b16 %v1013, %v1009
        %v1410 = vpack.c.b16 %v1018, %v1014
        %v1411 = vpack.c.b16 %v1019, %v1015
        %v1412 = vpack.c.b16 %v1020, %v1016
        %v1413 = vpack.c.b16 %v1021, %v1017
        %v1414 = vpack.c.b16 %v1026, %v1022
        %v1415 = vpack.c.b16 %v1027, %v1023
        %v1416 = vpack.c.b16 %v1028, %v1024
        %v1417 = vpack.c.b16 %v1029, %v1025
        %v1418 = vpack.c.b16 %v1034, %v1030
        %v1419 = vpack.c.b16 %v1035, %v1031
        %v1420 = vpack.c.b16 %v1036, %v1032
        %v1421 = vpack.c.b16 %v1037, %v1033
        %v1422 = vpack.c.b16 %v1042, %v1038
        %v1423 = vpack.c.b16 %v1043, %v1039
        %v1424 = vpack.c.b16 %v1044, %v1040
        %v1425 = vpack.c.b16 %v1045, %v1041
        %v1426 = vpack.c.b16 %v1050, %v1046
        %v1427 = vpack.c.b16 %v1051, %v1047
        %v1428 = vpack.c.b16 %v1052, %v1048
        %v1429 = vpack.c.b16 %v1053, %v1049
        %v1430 = vpack.c.b16 %v1058, %v1054
        %v1431 = vpack.c.b16 %v1059, %v1055
        %v1432 = vpack.c.b16 %v1060, %v1056
        %v1433 = vpack.c.b16 %v1061, %v1057
        %v1434 = vpack.c.b16 %v1066, %v1062
        %v1435 = vpack.c.b16 %v1067, %v1063
        %v1436 = vpack.c.b16 %v1068, %v1064
        %v1437 = vpack.c.b16 %v1069, %v1065
        %v1438 = vpack.c.b16 %v1074, %v1070
        %v1439 = vpack.c.b16 %v1075, %v1071
        %v1440 = vpack.c.b16 %v1076, %v1072
        %v1441 = vpack.c.b16 %v1077, %v1073
        %v1442 = vpack.c.b16 %v1082, %v1078
        %v1443 = vpack.c.b16 %v1083, %v1079
        %v1444 = vpack.c.b16 %v1084, %v1080
        %v1445 = vpack.c.b16 %v1085, %v1081
        %v1446 = vpack.c.b16 %v1090, %v1086
        %v1447 = vpack.c.b16 %v1091, %v1087
        %v1448 = vpack.c.b16 %v1092, %v1088
        %v1449 = vpack.c.b16 %v1093, %v1089
        %v1450 = vpack.c.b16 %v1098, %v1094
        %v1451 = vpack.c.b16 %v1099, %v1095
        %v1452 = vpack.c.b16 %v1100, %v1096
        %v1453 = vpack.c.b16 %v1101, %v1097
        %v1454 = vpack.c.b16 %v1106, %v1102
        %v1455 = vpack.c.b16 %v1107, %v1103
        %v1456 = vpack.c.b16 %v1108, %v1104
        %v1457 = vpack.c.b16 %v1109, %v1105
        %v1458 = vpack.c.b16 %v1114, %v1110
        %v1459 = vpack.c.b16 %v1115, %v1111
        %v1460 = vpack.c.b16 %v1116, %v1112
        %v1461 = vpack.c.b16 %v1117, %v1113
        %v1462 = vpack.c.b16 %v1122, %v1118
        %v1463 = vpack.c.b16 %v1123, %v1119
        %v1464 = vpack.c.b16 %v1124, %v1120
        %v1465 = vpack.c.b16 %v1125, %v1121
        %v1466 = vpack.c.b16 %v1130, %v1126
        %v1467 = vpack.c.b16 %v1131, %v1127
        %v1468 = vpack.c.b16 %v1132, %v1128
        %v1469 = vpack.c.b16 %v1133, %v1129
        %v1470 = vpack.c.b16 %v1138, %v1134
        %v1471 = vpack.c.b16 %v1139, %v1135
        %v1472 = vpack.c.b16 %v1140, %v1136
        %v1473 = vpack.c.b16 %v1141, %v1137
        %v1474 = vpack.c.b16 %v1146, %v1142
        %v1475 = vpack.c.b16 %v1147, %v1143
        %v1476 = vpack.c.b16 %v1148, %v1144
        %v1477 = vpack.c.b16 %v1149, %v1145
        %v1478 = vpack.c.b16 %v1154, %v1150
        %v1479 = vpack.c.b16 %v1155, %v1151
        %v1480 = vpack.c.b16 %v1156, %v1152
        %v1481 = vpack.c.b16 %v1157, %v1153
        %v1482 = vpack.c.b16 %v1162, %v1158
        %v1483 = vpack.c.b16 %v1163, %v1159
        %v1484 = vpack.c.b16 %v1164, %v1160
        %v1485 = vpack.c.b16 %v1165, %v1161
        %v1486 = vpack.c.b16 %v1170, %v1166
        %v1487 = vpack.c.b16 %v1171, %v1167
        %v1488 = vpack.c.b16 %v1172, %v1168
        %v1489 = vpack.c.b16 %v1173, %v1169
        %v1490 = vpack.c.b16 %v1178, %v1174
        %v1491 = vpack.c.b16 %v1179, %v1175
        %v1492 = vpack.c.b16 %v1180, %v1176
        %v1493 = vpack.c.b16 %v1181, %v1177
        %v1494 = vpack.c.b16 %v1186, %v1182
        %v1495 = vpack.c.b16 %v1187, %v1183
        %v1496 = vpack.c.b16 %v1188, %v1184
        %v1497 = vpack.c.b16 %v1189, %v1185
        %v1498 = vpack.c.b16 %v1194, %v1190
        %v1499 = vpack.c.b16 %v1195, %v1191
        %v1500 = vpack.c.b16 %v1196, %v1192
        %v1501 = vpack.c.b16 %v1197, %v1193
        %v1502 = vpack.c.b16 %v1202, %v1198
        %v1503 = vpack.c.b16 %v1203, %v1199
        %v1504 = vpack.c.b16 %v1204, %v1200
        %v1505 = vpack.c.b16 %v1205, %v1201
        %v1506 = vpack.c.b16 %v1210, %v1206
        %v1507 = vpack.c.b16 %v1211, %v1207
        %v1508 = vpack.c.b16 %v1212, %v1208
        %v1509 = vpack.c.b16 %v1213, %v1209
        %v1510 = vpack.c.b16 %v1218, %v1214
        %v1511 = vpack.c.b16 %v1219, %v1215
        %v1512 = vpack.c.b16 %v1220, %v1216
        %v1513 = vpack.c.b16 %v1221, %v1217
        %v1514 = vpack.c.b16 %v1226, %v1222
        %v1515 = vpack.c.b16 %v1227, %v1223
        %v1516 = vpack.c.b16 %v1228, %v1224
        %v1517 = vpack.c.b16 %v1229, %v1225
        %v1518 = vpack.c.b16 %v1234, %v1230
        %v1519 = vpack.c.b16 %v1235, %v1231
        %v1520 = vpack.c.b16 %v1236, %v1232
        %v1521 = vpack.c.b16 %v1237, %v1233
        %v1522 = vpack.c.b16 %v1242, %v1238
        %v1523 = vpack.c.b16 %v1243, %v1239
        %v1524 = vpack.c.b16 %v1244, %v1240
        %v1525 = vpack.c.b16 %v1245, %v1241
        %v1526 = vpack.c.b16 %v1250, %v1246
        %v1527 = vpack.c.b16 %v1251, %v1247
        %v1528 = vpack.c.b16 %v1252, %v1248
        %v1529 = vpack.c.b16 %v1253, %v1249
        %v1530 = vpack.c.b16 %v1258, %v1254
        %v1531 = vpack.c.b16 %v1259, %v1255
        %v1532 = vpack.c.b16 %v1260, %v1256
        %v1533 = vpack.c.b16 %v1261, %v1257
        %v1534 = vpack.c.b16 %v1266, %v1262
        %v1535 = vpack.c.b16 %v1267, %v1263
        %v1536 = vpack.c.b16 %v1268, %v1264
        %v1537 = vpack.c.b16 %v1269, %v1265
        %v1538 = vpack.c.b16 %v1274, %v1270
        %v1539 = vpack.c.b16 %v1275, %v1271
        %v1540 = vpack.c.b16 %v1276, %v1272
        %v1541 = vpack.c.b16 %v1277, %v1273
        %v1542 = vpack.c.b16 %v1282, %v1278
        %v1543 = vpack.c.b16 %v1283, %v1279
        %v1544 = vpack.c.b16 %v1284, %v1280
        %v1545 = vpack.c.b16 %v1285, %v1281
        %v1546 = vpack.c.b16 %v1290, %v1286
        %v1547 = vpack.c.b16 %v1291, %v1287
        %v1548 = vpack.c.b16 %v1292, %v1288
        %v1549 = vpack.c.b16 %v1293, %v1289
        %v1550 = vpack.c.b16 %v1298, %v1294
        %v1551 = vpack.c.b16 %v1299, %v1295
        %v1552 = vpack.c.b16 %v1300, %v1296
        %v1553 = vpack.c.b16 %v1301, %v1297
        %v1554 = vpack.c.b16 %v1306, %v1302
        %v1555 = vpack.c.b16 %v1307, %v1303
        %v1556 = vpack.c.b16 %v1308, %v1304
        %v1557 = vpack.c.b16 %v1309, %v1305
        %v1558 = vpack.c.b16 %v1314, %v1310
        %v1559 = vpack.c.b16 %v1315, %v1311
        %v1560 = vpack.c.b16 %v1316, %v1312
        %v1561 = vpack.c.b16 %v1317, %v1313
        %v1562 = vpack.c.b16 %v1322, %v1318
        %v1563 = vpack.c.b16 %v1323, %v1319
        %v1564 = vpack.c.b16 %v1324, %v1320
        %v1565 = vpack.c.b16 %v1325, %v1321
        %v1566 = vpack.c.b16 %v1330, %v1326
        %v1567 = vpack.c.b16 %v1331, %v1327
        %v1568 = vpack.c.b16 %v1332, %v1328
        %v1569 = vpack.c.b16 %v1333, %v1329
        %v1570 = vpack.c.b16 %v1338, %v1334
        %v1571 = vpack.c.b16 %v1339, %v1335
        %v1572 = vpack.c.b16 %v1340, %v1336
        %v1573 = vpack.c.b16 %v1341, %v1337
        %v1574 = vpack.c.b16 %v1346, %v1342
        %v1575 = vpack.c.b16 %v1347, %v1343
        %v1576 = vpack.c.b16 %v1348, %v1344
        %v1577 = vpack.c.b16 %v1349, %v1345
        %v1578 = vpack.c.b16 %v1354, %v1350
        %v1579 = vpack.c.b16 %v1355, %v1351
        %v1580 = vpack.c.b16 %v1356, %v1352
        %v1581 = vpack.c.b16 %v1357, %v1353
        %1806 = vmatprep.subr.bf16.mxu0 %v1387
        %1807 = vmatpush1.bf16.msra.mxu0 %v1386
        %1808 = vmatprep.subr.bf16.mxu0 %v1383
        %1809 = vmatpush1.bf16.msra.mxu0 %v1382
        %1810 = vmatprep.subr.bf16.mxu0 %v1379
        %1811 = vmatpush1.bf16.msra.mxu0 %v1378
        %1812 = vmatprep.subr.bf16.mxu0 %v1375
        %1813 = vmatpush1.bf16.msra.mxu0 %v1374
        %1814 = vmatprep.subr.bf16.mxu0 %v1371
        %1815 = vmatpush1.bf16.msra.mxu0 %v1370
        %1816 = vmatprep.subr.bf16.mxu0 %v1367
        %1817 = vmatpush1.bf16.msra.mxu0 %v1366
        %1818 = vmatprep.subr.bf16.mxu0 %v1363
        %1819 = vmatpush1.bf16.msra.mxu0 %v1362
        %1820 = vmatprep.subr.bf16.mxu0 %v1359
        %1821 = vmatpush1.bf16.msra.mxu0 %v1358
        %1822 = vmatprep.subr.bf16.mxu0 %v1419
        %1823 = vmatpush2.bf16.msra.mxu0 %v1418
        %1824 = vmatprep.subr.bf16.mxu0 %v1415
        %1825 = vmatpush2.bf16.msra.mxu0 %v1414
        %1826 = vmatprep.subr.bf16.mxu0 %v1411
        %1827 = vmatpush2.bf16.msra.mxu0 %v1410
        %1828 = vmatprep.subr.bf16.mxu0 %v1407
        %1829 = vmatpush2.bf16.msra.mxu0 %v1406
        %1830 = vmatprep.subr.bf16.mxu0 %v1403
        %1831 = vmatpush2.bf16.msra.mxu0 %v1402
        %1832 = vmatprep.subr.bf16.mxu0 %v1399
        %1833 = vmatpush2.bf16.msra.mxu0 %v1398
        %1834 = vmatprep.subr.bf16.mxu0 %v1395
        %1835 = vmatpush2.bf16.msra.mxu0 %v1394
        %1836 = vmatprep.subr.bf16.mxu0 %v1391
        %1837 = vmatpush2.bf16.msra.mxu0 %v1390
        %1838 = vmatprep.mubr.bf16.mxu0 %v668
        %1839 = vmatmul.mubr.bf16.gmra.mxu0 %v654
        %v1840 = vpop.f32.mrf.mxu0
        %v1841 = vadd.f32 0.0, %v1840
        %v1842 = vpop.f32.mrf.mxu0
        %v1843 = vadd.f32 0.0, %v1842
        %v1844 = vpop.f32.mrf.mxu0
        %v1845 = vpop.f32.mrf.mxu0
        %1846 = vdwg.mxu0
        %1847 = vmatprep.subr.bf16.mxu0 %v1451
        %1848 = vmatpush1.bf16.msra.mxu0 %v1450
        %1849 = vmatprep.subr.bf16.mxu0 %v1447
        %1850 = vmatpush1.bf16.msra.mxu0 %v1446
        %1851 = vmatprep.subr.bf16.mxu0 %v1443
        %1852 = vmatpush1.bf16.msra.mxu0 %v1442
        %1853 = vmatprep.subr.bf16.mxu0 %v1439
        %1854 = vmatpush1.bf16.msra.mxu0 %v1438
        %1855 = vmatprep.subr.bf16.mxu0 %v1435
        %1856 = vmatpush1.bf16.msra.mxu0 %v1434
        %1857 = vmatprep.subr.bf16.mxu0 %v1431
        %1858 = vmatpush1.bf16.msra.mxu0 %v1430
        %1859 = vmatprep.subr.bf16.mxu0 %v1427
        %1860 = vmatpush1.bf16.msra.mxu0 %v1426
        %1861 = vmatprep.subr.bf16.mxu0 %v1423
        %1862 = vmatpush1.bf16.msra.mxu0 %v1422
        %1863 = vmatprep.subr.bf16.mxu0 %v1483
        %1864 = vmatpush2.bf16.msra.mxu0 %v1482
        %1865 = vmatprep.subr.bf16.mxu0 %v1479
        %1866 = vmatpush2.bf16.msra.mxu0 %v1478
        %1867 = vmatprep.subr.bf16.mxu0 %v1475
        %1868 = vmatpush2.bf16.msra.mxu0 %v1474
        %1869 = vmatprep.subr.bf16.mxu0 %v1471
        %1870 = vmatpush2.bf16.msra.mxu0 %v1470
        %1871 = vmatprep.subr.bf16.mxu0 %v1467
        %1872 = vmatpush2.bf16.msra.mxu0 %v1466
        %1873 = vmatprep.subr.bf16.mxu0 %v1463
        %1874 = vmatpush2.bf16.msra.mxu0 %v1462
        %1875 = vmatprep.subr.bf16.mxu0 %v1459
        %1876 = vmatpush2.bf16.msra.mxu0 %v1458
        %1877 = vmatprep.subr.bf16.mxu0 %v1455
        %1878 = vmatpush2.bf16.msra.mxu0 %v1454
        %1879 = vmatprep.mubr.bf16.mxu0 %v678
        %1880 = vmatmul.mubr.bf16.gmra.mxu0 %v676
        %v1881 = vpop.f32.mrf.mxu0
        %v1882 = vadd.f32 %v1841, %v1881
        %v1883 = vpop.f32.mrf.mxu0
        %v1884 = vadd.f32 %v1843, %v1883
        %v1885 = vpop.f32.mrf.mxu0
        %v1886 = vpop.f32.mrf.mxu0
        %1887 = vdwg.mxu0
        %1888 = vmatprep.subr.bf16.mxu0 %v1515
        %1889 = vmatpush1.bf16.msra.mxu0 %v1514
        %1890 = vmatprep.subr.bf16.mxu0 %v1511
        %1891 = vmatpush1.bf16.msra.mxu0 %v1510
        %1892 = vmatprep.subr.bf16.mxu0 %v1507
        %1893 = vmatpush1.bf16.msra.mxu0 %v1506
        %1894 = vmatprep.subr.bf16.mxu0 %v1503
        %1895 = vmatpush1.bf16.msra.mxu0 %v1502
        %1896 = vmatprep.subr.bf16.mxu0 %v1499
        %1897 = vmatpush1.bf16.msra.mxu0 %v1498
        %1898 = vmatprep.subr.bf16.mxu0 %v1495
        %1899 = vmatpush1.bf16.msra.mxu0 %v1494
        %1900 = vmatprep.subr.bf16.mxu0 %v1491
        %1901 = vmatpush1.bf16.msra.mxu0 %v1490
        %1902 = vmatprep.subr.bf16.mxu0 %v1487
        %1903 = vmatpush1.bf16.msra.mxu0 %v1486
        %1904 = vmatprep.subr.bf16.mxu0 %v1547
        %1905 = vmatpush2.bf16.msra.mxu0 %v1546
        %1906 = vmatprep.subr.bf16.mxu0 %v1543
        %1907 = vmatpush2.bf16.msra.mxu0 %v1542
        %1908 = vmatprep.subr.bf16.mxu0 %v1539
        %1909 = vmatpush2.bf16.msra.mxu0 %v1538
        %1910 = vmatprep.subr.bf16.mxu0 %v1535
        %1911 = vmatpush2.bf16.msra.mxu0 %v1534
        %1912 = vmatprep.subr.bf16.mxu0 %v1531
        %1913 = vmatpush2.bf16.msra.mxu0 %v1530
        %1914 = vmatprep.subr.bf16.mxu0 %v1527
        %1915 = vmatpush2.bf16.msra.mxu0 %v1526
        %1916 = vmatprep.subr.bf16.mxu0 %v1523
        %1917 = vmatpush2.bf16.msra.mxu0 %v1522
        %1918 = vmatprep.subr.bf16.mxu0 %v1519
        %1919 = vmatpush2.bf16.msra.mxu0 %v1518
        %1920 = vmatprep.mubr.bf16.mxu0 %v675
        %1921 = vmatmul.mubr.bf16.gmra.mxu0 %v661
        %v1922 = vpop.f32.mrf.mxu0
        %v1923 = vadd.f32 %v1882, %v1922
        %v1924 = vpop.f32.mrf.mxu0
        %v1925 = vadd.f32 %v1884, %v1924
        %v1926 = vpop.f32.mrf.mxu0
        %v1927 = vpop.f32.mrf.mxu0
        %1928 = vdwg.mxu0
        %1929 = vmatprep.subr.bf16.mxu0 %v1579
        %1930 = vmatpush1.bf16.msra.mxu0 %v1578
        %1931 = vmatprep.subr.bf16.mxu0 %v1575
        %1932 = vmatpush1.bf16.msra.mxu0 %v1574
        %1933 = vmatprep.subr.bf16.mxu0 %v1571
        %1934 = vmatpush1.bf16.msra.mxu0 %v1570
        %1935 = vmatprep.subr.bf16.mxu0 %v1567
        %1936 = vmatpush1.bf16.msra.mxu0 %v1566
        %1937 = vmatprep.subr.bf16.mxu0 %v1563
        %1938 = vmatpush1.bf16.msra.mxu0 %v1562
        %1939 = vmatprep.subr.bf16.mxu0 %v1559
        %1940 = vmatpush1.bf16.msra.mxu0 %v1558
        %1941 = vmatprep.subr.bf16.mxu0 %v1555
        %1942 = vmatpush1.bf16.msra.mxu0 %v1554
        %1943 = vmatprep.subr.bf16.mxu0 %v1551
        %1944 = vmatpush1.bf16.msra.mxu0 %v1550
        %1945 = vmatprep.subr.bf16.mxu0 0
        %1946 = vmatpush2.bf16.msra.mxu0 0
        %1947 = vmatprep.subr.bf16.mxu0 0
        %1948 = vmatpush2.bf16.msra.mxu0 0
        %1949 = vmatprep.subr.bf16.mxu0 0
        %1950 = vmatpush2.bf16.msra.mxu0 0
        %1951 = vmatprep.subr.bf16.mxu0 0
        %1952 = vmatpush2.bf16.msra.mxu0 0
        %1953 = vmatprep.subr.bf16.mxu0 0
        %1954 = vmatpush2.bf16.msra.mxu0 0
        %1955 = vmatprep.subr.bf16.mxu0 0
        %1956 = vmatpush2.bf16.msra.mxu0 0
        %1957 = vmatprep.subr.bf16.mxu0 0
        %1958 = vmatpush2.bf16.msra.mxu0 0
        %1959 = vmatprep.subr.bf16.mxu0 0
        %1960 = vmatpush2.bf16.msra.mxu0 0
        %1961 = vmatprep.mubr.bf16.mxu0 0
        %1962 = vmatmul.mubr.bf16.gmra.mxu0 %v677
        %v1963 = vpop.f32.mrf.mxu0
        %v1964 = vadd.f32 %v1923, %v1963
        %v1965 = vpop.f32.mrf.mxu0
        %v1966 = vadd.f32 %v1925, %v1965
        %v1967 = vpop.f32.mrf.mxu0
        %v1968 = vpop.f32.mrf.mxu0
        %1969 = vdwg.mxu0
        %1970 = vmatprep.subr.bf16.mxu0 %v1389
        %1971 = vmatpush1.bf16.msra.mxu0 %v1388
        %1972 = vmatprep.subr.bf16.mxu0 %v1385
        %1973 = vmatpush1.bf16.msra.mxu0 %v1384
        %1974 = vmatprep.subr.bf16.mxu0 %v1381
        %1975 = vmatpush1.bf16.msra.mxu0 %v1380
        %1976 = vmatprep.subr.bf16.mxu0 %v1377
        %1977 = vmatpush1.bf16.msra.mxu0 %v1376
        %1978 = vmatprep.subr.bf16.mxu0 %v1373
        %1979 = vmatpush1.bf16.msra.mxu0 %v1372
        %1980 = vmatprep.subr.bf16.mxu0 %v1369
        %1981 = vmatpush1.bf16.msra.mxu0 %v1368
        %1982 = vmatprep.subr.bf16.mxu0 %v1365
        %1983 = vmatpush1.bf16.msra.mxu0 %v1364
        %1984 = vmatprep.subr.bf16.mxu0 %v1361
        %1985 = vmatpush1.bf16.msra.mxu0 %v1360
        %1986 = vmatprep.subr.bf16.mxu0 %v1421
        %1987 = vmatpush2.bf16.msra.mxu0 %v1420
        %1988 = vmatprep.subr.bf16.mxu0 %v1417
        %1989 = vmatpush2.bf16.msra.mxu0 %v1416
        %1990 = vmatprep.subr.bf16.mxu0 %v1413
        %1991 = vmatpush2.bf16.msra.mxu0 %v1412
        %1992 = vmatprep.subr.bf16.mxu0 %v1409
        %1993 = vmatpush2.bf16.msra.mxu0 %v1408
        %1994 = vmatprep.subr.bf16.mxu0 %v1405
        %1995 = vmatpush2.bf16.msra.mxu0 %v1404
        %1996 = vmatprep.subr.bf16.mxu0 %v1401
        %1997 = vmatpush2.bf16.msra.mxu0 %v1400
        %1998 = vmatprep.subr.bf16.mxu0 %v1397
        %1999 = vmatpush2.bf16.msra.mxu0 %v1396
        %2000 = vmatprep.subr.bf16.mxu0 %v1393
        %2001 = vmatpush2.bf16.msra.mxu0 %v1392
        %2002 = vmatprep.mubr.bf16.mxu0 %v668
        %2003 = vmatmul.mubr.bf16.gmra.mxu0 %v654
        %v2004 = vpop.f32.mrf.mxu0
        %v2005 = vadd.f32 0.0, %v2004
        %v2006 = vpop.f32.mrf.mxu0
        %v2007 = vadd.f32 0.0, %v2006
        %v2008 = vpop.f32.mrf.mxu0
        %v2009 = vpop.f32.mrf.mxu0
        %2010 = vdwg.mxu0
        %2011 = vmatprep.subr.bf16.mxu0 %v1453
        %2012 = vmatpush1.bf16.msra.mxu0 %v1452
        %2013 = vmatprep.subr.bf16.mxu0 %v1449
        %2014 = vmatpush1.bf16.msra.mxu0 %v1448
        %2015 = vmatprep.subr.bf16.mxu0 %v1445
        %2016 = vmatpush1.bf16.msra.mxu0 %v1444
        %2017 = vmatprep.subr.bf16.mxu0 %v1441
        %2018 = vmatpush1.bf16.msra.mxu0 %v1440
        %2019 = vmatprep.subr.bf16.mxu0 %v1437
        %2020 = vmatpush1.bf16.msra.mxu0 %v1436
        %2021 = vmatprep.subr.bf16.mxu0 %v1433
        %2022 = vmatpush1.bf16.msra.mxu0 %v1432
        %2023 = vmatprep.subr.bf16.mxu0 %v1429
        %2024 = vmatpush1.bf16.msra.mxu0 %v1428
        %2025 = vmatprep.subr.bf16.mxu0 %v1425
        %2026 = vmatpush1.bf16.msra.mxu0 %v1424
        %2027 = vmatprep.subr.bf16.mxu0 %v1485
        %2028 = vmatpush2.bf16.msra.mxu0 %v1484
        %2029 = vmatprep.subr.bf16.mxu0 %v1481
        %2030 = vmatpush2.bf16.msra.mxu0 %v1480
        %2031 = vmatprep.subr.bf16.mxu0 %v1477
        %2032 = vmatpush2.bf16.msra.mxu0 %v1476
        %2033 = vmatprep.subr.bf16.mxu0 %v1473
        %2034 = vmatpush2.bf16.msra.mxu0 %v1472
        %2035 = vmatprep.subr.bf16.mxu0 %v1469
        %2036 = vmatpush2.bf16.msra.mxu0 %v1468
        %2037 = vmatprep.subr.bf16.mxu0 %v1465
        %2038 = vmatpush2.bf16.msra.mxu0 %v1464
        %2039 = vmatprep.subr.bf16.mxu0 %v1461
        %2040 = vmatpush2.bf16.msra.mxu0 %v1460
        %2041 = vmatprep.subr.bf16.mxu0 %v1457
        %2042 = vmatpush2.bf16.msra.mxu0 %v1456
        %2043 = vmatprep.mubr.bf16.mxu0 %v678
        %2044 = vmatmul.mubr.bf16.gmra.mxu0 %v676
        %v2045 = vpop.f32.mrf.mxu0
        %v2046 = vadd.f32 %v2005, %v2045
        %v2047 = vpop.f32.mrf.mxu0
        %v2048 = vadd.f32 %v2007, %v2047
        %v2049 = vpop.f32.mrf.mxu0
        %v2050 = vpop.f32.mrf.mxu0
        %2051 = vdwg.mxu0
        %2052 = vmatprep.subr.bf16.mxu0 %v1517
        %2053 = vmatpush1.bf16.msra.mxu0 %v1516
        %2054 = vmatprep.subr.bf16.mxu0 %v1513
        %2055 = vmatpush1.bf16.msra.mxu0 %v1512
        %2056 = vmatprep.subr.bf16.mxu0 %v1509
        %2057 = vmatpush1.bf16.msra.mxu0 %v1508
        %2058 = vmatprep.subr.bf16.mxu0 %v1505
        %2059 = vmatpush1.bf16.msra.mxu0 %v1504
        %2060 = vmatprep.subr.bf16.mxu0 %v1501
        %2061 = vmatpush1.bf16.msra.mxu0 %v1500
        %2062 = vmatprep.subr.bf16.mxu0 %v1497
        %2063 = vmatpush1.bf16.msra.mxu0 %v1496
        %2064 = vmatprep.subr.bf16.mxu0 %v1493
        %2065 = vmatpush1.bf16.msra.mxu0 %v1492
        %2066 = vmatprep.subr.bf16.mxu0 %v1489
        %2067 = vmatpush1.bf16.msra.mxu0 %v1488
        %2068 = vmatprep.subr.bf16.mxu0 %v1549
        %2069 = vmatpush2.bf16.msra.mxu0 %v1548
        %2070 = vmatprep.subr.bf16.mxu0 %v1545
        %2071 = vmatpush2.bf16.msra.mxu0 %v1544
        %2072 = vmatprep.subr.bf16.mxu0 %v1541
        %2073 = vmatpush2.bf16.msra.mxu0 %v1540
        %2074 = vmatprep.subr.bf16.mxu0 %v1537
        %2075 = vmatpush2.bf16.msra.mxu0 %v1536
        %2076 = vmatprep.subr.bf16.mxu0 %v1533
        %2077 = vmatpush2.bf16.msra.mxu0 %v1532
        %2078 = vmatprep.subr.bf16.mxu0 %v1529
        %2079 = vmatpush2.bf16.msra.mxu0 %v1528
        %2080 = vmatprep.subr.bf16.mxu0 %v1525
        %2081 = vmatpush2.bf16.msra.mxu0 %v1524
        %2082 = vmatprep.subr.bf16.mxu0 %v1521
        %2083 = vmatpush2.bf16.msra.mxu0 %v1520
        %2084 = vmatprep.mubr.bf16.mxu0 %v675
        %2085 = vmatmul.mubr.bf16.gmra.mxu0 %v661
        %v2086 = vpop.f32.mrf.mxu0
        %v2087 = vadd.f32 %v2046, %v2086
        %v2088 = vpop.f32.mrf.mxu0
        %v2089 = vadd.f32 %v2048, %v2088
        %v2090 = vpop.f32.mrf.mxu0
        %v2091 = vpop.f32.mrf.mxu0
        %2092 = vdwg.mxu0
        %2093 = vmatprep.subr.bf16.mxu0 %v1581
        %2094 = vmatpush1.bf16.msra.mxu0 %v1580
        %2095 = vmatprep.subr.bf16.mxu0 %v1577
        %2096 = vmatpush1.bf16.msra.mxu0 %v1576
        %2097 = vmatprep.subr.bf16.mxu0 %v1573
        %2098 = vmatpush1.bf16.msra.mxu0 %v1572
        %2099 = vmatprep.subr.bf16.mxu0 %v1569
        %2100 = vmatpush1.bf16.msra.mxu0 %v1568
        %2101 = vmatprep.subr.bf16.mxu0 %v1565
        %2102 = vmatpush1.bf16.msra.mxu0 %v1564
        %2103 = vmatprep.subr.bf16.mxu0 %v1561
        %2104 = vmatpush1.bf16.msra.mxu0 %v1560
        %2105 = vmatprep.subr.bf16.mxu0 %v1557
        %2106 = vmatpush1.bf16.msra.mxu0 %v1556
        %2107 = vmatprep.subr.bf16.mxu0 %v1553
        %2108 = vmatpush1.bf16.msra.mxu0 %v1552
        %2109 = vmatprep.subr.bf16.mxu0 0
        %2110 = vmatpush2.bf16.msra.mxu0 0
        %2111 = vmatprep.subr.bf16.mxu0 0
        %2112 = vmatpush2.bf16.msra.mxu0 0
        %2113 = vmatprep.subr.bf16.mxu0 0
        %2114 = vmatpush2.bf16.msra.mxu0 0
        %2115 = vmatprep.subr.bf16.mxu0 0
        %2116 = vmatpush2.bf16.msra.mxu0 0
        %2117 = vmatprep.subr.bf16.mxu0 0
        %2118 = vmatpush2.bf16.msra.mxu0 0
        %2119 = vmatprep.subr.bf16.mxu0 0
        %2120 = vmatpush2.bf16.msra.mxu0 0
        %2121 = vmatprep.subr.bf16.mxu0 0
        %2122 = vmatpush2.bf16.msra.mxu0 0
        %2123 = vmatprep.subr.bf16.mxu0 0
        %2124 = vmatpush2.bf16.msra.mxu0 0
        %2125 = vmatprep.mubr.bf16.mxu0 0
        %2126 = vmatmul.mubr.bf16.gmra.mxu0 %v677
        %v2127 = vpop.f32.mrf.mxu0
        %v2128 = vadd.f32 %v2087, %v2127
        %v2129 = vpop.f32.mrf.mxu0
        %v2130 = vadd.f32 %v2089, %v2129
        %v2131 = vpop.f32.mrf.mxu0
        %v2132 = vpop.f32.mrf.mxu0
        %2133 = vdwg.mxu0
        %v2138 = vcombine.low %v1964, %v1966
        %v2139 = vcombine.low %v2128, %v2130
        %v2141 = vunpack.c.l.s4 1983009808
        %v2142 = vunpack.c.0.s8 %v2141
        %v2143 = vlaneseq
        %v2144 = vshrl.u32 %v2143, 7
        %v2145 = vsub.s32 %v2142, %v2144
        %v2146 = vrot.slane %v2138, %v2145
        %v2148 = vunpack.c.l.s4 1983009808
        %v2149 = vunpack.c.0.s8 %v2148
        %v2150 = vlaneseq
        %v2151 = vshrl.u32 %v2150, 7
        %v2152 = vsub.s32 %v2149, %v2151
        %v2153 = vrot.slane %v2139, %v2152
        %v2154 = vcombine.low %v2146, %v2153
        %v2156 = vadd.f32 %v404, %v2154
        %2157 = vst [vmem:[#allocation2] sm:$0xff] %v2156
        %p2158 = scmp.eq.s32.totalorder %s30, 6
        // Predicated region
        $region61: #{qy_x_forward.4} parent=39 // pred_check
          %p2159 = pneg %p2158
        $region62: #{qy_x_forward.4} parent=39 // pred_check_branch
          %2161 = sbr.rel (%p2159) target = $region64
        $region63: #{qy_x_forward.4} parent=39 // pred_region
          %v2162 = vld [vmem:[#allocation2] sm:$0xff]
          %v2163 = vld [vmem:[%s318] sm:$0xf]
          %v2165 = vlaneseq
          %v2166 = vshrl.u32 %v2165, 7
          %v2167 = vsub.s32 0, %v2166
          %v2168 = vrot.slane %v2163, %v2167
          %v2169 = vlaneseq
          %v2170 = vshrl.u32 %v2169, 7
          %v2171 = vsub.s32 1, %v2170
          %v2172 = vrot.slane %v2163, %v2171
          %v2173 = vlaneseq
          %v2174 = vshrl.u32 %v2173, 7
          %v2175 = vsub.s32 2, %v2174
          %v2176 = vrot.slane %v2163, %v2175
          %v2177 = vlaneseq
          %v2178 = vshrl.u32 %v2177, 7
          %v2179 = vsub.s32 3, %v2178
          %v2180 = vrot.slane %v2163, %v2179
          %v2181 = vcombine.low %v2168, %v2172
          %v2182 = vcombine.low %v2176, %v2180
          %v2184 = vunpack.c.l.s4 1983009808
          %v2185 = vunpack.c.0.s8 %v2184
          %v2186 = vlaneseq
          %v2187 = vshrl.u32 %v2186, 7
          %v2188 = vsub.s32 %v2185, %v2187
          %v2189 = vrot.slane %v2181, %v2188
          %v2191 = vunpack.c.l.s4 1983009808
          %v2192 = vunpack.c.0.s8 %v2191
          %v2193 = vlaneseq
          %v2194 = vshrl.u32 %v2193, 7
          %v2195 = vsub.s32 %v2192, %v2194
          %v2196 = vrot.slane %v2182, %v2195
          %v2197 = vcombine.low %v2189, %v2196
          %v2199 = vadd.f32 %v2162, %v2197
          %v2201 = vcombine.high %v2199, %v2199
          %v2203 = vunpack.c.l.s4 1983009808
          %v2204 = vunpack.c.0.s8 %v2203
          %v2205 = vlaneseq
          %v2206 = vshrl.u32 %v2205, 7
          %v2207 = vsub.s32 %v2204, %v2206
          %v2208 = vrot.slane %v2199, %v2207
          %v2210 = vunpack.c.l.s4 1983009808
          %v2211 = vunpack.c.0.s8 %v2210
          %v2212 = vlaneseq
          %v2213 = vshrl.u32 %v2212, 7
          %v2214 = vsub.s32 %v2211, %v2213
          %v2215 = vrot.slane %v2201, %v2214
          %v2216 = vcombine.high %v2208, %v2208
          %v2217 = vcombine.high %v2215, %v2215
          %vm2222 = vcmask 1041408
          %v2223 = vsel %vm2222, %v2208, 0.0
          %v2224 = vrot.slane %v2223, 4
          %v2225 = vadd.f32 %v2223, %v2224
          %v2226 = vrot.slane %v2225, 2
          %v2227 = vadd.f32 %v2225, %v2226
          %v2228 = vrot.slane %v2227, 1
          %v2229 = vadd.f32 %v2227, %v2228
          %v2230 = vsel %vm2222, %v2216, 0.0
          %v2231 = vrot.slane %v2230, 4
          %v2232 = vadd.f32 %v2230, %v2231
          %v2233 = vrot.slane %v2232, 2
          %v2234 = vadd.f32 %v2232, %v2233
          %v2235 = vrot.slane %v2234, 1
          %v2236 = vadd.f32 %v2234, %v2235
          %v2237 = vsel %vm2222, %v2215, 0.0
          %v2238 = vrot.slane %v2237, 4
          %v2239 = vadd.f32 %v2237, %v2238
          %v2240 = vrot.slane %v2239, 2
          %v2241 = vadd.f32 %v2239, %v2240
          %v2242 = vrot.slane %v2241, 1
          %v2243 = vadd.f32 %v2241, %v2242
          %v2244 = vsel %vm2222, %v2217, 0.0
          %v2245 = vrot.slane %v2244, 4
          %v2246 = vadd.f32 %v2244, %v2245
          %v2247 = vrot.slane %v2246, 2
          %v2248 = vadd.f32 %v2246, %v2247
          %v2249 = vrot.slane %v2248, 1
          %v2250 = vadd.f32 %v2248, %v2249
          %v2251 = vrcp.pop 2.0
          %v2252 = vmul.f32 %v2229, %v2251
          %v2253 = vmul.f32 %v2236, %v2251
          %v2254 = vmul.f32 %v2243, %v2251
          %v2255 = vmul.f32 %v2250, %v2251
          %v2256 = vmul.f32 %v2199, %v2199
          %v2258 = vcombine.high %v2256, %v2256
          %v2260 = vunpack.c.l.s4 1983009808
          %v2261 = vunpack.c.0.s8 %v2260
          %v2262 = vlaneseq
          %v2263 = vshrl.u32 %v2262, 7
          %v2264 = vsub.s32 %v2261, %v2263
          %v2265 = vrot.slane %v2256, %v2264
          %v2267 = vunpack.c.l.s4 1983009808
          %v2268 = vunpack.c.0.s8 %v2267
          %v2269 = vlaneseq
          %v2270 = vshrl.u32 %v2269, 7
          %v2271 = vsub.s32 %v2268, %v2270
          %v2272 = vrot.slane %v2258, %v2271
          %v2273 = vcombine.high %v2265, %v2265
          %v2274 = vcombine.high %v2272, %v2272
          %v2279 = vsel %vm2222, %v2265, 0.0
          %v2280 = vrot.slane %v2279, 4
          %v2281 = vadd.f32 %v2279, %v2280
          %v2282 = vrot.slane %v2281, 2
          %v2283 = vadd.f32 %v2281, %v2282
          %v2284 = vrot.slane %v2283, 1
          %v2285 = vadd.f32 %v2283, %v2284
          %v2286 = vsel %vm2222, %v2273, 0.0
          %v2287 = vrot.slane %v2286, 4
          %v2288 = vadd.f32 %v2286, %v2287
          %v2289 = vrot.slane %v2288, 2
          %v2290 = vadd.f32 %v2288, %v2289
          %v2291 = vrot.slane %v2290, 1
          %v2292 = vadd.f32 %v2290, %v2291
          %v2293 = vsel %vm2222, %v2272, 0.0
          %v2294 = vrot.slane %v2293, 4
          %v2295 = vadd.f32 %v2293, %v2294
          %v2296 = vrot.slane %v2295, 2
          %v2297 = vadd.f32 %v2295, %v2296
          %v2298 = vrot.slane %v2297, 1
          %v2299 = vadd.f32 %v2297, %v2298
          %v2300 = vsel %vm2222, %v2274, 0.0
          %v2301 = vrot.slane %v2300, 4
          %v2302 = vadd.f32 %v2300, %v2301
          %v2303 = vrot.slane %v2302, 2
          %v2304 = vadd.f32 %v2302, %v2303
          %v2305 = vrot.slane %v2304, 1
          %v2306 = vadd.f32 %v2304, %v2305
          %v2307 = vmul.f32 %v2285, %v2251
          %v2308 = vmul.f32 %v2292, %v2251
          %v2309 = vmul.f32 %v2299, %v2251
          %v2310 = vmul.f32 %v2306, %v2251
          %v2311 = vmul.f32 %v2252, %v2252
          %v2312 = vmul.f32 %v2253, %v2253
          %v2313 = vmul.f32 %v2254, %v2254
          %v2314 = vmul.f32 %v2255, %v2255
          %v2315 = vsub.f32 %v2307, %v2311
          %v2316 = vsub.f32 %v2308, %v2312
          %v2317 = vsub.f32 %v2309, %v2313
          %v2318 = vsub.f32 %v2310, %v2314
          %v2319 = vmax.f32 %v2315, 0.0
          %v2320 = vmax.f32 %v2316, 0.0
          %v2321 = vmax.f32 %v2317, 0.0
          %v2322 = vmax.f32 %v2318, 0.0
          %v2327 = vcombine.low %v2252, %v2253
          %v2328 = vcombine.low %v2254, %v2255
          %v2330 = vunpack.c.l.s4 1983009808
          %v2331 = vunpack.c.0.s8 %v2330
          %v2332 = vlaneseq
          %v2333 = vshrl.u32 %v2332, 7
          %v2334 = vsub.s32 %v2331, %v2333
          %v2335 = vrot.slane %v2327, %v2334
          %v2337 = vunpack.c.l.s4 1983009808
          %v2338 = vunpack.c.0.s8 %v2337
          %v2339 = vlaneseq
          %v2340 = vshrl.u32 %v2339, 7
          %v2341 = vsub.s32 %v2338, %v2340
          %v2342 = vrot.slane %v2328, %v2341
          %v2343 = vcombine.low %v2335, %v2342
          %v2345 = vsub.f32 %v2199, %v2343
          %v2346 = vadd.f32 %v2319, 1e-05
          %v2347 = vadd.f32 %v2320, 1e-05
          %v2348 = vadd.f32 %v2321, 1e-05
          %v2349 = vadd.f32 %v2322, 1e-05
          %v2350 = vrsqrt.pop %v2346
          %v2351 = vrsqrt.pop %v2347
          %v2352 = vrsqrt.pop %v2348
          %v2353 = vrsqrt.pop %v2349
          %v2358 = vcombine.low %v2350, %v2351
          %v2359 = vcombine.low %v2352, %v2353
          %v2361 = vunpack.c.l.s4 1983009808
          %v2362 = vunpack.c.0.s8 %v2361
          %v2363 = vlaneseq
          %v2364 = vshrl.u32 %v2363, 7
          %v2365 = vsub.s32 %v2362, %v2364
          %v2366 = vrot.slane %v2358, %v2365
          %v2368 = vunpack.c.l.s4 1983009808
          %v2369 = vunpack.c.0.s8 %v2368
          %v2370 = vlaneseq
          %v2371 = vshrl.u32 %v2370, 7
          %v2372 = vsub.s32 %v2369, %v2371
          %v2373 = vrot.slane %v2359, %v2372
          %v2374 = vcombine.low %v2366, %v2373
          %v2376 = vmul.f32 %v2345, %v2374
          %v2377 = vld [vmem:[%s327] sm:$0xf]
          %v2379 = vlaneseq
          %v2380 = vshrl.u32 %v2379, 7
          %v2381 = vsub.s32 0, %v2380
          %v2382 = vrot.slane %v2377, %v2381
          %v2383 = vlaneseq
          %v2384 = vshrl.u32 %v2383, 7
          %v2385 = vsub.s32 1, %v2384
          %v2386 = vrot.slane %v2377, %v2385
          %v2387 = vlaneseq
          %v2388 = vshrl.u32 %v2387, 7
          %v2389 = vsub.s32 2, %v2388
          %v2390 = vrot.slane %v2377, %v2389
          %v2391 = vlaneseq
          %v2392 = vshrl.u32 %v2391, 7
          %v2393 = vsub.s32 3, %v2392
          %v2394 = vrot.slane %v2377, %v2393
          %v2395 = vcombine.low %v2382, %v2386
          %v2396 = vcombine.low %v2390, %v2394
          %v2398 = vunpack.c.l.s4 1983009808
          %v2399 = vunpack.c.0.s8 %v2398
          %v2400 = vlaneseq
          %v2401 = vshrl.u32 %v2400, 7
          %v2402 = vsub.s32 %v2399, %v2401
          %v2403 = vrot.slane %v2395, %v2402
          %v2405 = vunpack.c.l.s4 1983009808
          %v2406 = vunpack.c.0.s8 %v2405
          %v2407 = vlaneseq
          %v2408 = vshrl.u32 %v2407, 7
          %v2409 = vsub.s32 %v2406, %v2408
          %v2410 = vrot.slane %v2396, %v2409
          %v2411 = vcombine.low %v2403, %v2410
          %v2413 = vmul.f32 %v2376, %v2411
          %v2414 = vld [vmem:[%s336] sm:$0xf]
          %v2416 = vlaneseq
          %v2417 = vshrl.u32 %v2416, 7
          %v2418 = vsub.s32 0, %v2417
          %v2419 = vrot.slane %v2414, %v2418
          %v2420 = vlaneseq
          %v2421 = vshrl.u32 %v2420, 7
          %v2422 = vsub.s32 1, %v2421
          %v2423 = vrot.slane %v2414, %v2422
          %v2424 = vlaneseq
          %v2425 = vshrl.u32 %v2424, 7
          %v2426 = vsub.s32 2, %v2425
          %v2427 = vrot.slane %v2414, %v2426
          %v2428 = vlaneseq
          %v2429 = vshrl.u32 %v2428, 7
          %v2430 = vsub.s32 3, %v2429
          %v2431 = vrot.slane %v2414, %v2430
          %v2432 = vcombine.low %v2419, %v2423
          %v2433 = vcombine.low %v2427, %v2431
          %v2435 = vunpack.c.l.s4 1983009808
          %v2436 = vunpack.c.0.s8 %v2435
          %v2437 = vlaneseq
          %v2438 = vshrl.u32 %v2437, 7
          %v2439 = vsub.s32 %v2436, %v2438
          %v2440 = vrot.slane %v2432, %v2439
          %v2442 = vunpack.c.l.s4 1983009808
          %v2443 = vunpack.c.0.s8 %v2442
          %v2444 = vlaneseq
          %v2445 = vshrl.u32 %v2444, 7
          %v2446 = vsub.s32 %v2443, %v2445
          %v2447 = vrot.slane %v2433, %v2446
          %v2448 = vcombine.low %v2440, %v2447
          %v2450 = vadd.f32 %v2413, %v2448
          %vm2451 = vcmp.gt.f32.partialorder %v2450, 0.0
          %v2452 = vmul.f32 %v2450, 0.2
          %v2453 = vsel %vm2451, %v2450, %v2452
          %2454 = vst [vmem:[%s396] sm:$0xff] %v2453
        $region64: #{qy_x_forward.4} parent=39 // pred_fallthru
          _
        %s2455 = smul.u32 4, %s29
        %p2456 = scmp.lt.s32.totalorder %s2455, 7
        %s2457 = scalar_select %p2456, %s2455, 7
        %s2458 = smul.addr %s2457, 2
        %s2459 = scalar_lea.vmem %s5, %s2458
        // Predicated region
        $region65: #{qy_x_forward.4} parent=39 // pred_check
          %p2460 = pneg %p187
        $region66: #{qy_x_forward.4} parent=39 // pred_check_branch
          %2462 = sbr.rel (%p2460) target = $region68
        $region67: #{qy_x_forward.4} parent=39 // pred_region
          %s2463 = smul.u32 4, %s29
        $region68: #{qy_x_forward.4} parent=39 // pred_fallthru
          _
      $region40: #{qy_x_forward.4} parent=5 // pred_fallthru
        _
      %p2464 = scmp.le.s32.totalorder 2, %s20
      // Predicated region
      $region69: #{qy_x_forward.4} parent=5 // pred_check
        %p2465 = pneg %p2464
      $region70: #{qy_x_forward.4} parent=5 // pred_check_branch
        %2467 = sbr.rel (%p2465) target = $region72
      $region71: #{qy_x_forward.4} parent=5 // pred_region
        %s2468 = ssub.s32 %s20, 2
        // Predicated region
        $region73: #{qy_x_forward.4} parent=71 // pred_check
          %p2469 = pneg %p193
        $region74: #{qy_x_forward.4} parent=71 // pred_check_branch
          %2471 = sbr.rel (%p2469) target = $region76
        $region75: #{qy_x_forward.4} parent=71 // pred_region
          %s2472 = smul.u32 4, %s31
          %p2473 = scmp.lt.s32.totalorder %s2472, 7
          %s2474 = scalar_select %p2473, %s2472, 7
          %s2475 = smul.addr %s2474, 2
          %s2476 = scalar_lea.vmem %s5, %s2475
        $region76: #{qy_x_forward.4} parent=71 // pred_fallthru
          _
      $region72: #{qy_x_forward.4} parent=5 // pred_fallthru
        _
    $region6: #{qy_x_forward.4} parent=1 // loop_footer
      %s24 = sadd.s32 1, %s20
    $region7: #{qy_x_forward.4} parent=1 // loop_footer_branch
      %19 = sbr.rel target = $region3
    $region8: #{qy_x_forward.4} parent=1 // loop_exit
      _
    %2477 = vsyncpa [#allocation4], 1
    %s2478 = scalar_lea.sflag [#allocation4], 1
    %2479 = vsyncpa %s2478, 1
    %2480 = vsyncpa [#allocation6], 1
    %s2481 = scalar_lea.sflag [#allocation6], 1
    %2482 = vsyncpa %s2481, 1
    %2483 = vsyncpa [#allocation9], 1
    %s2484 = scalar_lea.sflag [#allocation9], 1
    %2485 = vsyncpa %s2484, 1

// kernel: qy_x_forward.3
$region0: #{qy_x_forward.3}
  #allocation0 [shape = 'u32[]', space=smem, size = 0x4, offset = 0x4, fixed_abs, tag = 'smem constant byte address 0x4 - core index']
  #allocation1 [shape = 'u32[144,128]{1,0:T(1,128)}', space=vmem, size = 0x12000, scoped, tag = 'internal scratch']
  %s0 = inlined_call_operand.hbm [shape: f32[56,28], index: 0, kind: input, shape index: {}]
  %s1 = inlined_call_operand.hbm [shape: f32[3,56,56], index: 1, kind: input, shape index: {}]
  %s2 = inlined_call_operand.hbm [shape: f32[3,28,224], index: 2, kind: input, shape index: {}]
  %s3 = inlined_call_operand.vmem [shape: f32[224,8], index: 3, kind: input, shape index: {}]
  %s4 = inlined_call_operand.hbm [shape: f32[8,224], index: 4, kind: input, shape index: {}]
  %s5 = inlined_call_operand.hbm [shape: f32[1,8], index: 5, kind: input, shape index: {}]
  %s6 = inlined_call_operand.hbm [shape: f32[1,8], index: 6, kind: input, shape index: {}]
  %s7 = inlined_call_operand.hbm [shape: f32[3,28,56], index: 7, kind: input, shape index: {}]
  %s8 = inlined_call_operand.vmem [shape: f32[3,28,1], index: 8, kind: input, shape index: {}]
  %s9 = inlined_call_operand.hbm [shape: f32[3,224,112], index: 9, kind: input, shape index: {}]
  %s10 = inlined_call_operand.hbm [shape: f32[3,1,112], index: 10, kind: input, shape index: {}]
  %s11 = inlined_call_operand.hbm [shape: f32[3,28,28], index: 11, kind: input, shape index: {}]
  %s12 = inlined_call_operand.hbm [shape: f32[3,112,224], index: 12, kind: input, shape index: {}]
  %s13 = inlined_call_operand.vmem [shape: f32[224,16], index: 13, kind: input, shape index: {}]
  %s14 = inlined_call_operand.hbm [shape: f32[16,224], index: 14, kind: input, shape index: {}]
  %s15 = inlined_call_operand.hbm [shape: f32[1,16], index: 15, kind: input, shape index: {}]
  %s16 = inlined_call_operand.hbm [shape: f32[1,16], index: 16, kind: input, shape index: {}]
  %s17 = inlined_call_operand.hbm [shape: f32[3,224,448], index: 17, kind: input, shape index: {}]
  %s18 = inlined_call_operand.vmem [shape: f32[448,32], index: 18, kind: input, shape index: {}]
  %s19 = inlined_call_operand.hbm [shape: f32[32,448], index: 19, kind: input, shape index: {}]
  %s20 = inlined_call_operand.hbm [shape: f32[1,32], index: 20, kind: input, shape index: {}]
  %s21 = inlined_call_operand.hbm [shape: f32[1,32], index: 21, kind: input, shape index: {}]
  %s22 = inlined_call_operand.vmem [shape: bf16[28,448], index: 22, kind: output, shape index: {}]
  %s23 = sld [smem:[#allocation0]]
  $region170: #{qy_x_forward.3} parent=0
    _
  %s25 = ssub.s32 1, %s23
  %s26 = scalar_select 0, %s25, %s23
  $region1: #{qy_x_forward.3} parent=0
    #allocation2 [shape = 'u8[28672]{0}', space=vmem, size = 0x7000, scoped, tag = 'input window, operand 0, single buffered']
    #allocation3 [shape = 's32[1]{0}', space=sflag, size = 0x4, scoped, tag = 'scoped memory for qy_x_forward.3']
    #allocation4 [shape = 'u8[86016]{0}', space=vmem, size = 0x15000, scoped, tag = 'input window, operand 1, single buffered']
    #allocation5 [shape = 's32[1]{0}', space=sflag, size = 0x4, scoped, tag = 'scoped memory for qy_x_forward.3']
    #allocation6 [shape = 'u8[98304]{0}', space=vmem, size = 0x18000, scoped, tag = 'input window, operand 2, single buffered']
    #allocation7 [shape = 'u8[8192]{0}', space=vmem, size = 0x2000, scoped, tag = 'input window, operand 4, single buffered']
    #allocation8 [shape = 's32[1]{0}', space=sflag, size = 0x4, scoped, tag = 'scoped memory for qy_x_forward.3']
    #allocation9 [shape = 'u8[512]{0}', space=vmem, size = 0x400, scoped, tag = 'input window, operand 5, single buffered']
    #allocation10 [shape = 'u8[512]{0}', space=vmem, size = 0x400, scoped, tag = 'input window, operand 6, single buffered']
    #allocation11 [shape = 's32[1]{0}', space=sflag, size = 0x4, scoped, tag = 'scoped memory for qy_x_forward.3']
    #allocation12 [shape = 'u8[49152]{0}', space=vmem, size = 0xc000, scoped, tag = 'input window, operand 7, single buffered']
    #allocation13 [shape = 'u8[344064]{0}', space=vmem, size = 0x54000, scoped, tag = 'input window, operand 9, single buffered']
    #allocation14 [shape = 's32[1]{0}', space=sflag, size = 0x4, scoped, tag = 'scoped memory for qy_x_forward.3']
    #allocation15 [shape = 'u8[1536]{0}', space=vmem, size = 0x800, scoped, tag = 'input window, operand 10, single buffered']
    #allocation16 [shape = 'u8[49152]{0}', space=vmem, size = 0xc000, scoped, tag = 'input window, operand 11, single buffered']
    #allocation17 [shape = 's32[1]{0}', space=sflag, size = 0x4, scoped, tag = 'scoped memory for qy_x_forward.3']
    #allocation18 [shape = 'u8[344064]{0}', space=vmem, size = 0x54000, scoped, tag = 'input window, operand 12, single buffered']
    #allocation19 [shape = 'u8[16384]{0}', space=vmem, size = 0x4000, scoped, tag = 'input window, operand 14, single buffered']
    #allocation20 [shape = 's32[1]{0}', space=sflag, size = 0x4, scoped, tag = 'scoped memory for qy_x_forward.3']
    #allocation21 [shape = 'u8[512]{0}', space=vmem, size = 0x400, scoped, tag = 'input window, operand 15, single buffered']
    #allocation22 [shape = 'u8[512]{0}', space=vmem, size = 0x400, scoped, tag = 'input window, operand 16, single buffered']
    #allocation23 [shape = 's32[1]{0}', space=sflag, size = 0x4, scoped, tag = 'scoped memory for qy_x_forward.3']
    #allocation24 [shape = 'u8[1376256]{0}', space=vmem, size = 0x150000, scoped, tag = 'input window, operand 17, single buffered']
    #allocation25 [shape = 'u8[65536]{0}', space=vmem, size = 0x10000, scoped, tag = 'input window, operand 19, single buffered']
    #allocation26 [shape = 's32[1]{0}', space=sflag, size = 0x4, scoped, tag = 'scoped memory for qy_x_forward.3']
    #allocation27 [shape = 'u8[512]{0}', space=vmem, size = 0x400, scoped, tag = 'input window, operand 20, single buffered']
    #allocation28 [shape = 'u8[512]{0}', space=vmem, size = 0x400, scoped, tag = 'input window, operand 21, single buffered']
    #allocation29 [shape = 's32[1]{0}', space=sflag, size = 0x4, scoped, tag = 'scoped memory for qy_x_forward.3']
    %27 = vsyncpa [#allocation3], 0
    %28 = vsyncpa [#allocation5], 0
    %29 = vsyncpa [#allocation8], 0
    %30 = vsyncpa [#allocation11], 0
    %31 = vsyncpa [#allocation14], 0
    %32 = vsyncpa [#allocation17], 0
    %33 = vsyncpa [#allocation20], 0
    %34 = vsyncpa [#allocation23], 0
    %35 = vsyncpa [#allocation26], 0
    %36 = vsyncpa [#allocation29], 0
    // Predicated region
    $region2: #{qy_x_forward.3} parent=1 // pred_check
      _
    $region3: #{qy_x_forward.3} parent=1 // pred_check_branch
      %38 = sbr.rel (0) target = $region5
    $region4: #{qy_x_forward.3} parent=1 // pred_region
      %s40 = ssub.s32 896, 896
      %41 = vsyncadd [#allocation3], %s40
      %s42 = sshll.u32 [#allocation2], 4
      %s43 = int_to_ptr.vmem [resolvable:$true] %s42
      %48 = dma.hbm_to_vmem [thread:$0]  %s0, 896, %s43, [#allocation3], 128, 128, 8
    $region5: #{qy_x_forward.3} parent=1 // pred_fallthru
      _
    // Predicated region
    $region6: #{qy_x_forward.3} parent=1 // pred_check
      _
    $region7: #{qy_x_forward.3} parent=1 // pred_check_branch
      %50 = sbr.rel (0) target = $region9
    $region8: #{qy_x_forward.3} parent=1 // pred_region
      %s52 = ssub.s32 2688, 2688
      %53 = vsyncadd [#allocation5], %s52
      %s54 = sshll.u32 [#allocation4], 4
      %s55 = int_to_ptr.vmem [resolvable:$true] %s54
      %60 = dma.hbm_to_vmem [thread:$0]  %s1, 2688, %s55, [#allocation5], 128, 128, 8
    $region9: #{qy_x_forward.3} parent=1 // pred_fallthru
      _
    // Predicated region
    $region10: #{qy_x_forward.3} parent=1 // pred_check
      _
    $region11: #{qy_x_forward.3} parent=1 // pred_check_branch
      %62 = sbr.rel (0) target = $region13
    $region12: #{qy_x_forward.3} parent=1 // pred_region
      %s64 = ssub.s32 3072, 3072
      %65 = vsyncadd [#allocation5], %s64
      %s66 = sshll.u32 [#allocation6], 4
      %s67 = int_to_ptr.vmem [resolvable:$true] %s66
      %72 = dma.hbm_to_vmem [thread:$0]  %s2, 3072, %s67, [#allocation5], 256, 256, 16
    $region13: #{qy_x_forward.3} parent=1 // pred_fallthru
      _
    // Predicated region
    $region14: #{qy_x_forward.3} parent=1 // pred_check
      _
    $region15: #{qy_x_forward.3} parent=1 // pred_check_branch
      %74 = sbr.rel (0) target = $region17
    $region16: #{qy_x_forward.3} parent=1 // pred_region
      _
    $region17: #{qy_x_forward.3} parent=1 // pred_fallthru
      _
    // Predicated region
    $region18: #{qy_x_forward.3} parent=1 // pred_check
      _
    $region19: #{qy_x_forward.3} parent=1 // pred_check_branch
      %76 = sbr.rel (0) target = $region21
    $region20: #{qy_x_forward.3} parent=1 // pred_region
      %s78 = ssub.s32 256, 256
      %79 = vsyncadd [#allocation8], %s78
      %s81 = sshll.u32 [#allocation7], 4
      %s82 = int_to_ptr.vmem [resolvable:$true] %s81
      %84 = dma.hbm_to_vmem [thread:$0]  %s4, 256, %s82, [#allocation8]
    $region21: #{qy_x_forward.3} parent=1 // pred_fallthru
      _
    // Predicated region
    $region22: #{qy_x_forward.3} parent=1 // pred_check
      _
    $region23: #{qy_x_forward.3} parent=1 // pred_check_branch
      %86 = sbr.rel (0) target = $region25
    $region24: #{qy_x_forward.3} parent=1 // pred_region
      %s88 = ssub.s32 16, 16
      %89 = vsyncadd [#allocation8], %s88
      %s91 = sshll.u32 [#allocation9], 4
      %s92 = int_to_ptr.vmem [resolvable:$true] %s91
      %94 = dma.hbm_to_vmem [thread:$0]  %s5, 16, %s92, [#allocation8]
    $region25: #{qy_x_forward.3} parent=1 // pred_fallthru
      _
    // Predicated region
    $region26: #{qy_x_forward.3} parent=1 // pred_check
      _
    $region27: #{qy_x_forward.3} parent=1 // pred_check_branch
      %96 = sbr.rel (0) target = $region29
    $region28: #{qy_x_forward.3} parent=1 // pred_region
      %s98 = ssub.s32 16, 16
      %99 = vsyncadd [#allocation11], %s98
      %s101 = sshll.u32 [#allocation10], 4
      %s102 = int_to_ptr.vmem [resolvable:$true] %s101
      %104 = dma.hbm_to_vmem [thread:$0]  %s6, 16, %s102, [#allocation11]
    $region29: #{qy_x_forward.3} parent=1 // pred_fallthru
      _
    // Predicated region
    $region30: #{qy_x_forward.3} parent=1 // pred_check
      _
    $region31: #{qy_x_forward.3} parent=1 // pred_check_branch
      %106 = sbr.rel (0) target = $region33
    $region32: #{qy_x_forward.3} parent=1 // pred_region
      %s108 = ssub.s32 1536, 1536
      %109 = vsyncadd [#allocation11], %s108
      %s110 = sshll.u32 [#allocation12], 4
      %s111 = int_to_ptr.vmem [resolvable:$true] %s110
      %116 = dma.hbm_to_vmem [thread:$0]  %s7, 1536, %s111, [#allocation11], 128, 128, 8
    $region33: #{qy_x_forward.3} parent=1 // pred_fallthru
      _
    // Predicated region
    $region34: #{qy_x_forward.3} parent=1 // pred_check
      _
    $region35: #{qy_x_forward.3} parent=1 // pred_check_branch
      %118 = sbr.rel (0) target = $region37
    $region36: #{qy_x_forward.3} parent=1 // pred_region
      _
    $region37: #{qy_x_forward.3} parent=1 // pred_fallthru
      _
    // Predicated region
    $region38: #{qy_x_forward.3} parent=1 // pred_check
      _
    $region39: #{qy_x_forward.3} parent=1 // pred_check_branch
      %120 = sbr.rel (0) target = $region41
    $region40: #{qy_x_forward.3} parent=1 // pred_region
      %s122 = ssub.s32 10752, 10752
      %123 = vsyncadd [#allocation14], %s122
      %s124 = sshll.u32 [#allocation13], 4
      %s125 = int_to_ptr.vmem [resolvable:$true] %s124
      %130 = dma.hbm_to_vmem [thread:$0]  %s9, 10752, %s125, [#allocation14], 128, 128, 8
    $region41: #{qy_x_forward.3} parent=1 // pred_fallthru
      _
    // Predicated region
    $region42: #{qy_x_forward.3} parent=1 // pred_check
      _
    $region43: #{qy_x_forward.3} parent=1 // pred_check_branch
      %132 = sbr.rel (0) target = $region45
    $region44: #{qy_x_forward.3} parent=1 // pred_region
      %s134 = ssub.s32 48, 48
      %135 = vsyncadd [#allocation14], %s134
      %s136 = sshll.u32 [#allocation15], 4
      %s137 = int_to_ptr.vmem [resolvable:$true] %s136
      %142 = dma.hbm_to_vmem [thread:$0]  %s10, 48, %s137, [#allocation14], 16, 16, 1
    $region45: #{qy_x_forward.3} parent=1 // pred_fallthru
      _
    // Predicated region
    $region46: #{qy_x_forward.3} parent=1 // pred_check
      _
    $region47: #{qy_x_forward.3} parent=1 // pred_check_branch
      %144 = sbr.rel (0) target = $region49
    $region48: #{qy_x_forward.3} parent=1 // pred_region
      %s146 = ssub.s32 1536, 1536
      %147 = vsyncadd [#allocation17], %s146
      %s148 = sshll.u32 [#allocation16], 4
      %s149 = int_to_ptr.vmem [resolvable:$true] %s148
      %154 = dma.hbm_to_vmem [thread:$0]  %s11, 1536, %s149, [#allocation17], 128, 128, 8
    $region49: #{qy_x_forward.3} parent=1 // pred_fallthru
      _
    // Predicated region
    $region50: #{qy_x_forward.3} parent=1 // pred_check
      _
    $region51: #{qy_x_forward.3} parent=1 // pred_check_branch
      %156 = sbr.rel (0) target = $region53
    $region52: #{qy_x_forward.3} parent=1 // pred_region
      %s158 = ssub.s32 10752, 10752
      %159 = vsyncadd [#allocation17], %s158
      %s160 = sshll.u32 [#allocation18], 4
      %s161 = int_to_ptr.vmem [resolvable:$true] %s160
      %166 = dma.hbm_to_vmem [thread:$0]  %s12, 10752, %s161, [#allocation17], 256, 256, 16
    $region53: #{qy_x_forward.3} parent=1 // pred_fallthru
      _
    // Predicated region
    $region54: #{qy_x_forward.3} parent=1 // pred_check
      _
    $region55: #{qy_x_forward.3} parent=1 // pred_check_branch
      %168 = sbr.rel (0) target = $region57
    $region56: #{qy_x_forward.3} parent=1 // pred_region
      _
    $region57: #{qy_x_forward.3} parent=1 // pred_fallthru
      _
    // Predicated region
    $region58: #{qy_x_forward.3} parent=1 // pred_check
      _
    $region59: #{qy_x_forward.3} parent=1 // pred_check_branch
      %170 = sbr.rel (0) target = $region61
    $region60: #{qy_x_forward.3} parent=1 // pred_region
      %s172 = ssub.s32 512, 512
      %173 = vsyncadd [#allocation20], %s172
      %s174 = sshll.u32 [#allocation19], 4
      %s175 = int_to_ptr.vmem [resolvable:$true] %s174
      %180 = dma.hbm_to_vmem [thread:$0]  %s14, 512, %s175, [#allocation20], 256, 256, 16
    $region61: #{qy_x_forward.3} parent=1 // pred_fallthru
      _
    // Predicated region
    $region62: #{qy_x_forward.3} parent=1 // pred_check
      _
    $region63: #{qy_x_forward.3} parent=1 // pred_check_branch
      %182 = sbr.rel (0) target = $region65
    $region64: #{qy_x_forward.3} parent=1 // pred_region
      %s184 = ssub.s32 16, 16
      %185 = vsyncadd [#allocation20], %s184
      %s187 = sshll.u32 [#allocation21], 4
      %s188 = int_to_ptr.vmem [resolvable:$true] %s187
      %190 = dma.hbm_to_vmem [thread:$0]  %s15, 16, %s188, [#allocation20]
    $region65: #{qy_x_forward.3} parent=1 // pred_fallthru
      _
    // Predicated region
    $region66: #{qy_x_forward.3} parent=1 // pred_check
      _
    $region67: #{qy_x_forward.3} parent=1 // pred_check_branch
      %192 = sbr.rel (0) target = $region69
    $region68: #{qy_x_forward.3} parent=1 // pred_region
      %s194 = ssub.s32 16, 16
      %195 = vsyncadd [#allocation23], %s194
      %s197 = sshll.u32 [#allocation22], 4
      %s198 = int_to_ptr.vmem [resolvable:$true] %s197
      %200 = dma.hbm_to_vmem [thread:$0]  %s16, 16, %s198, [#allocation23]
    $region69: #{qy_x_forward.3} parent=1 // pred_fallthru
      _
    // Predicated region
    $region70: #{qy_x_forward.3} parent=1 // pred_check
      _
    $region71: #{qy_x_forward.3} parent=1 // pred_check_branch
      %202 = sbr.rel (0) target = $region73
    $region72: #{qy_x_forward.3} parent=1 // pred_region
      %s204 = ssub.s32 43008, 43008
      %205 = vsyncadd [#allocation23], %s204
      %s206 = sshll.u32 [#allocation24], 4
      %s207 = int_to_ptr.vmem [resolvable:$true] %s206
      %212 = dma.hbm_to_vmem [thread:$0]  %s17, 43008, %s207, [#allocation23], 512, 512, 32
    $region73: #{qy_x_forward.3} parent=1 // pred_fallthru
      _
    // Predicated region
    $region74: #{qy_x_forward.3} parent=1 // pred_check
      _
    $region75: #{qy_x_forward.3} parent=1 // pred_check_branch
      %214 = sbr.rel (0) target = $region77
    $region76: #{qy_x_forward.3} parent=1 // pred_region
      _
    $region77: #{qy_x_forward.3} parent=1 // pred_fallthru
      _
    // Predicated region
    $region78: #{qy_x_forward.3} parent=1 // pred_check
      _
    $region79: #{qy_x_forward.3} parent=1 // pred_check_branch
      %216 = sbr.rel (0) target = $region81
    $region80: #{qy_x_forward.3} parent=1 // pred_region
      %s218 = ssub.s32 2048, 2048
      %219 = vsyncadd [#allocation26], %s218
      %s220 = sshll.u32 [#allocation25], 4
      %s221 = int_to_ptr.vmem [resolvable:$true] %s220
      %226 = dma.hbm_to_vmem [thread:$0]  %s19, 2048, %s221, [#allocation26], 512, 512, 32
    $region81: #{qy_x_forward.3} parent=1 // pred_fallthru
      _
    // Predicated region
    $region82: #{qy_x_forward.3} parent=1 // pred_check
      _
    $region83: #{qy_x_forward.3} parent=1 // pred_check_branch
      %228 = sbr.rel (0) target = $region85
    $region84: #{qy_x_forward.3} parent=1 // pred_region
      %s230 = ssub.s32 16, 16
      %231 = vsyncadd [#allocation26], %s230
      %s233 = sshll.u32 [#allocation27], 4
      %s234 = int_to_ptr.vmem [resolvable:$true] %s233
      %236 = dma.hbm_to_vmem [thread:$0]  %s20, 16, %s234, [#allocation26]
    $region85: #{qy_x_forward.3} parent=1 // pred_fallthru
      _
    // Predicated region
    $region86: #{qy_x_forward.3} parent=1 // pred_check
      _
    $region87: #{qy_x_forward.3} parent=1 // pred_check_branch
      %238 = sbr.rel (0) target = $region89
    $region88: #{qy_x_forward.3} parent=1 // pred_region
      %s240 = ssub.s32 16, 16
      %241 = vsyncadd [#allocation29], %s240
      %s243 = sshll.u32 [#allocation28], 4
      %s244 = int_to_ptr.vmem [resolvable:$true] %s243
      %246 = dma.hbm_to_vmem [thread:$0]  %s21, 16, %s244, [#allocation29]
    $region89: #{qy_x_forward.3} parent=1 // pred_fallthru
      _
    // Predicated region
    $region90: #{qy_x_forward.3} parent=1 // pred_check
      _
    $region91: #{qy_x_forward.3} parent=1 // pred_check_branch
      %248 = sbr.rel (0) target = $region93
    $region92: #{qy_x_forward.3} parent=1 // pred_region
      %249 = dma.done [#allocation3], 896
    $region93: #{qy_x_forward.3} parent=1 // pred_fallthru
      _
    // Predicated region
    $region94: #{qy_x_forward.3} parent=1 // pred_check
      _
    $region95: #{qy_x_forward.3} parent=1 // pred_check_branch
      %251 = sbr.rel (0) target = $region97
    $region96: #{qy_x_forward.3} parent=1 // pred_region
      %252 = dma.done [#allocation5], 2688
    $region97: #{qy_x_forward.3} parent=1 // pred_fallthru
      _
    // Predicated region
    $region98: #{qy_x_forward.3} parent=1 // pred_check
      _
    $region99: #{qy_x_forward.3} parent=1 // pred_check_branch
      %254 = sbr.rel (0) target = $region101
    $region100: #{qy_x_forward.3} parent=1 // pred_region
      %255 = dma.done [#allocation5], 3072
    $region101: #{qy_x_forward.3} parent=1 // pred_fallthru
      _
    // Predicated region
    $region102: #{qy_x_forward.3} parent=1 // pred_check
      _
    $region103: #{qy_x_forward.3} parent=1 // pred_check_branch
      %257 = sbr.rel (0) target = $region105
    $region104: #{qy_x_forward.3} parent=1 // pred_region
      %258 = dma.done [#allocation8], 256
    $region105: #{qy_x_forward.3} parent=1 // pred_fallthru
      _
    // Predicated region
    $region106: #{qy_x_forward.3} parent=1 // pred_check
      _
    $region107: #{qy_x_forward.3} parent=1 // pred_check_branch
      %260 = sbr.rel (0) target = $region109
    $region108: #{qy_x_forward.3} parent=1 // pred_region
      %261 = dma.done [#allocation8], 16
    $region109: #{qy_x_forward.3} parent=1 // pred_fallthru
      _
    // Predicated region
    $region110: #{qy_x_forward.3} parent=1 // pred_check
      _
    $region111: #{qy_x_forward.3} parent=1 // pred_check_branch
      %263 = sbr.rel (0) target = $region113
    $region112: #{qy_x_forward.3} parent=1 // pred_region
      %264 = dma.done [#allocation11], 16
    $region113: #{qy_x_forward.3} parent=1 // pred_fallthru
      _
    // Predicated region
    $region114: #{qy_x_forward.3} parent=1 // pred_check
      _
    $region115: #{qy_x_forward.3} parent=1 // pred_check_branch
      %266 = sbr.rel (0) target = $region117
    $region116: #{qy_x_forward.3} parent=1 // pred_region
      %267 = dma.done [#allocation11], 1536
    $region117: #{qy_x_forward.3} parent=1 // pred_fallthru
      _
    // Predicated region
    $region118: #{qy_x_forward.3} parent=1 // pred_check
      _
    $region119: #{qy_x_forward.3} parent=1 // pred_check_branch
      %269 = sbr.rel (0) target = $region121
    $region120: #{qy_x_forward.3} parent=1 // pred_region
      %270 = dma.done [#allocation14], 10752
    $region121: #{qy_x_forward.3} parent=1 // pred_fallthru
      _
    // Predicated region
    $region122: #{qy_x_forward.3} parent=1 // pred_check
      _
    $region123: #{qy_x_forward.3} parent=1 // pred_check_branch
      %272 = sbr.rel (0) target = $region125
    $region124: #{qy_x_forward.3} parent=1 // pred_region
      %273 = dma.done [#allocation14], 48
    $region125: #{qy_x_forward.3} parent=1 // pred_fallthru
      _
    // Predicated region
    $region126: #{qy_x_forward.3} parent=1 // pred_check
      _
    $region127: #{qy_x_forward.3} parent=1 // pred_check_branch
      %275 = sbr.rel (0) target = $region129
    $region128: #{qy_x_forward.3} parent=1 // pred_region
      %276 = dma.done [#allocation17], 1536
    $region129: #{qy_x_forward.3} parent=1 // pred_fallthru
      _
    // Predicated region
    $region130: #{qy_x_forward.3} parent=1 // pred_check
      _
    $region131: #{qy_x_forward.3} parent=1 // pred_check_branch
      %278 = sbr.rel (0) target = $region133
    $region132: #{qy_x_forward.3} parent=1 // pred_region
      %279 = dma.done [#allocation17], 10752
    $region133: #{qy_x_forward.3} parent=1 // pred_fallthru
      _
    // Predicated region
    $region134: #{qy_x_forward.3} parent=1 // pred_check
      _
    $region135: #{qy_x_forward.3} parent=1 // pred_check_branch
      %281 = sbr.rel (0) target = $region137
    $region136: #{qy_x_forward.3} parent=1 // pred_region
      %282 = dma.done [#allocation20], 512
    $region137: #{qy_x_forward.3} parent=1 // pred_fallthru
      _
    // Predicated region
    $region138: #{qy_x_forward.3} parent=1 // pred_check
      _
    $region139: #{qy_x_forward.3} parent=1 // pred_check_branch
      %284 = sbr.rel (0) target = $region141
    $region140: #{qy_x_forward.3} parent=1 // pred_region
      %285 = dma.done [#allocation20], 16
    $region141: #{qy_x_forward.3} parent=1 // pred_fallthru
      _
    // Predicated region
    $region142: #{qy_x_forward.3} parent=1 // pred_check
      _
    $region143: #{qy_x_forward.3} parent=1 // pred_check_branch
      %287 = sbr.rel (0) target = $region145
    $region144: #{qy_x_forward.3} parent=1 // pred_region
      %288 = dma.done [#allocation23], 16
    $region145: #{qy_x_forward.3} parent=1 // pred_fallthru
      _
    // Predicated region
    $region146: #{qy_x_forward.3} parent=1 // pred_check
      _
    $region147: #{qy_x_forward.3} parent=1 // pred_check_branch
      %290 = sbr.rel (0) target = $region149
    $region148: #{qy_x_forward.3} parent=1 // pred_region
      %291 = dma.done [#allocation23], 43008
    $region149: #{qy_x_forward.3} parent=1 // pred_fallthru
      _
    // Predicated region
    $region150: #{qy_x_forward.3} parent=1 // pred_check
      _
    $region151: #{qy_x_forward.3} parent=1 // pred_check_branch
      %293 = sbr.rel (0) target = $region153
    $region152: #{qy_x_forward.3} parent=1 // pred_region
      %294 = dma.done [#allocation26], 2048
    $region153: #{qy_x_forward.3} parent=1 // pred_fallthru
      _
    // Predicated region
    $region154: #{qy_x_forward.3} parent=1 // pred_check
      _
    $region155: #{qy_x_forward.3} parent=1 // pred_check_branch
      %296 = sbr.rel (0) target = $region157
    $region156: #{qy_x_forward.3} parent=1 // pred_region
      %297 = dma.done [#allocation26], 16
    $region157: #{qy_x_forward.3} parent=1 // pred_fallthru
      _
    // Predicated region
    $region158: #{qy_x_forward.3} parent=1 // pred_check
      _
    $region159: #{qy_x_forward.3} parent=1 // pred_check_branch
      %299 = sbr.rel (0) target = $region161
    $region160: #{qy_x_forward.3} parent=1 // pred_region
      %300 = dma.done [#allocation29], 16
    $region161: #{qy_x_forward.3} parent=1 // pred_fallthru
      _
    %v301 = vld [vmem:[#allocation2] sm:$0xff]
    %v302 = vld [vmem:[#allocation2 + $0x8] sm:$0xff]
    %v303 = vld [vmem:[#allocation2 + $0x10] sm:$0xff]
    %v304 = vld [vmem:[#allocation2 + $0x18] sm:$0xff]
    %v305 = vld [vmem:[#allocation2 + $0x20] sm:$0xff]
    %v306 = vld [vmem:[#allocation2 + $0x28] sm:$0xff]
    %v307 = vld [vmem:[#allocation2 + $0x30] sm:$0xff]
    %v308 = vld [vmem:[#allocation4] sm:$0xff]
    %v309 = vld [vmem:[#allocation4 + $0x8] sm:$0xff]
    %v310 = vld [vmem:[#allocation4 + $0x10] sm:$0xff]
    %v311 = vld [vmem:[#allocation4 + $0x18] sm:$0xff]
    %v312 = vld [vmem:[#allocation4 + $0x20] sm:$0xff]
    %v313 = vld [vmem:[#allocation4 + $0x28] sm:$0xff]
    %v314 = vld [vmem:[#allocation4 + $0x30] sm:$0xff]
    %vm315 = vcmask 457728
    %v317 = vsel %vm315, %v308, 0
    %v320 = vsel %vm315, %v309, 0
    %v323 = vsel %vm315, %v310, 0
    %v326 = vsel %vm315, %v311, 0
    %v329 = vsel %vm315, %v312, 0
    %v332 = vsel %vm315, %v313, 0
    %v335 = vsel %vm315, %v314, 0
    %337 = vmatprep.subr.mxu0 0.0
    %338 = vmatpush1.msra.mxu0 0.0
    %339 = vmatprep.subr.mxu0 0.0
    %340 = vmatpush1.msra.mxu0 0.0
    %341 = vmatprep.subr.mxu0 0.0
    %342 = vmatpush1.msra.mxu0 0.0
    %343 = vmatprep.subr.mxu0 0.0
    %344 = vmatpush1.msra.mxu0 0.0
    %345 = vmatprep.subr.mxu0 0.0
    %346 = vmatpush1.msra.mxu0 0.0
    %347 = vmatprep.subr.mxu0 0.0
    %348 = vmatpush1.msra.mxu0 0.0
    %349 = vmatprep.subr.mxu0 0.0
    %350 = vmatpush1.msra.mxu0 0.0
    %351 = vmatprep.subr.mxu0 0.0
    %352 = vmatpush1.msra.mxu0 0.0
    %353 = vmatprep.subr.mxu0 0.0
    %354 = vmatpush1.msra.mxu0 0.0
    %355 = vmatprep.subr.mxu0 0.0
    %356 = vmatpush1.msra.mxu0 %v307
    %357 = vmatprep.subr.mxu0 0.0
    %358 = vmatpush1.msra.mxu0 %v306
    %359 = vmatprep.subr.mxu0 0.0
    %360 = vmatpush1.msra.mxu0 %v305
    %361 = vmatprep.subr.mxu0 0.0
    %362 = vmatpush1.msra.mxu0 %v304
    %363 = vmatprep.subr.mxu0 0.0
    %364 = vmatpush1.msra.mxu0 %v303
    %365 = vmatprep.subr.mxu0 0.0
    %366 = vmatpush1.msra.mxu0 %v302
    %367 = vmatprep.subr.mxu0 0.0
    %368 = vmatpush1.msra.mxu0 %v301
    %369 = vmatprep.subr.mxu0 0.0
    %370 = vmatpush2.msra.mxu0 0.0
    %371 = vmatprep.subr.mxu0 0.0
    %372 = vmatpush2.msra.mxu0 0.0
    %373 = vmatprep.subr.mxu0 0.0
    %374 = vmatpush2.msra.mxu0 0.0
    %375 = vmatprep.subr.mxu0 0.0
    %376 = vmatpush2.msra.mxu0 0.0
    %377 = vmatprep.subr.mxu0 0.0
    %378 = vmatpush2.msra.mxu0 0.0
    %379 = vmatprep.subr.mxu0 0.0
    %380 = vmatpush2.msra.mxu0 0.0
    %381 = vmatprep.subr.mxu0 0.0
    %382 = vmatpush2.msra.mxu0 0.0
    %383 = vmatprep.subr.mxu0 0.0
    %384 = vmatpush2.msra.mxu0 0.0
    %385 = vmatprep.subr.mxu0 0.0
    %386 = vmatpush2.msra.mxu0 0.0
    %387 = vmatprep.subr.mxu0 0.0
    %388 = vmatpush2.msra.mxu0 0.0
    %389 = vmatprep.subr.mxu0 0.0
    %390 = vmatpush2.msra.mxu0 0.0
    %391 = vmatprep.subr.mxu0 0.0
    %392 = vmatpush2.msra.mxu0 0.0
    %393 = vmatprep.subr.mxu0 0.0
    %394 = vmatpush2.msra.mxu0 0.0
    %395 = vmatprep.subr.mxu0 0.0
    %396 = vmatpush2.msra.mxu0 0.0
    %397 = vmatprep.subr.mxu0 0.0
    %398 = vmatpush2.msra.mxu0 0.0
    %399 = vmatprep.subr.mxu0 0.0
    %400 = vmatpush2.msra.mxu0 0.0
    %401 = vmatprep.mubr.f32.mxu0 0.0
    %402 = vmatmul.mubr.f32.gmra.mxu0 %v317
    %v403 = vpop.f32.mrf.mxu0
    %v404 = vadd.f32 0.0, %v403
    %v405 = vpop.f32.mrf.mxu0
    %406 = vmatprep.mubr.f32.mxu0 0.0
    %407 = vmatmul.mubr.f32.gmra.mxu0 %v320
    %v408 = vpop.f32.mrf.mxu0
    %v409 = vadd.f32 0.0, %v408
    %v410 = vpop.f32.mrf.mxu0
    %411 = vmatprep.mubr.f32.mxu0 0.0
    %412 = vmatmul.mubr.f32.gmra.mxu0 %v323
    %v413 = vpop.f32.mrf.mxu0
    %v414 = vadd.f32 0.0, %v413
    %v415 = vpop.f32.mrf.mxu0
    %416 = vmatprep.mubr.f32.mxu0 0.0
    %417 = vmatmul.mubr.f32.gmra.mxu0 %v326
    %v418 = vpop.f32.mrf.mxu0
    %v419 = vadd.f32 0.0, %v418
    %v420 = vpop.f32.mrf.mxu0
    %421 = vmatprep.mubr.f32.mxu0 0.0
    %422 = vmatmul.mubr.f32.gmra.mxu0 %v329
    %v423 = vpop.f32.mrf.mxu0
    %v424 = vadd.f32 0.0, %v423
    %v425 = vpop.f32.mrf.mxu0
    %426 = vmatprep.mubr.f32.mxu0 0.0
    %427 = vmatmul.mubr.f32.gmra.mxu0 %v332
    %v428 = vpop.f32.mrf.mxu0
    %v429 = vadd.f32 0.0, %v428
    %v430 = vpop.f32.mrf.mxu0
    %431 = vmatprep.mubr.f32.mxu0 0.0
    %432 = vmatmul.mubr.f32.gmra.mxu0 %v335
    %v433 = vpop.f32.mrf.mxu0
    %v434 = vadd.f32 0.0, %v433
    %v435 = vpop.f32.mrf.mxu0
    %436 = vdwg.mxu0
    %v437 = vld [vmem:[#allocation6] sm:$0xff]
    %v438 = vld [vmem:[#allocation6 + $0x8] sm:$0xff]
    %v439 = vld [vmem:[#allocation6 + $0x10] sm:$0xff]
    %v440 = vld [vmem:[#allocation6 + $0x18] sm:$0xff]
    %v441 = vld [vmem:[#allocation6 + $0x20] sm:$0xff]
    %v442 = vld [vmem:[#allocation6 + $0x28] sm:$0xff]
    %v443 = vld [vmem:[#allocation6 + $0x30] sm:$0xf]
    %v444 = vld [vmem:[#allocation6 + $0x38] sm:$0xf]
    %s445 = scalar_lea.vmem [#allocation4], 56
    %v446 = vld [vmem:[%s445] sm:$0xff]
    %v447 = vld [vmem:[%s445 + $0x8] sm:$0xff]
    %v448 = vld [vmem:[%s445 + $0x10] sm:$0xff]
    %v449 = vld [vmem:[%s445 + $0x18] sm:$0xff]
    %v450 = vld [vmem:[%s445 + $0x20] sm:$0xff]
    %v451 = vld [vmem:[%s445 + $0x28] sm:$0xff]
    %v452 = vld [vmem:[%s445 + $0x30] sm:$0xff]
    %v454 = vsel %vm315, %v446, 0
    %v457 = vsel %vm315, %v447, 0
    %v460 = vsel %vm315, %v448, 0
    %v463 = vsel %vm315, %v449, 0
    %v466 = vsel %vm315, %v450, 0
    %v469 = vsel %vm315, %v451, 0
    %v472 = vsel %vm315, %v452, 0
    %474 = vmatprep.subr.mxu0 0.0
    %475 = vmatpush1.msra.mxu0 0.0
    %476 = vmatprep.subr.mxu0 0.0
    %477 = vmatpush1.msra.mxu0 0.0
    %478 = vmatprep.subr.mxu0 0.0
    %479 = vmatpush1.msra.mxu0 0.0
    %480 = vmatprep.subr.mxu0 0.0
    %481 = vmatpush1.msra.mxu0 0.0
    %482 = vmatprep.subr.mxu0 0.0
    %483 = vmatpush1.msra.mxu0 0.0
    %484 = vmatprep.subr.mxu0 0.0
    %485 = vmatpush1.msra.mxu0 0.0
    %486 = vmatprep.subr.mxu0 0.0
    %487 = vmatpush1.msra.mxu0 0.0
    %488 = vmatprep.subr.mxu0 0.0
    %489 = vmatpush1.msra.mxu0 0.0
    %490 = vmatprep.subr.mxu0 0.0
    %491 = vmatpush1.msra.mxu0 0.0
    %492 = vmatprep.subr.mxu0 0.0
    %493 = vmatpush1.msra.mxu0 %v307
    %494 = vmatprep.subr.mxu0 0.0
    %495 = vmatpush1.msra.mxu0 %v306
    %496 = vmatprep.subr.mxu0 0.0
    %497 = vmatpush1.msra.mxu0 %v305
    %498 = vmatprep.subr.mxu0 0.0
    %499 = vmatpush1.msra.mxu0 %v304
    %500 = vmatprep.subr.mxu0 0.0
    %501 = vmatpush1.msra.mxu0 %v303
    %502 = vmatprep.subr.mxu0 0.0
    %503 = vmatpush1.msra.mxu0 %v302
    %504 = vmatprep.subr.mxu0 0.0
    %505 = vmatpush1.msra.mxu0 %v301
    %506 = vmatprep.subr.mxu0 0.0
    %507 = vmatpush2.msra.mxu0 0.0
    %508 = vmatprep.subr.mxu0 0.0
    %509 = vmatpush2.msra.mxu0 0.0
    %510 = vmatprep.subr.mxu0 0.0
    %511 = vmatpush2.msra.mxu0 0.0
    %512 = vmatprep.subr.mxu0 0.0
    %513 = vmatpush2.msra.mxu0 0.0
    %514 = vmatprep.subr.mxu0 0.0
    %515 = vmatpush2.msra.mxu0 0.0
    %516 = vmatprep.subr.mxu0 0.0
    %517 = vmatpush2.msra.mxu0 0.0
    %518 = vmatprep.subr.mxu0 0.0
    %519 = vmatpush2.msra.mxu0 0.0
    %520 = vmatprep.subr.mxu0 0.0
    %521 = vmatpush2.msra.mxu0 0.0
    %522 = vmatprep.subr.mxu0 0.0
    %523 = vmatpush2.msra.mxu0 0.0
    %524 = vmatprep.subr.mxu0 0.0
    %525 = vmatpush2.msra.mxu0 0.0
    %526 = vmatprep.subr.mxu0 0.0
    %527 = vmatpush2.msra.mxu0 0.0
    %528 = vmatprep.subr.mxu0 0.0
    %529 = vmatpush2.msra.mxu0 0.0
    %530 = vmatprep.subr.mxu0 0.0
    %531 = vmatpush2.msra.mxu0 0.0
    %532 = vmatprep.subr.mxu0 0.0
    %533 = vmatpush2.msra.mxu0 0.0
    %534 = vmatprep.subr.mxu0 0.0
    %535 = vmatpush2.msra.mxu0 0.0
    %536 = vmatprep.subr.mxu0 0.0
    %537 = vmatpush2.msra.mxu0 0.0
    %538 = vmatprep.mubr.f32.mxu0 0.0
    %539 = vmatmul.mubr.f32.gmra.mxu0 %v454
    %v540 = vpop.f32.mrf.mxu0
    %v541 = vadd.f32 0.0, %v540
    %v542 = vpop.f32.mrf.mxu0
    %543 = vmatprep.mubr.f32.mxu0 0.0
    %544 = vmatmul.mubr.f32.gmra.mxu0 %v457
    %v545 = vpop.f32.mrf.mxu0
    %v546 = vadd.f32 0.0, %v545
    %v547 = vpop.f32.mrf.mxu0
    %548 = vmatprep.mubr.f32.mxu0 0.0
    %549 = vmatmul.mubr.f32.gmra.mxu0 %v460
    %v550 = vpop.f32.mrf.mxu0
    %v551 = vadd.f32 0.0, %v550
    %v552 = vpop.f32.mrf.mxu0
    %553 = vmatprep.mubr.f32.mxu0 0.0
    %554 = vmatmul.mubr.f32.gmra.mxu0 %v463
    %v555 = vpop.f32.mrf.mxu0
    %v556 = vadd.f32 0.0, %v555
    %v557 = vpop.f32.mrf.mxu0
    %558 = vmatprep.mubr.f32.mxu0 0.0
    %559 = vmatmul.mubr.f32.gmra.mxu0 %v466
    %v560 = vpop.f32.mrf.mxu0
    %v561 = vadd.f32 0.0, %v560
    %v562 = vpop.f32.mrf.mxu0
    %563 = vmatprep.mubr.f32.mxu0 0.0
    %564 = vmatmul.mubr.f32.gmra.mxu0 %v469
    %v565 = vpop.f32.mrf.mxu0
    %v566 = vadd.f32 0.0, %v565
    %v567 = vpop.f32.mrf.mxu0
    %568 = vmatprep.mubr.f32.mxu0 0.0
    %569 = vmatmul.mubr.f32.gmra.mxu0 %v472
    %v570 = vpop.f32.mrf.mxu0
    %v571 = vadd.f32 0.0, %v570
    %v572 = vpop.f32.mrf.mxu0
    %573 = vdwg.mxu0
    %s574 = scalar_lea.vmem [#allocation6], 64
    %v575 = vld [vmem:[%s574] sm:$0xff]
    %v576 = vld [vmem:[%s574 + $0x8] sm:$0xff]
    %v577 = vld [vmem:[%s574 + $0x10] sm:$0xff]
    %v578 = vld [vmem:[%s574 + $0x18] sm:$0xff]
    %v579 = vld [vmem:[%s574 + $0x20] sm:$0xff]
    %v580 = vld [vmem:[%s574 + $0x28] sm:$0xff]
    %v581 = vld [vmem:[%s574 + $0x30] sm:$0xf]
    %v582 = vld [vmem:[%s574 + $0x38] sm:$0xf]
    %vm583 = vcmask 228352
    %v585 = vsel %vm583, %v541, 0
    %v588 = vsel %vm583, %v546, 0
    %v591 = vsel %vm583, %v551, 0
    %v594 = vsel %vm583, %v556, 0
    %v597 = vsel %vm583, %v561, 0
    %v600 = vsel %vm583, %v566, 0
    %v603 = vsel %vm583, %v571, 0
    %vm605 = vcmask 1043456
    %v607 = vsel %vm605, %v581, 0
    %v610 = vsel %vm605, %v582, 0
    %612 = vmatprep.subr.mxu0 0.0
    %613 = vmatpush1.msra.mxu0 0.0
    %614 = vmatprep.subr.mxu0 0.0
    %615 = vmatpush1.msra.mxu0 0.0
    %616 = vmatprep.subr.mxu0 0.0
    %617 = vmatpush1.msra.mxu0 0.0
    %618 = vmatprep.subr.mxu0 0.0
    %619 = vmatpush1.msra.mxu0 0.0
    %620 = vmatprep.subr.mxu0 0.0
    %621 = vmatpush1.msra.mxu0 0.0
    %622 = vmatprep.subr.mxu0 0.0
    %623 = vmatpush1.msra.mxu0 0.0
    %624 = vmatprep.subr.mxu0 0.0
    %625 = vmatpush1.msra.mxu0 0.0
    %626 = vmatprep.subr.mxu0 0.0
    %627 = vmatpush1.msra.mxu0 0.0
    %628 = vmatprep.subr.mxu0 0.0
    %629 = vmatpush1.msra.mxu0 0.0
    %630 = vmatprep.subr.mxu0 0.0
    %631 = vmatpush1.msra.mxu0 0.0
    %632 = vmatprep.subr.mxu0 0.0
    %633 = vmatpush1.msra.mxu0 0.0
    %634 = vmatprep.subr.mxu0 0.0
    %635 = vmatpush1.msra.mxu0 0.0
    %636 = vmatprep.subr.mxu0 %v610
    %637 = vmatpush1.msra.mxu0 %v607
    %638 = vmatprep.subr.mxu0 %v580
    %639 = vmatpush1.msra.mxu0 %v579
    %640 = vmatprep.subr.mxu0 %v578
    %641 = vmatpush1.msra.mxu0 %v577
    %642 = vmatprep.subr.mxu0 %v576
    %643 = vmatpush1.msra.mxu0 %v575
    %644 = vmatprep.subr.mxu0 0.0
    %645 = vmatpush2.msra.mxu0 0.0
    %646 = vmatprep.subr.mxu0 0.0
    %647 = vmatpush2.msra.mxu0 0.0
    %648 = vmatprep.subr.mxu0 0.0
    %649 = vmatpush2.msra.mxu0 0.0
    %650 = vmatprep.subr.mxu0 0.0
    %651 = vmatpush2.msra.mxu0 0.0
    %652 = vmatprep.subr.mxu0 0.0
    %653 = vmatpush2.msra.mxu0 0.0
    %654 = vmatprep.subr.mxu0 0.0
    %655 = vmatpush2.msra.mxu0 0.0
    %656 = vmatprep.subr.mxu0 0.0
    %657 = vmatpush2.msra.mxu0 0.0
    %658 = vmatprep.subr.mxu0 0.0
    %659 = vmatpush2.msra.mxu0 0.0
    %660 = vmatprep.subr.mxu0 0.0
    %661 = vmatpush2.msra.mxu0 0.0
    %662 = vmatprep.subr.mxu0 0.0
    %663 = vmatpush2.msra.mxu0 0.0
    %664 = vmatprep.subr.mxu0 0.0
    %665 = vmatpush2.msra.mxu0 0.0
    %666 = vmatprep.subr.mxu0 0.0
    %667 = vmatpush2.msra.mxu0 0.0
    %668 = vmatprep.subr.mxu0 0.0
    %669 = vmatpush2.msra.mxu0 0.0
    %670 = vmatprep.subr.mxu0 0.0
    %671 = vmatpush2.msra.mxu0 0.0
    %672 = vmatprep.subr.mxu0 0.0
    %673 = vmatpush2.msra.mxu0 0.0
    %674 = vmatprep.subr.mxu0 0.0
    %675 = vmatpush2.msra.mxu0 0.0
    %676 = vmatprep.mubr.f32.mxu0 0.0
    %677 = vmatmul.mubr.f32.gmra.mxu0 %v585
    %v678 = vpop.f32.mrf.mxu0
    %v679 = vadd.f32 0.0, %v678
    %v680 = vpop.f32.mrf.mxu0
    %v681 = vadd.f32 0.0, %v680
    %682 = vmatprep.mubr.f32.mxu0 0.0
    %683 = vmatmul.mubr.f32.gmra.mxu0 %v588
    %v684 = vpop.f32.mrf.mxu0
    %v685 = vadd.f32 0.0, %v684
    %v686 = vpop.f32.mrf.mxu0
    %v687 = vadd.f32 0.0, %v686
    %688 = vmatprep.mubr.f32.mxu0 0.0
    %689 = vmatmul.mubr.f32.gmra.mxu0 %v591
    %v690 = vpop.f32.mrf.mxu0
    %v691 = vadd.f32 0.0, %v690
    %v692 = vpop.f32.mrf.mxu0
    %v693 = vadd.f32 0.0, %v692
    %694 = vmatprep.mubr.f32.mxu0 0.0
    %695 = vmatmul.mubr.f32.gmra.mxu0 %v594
    %v696 = vpop.f32.mrf.mxu0
    %v697 = vadd.f32 0.0, %v696
    %v698 = vpop.f32.mrf.mxu0
    %v699 = vadd.f32 0.0, %v698
    %700 = vmatprep.mubr.f32.mxu0 0.0
    %701 = vmatmul.mubr.f32.gmra.mxu0 %v597
    %v702 = vpop.f32.mrf.mxu0
    %v703 = vadd.f32 0.0, %v702
    %v704 = vpop.f32.mrf.mxu0
    %v705 = vadd.f32 0.0, %v704
    %706 = vmatprep.mubr.f32.mxu0 0.0
    %707 = vmatmul.mubr.f32.gmra.mxu0 %v600
    %v708 = vpop.f32.mrf.mxu0
    %v709 = vadd.f32 0.0, %v708
    %v710 = vpop.f32.mrf.mxu0
    %v711 = vadd.f32 0.0, %v710
    %712 = vmatprep.mubr.f32.mxu0 0.0
    %713 = vmatmul.mubr.f32.gmra.mxu0 %v603
    %v714 = vpop.f32.mrf.mxu0
    %v715 = vadd.f32 0.0, %v714
    %v716 = vpop.f32.mrf.mxu0
    %v717 = vadd.f32 0.0, %v716
    %718 = vdwg.mxu0
    %v720 = vsel %vm583, %v404, 0
    %v723 = vsel %vm583, %v409, 0
    %v726 = vsel %vm583, %v414, 0
    %v729 = vsel %vm583, %v419, 0
    %v732 = vsel %vm583, %v424, 0
    %v735 = vsel %vm583, %v429, 0
    %v738 = vsel %vm583, %v434, 0
    %v741 = vsel %vm605, %v443, 0
    %v744 = vsel %vm605, %v444, 0
    %746 = vmatprep.subr.mxu0 0.0
    %747 = vmatpush1.msra.mxu0 0.0
    %748 = vmatprep.subr.mxu0 0.0
    %749 = vmatpush1.msra.mxu0 0.0
    %750 = vmatprep.subr.mxu0 0.0
    %751 = vmatpush1.msra.mxu0 0.0
    %752 = vmatprep.subr.mxu0 0.0
    %753 = vmatpush1.msra.mxu0 0.0
    %754 = vmatprep.subr.mxu0 0.0
    %755 = vmatpush1.msra.mxu0 0.0
    %756 = vmatprep.subr.mxu0 0.0
    %757 = vmatpush1.msra.mxu0 0.0
    %758 = vmatprep.subr.mxu0 0.0
    %759 = vmatpush1.msra.mxu0 0.0
    %760 = vmatprep.subr.mxu0 0.0
    %761 = vmatpush1.msra.mxu0 0.0
    %762 = vmatprep.subr.mxu0 0.0
    %763 = vmatpush1.msra.mxu0 0.0
    %764 = vmatprep.subr.mxu0 0.0
    %765 = vmatpush1.msra.mxu0 0.0
    %766 = vmatprep.subr.mxu0 0.0
    %767 = vmatpush1.msra.mxu0 0.0
    %768 = vmatprep.subr.mxu0 0.0
    %769 = vmatpush1.msra.mxu0 0.0
    %770 = vmatprep.subr.mxu0 %v744
    %771 = vmatpush1.msra.mxu0 %v741
    %772 = vmatprep.subr.mxu0 %v442
    %773 = vmatpush1.msra.mxu0 %v441
    %774 = vmatprep.subr.mxu0 %v440
    %775 = vmatpush1.msra.mxu0 %v439
    %776 = vmatprep.subr.mxu0 %v438
    %777 = vmatpush1.msra.mxu0 %v437
    %778 = vmatprep.subr.mxu0 0.0
    %779 = vmatpush2.msra.mxu0 0.0
    %780 = vmatprep.subr.mxu0 0.0
    %781 = vmatpush2.msra.mxu0 0.0
    %782 = vmatprep.subr.mxu0 0.0
    %783 = vmatpush2.msra.mxu0 0.0
    %784 = vmatprep.subr.mxu0 0.0
    %785 = vmatpush2.msra.mxu0 0.0
    %786 = vmatprep.subr.mxu0 0.0
    %787 = vmatpush2.msra.mxu0 0.0
    %788 = vmatprep.subr.mxu0 0.0
    %789 = vmatpush2.msra.mxu0 0.0
    %790 = vmatprep.subr.mxu0 0.0
    %791 = vmatpush2.msra.mxu0 0.0
    %792 = vmatprep.subr.mxu0 0.0
    %793 = vmatpush2.msra.mxu0 0.0
    %794 = vmatprep.subr.mxu0 0.0
    %795 = vmatpush2.msra.mxu0 0.0
    %796 = vmatprep.subr.mxu0 0.0
    %797 = vmatpush2.msra.mxu0 0.0
    %798 = vmatprep.subr.mxu0 0.0
    %799 = vmatpush2.msra.mxu0 0.0
    %800 = vmatprep.subr.mxu0 0.0
    %801 = vmatpush2.msra.mxu0 0.0
    %802 = vmatprep.subr.mxu0 0.0
    %803 = vmatpush2.msra.mxu0 0.0
    %804 = vmatprep.subr.mxu0 0.0
    %805 = vmatpush2.msra.mxu0 0.0
    %806 = vmatprep.subr.mxu0 0.0
    %807 = vmatpush2.msra.mxu0 0.0
    %808 = vmatprep.subr.mxu0 0.0
    %809 = vmatpush2.msra.mxu0 0.0
    %810 = vmatprep.mubr.f32.mxu0 0.0
    %811 = vmatmul.mubr.f32.gmra.mxu0 %v720
    %v812 = vpop.f32.mrf.mxu0
    %v813 = vadd.f32 %v679, %v812
    %v814 = vpop.f32.mrf.mxu0
    %v815 = vadd.f32 %v681, %v814
    %816 = vmatprep.mubr.f32.mxu0 0.0
    %817 = vmatmul.mubr.f32.gmra.mxu0 %v723
    %v818 = vpop.f32.mrf.mxu0
    %v819 = vadd.f32 %v685, %v818
    %v820 = vpop.f32.mrf.mxu0
    %v821 = vadd.f32 %v687, %v820
    %822 = vmatprep.mubr.f32.mxu0 0.0
    %823 = vmatmul.mubr.f32.gmra.mxu0 %v726
    %v824 = vpop.f32.mrf.mxu0
    %v825 = vadd.f32 %v691, %v824
    %v826 = vpop.f32.mrf.mxu0
    %v827 = vadd.f32 %v693, %v826
    %828 = vmatprep.mubr.f32.mxu0 0.0
    %829 = vmatmul.mubr.f32.gmra.mxu0 %v729
    %v830 = vpop.f32.mrf.mxu0
    %v831 = vadd.f32 %v697, %v830
    %v832 = vpop.f32.mrf.mxu0
    %v833 = vadd.f32 %v699, %v832
    %834 = vmatprep.mubr.f32.mxu0 0.0
    %835 = vmatmul.mubr.f32.gmra.mxu0 %v732
    %v836 = vpop.f32.mrf.mxu0
    %v837 = vadd.f32 %v703, %v836
    %v838 = vpop.f32.mrf.mxu0
    %v839 = vadd.f32 %v705, %v838
    %840 = vmatprep.mubr.f32.mxu0 0.0
    %841 = vmatmul.mubr.f32.gmra.mxu0 %v735
    %v842 = vpop.f32.mrf.mxu0
    %v843 = vadd.f32 %v709, %v842
    %v844 = vpop.f32.mrf.mxu0
    %v845 = vadd.f32 %v711, %v844
    %846 = vmatprep.mubr.f32.mxu0 0.0
    %847 = vmatmul.mubr.f32.gmra.mxu0 %v738
    %v848 = vpop.f32.mrf.mxu0
    %v849 = vadd.f32 %v715, %v848
    %v850 = vpop.f32.mrf.mxu0
    %v851 = vadd.f32 %v717, %v850
    %852 = vdwg.mxu0
    %s853 = scalar_lea.vmem [#allocation4], 112
    %v854 = vld [vmem:[%s853] sm:$0xff]
    %v855 = vld [vmem:[%s853 + $0x8] sm:$0xff]
    %v856 = vld [vmem:[%s853 + $0x10] sm:$0xff]
    %v857 = vld [vmem:[%s853 + $0x18] sm:$0xff]
    %v858 = vld [vmem:[%s853 + $0x20] sm:$0xff]
    %v859 = vld [vmem:[%s853 + $0x28] sm:$0xff]
    %v860 = vld [vmem:[%s853 + $0x30] sm:$0xff]
    %v862 = vsel %vm315, %v854, 0
    %v865 = vsel %vm315, %v855, 0
    %v868 = vsel %vm315, %v856, 0
    %v871 = vsel %vm315, %v857, 0
    %v874 = vsel %vm315, %v858, 0
    %v877 = vsel %vm315, %v859, 0
    %v880 = vsel %vm315, %v860, 0
    %882 = vmatprep.subr.mxu0 0.0
    %883 = vmatpush1.msra.mxu0 0.0
    %884 = vmatprep.subr.mxu0 0.0
    %885 = vmatpush1.msra.mxu0 0.0
    %886 = vmatprep.subr.mxu0 0.0
    %887 = vmatpush1.msra.mxu0 0.0
    %888 = vmatprep.subr.mxu0 0.0
    %889 = vmatpush1.msra.mxu0 0.0
    %890 = vmatprep.subr.mxu0 0.0
    %891 = vmatpush1.msra.mxu0 0.0
    %892 = vmatprep.subr.mxu0 0.0
    %893 = vmatpush1.msra.mxu0 0.0
    %894 = vmatprep.subr.mxu0 0.0
    %895 = vmatpush1.msra.mxu0 0.0
    %896 = vmatprep.subr.mxu0 0.0
    %897 = vmatpush1.msra.mxu0 0.0
    %898 = vmatprep.subr.mxu0 0.0
    %899 = vmatpush1.msra.mxu0 0.0
    %900 = vmatprep.subr.mxu0 0.0
    %901 = vmatpush1.msra.mxu0 %v307
    %902 = vmatprep.subr.mxu0 0.0
    %903 = vmatpush1.msra.mxu0 %v306
    %904 = vmatprep.subr.mxu0 0.0
    %905 = vmatpush1.msra.mxu0 %v305
    %906 = vmatprep.subr.mxu0 0.0
    %907 = vmatpush1.msra.mxu0 %v304
    %908 = vmatprep.subr.mxu0 0.0
    %909 = vmatpush1.msra.mxu0 %v303
    %910 = vmatprep.subr.mxu0 0.0
    %911 = vmatpush1.msra.mxu0 %v302
    %912 = vmatprep.subr.mxu0 0.0
    %913 = vmatpush1.msra.mxu0 %v301
    %914 = vmatprep.subr.mxu0 0.0
    %915 = vmatpush2.msra.mxu0 0.0
    %916 = vmatprep.subr.mxu0 0.0
    %917 = vmatpush2.msra.mxu0 0.0
    %918 = vmatprep.subr.mxu0 0.0
    %919 = vmatpush2.msra.mxu0 0.0
    %920 = vmatprep.subr.mxu0 0.0
    %921 = vmatpush2.msra.mxu0 0.0
    %922 = vmatprep.subr.mxu0 0.0
    %923 = vmatpush2.msra.mxu0 0.0
    %924 = vmatprep.subr.mxu0 0.0
    %925 = vmatpush2.msra.mxu0 0.0
    %926 = vmatprep.subr.mxu0 0.0
    %927 = vmatpush2.msra.mxu0 0.0
    %928 = vmatprep.subr.mxu0 0.0
    %929 = vmatpush2.msra.mxu0 0.0
    %930 = vmatprep.subr.mxu0 0.0
    %931 = vmatpush2.msra.mxu0 0.0
    %932 = vmatprep.subr.mxu0 0.0
    %933 = vmatpush2.msra.mxu0 0.0
    %934 = vmatprep.subr.mxu0 0.0
    %935 = vmatpush2.msra.mxu0 0.0
    %936 = vmatprep.subr.mxu0 0.0
    %937 = vmatpush2.msra.mxu0 0.0
    %938 = vmatprep.subr.mxu0 0.0
    %939 = vmatpush2.msra.mxu0 0.0
    %940 = vmatprep.subr.mxu0 0.0
    %941 = vmatpush2.msra.mxu0 0.0
    %942 = vmatprep.subr.mxu0 0.0
    %943 = vmatpush2.msra.mxu0 0.0
    %944 = vmatprep.subr.mxu0 0.0
    %945 = vmatpush2.msra.mxu0 0.0
    %946 = vmatprep.mubr.f32.mxu0 0.0
    %947 = vmatmul.mubr.f32.gmra.mxu0 %v862
    %v948 = vpop.f32.mrf.mxu0
    %v949 = vadd.f32 0.0, %v948
    %v950 = vpop.f32.mrf.mxu0
    %951 = vmatprep.mubr.f32.mxu0 0.0
    %952 = vmatmul.mubr.f32.gmra.mxu0 %v865
    %v953 = vpop.f32.mrf.mxu0
    %v954 = vadd.f32 0.0, %v953
    %v955 = vpop.f32.mrf.mxu0
    %956 = vmatprep.mubr.f32.mxu0 0.0
    %957 = vmatmul.mubr.f32.gmra.mxu0 %v868
    %v958 = vpop.f32.mrf.mxu0
    %v959 = vadd.f32 0.0, %v958
    %v960 = vpop.f32.mrf.mxu0
    %961 = vmatprep.mubr.f32.mxu0 0.0
    %962 = vmatmul.mubr.f32.gmra.mxu0 %v871
    %v963 = vpop.f32.mrf.mxu0
    %v964 = vadd.f32 0.0, %v963
    %v965 = vpop.f32.mrf.mxu0
    %966 = vmatprep.mubr.f32.mxu0 0.0
    %967 = vmatmul.mubr.f32.gmra.mxu0 %v874
    %v968 = vpop.f32.mrf.mxu0
    %v969 = vadd.f32 0.0, %v968
    %v970 = vpop.f32.mrf.mxu0
    %971 = vmatprep.mubr.f32.mxu0 0.0
    %972 = vmatmul.mubr.f32.gmra.mxu0 %v877
    %v973 = vpop.f32.mrf.mxu0
    %v974 = vadd.f32 0.0, %v973
    %v975 = vpop.f32.mrf.mxu0
    %976 = vmatprep.mubr.f32.mxu0 0.0
    %977 = vmatmul.mubr.f32.gmra.mxu0 %v880
    %v978 = vpop.f32.mrf.mxu0
    %v979 = vadd.f32 0.0, %v978
    %v980 = vpop.f32.mrf.mxu0
    %981 = vdwg.mxu0
    %s982 = scalar_lea.vmem [#allocation6], 128
    %v983 = vld [vmem:[%s982] sm:$0xff]
    %v984 = vld [vmem:[%s982 + $0x8] sm:$0xff]
    %v985 = vld [vmem:[%s982 + $0x10] sm:$0xff]
    %v986 = vld [vmem:[%s982 + $0x18] sm:$0xff]
    %v987 = vld [vmem:[%s982 + $0x20] sm:$0xff]
    %v988 = vld [vmem:[%s982 + $0x28] sm:$0xff]
    %v989 = vld [vmem:[%s982 + $0x30] sm:$0xf]
    %v990 = vld [vmem:[%s982 + $0x38] sm:$0xf]
    %v992 = vsel %vm583, %v949, 0
    %v995 = vsel %vm583, %v954, 0
    %v998 = vsel %vm583, %v959, 0
    %v1001 = vsel %vm583, %v964, 0
    %v1004 = vsel %vm583, %v969, 0
    %v1007 = vsel %vm583, %v974, 0
    %v1010 = vsel %vm583, %v979, 0
    %v1013 = vsel %vm605, %v989, 0
    %v1016 = vsel %vm605, %v990, 0
    %1018 = vmatprep.subr.mxu0 0.0
    %1019 = vmatpush1.msra.mxu0 0.0
    %1020 = vmatprep.subr.mxu0 0.0
    %1021 = vmatpush1.msra.mxu0 0.0
    %1022 = vmatprep.subr.mxu0 0.0
    %1023 = vmatpush1.msra.mxu0 0.0
    %1024 = vmatprep.subr.mxu0 0.0
    %1025 = vmatpush1.msra.mxu0 0.0
    %1026 = vmatprep.subr.mxu0 0.0
    %1027 = vmatpush1.msra.mxu0 0.0
    %1028 = vmatprep.subr.mxu0 0.0
    %1029 = vmatpush1.msra.mxu0 0.0
    %1030 = vmatprep.subr.mxu0 0.0
    %1031 = vmatpush1.msra.mxu0 0.0
    %1032 = vmatprep.subr.mxu0 0.0
    %1033 = vmatpush1.msra.mxu0 0.0
    %1034 = vmatprep.subr.mxu0 0.0
    %1035 = vmatpush1.msra.mxu0 0.0
    %1036 = vmatprep.subr.mxu0 0.0
    %1037 = vmatpush1.msra.mxu0 0.0
    %1038 = vmatprep.subr.mxu0 0.0
    %1039 = vmatpush1.msra.mxu0 0.0
    %1040 = vmatprep.subr.mxu0 0.0
    %1041 = vmatpush1.msra.mxu0 0.0
    %1042 = vmatprep.subr.mxu0 %v1016
    %1043 = vmatpush1.msra.mxu0 %v1013
    %1044 = vmatprep.subr.mxu0 %v988
    %1045 = vmatpush1.msra.mxu0 %v987
    %1046 = vmatprep.subr.mxu0 %v986
    %1047 = vmatpush1.msra.mxu0 %v985
    %1048 = vmatprep.subr.mxu0 %v984
    %1049 = vmatpush1.msra.mxu0 %v983
    %1050 = vmatprep.subr.mxu0 0.0
    %1051 = vmatpush2.msra.mxu0 0.0
    %1052 = vmatprep.subr.mxu0 0.0
    %1053 = vmatpush2.msra.mxu0 0.0
    %1054 = vmatprep.subr.mxu0 0.0
    %1055 = vmatpush2.msra.mxu0 0.0
    %1056 = vmatprep.subr.mxu0 0.0
    %1057 = vmatpush2.msra.mxu0 0.0
    %1058 = vmatprep.subr.mxu0 0.0
    %1059 = vmatpush2.msra.mxu0 0.0
    %1060 = vmatprep.subr.mxu0 0.0
    %1061 = vmatpush2.msra.mxu0 0.0
    %1062 = vmatprep.subr.mxu0 0.0
    %1063 = vmatpush2.msra.mxu0 0.0
    %1064 = vmatprep.subr.mxu0 0.0
    %1065 = vmatpush2.msra.mxu0 0.0
    %1066 = vmatprep.subr.mxu0 0.0
    %1067 = vmatpush2.msra.mxu0 0.0
    %1068 = vmatprep.subr.mxu0 0.0
    %1069 = vmatpush2.msra.mxu0 0.0
    %1070 = vmatprep.subr.mxu0 0.0
    %1071 = vmatpush2.msra.mxu0 0.0
    %1072 = vmatprep.subr.mxu0 0.0
    %1073 = vmatpush2.msra.mxu0 0.0
    %1074 = vmatprep.subr.mxu0 0.0
    %1075 = vmatpush2.msra.mxu0 0.0
    %1076 = vmatprep.subr.mxu0 0.0
    %1077 = vmatpush2.msra.mxu0 0.0
    %1078 = vmatprep.subr.mxu0 0.0
    %1079 = vmatpush2.msra.mxu0 0.0
    %1080 = vmatprep.subr.mxu0 0.0
    %1081 = vmatpush2.msra.mxu0 0.0
    %1082 = vmatprep.mubr.f32.mxu0 0.0
    %1083 = vmatmul.mubr.f32.gmra.mxu0 %v992
    %v1084 = vpop.f32.mrf.mxu0
    %v1085 = vadd.f32 0.0, %v1084
    %v1086 = vpop.f32.mrf.mxu0
    %v1087 = vadd.f32 0.0, %v1086
    %1088 = vmatprep.mubr.f32.mxu0 0.0
    %1089 = vmatmul.mubr.f32.gmra.mxu0 %v995
    %v1090 = vpop.f32.mrf.mxu0
    %v1091 = vadd.f32 0.0, %v1090
    %v1092 = vpop.f32.mrf.mxu0
    %v1093 = vadd.f32 0.0, %v1092
    %1094 = vmatprep.mubr.f32.mxu0 0.0
    %1095 = vmatmul.mubr.f32.gmra.mxu0 %v998
    %v1096 = vpop.f32.mrf.mxu0
    %v1097 = vadd.f32 0.0, %v1096
    %v1098 = vpop.f32.mrf.mxu0
    %v1099 = vadd.f32 0.0, %v1098
    %1100 = vmatprep.mubr.f32.mxu0 0.0
    %1101 = vmatmul.mubr.f32.gmra.mxu0 %v1001
    %v1102 = vpop.f32.mrf.mxu0
    %v1103 = vadd.f32 0.0, %v1102
    %v1104 = vpop.f32.mrf.mxu0
    %v1105 = vadd.f32 0.0, %v1104
    %1106 = vmatprep.mubr.f32.mxu0 0.0
    %1107 = vmatmul.mubr.f32.gmra.mxu0 %v1004
    %v1108 = vpop.f32.mrf.mxu0
    %v1109 = vadd.f32 0.0, %v1108
    %v1110 = vpop.f32.mrf.mxu0
    %v1111 = vadd.f32 0.0, %v1110
    %1112 = vmatprep.mubr.f32.mxu0 0.0
    %1113 = vmatmul.mubr.f32.gmra.mxu0 %v1007
    %v1114 = vpop.f32.mrf.mxu0
    %v1115 = vadd.f32 0.0, %v1114
    %v1116 = vpop.f32.mrf.mxu0
    %v1117 = vadd.f32 0.0, %v1116
    %1118 = vmatprep.mubr.f32.mxu0 0.0
    %1119 = vmatmul.mubr.f32.gmra.mxu0 %v1010
    %v1120 = vpop.f32.mrf.mxu0
    %v1121 = vadd.f32 0.0, %v1120
    %v1122 = vpop.f32.mrf.mxu0
    %v1123 = vadd.f32 0.0, %v1122
    %1124 = vdwg.mxu0
    %v1125 = vadd.f32 %v813, %v1085
    %v1126 = vadd.f32 %v815, %v1087
    %v1127 = vadd.f32 %v819, %v1091
    %v1128 = vadd.f32 %v821, %v1093
    %v1129 = vadd.f32 %v825, %v1097
    %v1130 = vadd.f32 %v827, %v1099
    %v1131 = vadd.f32 %v831, %v1103
    %v1132 = vadd.f32 %v833, %v1105
    %v1133 = vadd.f32 %v837, %v1109
    %v1134 = vadd.f32 %v839, %v1111
    %v1135 = vadd.f32 %v843, %v1115
    %v1136 = vadd.f32 %v845, %v1117
    %v1137 = vadd.f32 %v849, %v1121
    %v1138 = vadd.f32 %v851, %v1123
    %v1139 = vadd.f32 %v1125, %v1127
    %v1140 = vadd.f32 %v1139, %v1129
    %v1141 = vadd.f32 %v1140, %v1131
    %v1142 = vadd.f32 %v1141, %v1133
    %v1143 = vadd.f32 %v1142, %v1135
    %v1144 = vadd.f32 %v1143, %v1137
    %v1145 = vrot.slane %v1144, 4
    %v1146 = vadd.f32 %v1144, %v1145
    %v1147 = vrot.slane %v1146, 2
    %v1148 = vadd.f32 %v1146, %v1147
    %v1149 = vrot.slane %v1148, 1
    %v1150 = vadd.f32 %v1148, %v1149
    %vm1151 = vcmask 785408
    %v1152 = vsel %vm1151, %v1126, 0.0
    %v1153 = vsel %vm1151, %v1128, 0.0
    %v1154 = vadd.f32 %v1152, %v1153
    %v1155 = vsel %vm1151, %v1130, 0.0
    %v1156 = vadd.f32 %v1154, %v1155
    %v1157 = vsel %vm1151, %v1132, 0.0
    %v1158 = vadd.f32 %v1156, %v1157
    %v1159 = vsel %vm1151, %v1134, 0.0
    %v1160 = vadd.f32 %v1158, %v1159
    %v1161 = vsel %vm1151, %v1136, 0.0
    %v1162 = vadd.f32 %v1160, %v1161
    %v1163 = vsel %vm1151, %v1138, 0.0
    %v1164 = vadd.f32 %v1162, %v1163
    %v1165 = vrot.slane %v1164, 4
    %v1166 = vadd.f32 %v1164, %v1165
    %v1167 = vrot.slane %v1166, 2
    %v1168 = vadd.f32 %v1166, %v1167
    %v1169 = vrot.slane %v1168, 1
    %v1170 = vadd.f32 %v1168, %v1169
    %v1171 = vld [vmem:[%s3] sm:$0xff]
    %v1172 = vld [vmem:[%s3 + $0x8] sm:$0xff]
    %v1173 = vld [vmem:[%s3 + $0x10] sm:$0xff]
    %v1174 = vld [vmem:[%s3 + $0x18] sm:$0xff]
    %v1175 = vld [vmem:[%s3 + $0x20] sm:$0xff]
    %v1176 = vld [vmem:[%s3 + $0x28] sm:$0xff]
    %v1177 = vld [vmem:[%s3 + $0x30] sm:$0xff]
    %v1178 = vld [vmem:[%s3 + $0x38] sm:$0xff]
    %v1179 = vld [vmem:[%s3 + $0x40] sm:$0xff]
    %v1180 = vld [vmem:[%s3 + $0x48] sm:$0xff]
    %v1181 = vld [vmem:[%s3 + $0x50] sm:$0xff]
    %v1182 = vld [vmem:[%s3 + $0x58] sm:$0xff]
    %v1183 = vld [vmem:[%s3 + $0x60] sm:$0xff]
    %v1184 = vld [vmem:[%s3 + $0x68] sm:$0xff]
    %v1185 = vld [vmem:[%s3 + $0x70] sm:$0xff]
    %v1186 = vld [vmem:[%s3 + $0x78] sm:$0xff]
    %v1187 = vld [vmem:[%s3 + $0x80] sm:$0xff]
    %v1188 = vld [vmem:[%s3 + $0x88] sm:$0xff]
    %v1189 = vld [vmem:[%s3 + $0x90] sm:$0xff]
    %v1190 = vld [vmem:[%s3 + $0x98] sm:$0xff]
    %v1191 = vld [vmem:[%s3 + $0xa0] sm:$0xff]
    %v1192 = vld [vmem:[%s3 + $0xa8] sm:$0xff]
    %v1193 = vld [vmem:[%s3 + $0xb0] sm:$0xff]
    %v1194 = vld [vmem:[%s3 + $0xb8] sm:$0xff]
    %v1195 = vld [vmem:[%s3 + $0xc0] sm:$0xff]
    %v1196 = vld [vmem:[%s3 + $0xc8] sm:$0xff]
    %v1197 = vld [vmem:[%s3 + $0xd0] sm:$0xff]
    %v1198 = vld [vmem:[%s3 + $0xd8] sm:$0xff]
    %v1200 = vsel %vm1151, %v1170, 0
    %1202 = vmatprep.subr.mxu0 0.0
    %1203 = vmatpush1.msra.mxu0 %v1186
    %1204 = vmatprep.subr.mxu0 0.0
    %1205 = vmatpush1.msra.mxu0 %v1185
    %1206 = vmatprep.subr.mxu0 0.0
    %1207 = vmatpush1.msra.mxu0 %v1184
    %1208 = vmatprep.subr.mxu0 0.0
    %1209 = vmatpush1.msra.mxu0 %v1183
    %1210 = vmatprep.subr.mxu0 0.0
    %1211 = vmatpush1.msra.mxu0 %v1182
    %1212 = vmatprep.subr.mxu0 0.0
    %1213 = vmatpush1.msra.mxu0 %v1181
    %1214 = vmatprep.subr.mxu0 0.0
    %1215 = vmatpush1.msra.mxu0 %v1180
    %1216 = vmatprep.subr.mxu0 0.0
    %1217 = vmatpush1.msra.mxu0 %v1179
    %1218 = vmatprep.subr.mxu0 0.0
    %1219 = vmatpush1.msra.mxu0 %v1178
    %1220 = vmatprep.subr.mxu0 0.0
    %1221 = vmatpush1.msra.mxu0 %v1177
    %1222 = vmatprep.subr.mxu0 0.0
    %1223 = vmatpush1.msra.mxu0 %v1176
    %1224 = vmatprep.subr.mxu0 0.0
    %1225 = vmatpush1.msra.mxu0 %v1175
    %1226 = vmatprep.subr.mxu0 0.0
    %1227 = vmatpush1.msra.mxu0 %v1174
    %1228 = vmatprep.subr.mxu0 0.0
    %1229 = vmatpush1.msra.mxu0 %v1173
    %1230 = vmatprep.subr.mxu0 0.0
    %1231 = vmatpush1.msra.mxu0 %v1172
    %1232 = vmatprep.subr.mxu0 0.0
    %1233 = vmatpush1.msra.mxu0 %v1171
    %1234 = vmatprep.subr.mxu0 0.0
    %1235 = vmatpush2.msra.mxu0 0.0
    %1236 = vmatprep.subr.mxu0 0.0
    %1237 = vmatpush2.msra.mxu0 0.0
    %1238 = vmatprep.subr.mxu0 0.0
    %1239 = vmatpush2.msra.mxu0 0.0
    %1240 = vmatprep.subr.mxu0 0.0
    %1241 = vmatpush2.msra.mxu0 0.0
    %1242 = vmatprep.subr.mxu0 0.0
    %1243 = vmatpush2.msra.mxu0 %v1198
    %1244 = vmatprep.subr.mxu0 0.0
    %1245 = vmatpush2.msra.mxu0 %v1197
    %1246 = vmatprep.subr.mxu0 0.0
    %1247 = vmatpush2.msra.mxu0 %v1196
    %1248 = vmatprep.subr.mxu0 0.0
    %1249 = vmatpush2.msra.mxu0 %v1195
    %1250 = vmatprep.subr.mxu0 0.0
    %1251 = vmatpush2.msra.mxu0 %v1194
    %1252 = vmatprep.subr.mxu0 0.0
    %1253 = vmatpush2.msra.mxu0 %v1193
    %1254 = vmatprep.subr.mxu0 0.0
    %1255 = vmatpush2.msra.mxu0 %v1192
    %1256 = vmatprep.subr.mxu0 0.0
    %1257 = vmatpush2.msra.mxu0 %v1191
    %1258 = vmatprep.subr.mxu0 0.0
    %1259 = vmatpush2.msra.mxu0 %v1190
    %1260 = vmatprep.subr.mxu0 0.0
    %1261 = vmatpush2.msra.mxu0 %v1189
    %1262 = vmatprep.subr.mxu0 0.0
    %1263 = vmatpush2.msra.mxu0 %v1188
    %1264 = vmatprep.subr.mxu0 0.0
    %1265 = vmatpush2.msra.mxu0 %v1187
    %1266 = vmatprep.mubr.f32.mxu0 %v1200
    %1267 = vmatmul.mubr.f32.gmra.mxu0 %v1150
    %v1268 = vpop.f32.mrf.mxu0
    %v1269 = vadd.f32 0.0, %v1268
    %v1270 = vpop.f32.mrf.mxu0
    %1271 = vdwg.mxu0
    %v1272 = vrcp.pop 1568.0
    %v1273 = vmul.f32 %v1269, %v1272
    %v1274 = vmul.f32 %v1125, %v1125
    %v1275 = vmul.f32 %v1126, %v1126
    %v1276 = vmul.f32 %v1127, %v1127
    %v1277 = vmul.f32 %v1128, %v1128
    %v1278 = vmul.f32 %v1129, %v1129
    %v1279 = vmul.f32 %v1130, %v1130
    %v1280 = vmul.f32 %v1131, %v1131
    %v1281 = vmul.f32 %v1132, %v1132
    %v1282 = vmul.f32 %v1133, %v1133
    %v1283 = vmul.f32 %v1134, %v1134
    %v1284 = vmul.f32 %v1135, %v1135
    %v1285 = vmul.f32 %v1136, %v1136
    %v1286 = vmul.f32 %v1137, %v1137
    %v1287 = vmul.f32 %v1138, %v1138
    %v1288 = vadd.f32 %v1274, %v1276
    %v1289 = vadd.f32 %v1288, %v1278
    %v1290 = vadd.f32 %v1289, %v1280
    %v1291 = vadd.f32 %v1290, %v1282
    %v1292 = vadd.f32 %v1291, %v1284
    %v1293 = vadd.f32 %v1292, %v1286
    %v1294 = vrot.slane %v1293, 4
    %v1295 = vadd.f32 %v1293, %v1294
    %v1296 = vrot.slane %v1295, 2
    %v1297 = vadd.f32 %v1295, %v1296
    %v1298 = vrot.slane %v1297, 1
    %v1299 = vadd.f32 %v1297, %v1298
    %v1300 = vsel %vm1151, %v1275, 0.0
    %v1301 = vsel %vm1151, %v1277, 0.0
    %v1302 = vadd.f32 %v1300, %v1301
    %v1303 = vsel %vm1151, %v1279, 0.0
    %v1304 = vadd.f32 %v1302, %v1303
    %v1305 = vsel %vm1151, %v1281, 0.0
    %v1306 = vadd.f32 %v1304, %v1305
    %v1307 = vsel %vm1151, %v1283, 0.0
    %v1308 = vadd.f32 %v1306, %v1307
    %v1309 = vsel %vm1151, %v1285, 0.0
    %v1310 = vadd.f32 %v1308, %v1309
    %v1311 = vsel %vm1151, %v1287, 0.0
    %v1312 = vadd.f32 %v1310, %v1311
    %v1313 = vrot.slane %v1312, 4
    %v1314 = vadd.f32 %v1312, %v1313
    %v1315 = vrot.slane %v1314, 2
    %v1316 = vadd.f32 %v1314, %v1315
    %v1317 = vrot.slane %v1316, 1
    %v1318 = vadd.f32 %v1316, %v1317
    %v1320 = vsel %vm1151, %v1318, 0
    %1322 = vmatprep.subr.mxu0 0.0
    %1323 = vmatpush1.msra.mxu0 %v1186
    %1324 = vmatprep.subr.mxu0 0.0
    %1325 = vmatpush1.msra.mxu0 %v1185
    %1326 = vmatprep.subr.mxu0 0.0
    %1327 = vmatpush1.msra.mxu0 %v1184
    %1328 = vmatprep.subr.mxu0 0.0
    %1329 = vmatpush1.msra.mxu0 %v1183
    %1330 = vmatprep.subr.mxu0 0.0
    %1331 = vmatpush1.msra.mxu0 %v1182
    %1332 = vmatprep.subr.mxu0 0.0
    %1333 = vmatpush1.msra.mxu0 %v1181
    %1334 = vmatprep.subr.mxu0 0.0
    %1335 = vmatpush1.msra.mxu0 %v1180
    %1336 = vmatprep.subr.mxu0 0.0
    %1337 = vmatpush1.msra.mxu0 %v1179
    %1338 = vmatprep.subr.mxu0 0.0
    %1339 = vmatpush1.msra.mxu0 %v1178
    %1340 = vmatprep.subr.mxu0 0.0
    %1341 = vmatpush1.msra.mxu0 %v1177
    %1342 = vmatprep.subr.mxu0 0.0
    %1343 = vmatpush1.msra.mxu0 %v1176
    %1344 = vmatprep.subr.mxu0 0.0
    %1345 = vmatpush1.msra.mxu0 %v1175
    %1346 = vmatprep.subr.mxu0 0.0
    %1347 = vmatpush1.msra.mxu0 %v1174
    %1348 = vmatprep.subr.mxu0 0.0
    %1349 = vmatpush1.msra.mxu0 %v1173
    %1350 = vmatprep.subr.mxu0 0.0
    %1351 = vmatpush1.msra.mxu0 %v1172
    %1352 = vmatprep.subr.mxu0 0.0
    %1353 = vmatpush1.msra.mxu0 %v1171
    %1354 = vmatprep.subr.mxu0 0.0
    %1355 = vmatpush2.msra.mxu0 0.0
    %1356 = vmatprep.subr.mxu0 0.0
    %1357 = vmatpush2.msra.mxu0 0.0
    %1358 = vmatprep.subr.mxu0 0.0
    %1359 = vmatpush2.msra.mxu0 0.0
    %1360 = vmatprep.subr.mxu0 0.0
    %1361 = vmatpush2.msra.mxu0 0.0
    %1362 = vmatprep.subr.mxu0 0.0
    %1363 = vmatpush2.msra.mxu0 %v1198
    %1364 = vmatprep.subr.mxu0 0.0
    %1365 = vmatpush2.msra.mxu0 %v1197
    %1366 = vmatprep.subr.mxu0 0.0
    %1367 = vmatpush2.msra.mxu0 %v1196
    %1368 = vmatprep.subr.mxu0 0.0
    %1369 = vmatpush2.msra.mxu0 %v1195
    %1370 = vmatprep.subr.mxu0 0.0
    %1371 = vmatpush2.msra.mxu0 %v1194
    %1372 = vmatprep.subr.mxu0 0.0
    %1373 = vmatpush2.msra.mxu0 %v1193
    %1374 = vmatprep.subr.mxu0 0.0
    %1375 = vmatpush2.msra.mxu0 %v1192
    %1376 = vmatprep.subr.mxu0 0.0
    %1377 = vmatpush2.msra.mxu0 %v1191
    %1378 = vmatprep.subr.mxu0 0.0
    %1379 = vmatpush2.msra.mxu0 %v1190
    %1380 = vmatprep.subr.mxu0 0.0
    %1381 = vmatpush2.msra.mxu0 %v1189
    %1382 = vmatprep.subr.mxu0 0.0
    %1383 = vmatpush2.msra.mxu0 %v1188
    %1384 = vmatprep.subr.mxu0 0.0
    %1385 = vmatpush2.msra.mxu0 %v1187
    %1386 = vmatprep.mubr.f32.mxu0 %v1320
    %1387 = vmatmul.mubr.f32.gmra.mxu0 %v1299
    %v1388 = vpop.f32.mrf.mxu0
    %v1389 = vadd.f32 0.0, %v1388
    %v1390 = vpop.f32.mrf.mxu0
    %1391 = vdwg.mxu0
    %v1392 = vmul.f32 %v1389, %v1272
    %v1393 = vmul.f32 %v1273, %v1273
    %v1394 = vsub.f32 %v1392, %v1393
    %v1395 = vmax.f32 %v1394, 0.0
    %v1396 = vld [vmem:[#allocation9] sm:$0x1]
    %v1397 = vadd.f32 %v1395, 1e-05
    %v1398 = vrsqrt.pop %v1397
    %v1399 = vmul.f32 %v1396, %v1398
    %v1400 = vld [vmem:[#allocation10] sm:$0x1]
    %v1401 = vmul.f32 %v1273, %v1399
    %v1402 = vsub.f32 %v1400, %v1401
    %v1403 = vld [vmem:[#allocation7] sm:$0xff]
    %v1404 = vld [vmem:[#allocation7 + $0x8] sm:$0xff]
    %vm1405 = vcmask 64512
    %v1407 = vsel %vm1405, %v1399, 0
    %1409 = vmatprep.subr.mxu0 0.0
    %1410 = vmatpush1.msra.mxu0 0.0
    %1411 = vmatprep.subr.mxu0 0.0
    %1412 = vmatpush1.msra.mxu0 0.0
    %1413 = vmatprep.subr.mxu0 0.0
    %1414 = vmatpush1.msra.mxu0 0.0
    %1415 = vmatprep.subr.mxu0 0.0
    %1416 = vmatpush1.msra.mxu0 0.0
    %1417 = vmatprep.subr.mxu0 0.0
    %1418 = vmatpush1.msra.mxu0 0.0
    %1419 = vmatprep.subr.mxu0 0.0
    %1420 = vmatpush1.msra.mxu0 0.0
    %1421 = vmatprep.subr.mxu0 0.0
    %1422 = vmatpush1.msra.mxu0 0.0
    %1423 = vmatprep.subr.mxu0 0.0
    %1424 = vmatpush1.msra.mxu0 0.0
    %1425 = vmatprep.subr.mxu0 0.0
    %1426 = vmatpush1.msra.mxu0 0.0
    %1427 = vmatprep.subr.mxu0 0.0
    %1428 = vmatpush1.msra.mxu0 0.0
    %1429 = vmatprep.subr.mxu0 0.0
    %1430 = vmatpush1.msra.mxu0 0.0
    %1431 = vmatprep.subr.mxu0 0.0
    %1432 = vmatpush1.msra.mxu0 0.0
    %1433 = vmatprep.subr.mxu0 0.0
    %1434 = vmatpush1.msra.mxu0 0.0
    %1435 = vmatprep.subr.mxu0 0.0
    %1436 = vmatpush1.msra.mxu0 0.0
    %1437 = vmatprep.subr.mxu0 0.0
    %1438 = vmatpush1.msra.mxu0 0.0
    %1439 = vmatprep.subr.mxu0 %v1404
    %1440 = vmatpush1.msra.mxu0 %v1403
    %1441 = vmatprep.subr.mxu0 0.0
    %1442 = vmatpush2.msra.mxu0 0.0
    %1443 = vmatprep.subr.mxu0 0.0
    %1444 = vmatpush2.msra.mxu0 0.0
    %1445 = vmatprep.subr.mxu0 0.0
    %1446 = vmatpush2.msra.mxu0 0.0
    %1447 = vmatprep.subr.mxu0 0.0
    %1448 = vmatpush2.msra.mxu0 0.0
    %1449 = vmatprep.subr.mxu0 0.0
    %1450 = vmatpush2.msra.mxu0 0.0
    %1451 = vmatprep.subr.mxu0 0.0
    %1452 = vmatpush2.msra.mxu0 0.0
    %1453 = vmatprep.subr.mxu0 0.0
    %1454 = vmatpush2.msra.mxu0 0.0
    %1455 = vmatprep.subr.mxu0 0.0
    %1456 = vmatpush2.msra.mxu0 0.0
    %1457 = vmatprep.subr.mxu0 0.0
    %1458 = vmatpush2.msra.mxu0 0.0
    %1459 = vmatprep.subr.mxu0 0.0
    %1460 = vmatpush2.msra.mxu0 0.0
    %1461 = vmatprep.subr.mxu0 0.0
    %1462 = vmatpush2.msra.mxu0 0.0
    %1463 = vmatprep.subr.mxu0 0.0
    %1464 = vmatpush2.msra.mxu0 0.0
    %1465 = vmatprep.subr.mxu0 0.0
    %1466 = vmatpush2.msra.mxu0 0.0
    %1467 = vmatprep.subr.mxu0 0.0
    %1468 = vmatpush2.msra.mxu0 0.0
    %1469 = vmatprep.subr.mxu0 0.0
    %1470 = vmatpush2.msra.mxu0 0.0
    %1471 = vmatprep.subr.mxu0 0.0
    %1472 = vmatpush2.msra.mxu0 0.0
    %1473 = vmatprep.mubr.f32.mxu0 0.0
    %1474 = vmatmul.mubr.f32.gmra.mxu0 %v1407
    %v1475 = vpop.f32.mrf.mxu0
    %v1476 = vadd.f32 0.0, %v1475
    %v1477 = vpop.f32.mrf.mxu0
    %v1478 = vadd.f32 0.0, %v1477
    %1479 = vdwg.mxu0
    %v1481 = vsel %vm1405, %v1402, 0
    %1483 = vmatprep.subr.mxu0 0.0
    %1484 = vmatpush1.msra.mxu0 0.0
    %1485 = vmatprep.subr.mxu0 0.0
    %1486 = vmatpush1.msra.mxu0 0.0
    %1487 = vmatprep.subr.mxu0 0.0
    %1488 = vmatpush1.msra.mxu0 0.0
    %1489 = vmatprep.subr.mxu0 0.0
    %1490 = vmatpush1.msra.mxu0 0.0
    %1491 = vmatprep.subr.mxu0 0.0
    %1492 = vmatpush1.msra.mxu0 0.0
    %1493 = vmatprep.subr.mxu0 0.0
    %1494 = vmatpush1.msra.mxu0 0.0
    %1495 = vmatprep.subr.mxu0 0.0
    %1496 = vmatpush1.msra.mxu0 0.0
    %1497 = vmatprep.subr.mxu0 0.0
    %1498 = vmatpush1.msra.mxu0 0.0
    %1499 = vmatprep.subr.mxu0 0.0
    %1500 = vmatpush1.msra.mxu0 0.0
    %1501 = vmatprep.subr.mxu0 0.0
    %1502 = vmatpush1.msra.mxu0 0.0
    %1503 = vmatprep.subr.mxu0 0.0
    %1504 = vmatpush1.msra.mxu0 0.0
    %1505 = vmatprep.subr.mxu0 0.0
    %1506 = vmatpush1.msra.mxu0 0.0
    %1507 = vmatprep.subr.mxu0 0.0
    %1508 = vmatpush1.msra.mxu0 0.0
    %1509 = vmatprep.subr.mxu0 0.0
    %1510 = vmatpush1.msra.mxu0 0.0
    %1511 = vmatprep.subr.mxu0 0.0
    %1512 = vmatpush1.msra.mxu0 0.0
    %1513 = vmatprep.subr.mxu0 %v1404
    %1514 = vmatpush1.msra.mxu0 %v1403
    %1515 = vmatprep.subr.mxu0 0.0
    %1516 = vmatpush2.msra.mxu0 0.0
    %1517 = vmatprep.subr.mxu0 0.0
    %1518 = vmatpush2.msra.mxu0 0.0
    %1519 = vmatprep.subr.mxu0 0.0
    %1520 = vmatpush2.msra.mxu0 0.0
    %1521 = vmatprep.subr.mxu0 0.0
    %1522 = vmatpush2.msra.mxu0 0.0
    %1523 = vmatprep.subr.mxu0 0.0
    %1524 = vmatpush2.msra.mxu0 0.0
    %1525 = vmatprep.subr.mxu0 0.0
    %1526 = vmatpush2.msra.mxu0 0.0
    %1527 = vmatprep.subr.mxu0 0.0
    %1528 = vmatpush2.msra.mxu0 0.0
    %1529 = vmatprep.subr.mxu0 0.0
    %1530 = vmatpush2.msra.mxu0 0.0
    %1531 = vmatprep.subr.mxu0 0.0
    %1532 = vmatpush2.msra.mxu0 0.0
    %1533 = vmatprep.subr.mxu0 0.0
    %1534 = vmatpush2.msra.mxu0 0.0
    %1535 = vmatprep.subr.mxu0 0.0
    %1536 = vmatpush2.msra.mxu0 0.0
    %1537 = vmatprep.subr.mxu0 0.0
    %1538 = vmatpush2.msra.mxu0 0.0
    %1539 = vmatprep.subr.mxu0 0.0
    %1540 = vmatpush2.msra.mxu0 0.0
    %1541 = vmatprep.subr.mxu0 0.0
    %1542 = vmatpush2.msra.mxu0 0.0
    %1543 = vmatprep.subr.mxu0 0.0
    %1544 = vmatpush2.msra.mxu0 0.0
    %1545 = vmatprep.subr.mxu0 0.0
    %1546 = vmatpush2.msra.mxu0 0.0
    %1547 = vmatprep.mubr.f32.mxu0 0.0
    %1548 = vmatmul.mubr.f32.gmra.mxu0 %v1481
    %v1549 = vpop.f32.mrf.mxu0
    %v1550 = vadd.f32 0.0, %v1549
    %v1551 = vpop.f32.mrf.mxu0
    %v1552 = vadd.f32 0.0, %v1551
    %1553 = vdwg.mxu0
    %v1554 = vlaneseq
    %v1555 = vshrl.u32 %v1554, 7
    %v1556 = vsub.s32 0, %v1555
    %v1557 = vrot.slane %v1476, %v1556
    %v1558 = vlaneseq
    %v1559 = vshrl.u32 %v1558, 7
    %v1560 = vsub.s32 0, %v1559
    %v1561 = vrot.slane %v1478, %v1560
    %v1562 = vmul.f32 %v1125, %v1557
    %v1563 = vmul.f32 %v1126, %v1561
    %v1564 = vmul.f32 %v1127, %v1557
    %v1565 = vmul.f32 %v1128, %v1561
    %v1566 = vmul.f32 %v1129, %v1557
    %v1567 = vmul.f32 %v1130, %v1561
    %v1568 = vmul.f32 %v1131, %v1557
    %v1569 = vmul.f32 %v1132, %v1561
    %v1570 = vmul.f32 %v1133, %v1557
    %v1571 = vmul.f32 %v1134, %v1561
    %v1572 = vmul.f32 %v1135, %v1557
    %v1573 = vmul.f32 %v1136, %v1561
    %v1574 = vmul.f32 %v1137, %v1557
    %v1575 = vmul.f32 %v1138, %v1561
    %v1576 = vlaneseq
    %v1577 = vshrl.u32 %v1576, 7
    %v1578 = vsub.s32 0, %v1577
    %v1579 = vrot.slane %v1550, %v1578
    %v1580 = vlaneseq
    %v1581 = vshrl.u32 %v1580, 7
    %v1582 = vsub.s32 0, %v1581
    %v1583 = vrot.slane %v1552, %v1582
    %v1584 = vadd.f32 %v1562, %v1579
    %v1585 = vadd.f32 %v1563, %v1583
    %v1586 = vadd.f32 %v1564, %v1579
    %v1587 = vadd.f32 %v1565, %v1583
    %v1588 = vadd.f32 %v1566, %v1579
    %v1589 = vadd.f32 %v1567, %v1583
    %v1590 = vadd.f32 %v1568, %v1579
    %v1591 = vadd.f32 %v1569, %v1583
    %v1592 = vadd.f32 %v1570, %v1579
    %v1593 = vadd.f32 %v1571, %v1583
    %v1594 = vadd.f32 %v1572, %v1579
    %v1595 = vadd.f32 %v1573, %v1583
    %v1596 = vadd.f32 %v1574, %v1579
    %v1597 = vadd.f32 %v1575, %v1583
    %vm1598 = vcmp.gt.f32.partialorder %v1584, 0.0
    %vm1599 = vcmp.gt.f32.partialorder %v1585, 0.0
    %vm1600 = vcmp.gt.f32.partialorder %v1586, 0.0
    %vm1601 = vcmp.gt.f32.partialorder %v1587, 0.0
    %vm1602 = vcmp.gt.f32.partialorder %v1588, 0.0
    %vm1603 = vcmp.gt.f32.partialorder %v1589, 0.0
    %vm1604 = vcmp.gt.f32.partialorder %v1590, 0.0
    %vm1605 = vcmp.gt.f32.partialorder %v1591, 0.0
    %vm1606 = vcmp.gt.f32.partialorder %v1592, 0.0
    %vm1607 = vcmp.gt.f32.partialorder %v1593, 0.0
    %vm1608 = vcmp.gt.f32.partialorder %v1594, 0.0
    %vm1609 = vcmp.gt.f32.partialorder %v1595, 0.0
    %vm1610 = vcmp.gt.f32.partialorder %v1596, 0.0
    %vm1611 = vcmp.gt.f32.partialorder %v1597, 0.0
    %v1612 = vmul.f32 %v1584, 0.2
    %v1613 = vmul.f32 %v1585, 0.2
    %v1614 = vmul.f32 %v1586, 0.2
    %v1615 = vmul.f32 %v1587, 0.2
    %v1616 = vmul.f32 %v1588, 0.2
    %v1617 = vmul.f32 %v1589, 0.2
    %v1618 = vmul.f32 %v1590, 0.2
    %v1619 = vmul.f32 %v1591, 0.2
    %v1620 = vmul.f32 %v1592, 0.2
    %v1621 = vmul.f32 %v1593, 0.2
    %v1622 = vmul.f32 %v1594, 0.2
    %v1623 = vmul.f32 %v1595, 0.2
    %v1624 = vmul.f32 %v1596, 0.2
    %v1625 = vmul.f32 %v1597, 0.2
    %v1626 = vsel %vm1598, %v1584, %v1612
    %v1627 = vsel %vm1599, %v1585, %v1613
    %v1628 = vsel %vm1600, %v1586, %v1614
    %v1629 = vsel %vm1601, %v1587, %v1615
    %v1630 = vsel %vm1602, %v1588, %v1616
    %v1631 = vsel %vm1603, %v1589, %v1617
    %v1632 = vsel %vm1604, %v1590, %v1618
    %v1633 = vsel %vm1605, %v1591, %v1619
    %v1634 = vsel %vm1606, %v1592, %v1620
    %v1635 = vsel %vm1607, %v1593, %v1621
    %v1636 = vsel %vm1608, %v1594, %v1622
    %v1637 = vsel %vm1609, %v1595, %v1623
    %v1638 = vsel %vm1610, %v1596, %v1624
    %v1639 = vsel %vm1611, %v1597, %v1625
    %v1640 = vld [vmem:[#allocation12] sm:$0xff]
    %v1641 = vld [vmem:[#allocation12 + $0x8] sm:$0xff]
    %v1642 = vld [vmem:[#allocation12 + $0x10] sm:$0xff]
    %v1643 = vld [vmem:[#allocation12 + $0x18] sm:$0xf]
    %v1644 = vld [vmem:[%s8] sm:$0xff]
    %v1645 = vld [vmem:[%s8 + $0x8] sm:$0xff]
    %v1646 = vld [vmem:[%s8 + $0x10] sm:$0xff]
    %v1647 = vld [vmem:[%s8 + $0x18] sm:$0xf]
    %1649 = vset.pattern.permute.xlu0 0
    %1650 = vperm.xlu0 %1649, %v1644
    %v1651 = vpop.permute.xlu0 %1650
    %1654 = vset.pattern.permute.xlu0 0
    %1655 = vperm.xlu0 %1654, %v1645
    %v1656 = vpop.permute.xlu0 %1655
    %1659 = vset.pattern.permute.xlu0 0
    %1660 = vperm.xlu0 %1659, %v1646
    %v1661 = vpop.permute.xlu0 %1660
    %1664 = vset.pattern.permute.xlu0 0
    %1665 = vperm.xlu0 %1664, %v1647
    %v1666 = vpop.permute.xlu0 %1665
    %v1669 = vsel %vm315, %v1640, 0
    %v1672 = vsel %vm315, %v1641, 0
    %v1675 = vsel %vm315, %v1642, 0
    %v1678 = vsel %vm315, %v1643, 0
    %1680 = vmatprep.subr.mxu0 0.0
    %1681 = vmatpush1.msra.mxu0 0.0
    %1682 = vmatprep.subr.mxu0 0.0
    %1683 = vmatpush1.msra.mxu0 0.0
    %1684 = vmatprep.subr.mxu0 0.0
    %1685 = vmatpush1.msra.mxu0 0.0
    %1686 = vmatprep.subr.mxu0 0.0
    %1687 = vmatpush1.msra.mxu0 0.0
    %1688 = vmatprep.subr.mxu0 0.0
    %1689 = vmatpush1.msra.mxu0 0.0
    %1690 = vmatprep.subr.mxu0 0.0
    %1691 = vmatpush1.msra.mxu0 0.0
    %1692 = vmatprep.subr.mxu0 0.0
    %1693 = vmatpush1.msra.mxu0 0.0
    %1694 = vmatprep.subr.mxu0 0.0
    %1695 = vmatpush1.msra.mxu0 0.0
    %1696 = vmatprep.subr.mxu0 0.0
    %1697 = vmatpush1.msra.mxu0 0.0
    %1698 = vmatprep.subr.mxu0 %v1639
    %1699 = vmatpush1.msra.mxu0 %v1638
    %1700 = vmatprep.subr.mxu0 %v1637
    %1701 = vmatpush1.msra.mxu0 %v1636
    %1702 = vmatprep.subr.mxu0 %v1635
    %1703 = vmatpush1.msra.mxu0 %v1634
    %1704 = vmatprep.subr.mxu0 %v1633
    %1705 = vmatpush1.msra.mxu0 %v1632
    %1706 = vmatprep.subr.mxu0 %v1631
    %1707 = vmatpush1.msra.mxu0 %v1630
    %1708 = vmatprep.subr.mxu0 %v1629
    %1709 = vmatpush1.msra.mxu0 %v1628
    %1710 = vmatprep.subr.mxu0 %v1627
    %1711 = vmatpush1.msra.mxu0 %v1626
    %1712 = vmatprep.subr.mxu0 0.0
    %1713 = vmatpush2.msra.mxu0 0.0
    %1714 = vmatprep.subr.mxu0 0.0
    %1715 = vmatpush2.msra.mxu0 0.0
    %1716 = vmatprep.subr.mxu0 0.0
    %1717 = vmatpush2.msra.mxu0 0.0
    %1718 = vmatprep.subr.mxu0 0.0
    %1719 = vmatpush2.msra.mxu0 0.0
    %1720 = vmatprep.subr.mxu0 0.0
    %1721 = vmatpush2.msra.mxu0 0.0
    %1722 = vmatprep.subr.mxu0 0.0
    %1723 = vmatpush2.msra.mxu0 0.0
    %1724 = vmatprep.subr.mxu0 0.0
    %1725 = vmatpush2.msra.mxu0 0.0
    %1726 = vmatprep.subr.mxu0 0.0
    %1727 = vmatpush2.msra.mxu0 0.0
    %1728 = vmatprep.subr.mxu0 0.0
    %1729 = vmatpush2.msra.mxu0 0.0
    %1730 = vmatprep.subr.mxu0 0.0
    %1731 = vmatpush2.msra.mxu0 0.0
    %1732 = vmatprep.subr.mxu0 0.0
    %1733 = vmatpush2.msra.mxu0 0.0
    %1734 = vmatprep.subr.mxu0 0.0
    %1735 = vmatpush2.msra.mxu0 0.0
    %1736 = vmatprep.subr.mxu0 0.0
    %1737 = vmatpush2.msra.mxu0 0.0
    %1738 = vmatprep.subr.mxu0 0.0
    %1739 = vmatpush2.msra.mxu0 0.0
    %1740 = vmatprep.subr.mxu0 0.0
    %1741 = vmatpush2.msra.mxu0 0.0
    %1742 = vmatprep.subr.mxu0 0.0
    %1743 = vmatpush2.msra.mxu0 0.0
    %1744 = vmatprep.mubr.f32.mxu0 0.0
    %1745 = vmatmul.mubr.f32.gmra.mxu0 %v1669
    %v1746 = vpop.f32.mrf.mxu0
    %v1747 = vadd.f32 %v1651, %v1746
    %v1748 = vpop.f32.mrf.mxu0
    %v1749 = vadd.f32 %v1651, %v1748
    %1750 = vmatprep.mubr.f32.mxu0 0.0
    %1751 = vmatmul.mubr.f32.gmra.mxu0 %v1672
    %v1752 = vpop.f32.mrf.mxu0
    %v1753 = vadd.f32 %v1656, %v1752
    %v1754 = vpop.f32.mrf.mxu0
    %v1755 = vadd.f32 %v1656, %v1754
    %1756 = vmatprep.mubr.f32.mxu0 0.0
    %1757 = vmatmul.mubr.f32.gmra.mxu0 %v1675
    %v1758 = vpop.f32.mrf.mxu0
    %v1759 = vadd.f32 %v1661, %v1758
    %v1760 = vpop.f32.mrf.mxu0
    %v1761 = vadd.f32 %v1661, %v1760
    %1762 = vmatprep.mubr.f32.mxu0 0.0
    %1763 = vmatmul.mubr.f32.gmra.mxu0 %v1678
    %v1764 = vpop.f32.mrf.mxu0
    %v1765 = vadd.f32 %v1666, %v1764
    %v1766 = vpop.f32.mrf.mxu0
    %v1767 = vadd.f32 %v1666, %v1766
    %1768 = vdwg.mxu0
    %s1769 = scalar_lea.vmem [#allocation12], 32
    %v1770 = vld [vmem:[%s1769] sm:$0xff]
    %v1771 = vld [vmem:[%s1769 + $0x8] sm:$0xff]
    %v1772 = vld [vmem:[%s1769 + $0x10] sm:$0xff]
    %v1773 = vld [vmem:[%s1769 + $0x18] sm:$0xf]
    %s1774 = scalar_lea.vmem %s8, 32
    %v1775 = vld [vmem:[%s1774] sm:$0xff]
    %v1776 = vld [vmem:[%s1774 + $0x8] sm:$0xff]
    %v1777 = vld [vmem:[%s1774 + $0x10] sm:$0xff]
    %v1778 = vld [vmem:[%s1774 + $0x18] sm:$0xf]
    %1780 = vset.pattern.permute.xlu0 0
    %1781 = vperm.xlu0 %1780, %v1775
    %v1782 = vpop.permute.xlu0 %1781
    %1785 = vset.pattern.permute.xlu0 0
    %1786 = vperm.xlu0 %1785, %v1776
    %v1787 = vpop.permute.xlu0 %1786
    %1790 = vset.pattern.permute.xlu0 0
    %1791 = vperm.xlu0 %1790, %v1777
    %v1792 = vpop.permute.xlu0 %1791
    %1795 = vset.pattern.permute.xlu0 0
    %1796 = vperm.xlu0 %1795, %v1778
    %v1797 = vpop.permute.xlu0 %1796
    %v1800 = vsel %vm315, %v1770, 0
    %v1803 = vsel %vm315, %v1771, 0
    %v1806 = vsel %vm315, %v1772, 0
    %v1809 = vsel %vm315, %v1773, 0
    %1811 = vmatprep.subr.mxu0 0.0
    %1812 = vmatpush1.msra.mxu0 0.0
    %1813 = vmatprep.subr.mxu0 0.0
    %1814 = vmatpush1.msra.mxu0 0.0
    %1815 = vmatprep.subr.mxu0 0.0
    %1816 = vmatpush1.msra.mxu0 0.0
    %1817 = vmatprep.subr.mxu0 0.0
    %1818 = vmatpush1.msra.mxu0 0.0
    %1819 = vmatprep.subr.mxu0 0.0
    %1820 = vmatpush1.msra.mxu0 0.0
    %1821 = vmatprep.subr.mxu0 0.0
    %1822 = vmatpush1.msra.mxu0 0.0
    %1823 = vmatprep.subr.mxu0 0.0
    %1824 = vmatpush1.msra.mxu0 0.0
    %1825 = vmatprep.subr.mxu0 0.0
    %1826 = vmatpush1.msra.mxu0 0.0
    %1827 = vmatprep.subr.mxu0 0.0
    %1828 = vmatpush1.msra.mxu0 0.0
    %1829 = vmatprep.subr.mxu0 %v1639
    %1830 = vmatpush1.msra.mxu0 %v1638
    %1831 = vmatprep.subr.mxu0 %v1637
    %1832 = vmatpush1.msra.mxu0 %v1636
    %1833 = vmatprep.subr.mxu0 %v1635
    %1834 = vmatpush1.msra.mxu0 %v1634
    %1835 = vmatprep.subr.mxu0 %v1633
    %1836 = vmatpush1.msra.mxu0 %v1632
    %1837 = vmatprep.subr.mxu0 %v1631
    %1838 = vmatpush1.msra.mxu0 %v1630
    %1839 = vmatprep.subr.mxu0 %v1629
    %1840 = vmatpush1.msra.mxu0 %v1628
    %1841 = vmatprep.subr.mxu0 %v1627
    %1842 = vmatpush1.msra.mxu0 %v1626
    %1843 = vmatprep.subr.mxu0 0.0
    %1844 = vmatpush2.msra.mxu0 0.0
    %1845 = vmatprep.subr.mxu0 0.0
    %1846 = vmatpush2.msra.mxu0 0.0
    %1847 = vmatprep.subr.mxu0 0.0
    %1848 = vmatpush2.msra.mxu0 0.0
    %1849 = vmatprep.subr.mxu0 0.0
    %1850 = vmatpush2.msra.mxu0 0.0
    %1851 = vmatprep.subr.mxu0 0.0
    %1852 = vmatpush2.msra.mxu0 0.0
    %1853 = vmatprep.subr.mxu0 0.0
    %1854 = vmatpush2.msra.mxu0 0.0
    %1855 = vmatprep.subr.mxu0 0.0
    %1856 = vmatpush2.msra.mxu0 0.0
    %1857 = vmatprep.subr.mxu0 0.0
    %1858 = vmatpush2.msra.mxu0 0.0
    %1859 = vmatprep.subr.mxu0 0.0
    %1860 = vmatpush2.msra.mxu0 0.0
    %1861 = vmatprep.subr.mxu0 0.0
    %1862 = vmatpush2.msra.mxu0 0.0
    %1863 = vmatprep.subr.mxu0 0.0
    %1864 = vmatpush2.msra.mxu0 0.0
    %1865 = vmatprep.subr.mxu0 0.0
    %1866 = vmatpush2.msra.mxu0 0.0
    %1867 = vmatprep.subr.mxu0 0.0
    %1868 = vmatpush2.msra.mxu0 0.0
    %1869 = vmatprep.subr.mxu0 0.0
    %1870 = vmatpush2.msra.mxu0 0.0
    %1871 = vmatprep.subr.mxu0 0.0
    %1872 = vmatpush2.msra.mxu0 0.0
    %1873 = vmatprep.subr.mxu0 0.0
    %1874 = vmatpush2.msra.mxu0 0.0
    %1875 = vmatprep.mubr.f32.mxu0 0.0
    %1876 = vmatmul.mubr.f32.gmra.mxu0 %v1800
    %v1877 = vpop.f32.mrf.mxu0
    %v1878 = vadd.f32 %v1782, %v1877
    %v1879 = vpop.f32.mrf.mxu0
    %v1880 = vadd.f32 %v1782, %v1879
    %1881 = vmatprep.mubr.f32.mxu0 0.0
    %1882 = vmatmul.mubr.f32.gmra.mxu0 %v1803
    %v1883 = vpop.f32.mrf.mxu0
    %v1884 = vadd.f32 %v1787, %v1883
    %v1885 = vpop.f32.mrf.mxu0
    %v1886 = vadd.f32 %v1787, %v1885
    %1887 = vmatprep.mubr.f32.mxu0 0.0
    %1888 = vmatmul.mubr.f32.gmra.mxu0 %v1806
    %v1889 = vpop.f32.mrf.mxu0
    %v1890 = vadd.f32 %v1792, %v1889
    %v1891 = vpop.f32.mrf.mxu0
    %v1892 = vadd.f32 %v1792, %v1891
    %1893 = vmatprep.mubr.f32.mxu0 0.0
    %1894 = vmatmul.mubr.f32.gmra.mxu0 %v1809
    %v1895 = vpop.f32.mrf.mxu0
    %v1896 = vadd.f32 %v1797, %v1895
    %v1897 = vpop.f32.mrf.mxu0
    %v1898 = vadd.f32 %v1797, %v1897
    %1899 = vdwg.mxu0
    %v1900 = vmax.f32 %v1747, %v1878
    %v1901 = vmax.f32 %v1749, %v1880
    %v1902 = vmax.f32 %v1753, %v1884
    %v1903 = vmax.f32 %v1755, %v1886
    %v1904 = vmax.f32 %v1759, %v1890
    %v1905 = vmax.f32 %v1761, %v1892
    %v1906 = vmax.f32 %v1765, %v1896
    %v1907 = vmax.f32 %v1767, %v1898
    %s1908 = scalar_lea.vmem [#allocation12], 64
    %v1909 = vld [vmem:[%s1908] sm:$0xff]
    %v1910 = vld [vmem:[%s1908 + $0x8] sm:$0xff]
    %v1911 = vld [vmem:[%s1908 + $0x10] sm:$0xff]
    %v1912 = vld [vmem:[%s1908 + $0x18] sm:$0xf]
    %s1913 = scalar_lea.vmem %s8, 64
    %v1914 = vld [vmem:[%s1913] sm:$0xff]
    %v1915 = vld [vmem:[%s1913 + $0x8] sm:$0xff]
    %v1916 = vld [vmem:[%s1913 + $0x10] sm:$0xff]
    %v1917 = vld [vmem:[%s1913 + $0x18] sm:$0xf]
    %1919 = vset.pattern.permute.xlu0 0
    %1920 = vperm.xlu0 %1919, %v1914
    %v1921 = vpop.permute.xlu0 %1920
    %1924 = vset.pattern.permute.xlu0 0
    %1925 = vperm.xlu0 %1924, %v1915
    %v1926 = vpop.permute.xlu0 %1925
    %1929 = vset.pattern.permute.xlu0 0
    %1930 = vperm.xlu0 %1929, %v1916
    %v1931 = vpop.permute.xlu0 %1930
    %1934 = vset.pattern.permute.xlu0 0
    %1935 = vperm.xlu0 %1934, %v1917
    %v1936 = vpop.permute.xlu0 %1935
    %v1939 = vsel %vm315, %v1909, 0
    %v1942 = vsel %vm315, %v1910, 0
    %v1945 = vsel %vm315, %v1911, 0
    %v1948 = vsel %vm315, %v1912, 0
    %1950 = vmatprep.subr.mxu0 0.0
    %1951 = vmatpush1.msra.mxu0 0.0
    %1952 = vmatprep.subr.mxu0 0.0
    %1953 = vmatpush1.msra.mxu0 0.0
    %1954 = vmatprep.subr.mxu0 0.0
    %1955 = vmatpush1.msra.mxu0 0.0
    %1956 = vmatprep.subr.mxu0 0.0
    %1957 = vmatpush1.msra.mxu0 0.0
    %1958 = vmatprep.subr.mxu0 0.0
    %1959 = vmatpush1.msra.mxu0 0.0
    %1960 = vmatprep.subr.mxu0 0.0
    %1961 = vmatpush1.msra.mxu0 0.0
    %1962 = vmatprep.subr.mxu0 0.0
    %1963 = vmatpush1.msra.mxu0 0.0
    %1964 = vmatprep.subr.mxu0 0.0
    %1965 = vmatpush1.msra.mxu0 0.0
    %1966 = vmatprep.subr.mxu0 0.0
    %1967 = vmatpush1.msra.mxu0 0.0
    %1968 = vmatprep.subr.mxu0 %v1639
    %1969 = vmatpush1.msra.mxu0 %v1638
    %1970 = vmatprep.subr.mxu0 %v1637
    %1971 = vmatpush1.msra.mxu0 %v1636
    %1972 = vmatprep.subr.mxu0 %v1635
    %1973 = vmatpush1.msra.mxu0 %v1634
    %1974 = vmatprep.subr.mxu0 %v1633
    %1975 = vmatpush1.msra.mxu0 %v1632
    %1976 = vmatprep.subr.mxu0 %v1631
    %1977 = vmatpush1.msra.mxu0 %v1630
    %1978 = vmatprep.subr.mxu0 %v1629
    %1979 = vmatpush1.msra.mxu0 %v1628
    %1980 = vmatprep.subr.mxu0 %v1627
    %1981 = vmatpush1.msra.mxu0 %v1626
    %1982 = vmatprep.subr.mxu0 0.0
    %1983 = vmatpush2.msra.mxu0 0.0
    %1984 = vmatprep.subr.mxu0 0.0
    %1985 = vmatpush2.msra.mxu0 0.0
    %1986 = vmatprep.subr.mxu0 0.0
    %1987 = vmatpush2.msra.mxu0 0.0
    %1988 = vmatprep.subr.mxu0 0.0
    %1989 = vmatpush2.msra.mxu0 0.0
    %1990 = vmatprep.subr.mxu0 0.0
    %1991 = vmatpush2.msra.mxu0 0.0
    %1992 = vmatprep.subr.mxu0 0.0
    %1993 = vmatpush2.msra.mxu0 0.0
    %1994 = vmatprep.subr.mxu0 0.0
    %1995 = vmatpush2.msra.mxu0 0.0
    %1996 = vmatprep.subr.mxu0 0.0
    %1997 = vmatpush2.msra.mxu0 0.0
    %1998 = vmatprep.subr.mxu0 0.0
    %1999 = vmatpush2.msra.mxu0 0.0
    %2000 = vmatprep.subr.mxu0 0.0
    %2001 = vmatpush2.msra.mxu0 0.0
    %2002 = vmatprep.subr.mxu0 0.0
    %2003 = vmatpush2.msra.mxu0 0.0
    %2004 = vmatprep.subr.mxu0 0.0
    %2005 = vmatpush2.msra.mxu0 0.0
    %2006 = vmatprep.subr.mxu0 0.0
    %2007 = vmatpush2.msra.mxu0 0.0
    %2008 = vmatprep.subr.mxu0 0.0
    %2009 = vmatpush2.msra.mxu0 0.0
    %2010 = vmatprep.subr.mxu0 0.0
    %2011 = vmatpush2.msra.mxu0 0.0
    %2012 = vmatprep.subr.mxu0 0.0
    %2013 = vmatpush2.msra.mxu0 0.0
    %2014 = vmatprep.mubr.f32.mxu0 0.0
    %2015 = vmatmul.mubr.f32.gmra.mxu0 %v1939
    %v2016 = vpop.f32.mrf.mxu0
    %v2017 = vadd.f32 %v1921, %v2016
    %v2018 = vpop.f32.mrf.mxu0
    %v2019 = vadd.f32 %v1921, %v2018
    %2020 = vmatprep.mubr.f32.mxu0 0.0
    %2021 = vmatmul.mubr.f32.gmra.mxu0 %v1942
    %v2022 = vpop.f32.mrf.mxu0
    %v2023 = vadd.f32 %v1926, %v2022
    %v2024 = vpop.f32.mrf.mxu0
    %v2025 = vadd.f32 %v1926, %v2024
    %2026 = vmatprep.mubr.f32.mxu0 0.0
    %2027 = vmatmul.mubr.f32.gmra.mxu0 %v1945
    %v2028 = vpop.f32.mrf.mxu0
    %v2029 = vadd.f32 %v1931, %v2028
    %v2030 = vpop.f32.mrf.mxu0
    %v2031 = vadd.f32 %v1931, %v2030
    %2032 = vmatprep.mubr.f32.mxu0 0.0
    %2033 = vmatmul.mubr.f32.gmra.mxu0 %v1948
    %v2034 = vpop.f32.mrf.mxu0
    %v2035 = vadd.f32 %v1936, %v2034
    %v2036 = vpop.f32.mrf.mxu0
    %v2037 = vadd.f32 %v1936, %v2036
    %2038 = vdwg.mxu0
    %v2039 = vmax.f32 %v1900, %v2017
    %v2040 = vmax.f32 %v1901, %v2019
    %v2041 = vmax.f32 %v1902, %v2023
    %v2042 = vmax.f32 %v1903, %v2025
    %v2043 = vmax.f32 %v1904, %v2029
    %v2044 = vmax.f32 %v1905, %v2031
    %v2045 = vmax.f32 %v1906, %v2035
    %v2046 = vmax.f32 %v1907, %v2037
    %v2047 = vld [vmem:[#allocation13] sm:$0xff]
    %v2048 = vld [vmem:[#allocation13 + $0x8] sm:$0xff]
    %v2049 = vld [vmem:[#allocation13 + $0x10] sm:$0xff]
    %v2050 = vld [vmem:[#allocation13 + $0x18] sm:$0xff]
    %v2051 = vld [vmem:[#allocation13 + $0x20] sm:$0xff]
    %v2052 = vld [vmem:[#allocation13 + $0x28] sm:$0xff]
    %v2053 = vld [vmem:[#allocation13 + $0x30] sm:$0xff]
    %v2054 = vld [vmem:[#allocation13 + $0x38] sm:$0xff]
    %v2055 = vld [vmem:[#allocation13 + $0x40] sm:$0xff]
    %v2056 = vld [vmem:[#allocation13 + $0x48] sm:$0xff]
    %v2057 = vld [vmem:[#allocation13 + $0x50] sm:$0xff]
    %v2058 = vld [vmem:[#allocation13 + $0x58] sm:$0xff]
    %v2059 = vld [vmem:[#allocation13 + $0x60] sm:$0xff]
    %v2060 = vld [vmem:[#allocation13 + $0x68] sm:$0xff]
    %v2061 = vld [vmem:[#allocation13 + $0x70] sm:$0xff]
    %v2062 = vld [vmem:[#allocation13 + $0x78] sm:$0xff]
    %v2063 = vld [vmem:[#allocation13 + $0x80] sm:$0xff]
    %v2064 = vld [vmem:[#allocation13 + $0x88] sm:$0xff]
    %v2065 = vld [vmem:[#allocation13 + $0x90] sm:$0xff]
    %v2066 = vld [vmem:[#allocation13 + $0x98] sm:$0xff]
    %v2067 = vld [vmem:[#allocation13 + $0xa0] sm:$0xff]
    %v2068 = vld [vmem:[#allocation13 + $0xa8] sm:$0xff]
    %v2069 = vld [vmem:[#allocation13 + $0xb0] sm:$0xff]
    %v2070 = vld [vmem:[#allocation13 + $0xb8] sm:$0xff]
    %v2071 = vld [vmem:[#allocation13 + $0xc0] sm:$0xff]
    %v2072 = vld [vmem:[#allocation13 + $0xc8] sm:$0xff]
    %v2073 = vld [vmem:[#allocation13 + $0xd0] sm:$0xff]
    %v2074 = vld [vmem:[#allocation13 + $0xd8] sm:$0xff]
    %v2075 = vld [vmem:[#allocation15] sm:$0x1]
    %v2077 = vlaneseq
    %v2078 = vshrl.u32 %v2077, 7
    %v2079 = vsub.s32 0, %v2078
    %v2080 = vrot.slane %v2075, %v2079
    %v2083 = vsel %vm1151, %v2040, 0
    %v2086 = vsel %vm1151, %v2042, 0
    %v2089 = vsel %vm1151, %v2044, 0
    %v2092 = vsel %vm1151, %v2046, 0
    %2094 = vmatprep.subr.mxu0 0.0
    %2095 = vmatpush1.msra.mxu0 %v2062
    %2096 = vmatprep.subr.mxu0 0.0
    %2097 = vmatpush1.msra.mxu0 %v2061
    %2098 = vmatprep.subr.mxu0 0.0
    %2099 = vmatpush1.msra.mxu0 %v2060
    %2100 = vmatprep.subr.mxu0 0.0
    %2101 = vmatpush1.msra.mxu0 %v2059
    %2102 = vmatprep.subr.mxu0 0.0
    %2103 = vmatpush1.msra.mxu0 %v2058
    %2104 = vmatprep.subr.mxu0 0.0
    %2105 = vmatpush1.msra.mxu0 %v2057
    %2106 = vmatprep.subr.mxu0 0.0
    %2107 = vmatpush1.msra.mxu0 %v2056
    %2108 = vmatprep.subr.mxu0 0.0
    %2109 = vmatpush1.msra.mxu0 %v2055
    %2110 = vmatprep.subr.mxu0 0.0
    %2111 = vmatpush1.msra.mxu0 %v2054
    %2112 = vmatprep.subr.mxu0 0.0
    %2113 = vmatpush1.msra.mxu0 %v2053
    %2114 = vmatprep.subr.mxu0 0.0
    %2115 = vmatpush1.msra.mxu0 %v2052
    %2116 = vmatprep.subr.mxu0 0.0
    %2117 = vmatpush1.msra.mxu0 %v2051
    %2118 = vmatprep.subr.mxu0 0.0
    %2119 = vmatpush1.msra.mxu0 %v2050
    %2120 = vmatprep.subr.mxu0 0.0
    %2121 = vmatpush1.msra.mxu0 %v2049
    %2122 = vmatprep.subr.mxu0 0.0
    %2123 = vmatpush1.msra.mxu0 %v2048
    %2124 = vmatprep.subr.mxu0 0.0
    %2125 = vmatpush1.msra.mxu0 %v2047
    %2126 = vmatprep.subr.mxu0 0.0
    %2127 = vmatpush2.msra.mxu0 0.0
    %2128 = vmatprep.subr.mxu0 0.0
    %2129 = vmatpush2.msra.mxu0 0.0
    %2130 = vmatprep.subr.mxu0 0.0
    %2131 = vmatpush2.msra.mxu0 0.0
    %2132 = vmatprep.subr.mxu0 0.0
    %2133 = vmatpush2.msra.mxu0 0.0
    %2134 = vmatprep.subr.mxu0 0.0
    %2135 = vmatpush2.msra.mxu0 %v2074
    %2136 = vmatprep.subr.mxu0 0.0
    %2137 = vmatpush2.msra.mxu0 %v2073
    %2138 = vmatprep.subr.mxu0 0.0
    %2139 = vmatpush2.msra.mxu0 %v2072
    %2140 = vmatprep.subr.mxu0 0.0
    %2141 = vmatpush2.msra.mxu0 %v2071
    %2142 = vmatprep.subr.mxu0 0.0
    %2143 = vmatpush2.msra.mxu0 %v2070
    %2144 = vmatprep.subr.mxu0 0.0
    %2145 = vmatpush2.msra.mxu0 %v2069
    %2146 = vmatprep.subr.mxu0 0.0
    %2147 = vmatpush2.msra.mxu0 %v2068
    %2148 = vmatprep.subr.mxu0 0.0
    %2149 = vmatpush2.msra.mxu0 %v2067
    %2150 = vmatprep.subr.mxu0 0.0
    %2151 = vmatpush2.msra.mxu0 %v2066
    %2152 = vmatprep.subr.mxu0 0.0
    %2153 = vmatpush2.msra.mxu0 %v2065
    %2154 = vmatprep.subr.mxu0 0.0
    %2155 = vmatpush2.msra.mxu0 %v2064
    %2156 = vmatprep.subr.mxu0 0.0
    %2157 = vmatpush2.msra.mxu0 %v2063
    %2158 = vmatprep.mubr.f32.mxu0 %v2083
    %2159 = vmatmul.mubr.f32.gmra.mxu0 %v2039
    %v2160 = vpop.f32.mrf.mxu0
    %v2161 = vadd.f32 %v2080, %v2160
    %v2162 = vpop.f32.mrf.mxu0
    %2163 = vmatprep.mubr.f32.mxu0 %v2086
    %2164 = vmatmul.mubr.f32.gmra.mxu0 %v2041
    %v2165 = vpop.f32.mrf.mxu0
    %v2166 = vadd.f32 %v2080, %v2165
    %v2167 = vpop.f32.mrf.mxu0
    %2168 = vmatprep.mubr.f32.mxu0 %v2089
    %2169 = vmatmul.mubr.f32.gmra.mxu0 %v2043
    %v2170 = vpop.f32.mrf.mxu0
    %v2171 = vadd.f32 %v2080, %v2170
    %v2172 = vpop.f32.mrf.mxu0
    %2173 = vmatprep.mubr.f32.mxu0 %v2092
    %2174 = vmatmul.mubr.f32.gmra.mxu0 %v2045
    %v2175 = vpop.f32.mrf.mxu0
    %v2176 = vadd.f32 %v2080, %v2175
    %v2177 = vpop.f32.mrf.mxu0
    %2178 = vdwg.mxu0
    %s2179 = scalar_lea.vmem [#allocation13], 224
    %v2180 = vld [vmem:[%s2179] sm:$0xff]
    %v2181 = vld [vmem:[%s2179 + $0x8] sm:$0xff]
    %v2182 = vld [vmem:[%s2179 + $0x10] sm:$0xff]
    %v2183 = vld [vmem:[%s2179 + $0x18] sm:$0xff]
    %v2184 = vld [vmem:[%s2179 + $0x20] sm:$0xff]
    %v2185 = vld [vmem:[%s2179 + $0x28] sm:$0xff]
    %v2186 = vld [vmem:[%s2179 + $0x30] sm:$0xff]
    %v2187 = vld [vmem:[%s2179 + $0x38] sm:$0xff]
    %v2188 = vld [vmem:[%s2179 + $0x40] sm:$0xff]
    %v2189 = vld [vmem:[%s2179 + $0x48] sm:$0xff]
    %v2190 = vld [vmem:[%s2179 + $0x50] sm:$0xff]
    %v2191 = vld [vmem:[%s2179 + $0x58] sm:$0xff]
    %v2192 = vld [vmem:[%s2179 + $0x60] sm:$0xff]
    %v2193 = vld [vmem:[%s2179 + $0x68] sm:$0xff]
    %v2194 = vld [vmem:[%s2179 + $0x70] sm:$0xff]
    %v2195 = vld [vmem:[%s2179 + $0x78] sm:$0xff]
    %v2196 = vld [vmem:[%s2179 + $0x80] sm:$0xff]
    %v2197 = vld [vmem:[%s2179 + $0x88] sm:$0xff]
    %v2198 = vld [vmem:[%s2179 + $0x90] sm:$0xff]
    %v2199 = vld [vmem:[%s2179 + $0x98] sm:$0xff]
    %v2200 = vld [vmem:[%s2179 + $0xa0] sm:$0xff]
    %v2201 = vld [vmem:[%s2179 + $0xa8] sm:$0xff]
    %v2202 = vld [vmem:[%s2179 + $0xb0] sm:$0xff]
    %v2203 = vld [vmem:[%s2179 + $0xb8] sm:$0xff]
    %v2204 = vld [vmem:[%s2179 + $0xc0] sm:$0xff]
    %v2205 = vld [vmem:[%s2179 + $0xc8] sm:$0xff]
    %v2206 = vld [vmem:[%s2179 + $0xd0] sm:$0xff]
    %v2207 = vld [vmem:[%s2179 + $0xd8] sm:$0xff]
    %s2208 = scalar_lea.vmem [#allocation15], 1
    %v2209 = vld [vmem:[%s2208] sm:$0x1]
    %v2211 = vlaneseq
    %v2212 = vshrl.u32 %v2211, 7
    %v2213 = vsub.s32 0, %v2212
    %v2214 = vrot.slane %v2209, %v2213
    %2216 = vmatprep.subr.mxu0 0.0
    %2217 = vmatpush1.msra.mxu0 %v2195
    %2218 = vmatprep.subr.mxu0 0.0
    %2219 = vmatpush1.msra.mxu0 %v2194
    %2220 = vmatprep.subr.mxu0 0.0
    %2221 = vmatpush1.msra.mxu0 %v2193
    %2222 = vmatprep.subr.mxu0 0.0
    %2223 = vmatpush1.msra.mxu0 %v2192
    %2224 = vmatprep.subr.mxu0 0.0
    %2225 = vmatpush1.msra.mxu0 %v2191
    %2226 = vmatprep.subr.mxu0 0.0
    %2227 = vmatpush1.msra.mxu0 %v2190
    %2228 = vmatprep.subr.mxu0 0.0
    %2229 = vmatpush1.msra.mxu0 %v2189
    %2230 = vmatprep.subr.mxu0 0.0
    %2231 = vmatpush1.msra.mxu0 %v2188
    %2232 = vmatprep.subr.mxu0 0.0
    %2233 = vmatpush1.msra.mxu0 %v2187
    %2234 = vmatprep.subr.mxu0 0.0
    %2235 = vmatpush1.msra.mxu0 %v2186
    %2236 = vmatprep.subr.mxu0 0.0
    %2237 = vmatpush1.msra.mxu0 %v2185
    %2238 = vmatprep.subr.mxu0 0.0
    %2239 = vmatpush1.msra.mxu0 %v2184
    %2240 = vmatprep.subr.mxu0 0.0
    %2241 = vmatpush1.msra.mxu0 %v2183
    %2242 = vmatprep.subr.mxu0 0.0
    %2243 = vmatpush1.msra.mxu0 %v2182
    %2244 = vmatprep.subr.mxu0 0.0
    %2245 = vmatpush1.msra.mxu0 %v2181
    %2246 = vmatprep.subr.mxu0 0.0
    %2247 = vmatpush1.msra.mxu0 %v2180
    %2248 = vmatprep.subr.mxu0 0.0
    %2249 = vmatpush2.msra.mxu0 0.0
    %2250 = vmatprep.subr.mxu0 0.0
    %2251 = vmatpush2.msra.mxu0 0.0
    %2252 = vmatprep.subr.mxu0 0.0
    %2253 = vmatpush2.msra.mxu0 0.0
    %2254 = vmatprep.subr.mxu0 0.0
    %2255 = vmatpush2.msra.mxu0 0.0
    %2256 = vmatprep.subr.mxu0 0.0
    %2257 = vmatpush2.msra.mxu0 %v2207
    %2258 = vmatprep.subr.mxu0 0.0
    %2259 = vmatpush2.msra.mxu0 %v2206
    %2260 = vmatprep.subr.mxu0 0.0
    %2261 = vmatpush2.msra.mxu0 %v2205
    %2262 = vmatprep.subr.mxu0 0.0
    %2263 = vmatpush2.msra.mxu0 %v2204
    %2264 = vmatprep.subr.mxu0 0.0
    %2265 = vmatpush2.msra.mxu0 %v2203
    %2266 = vmatprep.subr.mxu0 0.0
    %2267 = vmatpush2.msra.mxu0 %v2202
    %2268 = vmatprep.subr.mxu0 0.0
    %2269 = vmatpush2.msra.mxu0 %v2201
    %2270 = vmatprep.subr.mxu0 0.0
    %2271 = vmatpush2.msra.mxu0 %v2200
    %2272 = vmatprep.subr.mxu0 0.0
    %2273 = vmatpush2.msra.mxu0 %v2199
    %2274 = vmatprep.subr.mxu0 0.0
    %2275 = vmatpush2.msra.mxu0 %v2198
    %2276 = vmatprep.subr.mxu0 0.0
    %2277 = vmatpush2.msra.mxu0 %v2197
    %2278 = vmatprep.subr.mxu0 0.0
    %2279 = vmatpush2.msra.mxu0 %v2196
    %2280 = vmatprep.mubr.f32.mxu0 %v2083
    %2281 = vmatmul.mubr.f32.gmra.mxu0 %v2039
    %v2282 = vpop.f32.mrf.mxu0
    %v2283 = vadd.f32 %v2214, %v2282
    %v2284 = vpop.f32.mrf.mxu0
    %2285 = vmatprep.mubr.f32.mxu0 %v2086
    %2286 = vmatmul.mubr.f32.gmra.mxu0 %v2041
    %v2287 = vpop.f32.mrf.mxu0
    %v2288 = vadd.f32 %v2214, %v2287
    %v2289 = vpop.f32.mrf.mxu0
    %2290 = vmatprep.mubr.f32.mxu0 %v2089
    %2291 = vmatmul.mubr.f32.gmra.mxu0 %v2043
    %v2292 = vpop.f32.mrf.mxu0
    %v2293 = vadd.f32 %v2214, %v2292
    %v2294 = vpop.f32.mrf.mxu0
    %2295 = vmatprep.mubr.f32.mxu0 %v2092
    %2296 = vmatmul.mubr.f32.gmra.mxu0 %v2045
    %v2297 = vpop.f32.mrf.mxu0
    %v2298 = vadd.f32 %v2214, %v2297
    %v2299 = vpop.f32.mrf.mxu0
    %2300 = vdwg.mxu0
    %v2301 = vmax.f32 %v2161, %v2283
    %v2302 = vmax.f32 %v2166, %v2288
    %v2303 = vmax.f32 %v2171, %v2293
    %v2304 = vmax.f32 %v2176, %v2298
    %s2305 = scalar_lea.vmem [#allocation13], 448
    %v2306 = vld [vmem:[%s2305] sm:$0xff]
    %v2307 = vld [vmem:[%s2305 + $0x8] sm:$0xff]
    %v2308 = vld [vmem:[%s2305 + $0x10] sm:$0xff]
    %v2309 = vld [vmem:[%s2305 + $0x18] sm:$0xff]
    %v2310 = vld [vmem:[%s2305 + $0x20] sm:$0xff]
    %v2311 = vld [vmem:[%s2305 + $0x28] sm:$0xff]
    %v2312 = vld [vmem:[%s2305 + $0x30] sm:$0xff]
    %v2313 = vld [vmem:[%s2305 + $0x38] sm:$0xff]
    %v2314 = vld [vmem:[%s2305 + $0x40] sm:$0xff]
    %v2315 = vld [vmem:[%s2305 + $0x48] sm:$0xff]
    %v2316 = vld [vmem:[%s2305 + $0x50] sm:$0xff]
    %v2317 = vld [vmem:[%s2305 + $0x58] sm:$0xff]
    %v2318 = vld [vmem:[%s2305 + $0x60] sm:$0xff]
    %v2319 = vld [vmem:[%s2305 + $0x68] sm:$0xff]
    %v2320 = vld [vmem:[%s2305 + $0x70] sm:$0xff]
    %v2321 = vld [vmem:[%s2305 + $0x78] sm:$0xff]
    %v2322 = vld [vmem:[%s2305 + $0x80] sm:$0xff]
    %v2323 = vld [vmem:[%s2305 + $0x88] sm:$0xff]
    %v2324 = vld [vmem:[%s2305 + $0x90] sm:$0xff]
    %v2325 = vld [vmem:[%s2305 + $0x98] sm:$0xff]
    %v2326 = vld [vmem:[%s2305 + $0xa0] sm:$0xff]
    %v2327 = vld [vmem:[%s2305 + $0xa8] sm:$0xff]
    %v2328 = vld [vmem:[%s2305 + $0xb0] sm:$0xff]
    %v2329 = vld [vmem:[%s2305 + $0xb8] sm:$0xff]
    %v2330 = vld [vmem:[%s2305 + $0xc0] sm:$0xff]
    %v2331 = vld [vmem:[%s2305 + $0xc8] sm:$0xff]
    %v2332 = vld [vmem:[%s2305 + $0xd0] sm:$0xff]
    %v2333 = vld [vmem:[%s2305 + $0xd8] sm:$0xff]
    %s2334 = scalar_lea.vmem [#allocation15], 2
    %v2335 = vld [vmem:[%s2334] sm:$0x1]
    %v2337 = vlaneseq
    %v2338 = vshrl.u32 %v2337, 7
    %v2339 = vsub.s32 0, %v2338
    %v2340 = vrot.slane %v2335, %v2339
    %2342 = vmatprep.subr.mxu0 0.0
    %2343 = vmatpush1.msra.mxu0 %v2321
    %2344 = vmatprep.subr.mxu0 0.0
    %2345 = vmatpush1.msra.mxu0 %v2320
    %2346 = vmatprep.subr.mxu0 0.0
    %2347 = vmatpush1.msra.mxu0 %v2319
    %2348 = vmatprep.subr.mxu0 0.0
    %2349 = vmatpush1.msra.mxu0 %v2318
    %2350 = vmatprep.subr.mxu0 0.0
    %2351 = vmatpush1.msra.mxu0 %v2317
    %2352 = vmatprep.subr.mxu0 0.0
    %2353 = vmatpush1.msra.mxu0 %v2316
    %2354 = vmatprep.subr.mxu0 0.0
    %2355 = vmatpush1.msra.mxu0 %v2315
    %2356 = vmatprep.subr.mxu0 0.0
    %2357 = vmatpush1.msra.mxu0 %v2314
    %2358 = vmatprep.subr.mxu0 0.0
    %2359 = vmatpush1.msra.mxu0 %v2313
    %2360 = vmatprep.subr.mxu0 0.0
    %2361 = vmatpush1.msra.mxu0 %v2312
    %2362 = vmatprep.subr.mxu0 0.0
    %2363 = vmatpush1.msra.mxu0 %v2311
    %2364 = vmatprep.subr.mxu0 0.0
    %2365 = vmatpush1.msra.mxu0 %v2310
    %2366 = vmatprep.subr.mxu0 0.0
    %2367 = vmatpush1.msra.mxu0 %v2309
    %2368 = vmatprep.subr.mxu0 0.0
    %2369 = vmatpush1.msra.mxu0 %v2308
    %2370 = vmatprep.subr.mxu0 0.0
    %2371 = vmatpush1.msra.mxu0 %v2307
    %2372 = vmatprep.subr.mxu0 0.0
    %2373 = vmatpush1.msra.mxu0 %v2306
    %2374 = vmatprep.subr.mxu0 0.0
    %2375 = vmatpush2.msra.mxu0 0.0
    %2376 = vmatprep.subr.mxu0 0.0
    %2377 = vmatpush2.msra.mxu0 0.0
    %2378 = vmatprep.subr.mxu0 0.0
    %2379 = vmatpush2.msra.mxu0 0.0
    %2380 = vmatprep.subr.mxu0 0.0
    %2381 = vmatpush2.msra.mxu0 0.0
    %2382 = vmatprep.subr.mxu0 0.0
    %2383 = vmatpush2.msra.mxu0 %v2333
    %2384 = vmatprep.subr.mxu0 0.0
    %2385 = vmatpush2.msra.mxu0 %v2332
    %2386 = vmatprep.subr.mxu0 0.0
    %2387 = vmatpush2.msra.mxu0 %v2331
    %2388 = vmatprep.subr.mxu0 0.0
    %2389 = vmatpush2.msra.mxu0 %v2330
    %2390 = vmatprep.subr.mxu0 0.0
    %2391 = vmatpush2.msra.mxu0 %v2329
    %2392 = vmatprep.subr.mxu0 0.0
    %2393 = vmatpush2.msra.mxu0 %v2328
    %2394 = vmatprep.subr.mxu0 0.0
    %2395 = vmatpush2.msra.mxu0 %v2327
    %2396 = vmatprep.subr.mxu0 0.0
    %2397 = vmatpush2.msra.mxu0 %v2326
    %2398 = vmatprep.subr.mxu0 0.0
    %2399 = vmatpush2.msra.mxu0 %v2325
    %2400 = vmatprep.subr.mxu0 0.0
    %2401 = vmatpush2.msra.mxu0 %v2324
    %2402 = vmatprep.subr.mxu0 0.0
    %2403 = vmatpush2.msra.mxu0 %v2323
    %2404 = vmatprep.subr.mxu0 0.0
    %2405 = vmatpush2.msra.mxu0 %v2322
    %2406 = vmatprep.mubr.f32.mxu0 %v2083
    %2407 = vmatmul.mubr.f32.gmra.mxu0 %v2039
    %v2408 = vpop.f32.mrf.mxu0
    %v2409 = vadd.f32 %v2340, %v2408
    %v2410 = vpop.f32.mrf.mxu0
    %2411 = vmatprep.mubr.f32.mxu0 %v2086
    %2412 = vmatmul.mubr.f32.gmra.mxu0 %v2041
    %v2413 = vpop.f32.mrf.mxu0
    %v2414 = vadd.f32 %v2340, %v2413
    %v2415 = vpop.f32.mrf.mxu0
    %2416 = vmatprep.mubr.f32.mxu0 %v2089
    %2417 = vmatmul.mubr.f32.gmra.mxu0 %v2043
    %v2418 = vpop.f32.mrf.mxu0
    %v2419 = vadd.f32 %v2340, %v2418
    %v2420 = vpop.f32.mrf.mxu0
    %2421 = vmatprep.mubr.f32.mxu0 %v2092
    %2422 = vmatmul.mubr.f32.gmra.mxu0 %v2045
    %v2423 = vpop.f32.mrf.mxu0
    %v2424 = vadd.f32 %v2340, %v2423
    %v2425 = vpop.f32.mrf.mxu0
    %2426 = vdwg.mxu0
    %v2427 = vmax.f32 %v2301, %v2409
    %v2428 = vmax.f32 %v2302, %v2414
    %v2429 = vmax.f32 %v2303, %v2419
    %v2430 = vmax.f32 %v2304, %v2424
    %v2431 = vld [vmem:[#allocation16] sm:$0xff]
    %v2432 = vld [vmem:[#allocation16 + $0x8] sm:$0xff]
    %v2433 = vld [vmem:[#allocation16 + $0x10] sm:$0xff]
    %v2434 = vld [vmem:[#allocation16 + $0x18] sm:$0xf]
    %v2436 = vsel %vm583, %v2431, 0
    %v2439 = vsel %vm583, %v2432, 0
    %v2442 = vsel %vm583, %v2433, 0
    %v2445 = vsel %vm583, %v2434, 0
    %v2448 = vsel %vm605, %v2430, 0
    %2450 = vmatprep.subr.mxu0 0.0
    %2451 = vmatpush1.msra.mxu0 0.0
    %2452 = vmatprep.subr.mxu0 0.0
    %2453 = vmatpush1.msra.mxu0 0.0
    %2454 = vmatprep.subr.mxu0 0.0
    %2455 = vmatpush1.msra.mxu0 0.0
    %2456 = vmatprep.subr.mxu0 0.0
    %2457 = vmatpush1.msra.mxu0 0.0
    %2458 = vmatprep.subr.mxu0 0.0
    %2459 = vmatpush1.msra.mxu0 0.0
    %2460 = vmatprep.subr.mxu0 0.0
    %2461 = vmatpush1.msra.mxu0 0.0
    %2462 = vmatprep.subr.mxu0 0.0
    %2463 = vmatpush1.msra.mxu0 0.0
    %2464 = vmatprep.subr.mxu0 0.0
    %2465 = vmatpush1.msra.mxu0 0.0
    %2466 = vmatprep.subr.mxu0 0.0
    %2467 = vmatpush1.msra.mxu0 0.0
    %2468 = vmatprep.subr.mxu0 0.0
    %2469 = vmatpush1.msra.mxu0 0.0
    %2470 = vmatprep.subr.mxu0 0.0
    %2471 = vmatpush1.msra.mxu0 0.0
    %2472 = vmatprep.subr.mxu0 0.0
    %2473 = vmatpush1.msra.mxu0 0.0
    %2474 = vmatprep.subr.mxu0 0.0
    %2475 = vmatpush1.msra.mxu0 %v2448
    %2476 = vmatprep.subr.mxu0 0.0
    %2477 = vmatpush1.msra.mxu0 %v2429
    %2478 = vmatprep.subr.mxu0 0.0
    %2479 = vmatpush1.msra.mxu0 %v2428
    %2480 = vmatprep.subr.mxu0 0.0
    %2481 = vmatpush1.msra.mxu0 %v2427
    %2482 = vmatprep.subr.mxu0 0.0
    %2483 = vmatpush2.msra.mxu0 0.0
    %2484 = vmatprep.subr.mxu0 0.0
    %2485 = vmatpush2.msra.mxu0 0.0
    %2486 = vmatprep.subr.mxu0 0.0
    %2487 = vmatpush2.msra.mxu0 0.0
    %2488 = vmatprep.subr.mxu0 0.0
    %2489 = vmatpush2.msra.mxu0 0.0
    %2490 = vmatprep.subr.mxu0 0.0
    %2491 = vmatpush2.msra.mxu0 0.0
    %2492 = vmatprep.subr.mxu0 0.0
    %2493 = vmatpush2.msra.mxu0 0.0
    %2494 = vmatprep.subr.mxu0 0.0
    %2495 = vmatpush2.msra.mxu0 0.0
    %2496 = vmatprep.subr.mxu0 0.0
    %2497 = vmatpush2.msra.mxu0 0.0
    %2498 = vmatprep.subr.mxu0 0.0
    %2499 = vmatpush2.msra.mxu0 0.0
    %2500 = vmatprep.subr.mxu0 0.0
    %2501 = vmatpush2.msra.mxu0 0.0
    %2502 = vmatprep.subr.mxu0 0.0
    %2503 = vmatpush2.msra.mxu0 0.0
    %2504 = vmatprep.subr.mxu0 0.0
    %2505 = vmatpush2.msra.mxu0 0.0
    %2506 = vmatprep.subr.mxu0 0.0
    %2507 = vmatpush2.msra.mxu0 0.0
    %2508 = vmatprep.subr.mxu0 0.0
    %2509 = vmatpush2.msra.mxu0 0.0
    %2510 = vmatprep.subr.mxu0 0.0
    %2511 = vmatpush2.msra.mxu0 0.0
    %2512 = vmatprep.subr.mxu0 0.0
    %2513 = vmatpush2.msra.mxu0 0.0
    %2514 = vmatprep.mubr.f32.mxu0 0.0
    %2515 = vmatmul.mubr.f32.gmra.mxu0 %v2436
    %v2516 = vpop.f32.mrf.mxu0
    %v2517 = vadd.f32 0.0, %v2516
    %v2518 = vpop.f32.mrf.mxu0
    %2519 = vmatprep.mubr.f32.mxu0 0.0
    %2520 = vmatmul.mubr.f32.gmra.mxu0 %v2439
    %v2521 = vpop.f32.mrf.mxu0
    %v2522 = vadd.f32 0.0, %v2521
    %v2523 = vpop.f32.mrf.mxu0
    %2524 = vmatprep.mubr.f32.mxu0 0.0
    %2525 = vmatmul.mubr.f32.gmra.mxu0 %v2442
    %v2526 = vpop.f32.mrf.mxu0
    %v2527 = vadd.f32 0.0, %v2526
    %v2528 = vpop.f32.mrf.mxu0
    %2529 = vmatprep.mubr.f32.mxu0 0.0
    %2530 = vmatmul.mubr.f32.gmra.mxu0 %v2445
    %v2531 = vpop.f32.mrf.mxu0
    %v2532 = vadd.f32 0.0, %v2531
    %v2533 = vpop.f32.mrf.mxu0
    %2534 = vdwg.mxu0
    %v2535 = vld [vmem:[#allocation18] sm:$0xff]
    %v2536 = vld [vmem:[#allocation18 + $0x8] sm:$0xff]
    %v2537 = vld [vmem:[#allocation18 + $0x10] sm:$0xff]
    %v2538 = vld [vmem:[#allocation18 + $0x18] sm:$0xff]
    %v2539 = vld [vmem:[#allocation18 + $0x20] sm:$0xff]
    %v2540 = vld [vmem:[#allocation18 + $0x28] sm:$0xff]
    %v2541 = vld [vmem:[#allocation18 + $0x30] sm:$0xff]
    %v2542 = vld [vmem:[#allocation18 + $0x38] sm:$0xff]
    %v2543 = vld [vmem:[#allocation18 + $0x40] sm:$0xff]
    %v2544 = vld [vmem:[#allocation18 + $0x48] sm:$0xff]
    %v2545 = vld [vmem:[#allocation18 + $0x50] sm:$0xff]
    %v2546 = vld [vmem:[#allocation18 + $0x58] sm:$0xff]
    %v2547 = vld [vmem:[#allocation18 + $0x60] sm:$0xff]
    %v2548 = vld [vmem:[#allocation18 + $0x68] sm:$0xff]
    %v2549 = vld [vmem:[#allocation18 + $0x70] sm:$0xff]
    %v2550 = vld [vmem:[#allocation18 + $0x78] sm:$0xff]
    %v2551 = vld [vmem:[#allocation18 + $0x80] sm:$0xff]
    %v2552 = vld [vmem:[#allocation18 + $0x88] sm:$0xff]
    %v2553 = vld [vmem:[#allocation18 + $0x90] sm:$0xff]
    %v2554 = vld [vmem:[#allocation18 + $0x98] sm:$0xff]
    %v2555 = vld [vmem:[#allocation18 + $0xa0] sm:$0xff]
    %v2556 = vld [vmem:[#allocation18 + $0xa8] sm:$0xff]
    %v2557 = vld [vmem:[#allocation18 + $0xb0] sm:$0xff]
    %v2558 = vld [vmem:[#allocation18 + $0xb8] sm:$0xff]
    %v2559 = vld [vmem:[#allocation18 + $0xc0] sm:$0xff]
    %v2560 = vld [vmem:[#allocation18 + $0xc8] sm:$0xff]
    %v2561 = vld [vmem:[#allocation18 + $0xd0] sm:$0xff]
    %v2562 = vld [vmem:[#allocation18 + $0xd8] sm:$0xff]
    %s2563 = scalar_lea.vmem [#allocation16], 32
    %v2564 = vld [vmem:[%s2563] sm:$0xff]
    %v2565 = vld [vmem:[%s2563 + $0x8] sm:$0xff]
    %v2566 = vld [vmem:[%s2563 + $0x10] sm:$0xff]
    %v2567 = vld [vmem:[%s2563 + $0x18] sm:$0xf]
    %v2569 = vsel %vm583, %v2564, 0
    %v2572 = vsel %vm583, %v2565, 0
    %v2575 = vsel %vm583, %v2566, 0
    %v2578 = vsel %vm583, %v2567, 0
    %2580 = vmatprep.subr.mxu0 0.0
    %2581 = vmatpush1.msra.mxu0 0.0
    %2582 = vmatprep.subr.mxu0 0.0
    %2583 = vmatpush1.msra.mxu0 0.0
    %2584 = vmatprep.subr.mxu0 0.0
    %2585 = vmatpush1.msra.mxu0 0.0
    %2586 = vmatprep.subr.mxu0 0.0
    %2587 = vmatpush1.msra.mxu0 0.0
    %2588 = vmatprep.subr.mxu0 0.0
    %2589 = vmatpush1.msra.mxu0 0.0
    %2590 = vmatprep.subr.mxu0 0.0
    %2591 = vmatpush1.msra.mxu0 0.0
    %2592 = vmatprep.subr.mxu0 0.0
    %2593 = vmatpush1.msra.mxu0 0.0
    %2594 = vmatprep.subr.mxu0 0.0
    %2595 = vmatpush1.msra.mxu0 0.0
    %2596 = vmatprep.subr.mxu0 0.0
    %2597 = vmatpush1.msra.mxu0 0.0
    %2598 = vmatprep.subr.mxu0 0.0
    %2599 = vmatpush1.msra.mxu0 0.0
    %2600 = vmatprep.subr.mxu0 0.0
    %2601 = vmatpush1.msra.mxu0 0.0
    %2602 = vmatprep.subr.mxu0 0.0
    %2603 = vmatpush1.msra.mxu0 0.0
    %2604 = vmatprep.subr.mxu0 0.0
    %2605 = vmatpush1.msra.mxu0 %v2448
    %2606 = vmatprep.subr.mxu0 0.0
    %2607 = vmatpush1.msra.mxu0 %v2429
    %2608 = vmatprep.subr.mxu0 0.0
    %2609 = vmatpush1.msra.mxu0 %v2428
    %2610 = vmatprep.subr.mxu0 0.0
    %2611 = vmatpush1.msra.mxu0 %v2427
    %2612 = vmatprep.subr.mxu0 0.0
    %2613 = vmatpush2.msra.mxu0 0.0
    %2614 = vmatprep.subr.mxu0 0.0
    %2615 = vmatpush2.msra.mxu0 0.0
    %2616 = vmatprep.subr.mxu0 0.0
    %2617 = vmatpush2.msra.mxu0 0.0
    %2618 = vmatprep.subr.mxu0 0.0
    %2619 = vmatpush2.msra.mxu0 0.0
    %2620 = vmatprep.subr.mxu0 0.0
    %2621 = vmatpush2.msra.mxu0 0.0
    %2622 = vmatprep.subr.mxu0 0.0
    %2623 = vmatpush2.msra.mxu0 0.0
    %2624 = vmatprep.subr.mxu0 0.0
    %2625 = vmatpush2.msra.mxu0 0.0
    %2626 = vmatprep.subr.mxu0 0.0
    %2627 = vmatpush2.msra.mxu0 0.0
    %2628 = vmatprep.subr.mxu0 0.0
    %2629 = vmatpush2.msra.mxu0 0.0
    %2630 = vmatprep.subr.mxu0 0.0
    %2631 = vmatpush2.msra.mxu0 0.0
    %2632 = vmatprep.subr.mxu0 0.0
    %2633 = vmatpush2.msra.mxu0 0.0
    %2634 = vmatprep.subr.mxu0 0.0
    %2635 = vmatpush2.msra.mxu0 0.0
    %2636 = vmatprep.subr.mxu0 0.0
    %2637 = vmatpush2.msra.mxu0 0.0
    %2638 = vmatprep.subr.mxu0 0.0
    %2639 = vmatpush2.msra.mxu0 0.0
    %2640 = vmatprep.subr.mxu0 0.0
    %2641 = vmatpush2.msra.mxu0 0.0
    %2642 = vmatprep.subr.mxu0 0.0
    %2643 = vmatpush2.msra.mxu0 0.0
    %2644 = vmatprep.mubr.f32.mxu0 0.0
    %2645 = vmatmul.mubr.f32.gmra.mxu0 %v2569
    %v2646 = vpop.f32.mrf.mxu0
    %v2647 = vadd.f32 0.0, %v2646
    %v2648 = vpop.f32.mrf.mxu0
    %2649 = vmatprep.mubr.f32.mxu0 0.0
    %2650 = vmatmul.mubr.f32.gmra.mxu0 %v2572
    %v2651 = vpop.f32.mrf.mxu0
    %v2652 = vadd.f32 0.0, %v2651
    %v2653 = vpop.f32.mrf.mxu0
    %2654 = vmatprep.mubr.f32.mxu0 0.0
    %2655 = vmatmul.mubr.f32.gmra.mxu0 %v2575
    %v2656 = vpop.f32.mrf.mxu0
    %v2657 = vadd.f32 0.0, %v2656
    %v2658 = vpop.f32.mrf.mxu0
    %2659 = vmatprep.mubr.f32.mxu0 0.0
    %2660 = vmatmul.mubr.f32.gmra.mxu0 %v2578
    %v2661 = vpop.f32.mrf.mxu0
    %v2662 = vadd.f32 0.0, %v2661
    %v2663 = vpop.f32.mrf.mxu0
    %2664 = vdwg.mxu0
    %s2665 = scalar_lea.vmem [#allocation18], 224
    %v2666 = vld [vmem:[%s2665] sm:$0xff]
    %v2667 = vld [vmem:[%s2665 + $0x8] sm:$0xff]
    %v2668 = vld [vmem:[%s2665 + $0x10] sm:$0xff]
    %v2669 = vld [vmem:[%s2665 + $0x18] sm:$0xff]
    %v2670 = vld [vmem:[%s2665 + $0x20] sm:$0xff]
    %v2671 = vld [vmem:[%s2665 + $0x28] sm:$0xff]
    %v2672 = vld [vmem:[%s2665 + $0x30] sm:$0xff]
    %v2673 = vld [vmem:[%s2665 + $0x38] sm:$0xff]
    %v2674 = vld [vmem:[%s2665 + $0x40] sm:$0xff]
    %v2675 = vld [vmem:[%s2665 + $0x48] sm:$0xff]
    %v2676 = vld [vmem:[%s2665 + $0x50] sm:$0xff]
    %v2677 = vld [vmem:[%s2665 + $0x58] sm:$0xff]
    %v2678 = vld [vmem:[%s2665 + $0x60] sm:$0xff]
    %v2679 = vld [vmem:[%s2665 + $0x68] sm:$0xff]
    %v2680 = vld [vmem:[%s2665 + $0x70] sm:$0xff]
    %v2681 = vld [vmem:[%s2665 + $0x78] sm:$0xff]
    %v2682 = vld [vmem:[%s2665 + $0x80] sm:$0xff]
    %v2683 = vld [vmem:[%s2665 + $0x88] sm:$0xff]
    %v2684 = vld [vmem:[%s2665 + $0x90] sm:$0xff]
    %v2685 = vld [vmem:[%s2665 + $0x98] sm:$0xff]
    %v2686 = vld [vmem:[%s2665 + $0xa0] sm:$0xff]
    %v2687 = vld [vmem:[%s2665 + $0xa8] sm:$0xff]
    %v2688 = vld [vmem:[%s2665 + $0xb0] sm:$0xff]
    %v2689 = vld [vmem:[%s2665 + $0xb8] sm:$0xff]
    %v2690 = vld [vmem:[%s2665 + $0xc0] sm:$0xff]
    %v2691 = vld [vmem:[%s2665 + $0xc8] sm:$0xff]
    %v2692 = vld [vmem:[%s2665 + $0xd0] sm:$0xff]
    %v2693 = vld [vmem:[%s2665 + $0xd8] sm:$0xff]
    %vm2694 = vcmask 916480
    %v2696 = vsel %vm2694, %v2647, 0
    %v2699 = vsel %vm2694, %v2652, 0
    %v2702 = vsel %vm2694, %v2657, 0
    %v2705 = vsel %vm2694, %v2662, 0
    %2707 = vmatprep.subr.mxu0 0.0
    %2708 = vmatpush1.msra.mxu0 0.0
    %2709 = vmatprep.subr.mxu0 0.0
    %2710 = vmatpush1.msra.mxu0 0.0
    %2711 = vmatprep.subr.mxu0 %v2693
    %2712 = vmatpush1.msra.mxu0 %v2692
    %2713 = vmatprep.subr.mxu0 %v2691
    %2714 = vmatpush1.msra.mxu0 %v2690
    %2715 = vmatprep.subr.mxu0 %v2689
    %2716 = vmatpush1.msra.mxu0 %v2688
    %2717 = vmatprep.subr.mxu0 %v2687
    %2718 = vmatpush1.msra.mxu0 %v2686
    %2719 = vmatprep.subr.mxu0 %v2685
    %2720 = vmatpush1.msra.mxu0 %v2684
    %2721 = vmatprep.subr.mxu0 %v2683
    %2722 = vmatpush1.msra.mxu0 %v2682
    %2723 = vmatprep.subr.mxu0 %v2681
    %2724 = vmatpush1.msra.mxu0 %v2680
    %2725 = vmatprep.subr.mxu0 %v2679
    %2726 = vmatpush1.msra.mxu0 %v2678
    %2727 = vmatprep.subr.mxu0 %v2677
    %2728 = vmatpush1.msra.mxu0 %v2676
    %2729 = vmatprep.subr.mxu0 %v2675
    %2730 = vmatpush1.msra.mxu0 %v2674
    %2731 = vmatprep.subr.mxu0 %v2673
    %2732 = vmatpush1.msra.mxu0 %v2672
    %2733 = vmatprep.subr.mxu0 %v2671
    %2734 = vmatpush1.msra.mxu0 %v2670
    %2735 = vmatprep.subr.mxu0 %v2669
    %2736 = vmatpush1.msra.mxu0 %v2668
    %2737 = vmatprep.subr.mxu0 %v2667
    %2738 = vmatpush1.msra.mxu0 %v2666
    %2739 = vmatprep.subr.mxu0 0.0
    %2740 = vmatpush2.msra.mxu0 0.0
    %2741 = vmatprep.subr.mxu0 0.0
    %2742 = vmatpush2.msra.mxu0 0.0
    %2743 = vmatprep.subr.mxu0 0.0
    %2744 = vmatpush2.msra.mxu0 0.0
    %2745 = vmatprep.subr.mxu0 0.0
    %2746 = vmatpush2.msra.mxu0 0.0
    %2747 = vmatprep.subr.mxu0 0.0
    %2748 = vmatpush2.msra.mxu0 0.0
    %2749 = vmatprep.subr.mxu0 0.0
    %2750 = vmatpush2.msra.mxu0 0.0
    %2751 = vmatprep.subr.mxu0 0.0
    %2752 = vmatpush2.msra.mxu0 0.0
    %2753 = vmatprep.subr.mxu0 0.0
    %2754 = vmatpush2.msra.mxu0 0.0
    %2755 = vmatprep.subr.mxu0 0.0
    %2756 = vmatpush2.msra.mxu0 0.0
    %2757 = vmatprep.subr.mxu0 0.0
    %2758 = vmatpush2.msra.mxu0 0.0
    %2759 = vmatprep.subr.mxu0 0.0
    %2760 = vmatpush2.msra.mxu0 0.0
    %2761 = vmatprep.subr.mxu0 0.0
    %2762 = vmatpush2.msra.mxu0 0.0
    %2763 = vmatprep.subr.mxu0 0.0
    %2764 = vmatpush2.msra.mxu0 0.0
    %2765 = vmatprep.subr.mxu0 0.0
    %2766 = vmatpush2.msra.mxu0 0.0
    %2767 = vmatprep.subr.mxu0 0.0
    %2768 = vmatpush2.msra.mxu0 0.0
    %2769 = vmatprep.subr.mxu0 0.0
    %2770 = vmatpush2.msra.mxu0 0.0
    %2771 = vmatprep.mubr.f32.mxu0 0.0
    %2772 = vmatmul.mubr.f32.gmra.mxu0 %v2696
    %v2773 = vpop.f32.mrf.mxu0
    %v2774 = vadd.f32 0.0, %v2773
    %v2775 = vpop.f32.mrf.mxu0
    %v2776 = vadd.f32 0.0, %v2775
    %2777 = vmatprep.mubr.f32.mxu0 0.0
    %2778 = vmatmul.mubr.f32.gmra.mxu0 %v2699
    %v2779 = vpop.f32.mrf.mxu0
    %v2780 = vadd.f32 0.0, %v2779
    %v2781 = vpop.f32.mrf.mxu0
    %v2782 = vadd.f32 0.0, %v2781
    %2783 = vmatprep.mubr.f32.mxu0 0.0
    %2784 = vmatmul.mubr.f32.gmra.mxu0 %v2702
    %v2785 = vpop.f32.mrf.mxu0
    %v2786 = vadd.f32 0.0, %v2785
    %v2787 = vpop.f32.mrf.mxu0
    %v2788 = vadd.f32 0.0, %v2787
    %2789 = vmatprep.mubr.f32.mxu0 0.0
    %2790 = vmatmul.mubr.f32.gmra.mxu0 %v2705
    %v2791 = vpop.f32.mrf.mxu0
    %v2792 = vadd.f32 0.0, %v2791
    %v2793 = vpop.f32.mrf.mxu0
    %v2794 = vadd.f32 0.0, %v2793
    %2795 = vdwg.mxu0
    %v2797 = vsel %vm2694, %v2517, 0
    %v2800 = vsel %vm2694, %v2522, 0
    %v2803 = vsel %vm2694, %v2527, 0
    %v2806 = vsel %vm2694, %v2532, 0
    %2808 = vmatprep.subr.mxu0 0.0
    %2809 = vmatpush1.msra.mxu0 0.0
    %2810 = vmatprep.subr.mxu0 0.0
    %2811 = vmatpush1.msra.mxu0 0.0
    %2812 = vmatprep.subr.mxu0 %v2562
    %2813 = vmatpush1.msra.mxu0 %v2561
    %2814 = vmatprep.subr.mxu0 %v2560
    %2815 = vmatpush1.msra.mxu0 %v2559
    %2816 = vmatprep.subr.mxu0 %v2558
    %2817 = vmatpush1.msra.mxu0 %v2557
    %2818 = vmatprep.subr.mxu0 %v2556
    %2819 = vmatpush1.msra.mxu0 %v2555
    %2820 = vmatprep.subr.mxu0 %v2554
    %2821 = vmatpush1.msra.mxu0 %v2553
    %2822 = vmatprep.subr.mxu0 %v2552
    %2823 = vmatpush1.msra.mxu0 %v2551
    %2824 = vmatprep.subr.mxu0 %v2550
    %2825 = vmatpush1.msra.mxu0 %v2549
    %2826 = vmatprep.subr.mxu0 %v2548
    %2827 = vmatpush1.msra.mxu0 %v2547
    %2828 = vmatprep.subr.mxu0 %v2546
    %2829 = vmatpush1.msra.mxu0 %v2545
    %2830 = vmatprep.subr.mxu0 %v2544
    %2831 = vmatpush1.msra.mxu0 %v2543
    %2832 = vmatprep.subr.mxu0 %v2542
    %2833 = vmatpush1.msra.mxu0 %v2541
    %2834 = vmatprep.subr.mxu0 %v2540
    %2835 = vmatpush1.msra.mxu0 %v2539
    %2836 = vmatprep.subr.mxu0 %v2538
    %2837 = vmatpush1.msra.mxu0 %v2537
    %2838 = vmatprep.subr.mxu0 %v2536
    %2839 = vmatpush1.msra.mxu0 %v2535
    %2840 = vmatprep.subr.mxu0 0.0
    %2841 = vmatpush2.msra.mxu0 0.0
    %2842 = vmatprep.subr.mxu0 0.0
    %2843 = vmatpush2.msra.mxu0 0.0
    %2844 = vmatprep.subr.mxu0 0.0
    %2845 = vmatpush2.msra.mxu0 0.0
    %2846 = vmatprep.subr.mxu0 0.0
    %2847 = vmatpush2.msra.mxu0 0.0
    %2848 = vmatprep.subr.mxu0 0.0
    %2849 = vmatpush2.msra.mxu0 0.0
    %2850 = vmatprep.subr.mxu0 0.0
    %2851 = vmatpush2.msra.mxu0 0.0
    %2852 = vmatprep.subr.mxu0 0.0
    %2853 = vmatpush2.msra.mxu0 0.0
    %2854 = vmatprep.subr.mxu0 0.0
    %2855 = vmatpush2.msra.mxu0 0.0
    %2856 = vmatprep.subr.mxu0 0.0
    %2857 = vmatpush2.msra.mxu0 0.0
    %2858 = vmatprep.subr.mxu0 0.0
    %2859 = vmatpush2.msra.mxu0 0.0
    %2860 = vmatprep.subr.mxu0 0.0
    %2861 = vmatpush2.msra.mxu0 0.0
    %2862 = vmatprep.subr.mxu0 0.0
    %2863 = vmatpush2.msra.mxu0 0.0
    %2864 = vmatprep.subr.mxu0 0.0
    %2865 = vmatpush2.msra.mxu0 0.0
    %2866 = vmatprep.subr.mxu0 0.0
    %2867 = vmatpush2.msra.mxu0 0.0
    %2868 = vmatprep.subr.mxu0 0.0
    %2869 = vmatpush2.msra.mxu0 0.0
    %2870 = vmatprep.subr.mxu0 0.0
    %2871 = vmatpush2.msra.mxu0 0.0
    %2872 = vmatprep.mubr.f32.mxu0 0.0
    %2873 = vmatmul.mubr.f32.gmra.mxu0 %v2797
    %v2874 = vpop.f32.mrf.mxu0
    %v2875 = vadd.f32 %v2774, %v2874
    %v2876 = vpop.f32.mrf.mxu0
    %v2877 = vadd.f32 %v2776, %v2876
    %2878 = vmatprep.mubr.f32.mxu0 0.0
    %2879 = vmatmul.mubr.f32.gmra.mxu0 %v2800
    %v2880 = vpop.f32.mrf.mxu0
    %v2881 = vadd.f32 %v2780, %v2880
    %v2882 = vpop.f32.mrf.mxu0
    %v2883 = vadd.f32 %v2782, %v2882
    %2884 = vmatprep.mubr.f32.mxu0 0.0
    %2885 = vmatmul.mubr.f32.gmra.mxu0 %v2803
    %v2886 = vpop.f32.mrf.mxu0
    %v2887 = vadd.f32 %v2786, %v2886
    %v2888 = vpop.f32.mrf.mxu0
    %v2889 = vadd.f32 %v2788, %v2888
    %2890 = vmatprep.mubr.f32.mxu0 0.0
    %2891 = vmatmul.mubr.f32.gmra.mxu0 %v2806
    %v2892 = vpop.f32.mrf.mxu0
    %v2893 = vadd.f32 %v2792, %v2892
    %v2894 = vpop.f32.mrf.mxu0
    %v2895 = vadd.f32 %v2794, %v2894
    %2896 = vdwg.mxu0
    %s2897 = scalar_lea.vmem [#allocation16], 64
    %v2898 = vld [vmem:[%s2897] sm:$0xff]
    %v2899 = vld [vmem:[%s2897 + $0x8] sm:$0xff]
    %v2900 = vld [vmem:[%s2897 + $0x10] sm:$0xff]
    %v2901 = vld [vmem:[%s2897 + $0x18] sm:$0xf]
    %v2903 = vsel %vm583, %v2898, 0
    %v2906 = vsel %vm583, %v2899, 0
    %v2909 = vsel %vm583, %v2900, 0
    %v2912 = vsel %vm583, %v2901, 0
    %2914 = vmatprep.subr.mxu0 0.0
    %2915 = vmatpush1.msra.mxu0 0.0
    %2916 = vmatprep.subr.mxu0 0.0
    %2917 = vmatpush1.msra.mxu0 0.0
    %2918 = vmatprep.subr.mxu0 0.0
    %2919 = vmatpush1.msra.mxu0 0.0
    %2920 = vmatprep.subr.mxu0 0.0
    %2921 = vmatpush1.msra.mxu0 0.0
    %2922 = vmatprep.subr.mxu0 0.0
    %2923 = vmatpush1.msra.mxu0 0.0
    %2924 = vmatprep.subr.mxu0 0.0
    %2925 = vmatpush1.msra.mxu0 0.0
    %2926 = vmatprep.subr.mxu0 0.0
    %2927 = vmatpush1.msra.mxu0 0.0
    %2928 = vmatprep.subr.mxu0 0.0
    %2929 = vmatpush1.msra.mxu0 0.0
    %2930 = vmatprep.subr.mxu0 0.0
    %2931 = vmatpush1.msra.mxu0 0.0
    %2932 = vmatprep.subr.mxu0 0.0
    %2933 = vmatpush1.msra.mxu0 0.0
    %2934 = vmatprep.subr.mxu0 0.0
    %2935 = vmatpush1.msra.mxu0 0.0
    %2936 = vmatprep.subr.mxu0 0.0
    %2937 = vmatpush1.msra.mxu0 0.0
    %2938 = vmatprep.subr.mxu0 0.0
    %2939 = vmatpush1.msra.mxu0 %v2448
    %2940 = vmatprep.subr.mxu0 0.0
    %2941 = vmatpush1.msra.mxu0 %v2429
    %2942 = vmatprep.subr.mxu0 0.0
    %2943 = vmatpush1.msra.mxu0 %v2428
    %2944 = vmatprep.subr.mxu0 0.0
    %2945 = vmatpush1.msra.mxu0 %v2427
    %2946 = vmatprep.subr.mxu0 0.0
    %2947 = vmatpush2.msra.mxu0 0.0
    %2948 = vmatprep.subr.mxu0 0.0
    %2949 = vmatpush2.msra.mxu0 0.0
    %2950 = vmatprep.subr.mxu0 0.0
    %2951 = vmatpush2.msra.mxu0 0.0
    %2952 = vmatprep.subr.mxu0 0.0
    %2953 = vmatpush2.msra.mxu0 0.0
    %2954 = vmatprep.subr.mxu0 0.0
    %2955 = vmatpush2.msra.mxu0 0.0
    %2956 = vmatprep.subr.mxu0 0.0
    %2957 = vmatpush2.msra.mxu0 0.0
    %2958 = vmatprep.subr.mxu0 0.0
    %2959 = vmatpush2.msra.mxu0 0.0
    %2960 = vmatprep.subr.mxu0 0.0
    %2961 = vmatpush2.msra.mxu0 0.0
    %2962 = vmatprep.subr.mxu0 0.0
    %2963 = vmatpush2.msra.mxu0 0.0
    %2964 = vmatprep.subr.mxu0 0.0
    %2965 = vmatpush2.msra.mxu0 0.0
    %2966 = vmatprep.subr.mxu0 0.0
    %2967 = vmatpush2.msra.mxu0 0.0
    %2968 = vmatprep.subr.mxu0 0.0
    %2969 = vmatpush2.msra.mxu0 0.0
    %2970 = vmatprep.subr.mxu0 0.0
    %2971 = vmatpush2.msra.mxu0 0.0
    %2972 = vmatprep.subr.mxu0 0.0
    %2973 = vmatpush2.msra.mxu0 0.0
    %2974 = vmatprep.subr.mxu0 0.0
    %2975 = vmatpush2.msra.mxu0 0.0
    %2976 = vmatprep.subr.mxu0 0.0
    %2977 = vmatpush2.msra.mxu0 0.0
    %2978 = vmatprep.mubr.f32.mxu0 0.0
    %2979 = vmatmul.mubr.f32.gmra.mxu0 %v2903
    %v2980 = vpop.f32.mrf.mxu0
    %v2981 = vadd.f32 0.0, %v2980
    %v2982 = vpop.f32.mrf.mxu0
    %2983 = vmatprep.mubr.f32.mxu0 0.0
    %2984 = vmatmul.mubr.f32.gmra.mxu0 %v2906
    %v2985 = vpop.f32.mrf.mxu0
    %v2986 = vadd.f32 0.0, %v2985
    %v2987 = vpop.f32.mrf.mxu0
    %2988 = vmatprep.mubr.f32.mxu0 0.0
    %2989 = vmatmul.mubr.f32.gmra.mxu0 %v2909
    %v2990 = vpop.f32.mrf.mxu0
    %v2991 = vadd.f32 0.0, %v2990
    %v2992 = vpop.f32.mrf.mxu0
    %2993 = vmatprep.mubr.f32.mxu0 0.0
    %2994 = vmatmul.mubr.f32.gmra.mxu0 %v2912
    %v2995 = vpop.f32.mrf.mxu0
    %v2996 = vadd.f32 0.0, %v2995
    %v2997 = vpop.f32.mrf.mxu0
    %2998 = vdwg.mxu0
    %s2999 = scalar_lea.vmem [#allocation18], 448
    %v3000 = vld [vmem:[%s2999] sm:$0xff]
    %v3001 = vld [vmem:[%s2999 + $0x8] sm:$0xff]
    %v3002 = vld [vmem:[%s2999 + $0x10] sm:$0xff]
    %v3003 = vld [vmem:[%s2999 + $0x18] sm:$0xff]
    %v3004 = vld [vmem:[%s2999 + $0x20] sm:$0xff]
    %v3005 = vld [vmem:[%s2999 + $0x28] sm:$0xff]
    %v3006 = vld [vmem:[%s2999 + $0x30] sm:$0xff]
    %v3007 = vld [vmem:[%s2999 + $0x38] sm:$0xff]
    %v3008 = vld [vmem:[%s2999 + $0x40] sm:$0xff]
    %v3009 = vld [vmem:[%s2999 + $0x48] sm:$0xff]
    %v3010 = vld [vmem:[%s2999 + $0x50] sm:$0xff]
    %v3011 = vld [vmem:[%s2999 + $0x58] sm:$0xff]
    %v3012 = vld [vmem:[%s2999 + $0x60] sm:$0xff]
    %v3013 = vld [vmem:[%s2999 + $0x68] sm:$0xff]
    %v3014 = vld [vmem:[%s2999 + $0x70] sm:$0xff]
    %v3015 = vld [vmem:[%s2999 + $0x78] sm:$0xff]
    %v3016 = vld [vmem:[%s2999 + $0x80] sm:$0xff]
    %v3017 = vld [vmem:[%s2999 + $0x88] sm:$0xff]
    %v3018 = vld [vmem:[%s2999 + $0x90] sm:$0xff]
    %v3019 = vld [vmem:[%s2999 + $0x98] sm:$0xff]
    %v3020 = vld [vmem:[%s2999 + $0xa0] sm:$0xff]
    %v3021 = vld [vmem:[%s2999 + $0xa8] sm:$0xff]
    %v3022 = vld [vmem:[%s2999 + $0xb0] sm:$0xff]
    %v3023 = vld [vmem:[%s2999 + $0xb8] sm:$0xff]
    %v3024 = vld [vmem:[%s2999 + $0xc0] sm:$0xff]
    %v3025 = vld [vmem:[%s2999 + $0xc8] sm:$0xff]
    %v3026 = vld [vmem:[%s2999 + $0xd0] sm:$0xff]
    %v3027 = vld [vmem:[%s2999 + $0xd8] sm:$0xff]
    %v3029 = vsel %vm2694, %v2981, 0
    %v3032 = vsel %vm2694, %v2986, 0
    %v3035 = vsel %vm2694, %v2991, 0
    %v3038 = vsel %vm2694, %v2996, 0
    %3040 = vmatprep.subr.mxu0 0.0
    %3041 = vmatpush1.msra.mxu0 0.0
    %3042 = vmatprep.subr.mxu0 0.0
    %3043 = vmatpush1.msra.mxu0 0.0
    %3044 = vmatprep.subr.mxu0 %v3027
    %3045 = vmatpush1.msra.mxu0 %v3026
    %3046 = vmatprep.subr.mxu0 %v3025
    %3047 = vmatpush1.msra.mxu0 %v3024
    %3048 = vmatprep.subr.mxu0 %v3023
    %3049 = vmatpush1.msra.mxu0 %v3022
    %3050 = vmatprep.subr.mxu0 %v3021
    %3051 = vmatpush1.msra.mxu0 %v3020
    %3052 = vmatprep.subr.mxu0 %v3019
    %3053 = vmatpush1.msra.mxu0 %v3018
    %3054 = vmatprep.subr.mxu0 %v3017
    %3055 = vmatpush1.msra.mxu0 %v3016
    %3056 = vmatprep.subr.mxu0 %v3015
    %3057 = vmatpush1.msra.mxu0 %v3014
    %3058 = vmatprep.subr.mxu0 %v3013
    %3059 = vmatpush1.msra.mxu0 %v3012
    %3060 = vmatprep.subr.mxu0 %v3011
    %3061 = vmatpush1.msra.mxu0 %v3010
    %3062 = vmatprep.subr.mxu0 %v3009
    %3063 = vmatpush1.msra.mxu0 %v3008
    %3064 = vmatprep.subr.mxu0 %v3007
    %3065 = vmatpush1.msra.mxu0 %v3006
    %3066 = vmatprep.subr.mxu0 %v3005
    %3067 = vmatpush1.msra.mxu0 %v3004
    %3068 = vmatprep.subr.mxu0 %v3003
    %3069 = vmatpush1.msra.mxu0 %v3002
    %3070 = vmatprep.subr.mxu0 %v3001
    %3071 = vmatpush1.msra.mxu0 %v3000
    %3072 = vmatprep.subr.mxu0 0.0
    %3073 = vmatpush2.msra.mxu0 0.0
    %3074 = vmatprep.subr.mxu0 0.0
    %3075 = vmatpush2.msra.mxu0 0.0
    %3076 = vmatprep.subr.mxu0 0.0
    %3077 = vmatpush2.msra.mxu0 0.0
    %3078 = vmatprep.subr.mxu0 0.0
    %3079 = vmatpush2.msra.mxu0 0.0
    %3080 = vmatprep.subr.mxu0 0.0
    %3081 = vmatpush2.msra.mxu0 0.0
    %3082 = vmatprep.subr.mxu0 0.0
    %3083 = vmatpush2.msra.mxu0 0.0
    %3084 = vmatprep.subr.mxu0 0.0
    %3085 = vmatpush2.msra.mxu0 0.0
    %3086 = vmatprep.subr.mxu0 0.0
    %3087 = vmatpush2.msra.mxu0 0.0
    %3088 = vmatprep.subr.mxu0 0.0
    %3089 = vmatpush2.msra.mxu0 0.0
    %3090 = vmatprep.subr.mxu0 0.0
    %3091 = vmatpush2.msra.mxu0 0.0
    %3092 = vmatprep.subr.mxu0 0.0
    %3093 = vmatpush2.msra.mxu0 0.0
    %3094 = vmatprep.subr.mxu0 0.0
    %3095 = vmatpush2.msra.mxu0 0.0
    %3096 = vmatprep.subr.mxu0 0.0
    %3097 = vmatpush2.msra.mxu0 0.0
    %3098 = vmatprep.subr.mxu0 0.0
    %3099 = vmatpush2.msra.mxu0 0.0
    %3100 = vmatprep.subr.mxu0 0.0
    %3101 = vmatpush2.msra.mxu0 0.0
    %3102 = vmatprep.subr.mxu0 0.0
    %3103 = vmatpush2.msra.mxu0 0.0
    %3104 = vmatprep.mubr.f32.mxu0 0.0
    %3105 = vmatmul.mubr.f32.gmra.mxu0 %v3029
    %v3106 = vpop.f32.mrf.mxu0
    %v3107 = vadd.f32 0.0, %v3106
    %v3108 = vpop.f32.mrf.mxu0
    %v3109 = vadd.f32 0.0, %v3108
    %3110 = vmatprep.mubr.f32.mxu0 0.0
    %3111 = vmatmul.mubr.f32.gmra.mxu0 %v3032
    %v3112 = vpop.f32.mrf.mxu0
    %v3113 = vadd.f32 0.0, %v3112
    %v3114 = vpop.f32.mrf.mxu0
    %v3115 = vadd.f32 0.0, %v3114
    %3116 = vmatprep.mubr.f32.mxu0 0.0
    %3117 = vmatmul.mubr.f32.gmra.mxu0 %v3035
    %v3118 = vpop.f32.mrf.mxu0
    %v3119 = vadd.f32 0.0, %v3118
    %v3120 = vpop.f32.mrf.mxu0
    %v3121 = vadd.f32 0.0, %v3120
    %3122 = vmatprep.mubr.f32.mxu0 0.0
    %3123 = vmatmul.mubr.f32.gmra.mxu0 %v3038
    %v3124 = vpop.f32.mrf.mxu0
    %v3125 = vadd.f32 0.0, %v3124
    %v3126 = vpop.f32.mrf.mxu0
    %v3127 = vadd.f32 0.0, %v3126
    %3128 = vdwg.mxu0
    %v3129 = vadd.f32 %v2875, %v3107
    %v3130 = vadd.f32 %v2877, %v3109
    %v3131 = vadd.f32 %v2881, %v3113
    %v3132 = vadd.f32 %v2883, %v3115
    %v3133 = vadd.f32 %v2887, %v3119
    %v3134 = vadd.f32 %v2889, %v3121
    %v3135 = vadd.f32 %v2893, %v3125
    %v3136 = vadd.f32 %v2895, %v3127
    %v3137 = vadd.f32 %v3129, %v3131
    %v3138 = vadd.f32 %v3137, %v3133
    %v3139 = vsel %vm605, %v3135, 0.0
    %v3140 = vadd.f32 %v3138, %v3139
    %v3141 = vrot.slane %v3140, 4
    %v3142 = vadd.f32 %v3140, %v3141
    %v3143 = vrot.slane %v3142, 2
    %v3144 = vadd.f32 %v3142, %v3143
    %v3145 = vrot.slane %v3144, 1
    %v3146 = vadd.f32 %v3144, %v3145
    %v3147 = vsel %vm1151, %v3130, 0.0
    %v3148 = vsel %vm1151, %v3132, 0.0
    %v3149 = vadd.f32 %v3147, %v3148
    %v3150 = vsel %vm1151, %v3134, 0.0
    %v3151 = vadd.f32 %v3149, %v3150
    %vm3152 = vcmask 781312
    %v3153 = vsel %vm3152, %v3136, 0.0
    %v3154 = vadd.f32 %v3151, %v3153
    %v3155 = vrot.slane %v3154, 4
    %v3156 = vadd.f32 %v3154, %v3155
    %v3157 = vrot.slane %v3156, 2
    %v3158 = vadd.f32 %v3156, %v3157
    %v3159 = vrot.slane %v3158, 1
    %v3160 = vadd.f32 %v3158, %v3159
    %v3161 = vld [vmem:[%s13] sm:$0xff]
    %v3162 = vld [vmem:[%s13 + $0x8] sm:$0xff]
    %v3163 = vld [vmem:[%s13 + $0x10] sm:$0xff]
    %v3164 = vld [vmem:[%s13 + $0x18] sm:$0xff]
    %v3165 = vld [vmem:[%s13 + $0x20] sm:$0xff]
    %v3166 = vld [vmem:[%s13 + $0x28] sm:$0xff]
    %v3167 = vld [vmem:[%s13 + $0x30] sm:$0xff]
    %v3168 = vld [vmem:[%s13 + $0x38] sm:$0xff]
    %v3169 = vld [vmem:[%s13 + $0x40] sm:$0xff]
    %v3170 = vld [vmem:[%s13 + $0x48] sm:$0xff]
    %v3171 = vld [vmem:[%s13 + $0x50] sm:$0xff]
    %v3172 = vld [vmem:[%s13 + $0x58] sm:$0xff]
    %v3173 = vld [vmem:[%s13 + $0x60] sm:$0xff]
    %v3174 = vld [vmem:[%s13 + $0x68] sm:$0xff]
    %v3175 = vld [vmem:[%s13 + $0x70] sm:$0xff]
    %v3176 = vld [vmem:[%s13 + $0x78] sm:$0xff]
    %v3177 = vld [vmem:[%s13 + $0x80] sm:$0xff]
    %v3178 = vld [vmem:[%s13 + $0x88] sm:$0xff]
    %v3179 = vld [vmem:[%s13 + $0x90] sm:$0xff]
    %v3180 = vld [vmem:[%s13 + $0x98] sm:$0xff]
    %v3181 = vld [vmem:[%s13 + $0xa0] sm:$0xff]
    %v3182 = vld [vmem:[%s13 + $0xa8] sm:$0xff]
    %v3183 = vld [vmem:[%s13 + $0xb0] sm:$0xff]
    %v3184 = vld [vmem:[%s13 + $0xb8] sm:$0xff]
    %v3185 = vld [vmem:[%s13 + $0xc0] sm:$0xff]
    %v3186 = vld [vmem:[%s13 + $0xc8] sm:$0xff]
    %v3187 = vld [vmem:[%s13 + $0xd0] sm:$0xff]
    %v3188 = vld [vmem:[%s13 + $0xd8] sm:$0xff]
    %v3190 = vsel %vm1151, %v3160, 0
    %3192 = vmatprep.subr.mxu0 0.0
    %3193 = vmatpush1.msra.mxu0 %v3176
    %3194 = vmatprep.subr.mxu0 0.0
    %3195 = vmatpush1.msra.mxu0 %v3175
    %3196 = vmatprep.subr.mxu0 0.0
    %3197 = vmatpush1.msra.mxu0 %v3174
    %3198 = vmatprep.subr.mxu0 0.0
    %3199 = vmatpush1.msra.mxu0 %v3173
    %3200 = vmatprep.subr.mxu0 0.0
    %3201 = vmatpush1.msra.mxu0 %v3172
    %3202 = vmatprep.subr.mxu0 0.0
    %3203 = vmatpush1.msra.mxu0 %v3171
    %3204 = vmatprep.subr.mxu0 0.0
    %3205 = vmatpush1.msra.mxu0 %v3170
    %3206 = vmatprep.subr.mxu0 0.0
    %3207 = vmatpush1.msra.mxu0 %v3169
    %3208 = vmatprep.subr.mxu0 0.0
    %3209 = vmatpush1.msra.mxu0 %v3168
    %3210 = vmatprep.subr.mxu0 0.0
    %3211 = vmatpush1.msra.mxu0 %v3167
    %3212 = vmatprep.subr.mxu0 0.0
    %3213 = vmatpush1.msra.mxu0 %v3166
    %3214 = vmatprep.subr.mxu0 0.0
    %3215 = vmatpush1.msra.mxu0 %v3165
    %3216 = vmatprep.subr.mxu0 0.0
    %3217 = vmatpush1.msra.mxu0 %v3164
    %3218 = vmatprep.subr.mxu0 0.0
    %3219 = vmatpush1.msra.mxu0 %v3163
    %3220 = vmatprep.subr.mxu0 0.0
    %3221 = vmatpush1.msra.mxu0 %v3162
    %3222 = vmatprep.subr.mxu0 0.0
    %3223 = vmatpush1.msra.mxu0 %v3161
    %3224 = vmatprep.subr.mxu0 0.0
    %3225 = vmatpush2.msra.mxu0 0.0
    %3226 = vmatprep.subr.mxu0 0.0
    %3227 = vmatpush2.msra.mxu0 0.0
    %3228 = vmatprep.subr.mxu0 0.0
    %3229 = vmatpush2.msra.mxu0 0.0
    %3230 = vmatprep.subr.mxu0 0.0
    %3231 = vmatpush2.msra.mxu0 0.0
    %3232 = vmatprep.subr.mxu0 0.0
    %3233 = vmatpush2.msra.mxu0 %v3188
    %3234 = vmatprep.subr.mxu0 0.0
    %3235 = vmatpush2.msra.mxu0 %v3187
    %3236 = vmatprep.subr.mxu0 0.0
    %3237 = vmatpush2.msra.mxu0 %v3186
    %3238 = vmatprep.subr.mxu0 0.0
    %3239 = vmatpush2.msra.mxu0 %v3185
    %3240 = vmatprep.subr.mxu0 0.0
    %3241 = vmatpush2.msra.mxu0 %v3184
    %3242 = vmatprep.subr.mxu0 0.0
    %3243 = vmatpush2.msra.mxu0 %v3183
    %3244 = vmatprep.subr.mxu0 0.0
    %3245 = vmatpush2.msra.mxu0 %v3182
    %3246 = vmatprep.subr.mxu0 0.0
    %3247 = vmatpush2.msra.mxu0 %v3181
    %3248 = vmatprep.subr.mxu0 0.0
    %3249 = vmatpush2.msra.mxu0 %v3180
    %3250 = vmatprep.subr.mxu0 0.0
    %3251 = vmatpush2.msra.mxu0 %v3179
    %3252 = vmatprep.subr.mxu0 0.0
    %3253 = vmatpush2.msra.mxu0 %v3178
    %3254 = vmatprep.subr.mxu0 0.0
    %3255 = vmatpush2.msra.mxu0 %v3177
    %3256 = vmatprep.mubr.f32.mxu0 %v3190
    %3257 = vmatmul.mubr.f32.gmra.mxu0 %v3146
    %v3258 = vpop.f32.mrf.mxu0
    %v3259 = vadd.f32 0.0, %v3258
    %v3260 = vpop.f32.mrf.mxu0
    %3261 = vdwg.mxu0
    %v3262 = vrcp.pop 392.0
    %v3263 = vmul.f32 %v3259, %v3262
    %v3264 = vmul.f32 %v3129, %v3129
    %v3265 = vmul.f32 %v3130, %v3130
    %v3266 = vmul.f32 %v3131, %v3131
    %v3267 = vmul.f32 %v3132, %v3132
    %v3268 = vmul.f32 %v3133, %v3133
    %v3269 = vmul.f32 %v3134, %v3134
    %v3270 = vmul.f32 %v3135, %v3135
    %v3271 = vmul.f32 %v3136, %v3136
    %v3272 = vadd.f32 %v3264, %v3266
    %v3273 = vadd.f32 %v3272, %v3268
    %v3274 = vsel %vm605, %v3270, 0.0
    %v3275 = vadd.f32 %v3273, %v3274
    %v3276 = vrot.slane %v3275, 4
    %v3277 = vadd.f32 %v3275, %v3276
    %v3278 = vrot.slane %v3277, 2
    %v3279 = vadd.f32 %v3277, %v3278
    %v3280 = vrot.slane %v3279, 1
    %v3281 = vadd.f32 %v3279, %v3280
    %v3282 = vsel %vm1151, %v3265, 0.0
    %v3283 = vsel %vm1151, %v3267, 0.0
    %v3284 = vadd.f32 %v3282, %v3283
    %v3285 = vsel %vm1151, %v3269, 0.0
    %v3286 = vadd.f32 %v3284, %v3285
    %v3287 = vsel %vm3152, %v3271, 0.0
    %v3288 = vadd.f32 %v3286, %v3287
    %v3289 = vrot.slane %v3288, 4
    %v3290 = vadd.f32 %v3288, %v3289
    %v3291 = vrot.slane %v3290, 2
    %v3292 = vadd.f32 %v3290, %v3291
    %v3293 = vrot.slane %v3292, 1
    %v3294 = vadd.f32 %v3292, %v3293
    %v3296 = vsel %vm1151, %v3294, 0
    %3298 = vmatprep.subr.mxu0 0.0
    %3299 = vmatpush1.msra.mxu0 %v3176
    %3300 = vmatprep.subr.mxu0 0.0
    %3301 = vmatpush1.msra.mxu0 %v3175
    %3302 = vmatprep.subr.mxu0 0.0
    %3303 = vmatpush1.msra.mxu0 %v3174
    %3304 = vmatprep.subr.mxu0 0.0
    %3305 = vmatpush1.msra.mxu0 %v3173
    %3306 = vmatprep.subr.mxu0 0.0
    %3307 = vmatpush1.msra.mxu0 %v3172
    %3308 = vmatprep.subr.mxu0 0.0
    %3309 = vmatpush1.msra.mxu0 %v3171
    %3310 = vmatprep.subr.mxu0 0.0
    %3311 = vmatpush1.msra.mxu0 %v3170
    %3312 = vmatprep.subr.mxu0 0.0
    %3313 = vmatpush1.msra.mxu0 %v3169
    %3314 = vmatprep.subr.mxu0 0.0
    %3315 = vmatpush1.msra.mxu0 %v3168
    %3316 = vmatprep.subr.mxu0 0.0
    %3317 = vmatpush1.msra.mxu0 %v3167
    %3318 = vmatprep.subr.mxu0 0.0
    %3319 = vmatpush1.msra.mxu0 %v3166
    %3320 = vmatprep.subr.mxu0 0.0
    %3321 = vmatpush1.msra.mxu0 %v3165
    %3322 = vmatprep.subr.mxu0 0.0
    %3323 = vmatpush1.msra.mxu0 %v3164
    %3324 = vmatprep.subr.mxu0 0.0
    %3325 = vmatpush1.msra.mxu0 %v3163
    %3326 = vmatprep.subr.mxu0 0.0
    %3327 = vmatpush1.msra.mxu0 %v3162
    %3328 = vmatprep.subr.mxu0 0.0
    %3329 = vmatpush1.msra.mxu0 %v3161
    %3330 = vmatprep.subr.mxu0 0.0
    %3331 = vmatpush2.msra.mxu0 0.0
    %3332 = vmatprep.subr.mxu0 0.0
    %3333 = vmatpush2.msra.mxu0 0.0
    %3334 = vmatprep.subr.mxu0 0.0
    %3335 = vmatpush2.msra.mxu0 0.0
    %3336 = vmatprep.subr.mxu0 0.0
    %3337 = vmatpush2.msra.mxu0 0.0
    %3338 = vmatprep.subr.mxu0 0.0
    %3339 = vmatpush2.msra.mxu0 %v3188
    %3340 = vmatprep.subr.mxu0 0.0
    %3341 = vmatpush2.msra.mxu0 %v3187
    %3342 = vmatprep.subr.mxu0 0.0
    %3343 = vmatpush2.msra.mxu0 %v3186
    %3344 = vmatprep.subr.mxu0 0.0
    %3345 = vmatpush2.msra.mxu0 %v3185
    %3346 = vmatprep.subr.mxu0 0.0
    %3347 = vmatpush2.msra.mxu0 %v3184
    %3348 = vmatprep.subr.mxu0 0.0
    %3349 = vmatpush2.msra.mxu0 %v3183
    %3350 = vmatprep.subr.mxu0 0.0
    %3351 = vmatpush2.msra.mxu0 %v3182
    %3352 = vmatprep.subr.mxu0 0.0
    %3353 = vmatpush2.msra.mxu0 %v3181
    %3354 = vmatprep.subr.mxu0 0.0
    %3355 = vmatpush2.msra.mxu0 %v3180
    %3356 = vmatprep.subr.mxu0 0.0
    %3357 = vmatpush2.msra.mxu0 %v3179
    %3358 = vmatprep.subr.mxu0 0.0
    %3359 = vmatpush2.msra.mxu0 %v3178
    %3360 = vmatprep.subr.mxu0 0.0
    %3361 = vmatpush2.msra.mxu0 %v3177
    %3362 = vmatprep.mubr.f32.mxu0 %v3296
    %3363 = vmatmul.mubr.f32.gmra.mxu0 %v3281
    %v3364 = vpop.f32.mrf.mxu0
    %v3365 = vadd.f32 0.0, %v3364
    %v3366 = vpop.f32.mrf.mxu0
    %3367 = vdwg.mxu0
    %v3368 = vmul.f32 %v3365, %v3262
    %v3369 = vmul.f32 %v3263, %v3263
    %v3370 = vsub.f32 %v3368, %v3369
    %v3371 = vmax.f32 %v3370, 0.0
    %v3372 = vld [vmem:[#allocation21] sm:$0x1]
    %v3373 = vadd.f32 %v3371, 1e-05
    %v3374 = vrsqrt.pop %v3373
    %v3375 = vmul.f32 %v3372, %v3374
    %v3376 = vld [vmem:[#allocation22] sm:$0x1]
    %v3377 = vmul.f32 %v3263, %v3375
    %v3378 = vsub.f32 %v3376, %v3377
    %v3379 = vld [vmem:[#allocation19] sm:$0xff]
    %v3380 = vld [vmem:[#allocation19 + $0x8] sm:$0xff]
    %v3381 = vld [vmem:[#allocation19 + $0x10] sm:$0xff]
    %v3382 = vld [vmem:[#allocation19 + $0x18] sm:$0xff]
    %vm3383 = vcmask 130048
    %v3385 = vsel %vm3383, %v3375, 0
    %3387 = vmatprep.subr.mxu0 0.0
    %3388 = vmatpush1.msra.mxu0 0.0
    %3389 = vmatprep.subr.mxu0 0.0
    %3390 = vmatpush1.msra.mxu0 0.0
    %3391 = vmatprep.subr.mxu0 0.0
    %3392 = vmatpush1.msra.mxu0 0.0
    %3393 = vmatprep.subr.mxu0 0.0
    %3394 = vmatpush1.msra.mxu0 0.0
    %3395 = vmatprep.subr.mxu0 0.0
    %3396 = vmatpush1.msra.mxu0 0.0
    %3397 = vmatprep.subr.mxu0 0.0
    %3398 = vmatpush1.msra.mxu0 0.0
    %3399 = vmatprep.subr.mxu0 0.0
    %3400 = vmatpush1.msra.mxu0 0.0
    %3401 = vmatprep.subr.mxu0 0.0
    %3402 = vmatpush1.msra.mxu0 0.0
    %3403 = vmatprep.subr.mxu0 0.0
    %3404 = vmatpush1.msra.mxu0 0.0
    %3405 = vmatprep.subr.mxu0 0.0
    %3406 = vmatpush1.msra.mxu0 0.0
    %3407 = vmatprep.subr.mxu0 0.0
    %3408 = vmatpush1.msra.mxu0 0.0
    %3409 = vmatprep.subr.mxu0 0.0
    %3410 = vmatpush1.msra.mxu0 0.0
    %3411 = vmatprep.subr.mxu0 0.0
    %3412 = vmatpush1.msra.mxu0 0.0
    %3413 = vmatprep.subr.mxu0 0.0
    %3414 = vmatpush1.msra.mxu0 0.0
    %3415 = vmatprep.subr.mxu0 %v3382
    %3416 = vmatpush1.msra.mxu0 %v3381
    %3417 = vmatprep.subr.mxu0 %v3380
    %3418 = vmatpush1.msra.mxu0 %v3379
    %3419 = vmatprep.subr.mxu0 0.0
    %3420 = vmatpush2.msra.mxu0 0.0
    %3421 = vmatprep.subr.mxu0 0.0
    %3422 = vmatpush2.msra.mxu0 0.0
    %3423 = vmatprep.subr.mxu0 0.0
    %3424 = vmatpush2.msra.mxu0 0.0
    %3425 = vmatprep.subr.mxu0 0.0
    %3426 = vmatpush2.msra.mxu0 0.0
    %3427 = vmatprep.subr.mxu0 0.0
    %3428 = vmatpush2.msra.mxu0 0.0
    %3429 = vmatprep.subr.mxu0 0.0
    %3430 = vmatpush2.msra.mxu0 0.0
    %3431 = vmatprep.subr.mxu0 0.0
    %3432 = vmatpush2.msra.mxu0 0.0
    %3433 = vmatprep.subr.mxu0 0.0
    %3434 = vmatpush2.msra.mxu0 0.0
    %3435 = vmatprep.subr.mxu0 0.0
    %3436 = vmatpush2.msra.mxu0 0.0
    %3437 = vmatprep.subr.mxu0 0.0
    %3438 = vmatpush2.msra.mxu0 0.0
    %3439 = vmatprep.subr.mxu0 0.0
    %3440 = vmatpush2.msra.mxu0 0.0
    %3441 = vmatprep.subr.mxu0 0.0
    %3442 = vmatpush2.msra.mxu0 0.0
    %3443 = vmatprep.subr.mxu0 0.0
    %3444 = vmatpush2.msra.mxu0 0.0
    %3445 = vmatprep.subr.mxu0 0.0
    %3446 = vmatpush2.msra.mxu0 0.0
    %3447 = vmatprep.subr.mxu0 0.0
    %3448 = vmatpush2.msra.mxu0 0.0
    %3449 = vmatprep.subr.mxu0 0.0
    %3450 = vmatpush2.msra.mxu0 0.0
    %3451 = vmatprep.mubr.f32.mxu0 0.0
    %3452 = vmatmul.mubr.f32.gmra.mxu0 %v3385
    %v3453 = vpop.f32.mrf.mxu0
    %v3454 = vadd.f32 0.0, %v3453
    %v3455 = vpop.f32.mrf.mxu0
    %v3456 = vadd.f32 0.0, %v3455
    %3457 = vdwg.mxu0
    %v3459 = vsel %vm3383, %v3378, 0
    %3461 = vmatprep.subr.mxu0 0.0
    %3462 = vmatpush1.msra.mxu0 0.0
    %3463 = vmatprep.subr.mxu0 0.0
    %3464 = vmatpush1.msra.mxu0 0.0
    %3465 = vmatprep.subr.mxu0 0.0
    %3466 = vmatpush1.msra.mxu0 0.0
    %3467 = vmatprep.subr.mxu0 0.0
    %3468 = vmatpush1.msra.mxu0 0.0
    %3469 = vmatprep.subr.mxu0 0.0
    %3470 = vmatpush1.msra.mxu0 0.0
    %3471 = vmatprep.subr.mxu0 0.0
    %3472 = vmatpush1.msra.mxu0 0.0
    %3473 = vmatprep.subr.mxu0 0.0
    %3474 = vmatpush1.msra.mxu0 0.0
    %3475 = vmatprep.subr.mxu0 0.0
    %3476 = vmatpush1.msra.mxu0 0.0
    %3477 = vmatprep.subr.mxu0 0.0
    %3478 = vmatpush1.msra.mxu0 0.0
    %3479 = vmatprep.subr.mxu0 0.0
    %3480 = vmatpush1.msra.mxu0 0.0
    %3481 = vmatprep.subr.mxu0 0.0
    %3482 = vmatpush1.msra.mxu0 0.0
    %3483 = vmatprep.subr.mxu0 0.0
    %3484 = vmatpush1.msra.mxu0 0.0
    %3485 = vmatprep.subr.mxu0 0.0
    %3486 = vmatpush1.msra.mxu0 0.0
    %3487 = vmatprep.subr.mxu0 0.0
    %3488 = vmatpush1.msra.mxu0 0.0
    %3489 = vmatprep.subr.mxu0 %v3382
    %3490 = vmatpush1.msra.mxu0 %v3381
    %3491 = vmatprep.subr.mxu0 %v3380
    %3492 = vmatpush1.msra.mxu0 %v3379
    %3493 = vmatprep.subr.mxu0 0.0
    %3494 = vmatpush2.msra.mxu0 0.0
    %3495 = vmatprep.subr.mxu0 0.0
    %3496 = vmatpush2.msra.mxu0 0.0
    %3497 = vmatprep.subr.mxu0 0.0
    %3498 = vmatpush2.msra.mxu0 0.0
    %3499 = vmatprep.subr.mxu0 0.0
    %3500 = vmatpush2.msra.mxu0 0.0
    %3501 = vmatprep.subr.mxu0 0.0
    %3502 = vmatpush2.msra.mxu0 0.0
    %3503 = vmatprep.subr.mxu0 0.0
    %3504 = vmatpush2.msra.mxu0 0.0
    %3505 = vmatprep.subr.mxu0 0.0
    %3506 = vmatpush2.msra.mxu0 0.0
    %3507 = vmatprep.subr.mxu0 0.0
    %3508 = vmatpush2.msra.mxu0 0.0
    %3509 = vmatprep.subr.mxu0 0.0
    %3510 = vmatpush2.msra.mxu0 0.0
    %3511 = vmatprep.subr.mxu0 0.0
    %3512 = vmatpush2.msra.mxu0 0.0
    %3513 = vmatprep.subr.mxu0 0.0
    %3514 = vmatpush2.msra.mxu0 0.0
    %3515 = vmatprep.subr.mxu0 0.0
    %3516 = vmatpush2.msra.mxu0 0.0
    %3517 = vmatprep.subr.mxu0 0.0
    %3518 = vmatpush2.msra.mxu0 0.0
    %3519 = vmatprep.subr.mxu0 0.0
    %3520 = vmatpush2.msra.mxu0 0.0
    %3521 = vmatprep.subr.mxu0 0.0
    %3522 = vmatpush2.msra.mxu0 0.0
    %3523 = vmatprep.subr.mxu0 0.0
    %3524 = vmatpush2.msra.mxu0 0.0
    %3525 = vmatprep.mubr.f32.mxu0 0.0
    %3526 = vmatmul.mubr.f32.gmra.mxu0 %v3459
    %v3527 = vpop.f32.mrf.mxu0
    %v3528 = vadd.f32 0.0, %v3527
    %v3529 = vpop.f32.mrf.mxu0
    %v3530 = vadd.f32 0.0, %v3529
    %3531 = vdwg.mxu0
    %v3532 = vlaneseq
    %v3533 = vshrl.u32 %v3532, 7
    %v3534 = vsub.s32 0, %v3533
    %v3535 = vrot.slane %v3454, %v3534
    %v3536 = vlaneseq
    %v3537 = vshrl.u32 %v3536, 7
    %v3538 = vsub.s32 0, %v3537
    %v3539 = vrot.slane %v3456, %v3538
    %v3540 = vmul.f32 %v3129, %v3535
    %v3541 = vmul.f32 %v3130, %v3539
    %v3542 = vmul.f32 %v3131, %v3535
    %v3543 = vmul.f32 %v3132, %v3539
    %v3544 = vmul.f32 %v3133, %v3535
    %v3545 = vmul.f32 %v3134, %v3539
    %v3546 = vmul.f32 %v3135, %v3535
    %v3547 = vmul.f32 %v3136, %v3539
    %v3548 = vlaneseq
    %v3549 = vshrl.u32 %v3548, 7
    %v3550 = vsub.s32 0, %v3549
    %v3551 = vrot.slane %v3528, %v3550
    %v3552 = vlaneseq
    %v3553 = vshrl.u32 %v3552, 7
    %v3554 = vsub.s32 0, %v3553
    %v3555 = vrot.slane %v3530, %v3554
    %v3556 = vadd.f32 %v3540, %v3551
    %v3557 = vadd.f32 %v3541, %v3555
    %v3558 = vadd.f32 %v3542, %v3551
    %v3559 = vadd.f32 %v3543, %v3555
    %v3560 = vadd.f32 %v3544, %v3551
    %v3561 = vadd.f32 %v3545, %v3555
    %v3562 = vadd.f32 %v3546, %v3551
    %v3563 = vadd.f32 %v3547, %v3555
    %vm3564 = vcmp.gt.f32.partialorder %v3556, 0.0
    %vm3565 = vcmp.gt.f32.partialorder %v3557, 0.0
    %vm3566 = vcmp.gt.f32.partialorder %v3558, 0.0
    %vm3567 = vcmp.gt.f32.partialorder %v3559, 0.0
    %vm3568 = vcmp.gt.f32.partialorder %v3560, 0.0
    %vm3569 = vcmp.gt.f32.partialorder %v3561, 0.0
    %vm3570 = vcmp.gt.f32.partialorder %v3562, 0.0
    %vm3571 = vcmp.gt.f32.partialorder %v3563, 0.0
    %v3572 = vmul.f32 %v3556, 0.2
    %v3573 = vmul.f32 %v3557, 0.2
    %v3574 = vmul.f32 %v3558, 0.2
    %v3575 = vmul.f32 %v3559, 0.2
    %v3576 = vmul.f32 %v3560, 0.2
    %v3577 = vmul.f32 %v3561, 0.2
    %v3578 = vmul.f32 %v3562, 0.2
    %v3579 = vmul.f32 %v3563, 0.2
    %v3580 = vsel %vm3564, %v3556, %v3572
    %v3581 = vsel %vm3565, %v3557, %v3573
    %v3582 = vsel %vm3566, %v3558, %v3574
    %v3583 = vsel %vm3567, %v3559, %v3575
    %v3584 = vsel %vm3568, %v3560, %v3576
    %v3585 = vsel %vm3569, %v3561, %v3577
    %v3586 = vsel %vm3570, %v3562, %v3578
    %v3587 = vsel %vm3571, %v3563, %v3579
    %v3589 = vsel %vm605, %v3586, 0
    %v3592 = vsel %vm605, %v3587, 0
    %3594 = vmatprep.subr.mxu0 0.0
    %3595 = vmatpush1.msra.mxu0 0.0
    %3596 = vmatprep.subr.mxu0 0.0
    %3597 = vmatpush1.msra.mxu0 0.0
    %3598 = vmatprep.subr.mxu0 0.0
    %3599 = vmatpush1.msra.mxu0 0.0
    %3600 = vmatprep.subr.mxu0 0.0
    %3601 = vmatpush1.msra.mxu0 0.0
    %3602 = vmatprep.subr.mxu0 0.0
    %3603 = vmatpush1.msra.mxu0 0.0
    %3604 = vmatprep.subr.mxu0 0.0
    %3605 = vmatpush1.msra.mxu0 0.0
    %3606 = vmatprep.subr.mxu0 0.0
    %3607 = vmatpush1.msra.mxu0 0.0
    %3608 = vmatprep.subr.mxu0 0.0
    %3609 = vmatpush1.msra.mxu0 0.0
    %3610 = vmatprep.subr.mxu0 0.0
    %3611 = vmatpush1.msra.mxu0 0.0
    %3612 = vmatprep.subr.mxu0 0.0
    %3613 = vmatpush1.msra.mxu0 0.0
    %3614 = vmatprep.subr.mxu0 0.0
    %3615 = vmatpush1.msra.mxu0 0.0
    %3616 = vmatprep.subr.mxu0 0.0
    %3617 = vmatpush1.msra.mxu0 0.0
    %3618 = vmatprep.subr.mxu0 %v3592
    %3619 = vmatpush1.msra.mxu0 %v3589
    %3620 = vmatprep.subr.mxu0 %v3585
    %3621 = vmatpush1.msra.mxu0 %v3584
    %3622 = vmatprep.subr.mxu0 %v3583
    %3623 = vmatpush1.msra.mxu0 %v3582
    %3624 = vmatprep.subr.mxu0 %v3581
    %3625 = vmatpush1.msra.mxu0 %v3580
    %3626 = vmatprep.subr.mxu0 0.0
    %3627 = vmatpush2.msra.mxu0 0.0
    %3628 = vmatprep.subr.mxu0 0.0
    %3629 = vmatpush2.msra.mxu0 0.0
    %3630 = vmatprep.subr.mxu0 0.0
    %3631 = vmatpush2.msra.mxu0 0.0
    %3632 = vmatprep.subr.mxu0 0.0
    %3633 = vmatpush2.msra.mxu0 0.0
    %3634 = vmatprep.subr.mxu0 0.0
    %3635 = vmatpush2.msra.mxu0 0.0
    %3636 = vmatprep.subr.mxu0 0.0
    %3637 = vmatpush2.msra.mxu0 0.0
    %3638 = vmatprep.subr.mxu0 0.0
    %3639 = vmatpush2.msra.mxu0 0.0
    %3640 = vmatprep.subr.mxu0 0.0
    %3641 = vmatpush2.msra.mxu0 0.0
    %3642 = vmatprep.subr.mxu0 0.0
    %3643 = vmatpush2.msra.mxu0 0.0
    %3644 = vmatprep.subr.mxu0 0.0
    %3645 = vmatpush2.msra.mxu0 0.0
    %3646 = vmatprep.subr.mxu0 0.0
    %3647 = vmatpush2.msra.mxu0 0.0
    %3648 = vmatprep.subr.mxu0 0.0
    %3649 = vmatpush2.msra.mxu0 0.0
    %3650 = vmatprep.subr.mxu0 0.0
    %3651 = vmatpush2.msra.mxu0 0.0
    %3652 = vmatprep.subr.mxu0 0.0
    %3653 = vmatpush2.msra.mxu0 0.0
    %3654 = vmatprep.subr.mxu0 0.0
    %3655 = vmatpush2.msra.mxu0 0.0
    %3656 = vmatprep.subr.mxu0 0.0
    %3657 = vmatpush2.msra.mxu0 0.0
    %3658 = vmatprep.mubr.f32.mxu0 0.0
    %3659 = vmatmul.mubr.f32.gmra.mxu0 %v2436
    %v3660 = vpop.f32.mrf.mxu0
    %v3661 = vadd.f32 0.0, %v3660
    %v3662 = vpop.f32.mrf.mxu0
    %v3663 = vadd.f32 0.0, %v3662
    %3664 = vmatprep.mubr.f32.mxu0 0.0
    %3665 = vmatmul.mubr.f32.gmra.mxu0 %v2439
    %v3666 = vpop.f32.mrf.mxu0
    %v3667 = vadd.f32 0.0, %v3666
    %v3668 = vpop.f32.mrf.mxu0
    %v3669 = vadd.f32 0.0, %v3668
    %3670 = vmatprep.mubr.f32.mxu0 0.0
    %3671 = vmatmul.mubr.f32.gmra.mxu0 %v2442
    %v3672 = vpop.f32.mrf.mxu0
    %v3673 = vadd.f32 0.0, %v3672
    %v3674 = vpop.f32.mrf.mxu0
    %v3675 = vadd.f32 0.0, %v3674
    %3676 = vmatprep.mubr.f32.mxu0 0.0
    %3677 = vmatmul.mubr.f32.gmra.mxu0 %v2445
    %v3678 = vpop.f32.mrf.mxu0
    %v3679 = vadd.f32 0.0, %v3678
    %v3680 = vpop.f32.mrf.mxu0
    %v3681 = vadd.f32 0.0, %v3680
    %3682 = vdwg.mxu0
    %v3683 = vld [vmem:[#allocation24] sm:$0xff]
    %v3684 = vld [vmem:[#allocation24 + $0x8] sm:$0xff]
    %v3685 = vld [vmem:[#allocation24 + $0x10] sm:$0xff]
    %v3686 = vld [vmem:[#allocation24 + $0x18] sm:$0xff]
    %v3687 = vld [vmem:[#allocation24 + $0x20] sm:$0xff]
    %v3688 = vld [vmem:[#allocation24 + $0x28] sm:$0xff]
    %v3689 = vld [vmem:[#allocation24 + $0x30] sm:$0xff]
    %v3690 = vld [vmem:[#allocation24 + $0x38] sm:$0xff]
    %v3691 = vld [vmem:[#allocation24 + $0x40] sm:$0xff]
    %v3692 = vld [vmem:[#allocation24 + $0x48] sm:$0xff]
    %v3693 = vld [vmem:[#allocation24 + $0x50] sm:$0xff]
    %v3694 = vld [vmem:[#allocation24 + $0x58] sm:$0xff]
    %v3695 = vld [vmem:[#allocation24 + $0x60] sm:$0xff]
    %v3696 = vld [vmem:[#allocation24 + $0x68] sm:$0xff]
    %v3697 = vld [vmem:[#allocation24 + $0x70] sm:$0xff]
    %v3698 = vld [vmem:[#allocation24 + $0x78] sm:$0xff]
    %v3699 = vld [vmem:[#allocation24 + $0x80] sm:$0xff]
    %v3700 = vld [vmem:[#allocation24 + $0x88] sm:$0xff]
    %v3701 = vld [vmem:[#allocation24 + $0x90] sm:$0xff]
    %v3702 = vld [vmem:[#allocation24 + $0x98] sm:$0xff]
    %v3703 = vld [vmem:[#allocation24 + $0xa0] sm:$0xff]
    %v3704 = vld [vmem:[#allocation24 + $0xa8] sm:$0xff]
    %v3705 = vld [vmem:[#allocation24 + $0xb0] sm:$0xff]
    %v3706 = vld [vmem:[#allocation24 + $0xb8] sm:$0xff]
    %v3707 = vld [vmem:[#allocation24 + $0xc0] sm:$0xff]
    %v3708 = vld [vmem:[#allocation24 + $0xc8] sm:$0xff]
    %v3709 = vld [vmem:[#allocation24 + $0xd0] sm:$0xff]
    %v3710 = vld [vmem:[#allocation24 + $0xd8] sm:$0xff]
    %v3711 = vld [vmem:[#allocation24 + $0xe0] sm:$0xff]
    %v3712 = vld [vmem:[#allocation24 + $0xe8] sm:$0xff]
    %v3713 = vld [vmem:[#allocation24 + $0xf0] sm:$0xff]
    %v3714 = vld [vmem:[#allocation24 + $0xf8] sm:$0xff]
    %v3715 = vld [vmem:[#allocation24 + $0x100] sm:$0xff]
    %v3716 = vld [vmem:[#allocation24 + $0x108] sm:$0xff]
    %v3717 = vld [vmem:[#allocation24 + $0x110] sm:$0xff]
    %v3718 = vld [vmem:[#allocation24 + $0x118] sm:$0xff]
    %v3719 = vld [vmem:[#allocation24 + $0x120] sm:$0xff]
    %v3720 = vld [vmem:[#allocation24 + $0x128] sm:$0xff]
    %v3721 = vld [vmem:[#allocation24 + $0x130] sm:$0xff]
    %v3722 = vld [vmem:[#allocation24 + $0x138] sm:$0xff]
    %v3723 = vld [vmem:[#allocation24 + $0x140] sm:$0xff]
    %v3724 = vld [vmem:[#allocation24 + $0x148] sm:$0xff]
    %v3725 = vld [vmem:[#allocation24 + $0x150] sm:$0xff]
    %v3726 = vld [vmem:[#allocation24 + $0x158] sm:$0xff]
    %v3727 = vld [vmem:[#allocation24 + $0x160] sm:$0xff]
    %v3728 = vld [vmem:[#allocation24 + $0x168] sm:$0xff]
    %v3729 = vld [vmem:[#allocation24 + $0x170] sm:$0xff]
    %v3730 = vld [vmem:[#allocation24 + $0x178] sm:$0xff]
    %v3731 = vld [vmem:[#allocation24 + $0x180] sm:$0xff]
    %v3732 = vld [vmem:[#allocation24 + $0x188] sm:$0xff]
    %v3733 = vld [vmem:[#allocation24 + $0x190] sm:$0xff]
    %v3734 = vld [vmem:[#allocation24 + $0x198] sm:$0xff]
    %v3735 = vld [vmem:[#allocation24 + $0x1a0] sm:$0xff]
    %v3736 = vld [vmem:[#allocation24 + $0x1a8] sm:$0xff]
    %v3737 = vld [vmem:[#allocation24 + $0x1b0] sm:$0xff]
    %v3738 = vld [vmem:[#allocation24 + $0x1b8] sm:$0xff]
    %v3739 = vld [vmem:[#allocation24 + $0x1c0] sm:$0xff]
    %v3740 = vld [vmem:[#allocation24 + $0x1c8] sm:$0xff]
    %v3741 = vld [vmem:[#allocation24 + $0x1d0] sm:$0xff]
    %v3742 = vld [vmem:[#allocation24 + $0x1d8] sm:$0xff]
    %v3743 = vld [vmem:[#allocation24 + $0x1e0] sm:$0xff]
    %v3744 = vld [vmem:[#allocation24 + $0x1e8] sm:$0xff]
    %v3745 = vld [vmem:[#allocation24 + $0x1f0] sm:$0xff]
    %v3746 = vld [vmem:[#allocation24 + $0x1f8] sm:$0xff]
    %v3747 = vld [vmem:[#allocation24 + $0x200] sm:$0xff]
    %v3748 = vld [vmem:[#allocation24 + $0x208] sm:$0xff]
    %v3749 = vld [vmem:[#allocation24 + $0x210] sm:$0xff]
    %v3750 = vld [vmem:[#allocation24 + $0x218] sm:$0xff]
    %v3751 = vld [vmem:[#allocation24 + $0x220] sm:$0xff]
    %v3752 = vld [vmem:[#allocation24 + $0x228] sm:$0xff]
    %v3753 = vld [vmem:[#allocation24 + $0x230] sm:$0xff]
    %v3754 = vld [vmem:[#allocation24 + $0x238] sm:$0xff]
    %v3755 = vld [vmem:[#allocation24 + $0x240] sm:$0xff]
    %v3756 = vld [vmem:[#allocation24 + $0x248] sm:$0xff]
    %v3757 = vld [vmem:[#allocation24 + $0x250] sm:$0xff]
    %v3758 = vld [vmem:[#allocation24 + $0x258] sm:$0xff]
    %v3759 = vld [vmem:[#allocation24 + $0x260] sm:$0xff]
    %v3760 = vld [vmem:[#allocation24 + $0x268] sm:$0xff]
    %v3761 = vld [vmem:[#allocation24 + $0x270] sm:$0xff]
    %v3762 = vld [vmem:[#allocation24 + $0x278] sm:$0xff]
    %v3763 = vld [vmem:[#allocation24 + $0x280] sm:$0xff]
    %v3764 = vld [vmem:[#allocation24 + $0x288] sm:$0xff]
    %v3765 = vld [vmem:[#allocation24 + $0x290] sm:$0xff]
    %v3766 = vld [vmem:[#allocation24 + $0x298] sm:$0xff]
    %v3767 = vld [vmem:[#allocation24 + $0x2a0] sm:$0xff]
    %v3768 = vld [vmem:[#allocation24 + $0x2a8] sm:$0xff]
    %v3769 = vld [vmem:[#allocation24 + $0x2b0] sm:$0xff]
    %v3770 = vld [vmem:[#allocation24 + $0x2b8] sm:$0xff]
    %v3771 = vld [vmem:[#allocation24 + $0x2c0] sm:$0xff]
    %v3772 = vld [vmem:[#allocation24 + $0x2c8] sm:$0xff]
    %v3773 = vld [vmem:[#allocation24 + $0x2d0] sm:$0xff]
    %v3774 = vld [vmem:[#allocation24 + $0x2d8] sm:$0xff]
    %v3775 = vld [vmem:[#allocation24 + $0x2e0] sm:$0xff]
    %v3776 = vld [vmem:[#allocation24 + $0x2e8] sm:$0xff]
    %v3777 = vld [vmem:[#allocation24 + $0x2f0] sm:$0xff]
    %v3778 = vld [vmem:[#allocation24 + $0x2f8] sm:$0xff]
    %v3779 = vld [vmem:[#allocation24 + $0x300] sm:$0xff]
    %v3780 = vld [vmem:[#allocation24 + $0x308] sm:$0xff]
    %v3781 = vld [vmem:[#allocation24 + $0x310] sm:$0xff]
    %v3782 = vld [vmem:[#allocation24 + $0x318] sm:$0xff]
    %v3783 = vld [vmem:[#allocation24 + $0x320] sm:$0xff]
    %v3784 = vld [vmem:[#allocation24 + $0x328] sm:$0xff]
    %v3785 = vld [vmem:[#allocation24 + $0x330] sm:$0xff]
    %v3786 = vld [vmem:[#allocation24 + $0x338] sm:$0xff]
    %v3787 = vld [vmem:[#allocation24 + $0x340] sm:$0xff]
    %v3788 = vld [vmem:[#allocation24 + $0x348] sm:$0xff]
    %v3789 = vld [vmem:[#allocation24 + $0x350] sm:$0xff]
    %v3790 = vld [vmem:[#allocation24 + $0x358] sm:$0xff]
    %v3791 = vld [vmem:[#allocation24 + $0x360] sm:$0xff]
    %v3792 = vld [vmem:[#allocation24 + $0x368] sm:$0xff]
    %v3793 = vld [vmem:[#allocation24 + $0x370] sm:$0xff]
    %v3794 = vld [vmem:[#allocation24 + $0x378] sm:$0xff]
    %3795 = vmatprep.subr.mxu0 0.0
    %3796 = vmatpush1.msra.mxu0 0.0
    %3797 = vmatprep.subr.mxu0 0.0
    %3798 = vmatpush1.msra.mxu0 0.0
    %3799 = vmatprep.subr.mxu0 0.0
    %3800 = vmatpush1.msra.mxu0 0.0
    %3801 = vmatprep.subr.mxu0 0.0
    %3802 = vmatpush1.msra.mxu0 0.0
    %3803 = vmatprep.subr.mxu0 0.0
    %3804 = vmatpush1.msra.mxu0 0.0
    %3805 = vmatprep.subr.mxu0 0.0
    %3806 = vmatpush1.msra.mxu0 0.0
    %3807 = vmatprep.subr.mxu0 0.0
    %3808 = vmatpush1.msra.mxu0 0.0
    %3809 = vmatprep.subr.mxu0 0.0
    %3810 = vmatpush1.msra.mxu0 0.0
    %3811 = vmatprep.subr.mxu0 0.0
    %3812 = vmatpush1.msra.mxu0 0.0
    %3813 = vmatprep.subr.mxu0 0.0
    %3814 = vmatpush1.msra.mxu0 0.0
    %3815 = vmatprep.subr.mxu0 0.0
    %3816 = vmatpush1.msra.mxu0 0.0
    %3817 = vmatprep.subr.mxu0 0.0
    %3818 = vmatpush1.msra.mxu0 0.0
    %3819 = vmatprep.subr.mxu0 %v3592
    %3820 = vmatpush1.msra.mxu0 %v3589
    %3821 = vmatprep.subr.mxu0 %v3585
    %3822 = vmatpush1.msra.mxu0 %v3584
    %3823 = vmatprep.subr.mxu0 %v3583
    %3824 = vmatpush1.msra.mxu0 %v3582
    %3825 = vmatprep.subr.mxu0 %v3581
    %3826 = vmatpush1.msra.mxu0 %v3580
    %3827 = vmatprep.subr.mxu0 0.0
    %3828 = vmatpush2.msra.mxu0 0.0
    %3829 = vmatprep.subr.mxu0 0.0
    %3830 = vmatpush2.msra.mxu0 0.0
    %3831 = vmatprep.subr.mxu0 0.0
    %3832 = vmatpush2.msra.mxu0 0.0
    %3833 = vmatprep.subr.mxu0 0.0
    %3834 = vmatpush2.msra.mxu0 0.0
    %3835 = vmatprep.subr.mxu0 0.0
    %3836 = vmatpush2.msra.mxu0 0.0
    %3837 = vmatprep.subr.mxu0 0.0
    %3838 = vmatpush2.msra.mxu0 0.0
    %3839 = vmatprep.subr.mxu0 0.0
    %3840 = vmatpush2.msra.mxu0 0.0
    %3841 = vmatprep.subr.mxu0 0.0
    %3842 = vmatpush2.msra.mxu0 0.0
    %3843 = vmatprep.subr.mxu0 0.0
    %3844 = vmatpush2.msra.mxu0 0.0
    %3845 = vmatprep.subr.mxu0 0.0
    %3846 = vmatpush2.msra.mxu0 0.0
    %3847 = vmatprep.subr.mxu0 0.0
    %3848 = vmatpush2.msra.mxu0 0.0
    %3849 = vmatprep.subr.mxu0 0.0
    %3850 = vmatpush2.msra.mxu0 0.0
    %3851 = vmatprep.subr.mxu0 0.0
    %3852 = vmatpush2.msra.mxu0 0.0
    %3853 = vmatprep.subr.mxu0 0.0
    %3854 = vmatpush2.msra.mxu0 0.0
    %3855 = vmatprep.subr.mxu0 0.0
    %3856 = vmatpush2.msra.mxu0 0.0
    %3857 = vmatprep.subr.mxu0 0.0
    %3858 = vmatpush2.msra.mxu0 0.0
    %3859 = vmatprep.mubr.f32.mxu0 0.0
    %3860 = vmatmul.mubr.f32.gmra.mxu0 %v2569
    %v3861 = vpop.f32.mrf.mxu0
    %v3862 = vadd.f32 0.0, %v3861
    %v3863 = vpop.f32.mrf.mxu0
    %v3864 = vadd.f32 0.0, %v3863
    %3865 = vmatprep.mubr.f32.mxu0 0.0
    %3866 = vmatmul.mubr.f32.gmra.mxu0 %v2572
    %v3867 = vpop.f32.mrf.mxu0
    %v3868 = vadd.f32 0.0, %v3867
    %v3869 = vpop.f32.mrf.mxu0
    %v3870 = vadd.f32 0.0, %v3869
    %3871 = vmatprep.mubr.f32.mxu0 0.0
    %3872 = vmatmul.mubr.f32.gmra.mxu0 %v2575
    %v3873 = vpop.f32.mrf.mxu0
    %v3874 = vadd.f32 0.0, %v3873
    %v3875 = vpop.f32.mrf.mxu0
    %v3876 = vadd.f32 0.0, %v3875
    %3877 = vmatprep.mubr.f32.mxu0 0.0
    %3878 = vmatmul.mubr.f32.gmra.mxu0 %v2578
    %v3879 = vpop.f32.mrf.mxu0
    %v3880 = vadd.f32 0.0, %v3879
    %v3881 = vpop.f32.mrf.mxu0
    %v3882 = vadd.f32 0.0, %v3881
    %3883 = vdwg.mxu0
    %s3884 = scalar_lea.vmem [#allocation24], 896
    %v3885 = vld [vmem:[%s3884] sm:$0xff]
    %v3886 = vld [vmem:[%s3884 + $0x8] sm:$0xff]
    %v3887 = vld [vmem:[%s3884 + $0x10] sm:$0xff]
    %v3888 = vld [vmem:[%s3884 + $0x18] sm:$0xff]
    %v3889 = vld [vmem:[%s3884 + $0x20] sm:$0xff]
    %v3890 = vld [vmem:[%s3884 + $0x28] sm:$0xff]
    %v3891 = vld [vmem:[%s3884 + $0x30] sm:$0xff]
    %v3892 = vld [vmem:[%s3884 + $0x38] sm:$0xff]
    %v3893 = vld [vmem:[%s3884 + $0x40] sm:$0xff]
    %v3894 = vld [vmem:[%s3884 + $0x48] sm:$0xff]
    %v3895 = vld [vmem:[%s3884 + $0x50] sm:$0xff]
    %v3896 = vld [vmem:[%s3884 + $0x58] sm:$0xff]
    %v3897 = vld [vmem:[%s3884 + $0x60] sm:$0xff]
    %v3898 = vld [vmem:[%s3884 + $0x68] sm:$0xff]
    %v3899 = vld [vmem:[%s3884 + $0x70] sm:$0xff]
    %v3900 = vld [vmem:[%s3884 + $0x78] sm:$0xff]
    %v3901 = vld [vmem:[%s3884 + $0x80] sm:$0xff]
    %v3902 = vld [vmem:[%s3884 + $0x88] sm:$0xff]
    %v3903 = vld [vmem:[%s3884 + $0x90] sm:$0xff]
    %v3904 = vld [vmem:[%s3884 + $0x98] sm:$0xff]
    %v3905 = vld [vmem:[%s3884 + $0xa0] sm:$0xff]
    %v3906 = vld [vmem:[%s3884 + $0xa8] sm:$0xff]
    %v3907 = vld [vmem:[%s3884 + $0xb0] sm:$0xff]
    %v3908 = vld [vmem:[%s3884 + $0xb8] sm:$0xff]
    %v3909 = vld [vmem:[%s3884 + $0xc0] sm:$0xff]
    %v3910 = vld [vmem:[%s3884 + $0xc8] sm:$0xff]
    %v3911 = vld [vmem:[%s3884 + $0xd0] sm:$0xff]
    %v3912 = vld [vmem:[%s3884 + $0xd8] sm:$0xff]
    %v3913 = vld [vmem:[%s3884 + $0xe0] sm:$0xff]
    %v3914 = vld [vmem:[%s3884 + $0xe8] sm:$0xff]
    %v3915 = vld [vmem:[%s3884 + $0xf0] sm:$0xff]
    %v3916 = vld [vmem:[%s3884 + $0xf8] sm:$0xff]
    %v3917 = vld [vmem:[%s3884 + $0x100] sm:$0xff]
    %v3918 = vld [vmem:[%s3884 + $0x108] sm:$0xff]
    %v3919 = vld [vmem:[%s3884 + $0x110] sm:$0xff]
    %v3920 = vld [vmem:[%s3884 + $0x118] sm:$0xff]
    %v3921 = vld [vmem:[%s3884 + $0x120] sm:$0xff]
    %v3922 = vld [vmem:[%s3884 + $0x128] sm:$0xff]
    %v3923 = vld [vmem:[%s3884 + $0x130] sm:$0xff]
    %v3924 = vld [vmem:[%s3884 + $0x138] sm:$0xff]
    %v3925 = vld [vmem:[%s3884 + $0x140] sm:$0xff]
    %v3926 = vld [vmem:[%s3884 + $0x148] sm:$0xff]
    %v3927 = vld [vmem:[%s3884 + $0x150] sm:$0xff]
    %v3928 = vld [vmem:[%s3884 + $0x158] sm:$0xff]
    %v3929 = vld [vmem:[%s3884 + $0x160] sm:$0xff]
    %v3930 = vld [vmem:[%s3884 + $0x168] sm:$0xff]
    %v3931 = vld [vmem:[%s3884 + $0x170] sm:$0xff]
    %v3932 = vld [vmem:[%s3884 + $0x178] sm:$0xff]
    %v3933 = vld [vmem:[%s3884 + $0x180] sm:$0xff]
    %v3934 = vld [vmem:[%s3884 + $0x188] sm:$0xff]
    %v3935 = vld [vmem:[%s3884 + $0x190] sm:$0xff]
    %v3936 = vld [vmem:[%s3884 + $0x198] sm:$0xff]
    %v3937 = vld [vmem:[%s3884 + $0x1a0] sm:$0xff]
    %v3938 = vld [vmem:[%s3884 + $0x1a8] sm:$0xff]
    %v3939 = vld [vmem:[%s3884 + $0x1b0] sm:$0xff]
    %v3940 = vld [vmem:[%s3884 + $0x1b8] sm:$0xff]
    %v3941 = vld [vmem:[%s3884 + $0x1c0] sm:$0xff]
    %v3942 = vld [vmem:[%s3884 + $0x1c8] sm:$0xff]
    %v3943 = vld [vmem:[%s3884 + $0x1d0] sm:$0xff]
    %v3944 = vld [vmem:[%s3884 + $0x1d8] sm:$0xff]
    %v3945 = vld [vmem:[%s3884 + $0x1e0] sm:$0xff]
    %v3946 = vld [vmem:[%s3884 + $0x1e8] sm:$0xff]
    %v3947 = vld [vmem:[%s3884 + $0x1f0] sm:$0xff]
    %v3948 = vld [vmem:[%s3884 + $0x1f8] sm:$0xff]
    %v3949 = vld [vmem:[%s3884 + $0x200] sm:$0xff]
    %v3950 = vld [vmem:[%s3884 + $0x208] sm:$0xff]
    %v3951 = vld [vmem:[%s3884 + $0x210] sm:$0xff]
    %v3952 = vld [vmem:[%s3884 + $0x218] sm:$0xff]
    %v3953 = vld [vmem:[%s3884 + $0x220] sm:$0xff]
    %v3954 = vld [vmem:[%s3884 + $0x228] sm:$0xff]
    %v3955 = vld [vmem:[%s3884 + $0x230] sm:$0xff]
    %v3956 = vld [vmem:[%s3884 + $0x238] sm:$0xff]
    %v3957 = vld [vmem:[%s3884 + $0x240] sm:$0xff]
    %v3958 = vld [vmem:[%s3884 + $0x248] sm:$0xff]
    %v3959 = vld [vmem:[%s3884 + $0x250] sm:$0xff]
    %v3960 = vld [vmem:[%s3884 + $0x258] sm:$0xff]
    %v3961 = vld [vmem:[%s3884 + $0x260] sm:$0xff]
    %v3962 = vld [vmem:[%s3884 + $0x268] sm:$0xff]
    %v3963 = vld [vmem:[%s3884 + $0x270] sm:$0xff]
    %v3964 = vld [vmem:[%s3884 + $0x278] sm:$0xff]
    %v3965 = vld [vmem:[%s3884 + $0x280] sm:$0xff]
    %v3966 = vld [vmem:[%s3884 + $0x288] sm:$0xff]
    %v3967 = vld [vmem:[%s3884 + $0x290] sm:$0xff]
    %v3968 = vld [vmem:[%s3884 + $0x298] sm:$0xff]
    %v3969 = vld [vmem:[%s3884 + $0x2a0] sm:$0xff]
    %v3970 = vld [vmem:[%s3884 + $0x2a8] sm:$0xff]
    %v3971 = vld [vmem:[%s3884 + $0x2b0] sm:$0xff]
    %v3972 = vld [vmem:[%s3884 + $0x2b8] sm:$0xff]
    %v3973 = vld [vmem:[%s3884 + $0x2c0] sm:$0xff]
    %v3974 = vld [vmem:[%s3884 + $0x2c8] sm:$0xff]
    %v3975 = vld [vmem:[%s3884 + $0x2d0] sm:$0xff]
    %v3976 = vld [vmem:[%s3884 + $0x2d8] sm:$0xff]
    %v3977 = vld [vmem:[%s3884 + $0x2e0] sm:$0xff]
    %v3978 = vld [vmem:[%s3884 + $0x2e8] sm:$0xff]
    %v3979 = vld [vmem:[%s3884 + $0x2f0] sm:$0xff]
    %v3980 = vld [vmem:[%s3884 + $0x2f8] sm:$0xff]
    %v3981 = vld [vmem:[%s3884 + $0x300] sm:$0xff]
    %v3982 = vld [vmem:[%s3884 + $0x308] sm:$0xff]
    %v3983 = vld [vmem:[%s3884 + $0x310] sm:$0xff]
    %v3984 = vld [vmem:[%s3884 + $0x318] sm:$0xff]
    %v3985 = vld [vmem:[%s3884 + $0x320] sm:$0xff]
    %v3986 = vld [vmem:[%s3884 + $0x328] sm:$0xff]
    %v3987 = vld [vmem:[%s3884 + $0x330] sm:$0xff]
    %v3988 = vld [vmem:[%s3884 + $0x338] sm:$0xff]
    %v3989 = vld [vmem:[%s3884 + $0x340] sm:$0xff]
    %v3990 = vld [vmem:[%s3884 + $0x348] sm:$0xff]
    %v3991 = vld [vmem:[%s3884 + $0x350] sm:$0xff]
    %v3992 = vld [vmem:[%s3884 + $0x358] sm:$0xff]
    %v3993 = vld [vmem:[%s3884 + $0x360] sm:$0xff]
    %v3994 = vld [vmem:[%s3884 + $0x368] sm:$0xff]
    %v3995 = vld [vmem:[%s3884 + $0x370] sm:$0xff]
    %v3996 = vld [vmem:[%s3884 + $0x378] sm:$0xff]
    %v3998 = vsel %vm1151, %v3864, 0
    %v4001 = vsel %vm1151, %v3870, 0
    %v4004 = vsel %vm1151, %v3876, 0
    %v4007 = vsel %vm1151, %v3882, 0
    %4009 = vmatprep.subr.mxu0 %v3946
    %4010 = vmatpush1.msra.mxu0 %v3945
    %4011 = vmatprep.subr.mxu0 %v3942
    %4012 = vmatpush1.msra.mxu0 %v3941
    %4013 = vmatprep.subr.mxu0 %v3938
    %4014 = vmatpush1.msra.mxu0 %v3937
    %4015 = vmatprep.subr.mxu0 %v3934
    %4016 = vmatpush1.msra.mxu0 %v3933
    %4017 = vmatprep.subr.mxu0 %v3930
    %4018 = vmatpush1.msra.mxu0 %v3929
    %4019 = vmatprep.subr.mxu0 %v3926
    %4020 = vmatpush1.msra.mxu0 %v3925
    %4021 = vmatprep.subr.mxu0 %v3922
    %4022 = vmatpush1.msra.mxu0 %v3921
    %4023 = vmatprep.subr.mxu0 %v3918
    %4024 = vmatpush1.msra.mxu0 %v3917
    %4025 = vmatprep.subr.mxu0 %v3914
    %4026 = vmatpush1.msra.mxu0 %v3913
    %4027 = vmatprep.subr.mxu0 %v3910
    %4028 = vmatpush1.msra.mxu0 %v3909
    %4029 = vmatprep.subr.mxu0 %v3906
    %4030 = vmatpush1.msra.mxu0 %v3905
    %4031 = vmatprep.subr.mxu0 %v3902
    %4032 = vmatpush1.msra.mxu0 %v3901
    %4033 = vmatprep.subr.mxu0 %v3898
    %4034 = vmatpush1.msra.mxu0 %v3897
    %4035 = vmatprep.subr.mxu0 %v3894
    %4036 = vmatpush1.msra.mxu0 %v3893
    %4037 = vmatprep.subr.mxu0 %v3890
    %4038 = vmatpush1.msra.mxu0 %v3889
    %4039 = vmatprep.subr.mxu0 %v3886
    %4040 = vmatpush1.msra.mxu0 %v3885
    %4041 = vmatprep.subr.mxu0 0.0
    %4042 = vmatpush2.msra.mxu0 0.0
    %4043 = vmatprep.subr.mxu0 0.0
    %4044 = vmatpush2.msra.mxu0 0.0
    %4045 = vmatprep.subr.mxu0 0.0
    %4046 = vmatpush2.msra.mxu0 0.0
    %4047 = vmatprep.subr.mxu0 0.0
    %4048 = vmatpush2.msra.mxu0 0.0
    %4049 = vmatprep.subr.mxu0 %v3994
    %4050 = vmatpush2.msra.mxu0 %v3993
    %4051 = vmatprep.subr.mxu0 %v3990
    %4052 = vmatpush2.msra.mxu0 %v3989
    %4053 = vmatprep.subr.mxu0 %v3986
    %4054 = vmatpush2.msra.mxu0 %v3985
    %4055 = vmatprep.subr.mxu0 %v3982
    %4056 = vmatpush2.msra.mxu0 %v3981
    %4057 = vmatprep.subr.mxu0 %v3978
    %4058 = vmatpush2.msra.mxu0 %v3977
    %4059 = vmatprep.subr.mxu0 %v3974
    %4060 = vmatpush2.msra.mxu0 %v3973
    %4061 = vmatprep.subr.mxu0 %v3970
    %4062 = vmatpush2.msra.mxu0 %v3969
    %4063 = vmatprep.subr.mxu0 %v3966
    %4064 = vmatpush2.msra.mxu0 %v3965
    %4065 = vmatprep.subr.mxu0 %v3962
    %4066 = vmatpush2.msra.mxu0 %v3961
    %4067 = vmatprep.subr.mxu0 %v3958
    %4068 = vmatpush2.msra.mxu0 %v3957
    %4069 = vmatprep.subr.mxu0 %v3954
    %4070 = vmatpush2.msra.mxu0 %v3953
    %4071 = vmatprep.subr.mxu0 %v3950
    %4072 = vmatpush2.msra.mxu0 %v3949
    %4073 = vmatprep.mubr.f32.mxu0 %v3998
    %4074 = vmatmul.mubr.f32.gmra.mxu0 %v3862
    %v4075 = vpop.f32.mrf.mxu0
    %v4076 = vadd.f32 0.0, %v4075
    %v4077 = vpop.f32.mrf.mxu0
    %v4078 = vadd.f32 0.0, %v4077
    %4079 = vmatprep.mubr.f32.mxu0 %v4001
    %4080 = vmatmul.mubr.f32.gmra.mxu0 %v3868
    %v4081 = vpop.f32.mrf.mxu0
    %v4082 = vadd.f32 0.0, %v4081
    %v4083 = vpop.f32.mrf.mxu0
    %v4084 = vadd.f32 0.0, %v4083
    %4085 = vmatprep.mubr.f32.mxu0 %v4004
    %4086 = vmatmul.mubr.f32.gmra.mxu0 %v3874
    %v4087 = vpop.f32.mrf.mxu0
    %v4088 = vadd.f32 0.0, %v4087
    %v4089 = vpop.f32.mrf.mxu0
    %v4090 = vadd.f32 0.0, %v4089
    %4091 = vmatprep.mubr.f32.mxu0 %v4007
    %4092 = vmatmul.mubr.f32.gmra.mxu0 %v3880
    %v4093 = vpop.f32.mrf.mxu0
    %v4094 = vadd.f32 0.0, %v4093
    %v4095 = vpop.f32.mrf.mxu0
    %v4096 = vadd.f32 0.0, %v4095
    %4097 = vdwg.mxu0
    %4098 = vmatprep.subr.mxu0 %v3948
    %4099 = vmatpush1.msra.mxu0 %v3947
    %4100 = vmatprep.subr.mxu0 %v3944
    %4101 = vmatpush1.msra.mxu0 %v3943
    %4102 = vmatprep.subr.mxu0 %v3940
    %4103 = vmatpush1.msra.mxu0 %v3939
    %4104 = vmatprep.subr.mxu0 %v3936
    %4105 = vmatpush1.msra.mxu0 %v3935
    %4106 = vmatprep.subr.mxu0 %v3932
    %4107 = vmatpush1.msra.mxu0 %v3931
    %4108 = vmatprep.subr.mxu0 %v3928
    %4109 = vmatpush1.msra.mxu0 %v3927
    %4110 = vmatprep.subr.mxu0 %v3924
    %4111 = vmatpush1.msra.mxu0 %v3923
    %4112 = vmatprep.subr.mxu0 %v3920
    %4113 = vmatpush1.msra.mxu0 %v3919
    %4114 = vmatprep.subr.mxu0 %v3916
    %4115 = vmatpush1.msra.mxu0 %v3915
    %4116 = vmatprep.subr.mxu0 %v3912
    %4117 = vmatpush1.msra.mxu0 %v3911
    %4118 = vmatprep.subr.mxu0 %v3908
    %4119 = vmatpush1.msra.mxu0 %v3907
    %4120 = vmatprep.subr.mxu0 %v3904
    %4121 = vmatpush1.msra.mxu0 %v3903
    %4122 = vmatprep.subr.mxu0 %v3900
    %4123 = vmatpush1.msra.mxu0 %v3899
    %4124 = vmatprep.subr.mxu0 %v3896
    %4125 = vmatpush1.msra.mxu0 %v3895
    %4126 = vmatprep.subr.mxu0 %v3892
    %4127 = vmatpush1.msra.mxu0 %v3891
    %4128 = vmatprep.subr.mxu0 %v3888
    %4129 = vmatpush1.msra.mxu0 %v3887
    %4130 = vmatprep.subr.mxu0 0.0
    %4131 = vmatpush2.msra.mxu0 0.0
    %4132 = vmatprep.subr.mxu0 0.0
    %4133 = vmatpush2.msra.mxu0 0.0
    %4134 = vmatprep.subr.mxu0 0.0
    %4135 = vmatpush2.msra.mxu0 0.0
    %4136 = vmatprep.subr.mxu0 0.0
    %4137 = vmatpush2.msra.mxu0 0.0
    %4138 = vmatprep.subr.mxu0 %v3996
    %4139 = vmatpush2.msra.mxu0 %v3995
    %4140 = vmatprep.subr.mxu0 %v3992
    %4141 = vmatpush2.msra.mxu0 %v3991
    %4142 = vmatprep.subr.mxu0 %v3988
    %4143 = vmatpush2.msra.mxu0 %v3987
    %4144 = vmatprep.subr.mxu0 %v3984
    %4145 = vmatpush2.msra.mxu0 %v3983
    %4146 = vmatprep.subr.mxu0 %v3980
    %4147 = vmatpush2.msra.mxu0 %v3979
    %4148 = vmatprep.subr.mxu0 %v3976
    %4149 = vmatpush2.msra.mxu0 %v3975
    %4150 = vmatprep.subr.mxu0 %v3972
    %4151 = vmatpush2.msra.mxu0 %v3971
    %4152 = vmatprep.subr.mxu0 %v3968
    %4153 = vmatpush2.msra.mxu0 %v3967
    %4154 = vmatprep.subr.mxu0 %v3964
    %4155 = vmatpush2.msra.mxu0 %v3963
    %4156 = vmatprep.subr.mxu0 %v3960
    %4157 = vmatpush2.msra.mxu0 %v3959
    %4158 = vmatprep.subr.mxu0 %v3956
    %4159 = vmatpush2.msra.mxu0 %v3955
    %4160 = vmatprep.subr.mxu0 %v3952
    %4161 = vmatpush2.msra.mxu0 %v3951
    %4162 = vmatprep.mubr.f32.mxu0 %v3998
    %4163 = vmatmul.mubr.f32.gmra.mxu0 %v3862
    %v4164 = vpop.f32.mrf.mxu0
    %v4165 = vadd.f32 0.0, %v4164
    %v4166 = vpop.f32.mrf.mxu0
    %v4167 = vadd.f32 0.0, %v4166
    %4168 = vmatprep.mubr.f32.mxu0 %v4001
    %4169 = vmatmul.mubr.f32.gmra.mxu0 %v3868
    %v4170 = vpop.f32.mrf.mxu0
    %v4171 = vadd.f32 0.0, %v4170
    %v4172 = vpop.f32.mrf.mxu0
    %v4173 = vadd.f32 0.0, %v4172
    %4174 = vmatprep.mubr.f32.mxu0 %v4004
    %4175 = vmatmul.mubr.f32.gmra.mxu0 %v3874
    %v4176 = vpop.f32.mrf.mxu0
    %v4177 = vadd.f32 0.0, %v4176
    %v4178 = vpop.f32.mrf.mxu0
    %v4179 = vadd.f32 0.0, %v4178
    %4180 = vmatprep.mubr.f32.mxu0 %v4007
    %4181 = vmatmul.mubr.f32.gmra.mxu0 %v3880
    %v4182 = vpop.f32.mrf.mxu0
    %v4183 = vadd.f32 0.0, %v4182
    %v4184 = vpop.f32.mrf.mxu0
    %v4185 = vadd.f32 0.0, %v4184
    %4186 = vdwg.mxu0
    %v4188 = vsel %vm1151, %v3663, 0
    %v4191 = vsel %vm1151, %v3669, 0
    %v4194 = vsel %vm1151, %v3675, 0
    %v4197 = vsel %vm1151, %v3681, 0
    %4199 = vmatprep.subr.mxu0 %v3744
    %4200 = vmatpush1.msra.mxu0 %v3743
    %4201 = vmatprep.subr.mxu0 %v3740
    %4202 = vmatpush1.msra.mxu0 %v3739
    %4203 = vmatprep.subr.mxu0 %v3736
    %4204 = vmatpush1.msra.mxu0 %v3735
    %4205 = vmatprep.subr.mxu0 %v3732
    %4206 = vmatpush1.msra.mxu0 %v3731
    %4207 = vmatprep.subr.mxu0 %v3728
    %4208 = vmatpush1.msra.mxu0 %v3727
    %4209 = vmatprep.subr.mxu0 %v3724
    %4210 = vmatpush1.msra.mxu0 %v3723
    %4211 = vmatprep.subr.mxu0 %v3720
    %4212 = vmatpush1.msra.mxu0 %v3719
    %4213 = vmatprep.subr.mxu0 %v3716
    %4214 = vmatpush1.msra.mxu0 %v3715
    %4215 = vmatprep.subr.mxu0 %v3712
    %4216 = vmatpush1.msra.mxu0 %v3711
    %4217 = vmatprep.subr.mxu0 %v3708
    %4218 = vmatpush1.msra.mxu0 %v3707
    %4219 = vmatprep.subr.mxu0 %v3704
    %4220 = vmatpush1.msra.mxu0 %v3703
    %4221 = vmatprep.subr.mxu0 %v3700
    %4222 = vmatpush1.msra.mxu0 %v3699
    %4223 = vmatprep.subr.mxu0 %v3696
    %4224 = vmatpush1.msra.mxu0 %v3695
    %4225 = vmatprep.subr.mxu0 %v3692
    %4226 = vmatpush1.msra.mxu0 %v3691
    %4227 = vmatprep.subr.mxu0 %v3688
    %4228 = vmatpush1.msra.mxu0 %v3687
    %4229 = vmatprep.subr.mxu0 %v3684
    %4230 = vmatpush1.msra.mxu0 %v3683
    %4231 = vmatprep.subr.mxu0 0.0
    %4232 = vmatpush2.msra.mxu0 0.0
    %4233 = vmatprep.subr.mxu0 0.0
    %4234 = vmatpush2.msra.mxu0 0.0
    %4235 = vmatprep.subr.mxu0 0.0
    %4236 = vmatpush2.msra.mxu0 0.0
    %4237 = vmatprep.subr.mxu0 0.0
    %4238 = vmatpush2.msra.mxu0 0.0
    %4239 = vmatprep.subr.mxu0 %v3792
    %4240 = vmatpush2.msra.mxu0 %v3791
    %4241 = vmatprep.subr.mxu0 %v3788
    %4242 = vmatpush2.msra.mxu0 %v3787
    %4243 = vmatprep.subr.mxu0 %v3784
    %4244 = vmatpush2.msra.mxu0 %v3783
    %4245 = vmatprep.subr.mxu0 %v3780
    %4246 = vmatpush2.msra.mxu0 %v3779
    %4247 = vmatprep.subr.mxu0 %v3776
    %4248 = vmatpush2.msra.mxu0 %v3775
    %4249 = vmatprep.subr.mxu0 %v3772
    %4250 = vmatpush2.msra.mxu0 %v3771
    %4251 = vmatprep.subr.mxu0 %v3768
    %4252 = vmatpush2.msra.mxu0 %v3767
    %4253 = vmatprep.subr.mxu0 %v3764
    %4254 = vmatpush2.msra.mxu0 %v3763
    %4255 = vmatprep.subr.mxu0 %v3760
    %4256 = vmatpush2.msra.mxu0 %v3759
    %4257 = vmatprep.subr.mxu0 %v3756
    %4258 = vmatpush2.msra.mxu0 %v3755
    %4259 = vmatprep.subr.mxu0 %v3752
    %4260 = vmatpush2.msra.mxu0 %v3751
    %4261 = vmatprep.subr.mxu0 %v3748
    %4262 = vmatpush2.msra.mxu0 %v3747
    %4263 = vmatprep.mubr.f32.mxu0 %v4188
    %4264 = vmatmul.mubr.f32.gmra.mxu0 %v3661
    %v4265 = vpop.f32.mrf.mxu0
    %v4266 = vadd.f32 %v4076, %v4265
    %v4267 = vpop.f32.mrf.mxu0
    %v4268 = vadd.f32 %v4078, %v4267
    %4269 = vmatprep.mubr.f32.mxu0 %v4191
    %4270 = vmatmul.mubr.f32.gmra.mxu0 %v3667
    %v4271 = vpop.f32.mrf.mxu0
    %v4272 = vadd.f32 %v4082, %v4271
    %v4273 = vpop.f32.mrf.mxu0
    %v4274 = vadd.f32 %v4084, %v4273
    %4275 = vmatprep.mubr.f32.mxu0 %v4194
    %4276 = vmatmul.mubr.f32.gmra.mxu0 %v3673
    %v4277 = vpop.f32.mrf.mxu0
    %v4278 = vadd.f32 %v4088, %v4277
    %v4279 = vpop.f32.mrf.mxu0
    %v4280 = vadd.f32 %v4090, %v4279
    %4281 = vmatprep.mubr.f32.mxu0 %v4197
    %4282 = vmatmul.mubr.f32.gmra.mxu0 %v3679
    %v4283 = vpop.f32.mrf.mxu0
    %v4284 = vadd.f32 %v4094, %v4283
    %v4285 = vpop.f32.mrf.mxu0
    %v4286 = vadd.f32 %v4096, %v4285
    %4287 = vdwg.mxu0
    %4288 = vmatprep.subr.mxu0 %v3746
    %4289 = vmatpush1.msra.mxu0 %v3745
    %4290 = vmatprep.subr.mxu0 %v3742
    %4291 = vmatpush1.msra.mxu0 %v3741
    %4292 = vmatprep.subr.mxu0 %v3738
    %4293 = vmatpush1.msra.mxu0 %v3737
    %4294 = vmatprep.subr.mxu0 %v3734
    %4295 = vmatpush1.msra.mxu0 %v3733
    %4296 = vmatprep.subr.mxu0 %v3730
    %4297 = vmatpush1.msra.mxu0 %v3729
    %4298 = vmatprep.subr.mxu0 %v3726
    %4299 = vmatpush1.msra.mxu0 %v3725
    %4300 = vmatprep.subr.mxu0 %v3722
    %4301 = vmatpush1.msra.mxu0 %v3721
    %4302 = vmatprep.subr.mxu0 %v3718
    %4303 = vmatpush1.msra.mxu0 %v3717
    %4304 = vmatprep.subr.mxu0 %v3714
    %4305 = vmatpush1.msra.mxu0 %v3713
    %4306 = vmatprep.subr.mxu0 %v3710
    %4307 = vmatpush1.msra.mxu0 %v3709
    %4308 = vmatprep.subr.mxu0 %v3706
    %4309 = vmatpush1.msra.mxu0 %v3705
    %4310 = vmatprep.subr.mxu0 %v3702
    %4311 = vmatpush1.msra.mxu0 %v3701
    %4312 = vmatprep.subr.mxu0 %v3698
    %4313 = vmatpush1.msra.mxu0 %v3697
    %4314 = vmatprep.subr.mxu0 %v3694
    %4315 = vmatpush1.msra.mxu0 %v3693
    %4316 = vmatprep.subr.mxu0 %v3690
    %4317 = vmatpush1.msra.mxu0 %v3689
    %4318 = vmatprep.subr.mxu0 %v3686
    %4319 = vmatpush1.msra.mxu0 %v3685
    %4320 = vmatprep.subr.mxu0 0.0
    %4321 = vmatpush2.msra.mxu0 0.0
    %4322 = vmatprep.subr.mxu0 0.0
    %4323 = vmatpush2.msra.mxu0 0.0
    %4324 = vmatprep.subr.mxu0 0.0
    %4325 = vmatpush2.msra.mxu0 0.0
    %4326 = vmatprep.subr.mxu0 0.0
    %4327 = vmatpush2.msra.mxu0 0.0
    %4328 = vmatprep.subr.mxu0 %v3794
    %4329 = vmatpush2.msra.mxu0 %v3793
    %4330 = vmatprep.subr.mxu0 %v3790
    %4331 = vmatpush2.msra.mxu0 %v3789
    %4332 = vmatprep.subr.mxu0 %v3786
    %4333 = vmatpush2.msra.mxu0 %v3785
    %4334 = vmatprep.subr.mxu0 %v3782
    %4335 = vmatpush2.msra.mxu0 %v3781
    %4336 = vmatprep.subr.mxu0 %v3778
    %4337 = vmatpush2.msra.mxu0 %v3777
    %4338 = vmatprep.subr.mxu0 %v3774
    %4339 = vmatpush2.msra.mxu0 %v3773
    %4340 = vmatprep.subr.mxu0 %v3770
    %4341 = vmatpush2.msra.mxu0 %v3769
    %4342 = vmatprep.subr.mxu0 %v3766
    %4343 = vmatpush2.msra.mxu0 %v3765
    %4344 = vmatprep.subr.mxu0 %v3762
    %4345 = vmatpush2.msra.mxu0 %v3761
    %4346 = vmatprep.subr.mxu0 %v3758
    %4347 = vmatpush2.msra.mxu0 %v3757
    %4348 = vmatprep.subr.mxu0 %v3754
    %4349 = vmatpush2.msra.mxu0 %v3753
    %4350 = vmatprep.subr.mxu0 %v3750
    %4351 = vmatpush2.msra.mxu0 %v3749
    %4352 = vmatprep.mubr.f32.mxu0 %v4188
    %4353 = vmatmul.mubr.f32.gmra.mxu0 %v3661
    %v4354 = vpop.f32.mrf.mxu0
    %v4355 = vadd.f32 %v4165, %v4354
    %v4356 = vpop.f32.mrf.mxu0
    %v4357 = vadd.f32 %v4167, %v4356
    %4358 = vmatprep.mubr.f32.mxu0 %v4191
    %4359 = vmatmul.mubr.f32.gmra.mxu0 %v3667
    %v4360 = vpop.f32.mrf.mxu0
    %v4361 = vadd.f32 %v4171, %v4360
    %v4362 = vpop.f32.mrf.mxu0
    %v4363 = vadd.f32 %v4173, %v4362
    %4364 = vmatprep.mubr.f32.mxu0 %v4194
    %4365 = vmatmul.mubr.f32.gmra.mxu0 %v3673
    %v4366 = vpop.f32.mrf.mxu0
    %v4367 = vadd.f32 %v4177, %v4366
    %v4368 = vpop.f32.mrf.mxu0
    %v4369 = vadd.f32 %v4179, %v4368
    %4370 = vmatprep.mubr.f32.mxu0 %v4197
    %4371 = vmatmul.mubr.f32.gmra.mxu0 %v3679
    %v4372 = vpop.f32.mrf.mxu0
    %v4373 = vadd.f32 %v4183, %v4372
    %v4374 = vpop.f32.mrf.mxu0
    %v4375 = vadd.f32 %v4185, %v4374
    %4376 = vdwg.mxu0
    %4377 = vmatprep.subr.mxu0 0.0
    %4378 = vmatpush1.msra.mxu0 0.0
    %4379 = vmatprep.subr.mxu0 0.0
    %4380 = vmatpush1.msra.mxu0 0.0
    %4381 = vmatprep.subr.mxu0 0.0
    %4382 = vmatpush1.msra.mxu0 0.0
    %4383 = vmatprep.subr.mxu0 0.0
    %4384 = vmatpush1.msra.mxu0 0.0
    %4385 = vmatprep.subr.mxu0 0.0
    %4386 = vmatpush1.msra.mxu0 0.0
    %4387 = vmatprep.subr.mxu0 0.0
    %4388 = vmatpush1.msra.mxu0 0.0
    %4389 = vmatprep.subr.mxu0 0.0
    %4390 = vmatpush1.msra.mxu0 0.0
    %4391 = vmatprep.subr.mxu0 0.0
    %4392 = vmatpush1.msra.mxu0 0.0
    %4393 = vmatprep.subr.mxu0 0.0
    %4394 = vmatpush1.msra.mxu0 0.0
    %4395 = vmatprep.subr.mxu0 0.0
    %4396 = vmatpush1.msra.mxu0 0.0
    %4397 = vmatprep.subr.mxu0 0.0
    %4398 = vmatpush1.msra.mxu0 0.0
    %4399 = vmatprep.subr.mxu0 0.0
    %4400 = vmatpush1.msra.mxu0 0.0
    %4401 = vmatprep.subr.mxu0 %v3592
    %4402 = vmatpush1.msra.mxu0 %v3589
    %4403 = vmatprep.subr.mxu0 %v3585
    %4404 = vmatpush1.msra.mxu0 %v3584
    %4405 = vmatprep.subr.mxu0 %v3583
    %4406 = vmatpush1.msra.mxu0 %v3582
    %4407 = vmatprep.subr.mxu0 %v3581
    %4408 = vmatpush1.msra.mxu0 %v3580
    %4409 = vmatprep.subr.mxu0 0.0
    %4410 = vmatpush2.msra.mxu0 0.0
    %4411 = vmatprep.subr.mxu0 0.0
    %4412 = vmatpush2.msra.mxu0 0.0
    %4413 = vmatprep.subr.mxu0 0.0
    %4414 = vmatpush2.msra.mxu0 0.0
    %4415 = vmatprep.subr.mxu0 0.0
    %4416 = vmatpush2.msra.mxu0 0.0
    %4417 = vmatprep.subr.mxu0 0.0
    %4418 = vmatpush2.msra.mxu0 0.0
    %4419 = vmatprep.subr.mxu0 0.0
    %4420 = vmatpush2.msra.mxu0 0.0
    %4421 = vmatprep.subr.mxu0 0.0
    %4422 = vmatpush2.msra.mxu0 0.0
    %4423 = vmatprep.subr.mxu0 0.0
    %4424 = vmatpush2.msra.mxu0 0.0
    %4425 = vmatprep.subr.mxu0 0.0
    %4426 = vmatpush2.msra.mxu0 0.0
    %4427 = vmatprep.subr.mxu0 0.0
    %4428 = vmatpush2.msra.mxu0 0.0
    %4429 = vmatprep.subr.mxu0 0.0
    %4430 = vmatpush2.msra.mxu0 0.0
    %4431 = vmatprep.subr.mxu0 0.0
    %4432 = vmatpush2.msra.mxu0 0.0
    %4433 = vmatprep.subr.mxu0 0.0
    %4434 = vmatpush2.msra.mxu0 0.0
    %4435 = vmatprep.subr.mxu0 0.0
    %4436 = vmatpush2.msra.mxu0 0.0
    %4437 = vmatprep.subr.mxu0 0.0
    %4438 = vmatpush2.msra.mxu0 0.0
    %4439 = vmatprep.subr.mxu0 0.0
    %4440 = vmatpush2.msra.mxu0 0.0
    %4441 = vmatprep.mubr.f32.mxu0 0.0
    %4442 = vmatmul.mubr.f32.gmra.mxu0 %v2903
    %v4443 = vpop.f32.mrf.mxu0
    %v4444 = vadd.f32 0.0, %v4443
    %v4445 = vpop.f32.mrf.mxu0
    %v4446 = vadd.f32 0.0, %v4445
    %4447 = vmatprep.mubr.f32.mxu0 0.0
    %4448 = vmatmul.mubr.f32.gmra.mxu0 %v2906
    %v4449 = vpop.f32.mrf.mxu0
    %v4450 = vadd.f32 0.0, %v4449
    %v4451 = vpop.f32.mrf.mxu0
    %v4452 = vadd.f32 0.0, %v4451
    %4453 = vmatprep.mubr.f32.mxu0 0.0
    %4454 = vmatmul.mubr.f32.gmra.mxu0 %v2909
    %v4455 = vpop.f32.mrf.mxu0
    %v4456 = vadd.f32 0.0, %v4455
    %v4457 = vpop.f32.mrf.mxu0
    %v4458 = vadd.f32 0.0, %v4457
    %4459 = vmatprep.mubr.f32.mxu0 0.0
    %4460 = vmatmul.mubr.f32.gmra.mxu0 %v2912
    %v4461 = vpop.f32.mrf.mxu0
    %v4462 = vadd.f32 0.0, %v4461
    %v4463 = vpop.f32.mrf.mxu0
    %v4464 = vadd.f32 0.0, %v4463
    %4465 = vdwg.mxu0
    %s4466 = scalar_lea.vmem [#allocation24], 1792
    %v4467 = vld [vmem:[%s4466] sm:$0xff]
    %v4468 = vld [vmem:[%s4466 + $0x8] sm:$0xff]
    %v4469 = vld [vmem:[%s4466 + $0x10] sm:$0xff]
    %v4470 = vld [vmem:[%s4466 + $0x18] sm:$0xff]
    %v4471 = vld [vmem:[%s4466 + $0x20] sm:$0xff]
    %v4472 = vld [vmem:[%s4466 + $0x28] sm:$0xff]
    %v4473 = vld [vmem:[%s4466 + $0x30] sm:$0xff]
    %v4474 = vld [vmem:[%s4466 + $0x38] sm:$0xff]
    %v4475 = vld [vmem:[%s4466 + $0x40] sm:$0xff]
    %v4476 = vld [vmem:[%s4466 + $0x48] sm:$0xff]
    %v4477 = vld [vmem:[%s4466 + $0x50] sm:$0xff]
    %v4478 = vld [vmem:[%s4466 + $0x58] sm:$0xff]
    %v4479 = vld [vmem:[%s4466 + $0x60] sm:$0xff]
    %v4480 = vld [vmem:[%s4466 + $0x68] sm:$0xff]
    %v4481 = vld [vmem:[%s4466 + $0x70] sm:$0xff]
    %v4482 = vld [vmem:[%s4466 + $0x78] sm:$0xff]
    %v4483 = vld [vmem:[%s4466 + $0x80] sm:$0xff]
    %v4484 = vld [vmem:[%s4466 + $0x88] sm:$0xff]
    %v4485 = vld [vmem:[%s4466 + $0x90] sm:$0xff]
    %v4486 = vld [vmem:[%s4466 + $0x98] sm:$0xff]
    %v4487 = vld [vmem:[%s4466 + $0xa0] sm:$0xff]
    %v4488 = vld [vmem:[%s4466 + $0xa8] sm:$0xff]
    %v4489 = vld [vmem:[%s4466 + $0xb0] sm:$0xff]
    %v4490 = vld [vmem:[%s4466 + $0xb8] sm:$0xff]
    %v4491 = vld [vmem:[%s4466 + $0xc0] sm:$0xff]
    %v4492 = vld [vmem:[%s4466 + $0xc8] sm:$0xff]
    %v4493 = vld [vmem:[%s4466 + $0xd0] sm:$0xff]
    %v4494 = vld [vmem:[%s4466 + $0xd8] sm:$0xff]
    %v4495 = vld [vmem:[%s4466 + $0xe0] sm:$0xff]
    %v4496 = vld [vmem:[%s4466 + $0xe8] sm:$0xff]
    %v4497 = vld [vmem:[%s4466 + $0xf0] sm:$0xff]
    %v4498 = vld [vmem:[%s4466 + $0xf8] sm:$0xff]
    %v4499 = vld [vmem:[%s4466 + $0x100] sm:$0xff]
    %v4500 = vld [vmem:[%s4466 + $0x108] sm:$0xff]
    %v4501 = vld [vmem:[%s4466 + $0x110] sm:$0xff]
    %v4502 = vld [vmem:[%s4466 + $0x118] sm:$0xff]
    %v4503 = vld [vmem:[%s4466 + $0x120] sm:$0xff]
    %v4504 = vld [vmem:[%s4466 + $0x128] sm:$0xff]
    %v4505 = vld [vmem:[%s4466 + $0x130] sm:$0xff]
    %v4506 = vld [vmem:[%s4466 + $0x138] sm:$0xff]
    %v4507 = vld [vmem:[%s4466 + $0x140] sm:$0xff]
    %v4508 = vld [vmem:[%s4466 + $0x148] sm:$0xff]
    %v4509 = vld [vmem:[%s4466 + $0x150] sm:$0xff]
    %v4510 = vld [vmem:[%s4466 + $0x158] sm:$0xff]
    %v4511 = vld [vmem:[%s4466 + $0x160] sm:$0xff]
    %v4512 = vld [vmem:[%s4466 + $0x168] sm:$0xff]
    %v4513 = vld [vmem:[%s4466 + $0x170] sm:$0xff]
    %v4514 = vld [vmem:[%s4466 + $0x178] sm:$0xff]
    %v4515 = vld [vmem:[%s4466 + $0x180] sm:$0xff]
    %v4516 = vld [vmem:[%s4466 + $0x188] sm:$0xff]
    %v4517 = vld [vmem:[%s4466 + $0x190] sm:$0xff]
    %v4518 = vld [vmem:[%s4466 + $0x198] sm:$0xff]
    %v4519 = vld [vmem:[%s4466 + $0x1a0] sm:$0xff]
    %v4520 = vld [vmem:[%s4466 + $0x1a8] sm:$0xff]
    %v4521 = vld [vmem:[%s4466 + $0x1b0] sm:$0xff]
    %v4522 = vld [vmem:[%s4466 + $0x1b8] sm:$0xff]
    %v4523 = vld [vmem:[%s4466 + $0x1c0] sm:$0xff]
    %v4524 = vld [vmem:[%s4466 + $0x1c8] sm:$0xff]
    %v4525 = vld [vmem:[%s4466 + $0x1d0] sm:$0xff]
    %v4526 = vld [vmem:[%s4466 + $0x1d8] sm:$0xff]
    %v4527 = vld [vmem:[%s4466 + $0x1e0] sm:$0xff]
    %v4528 = vld [vmem:[%s4466 + $0x1e8] sm:$0xff]
    %v4529 = vld [vmem:[%s4466 + $0x1f0] sm:$0xff]
    %v4530 = vld [vmem:[%s4466 + $0x1f8] sm:$0xff]
    %v4531 = vld [vmem:[%s4466 + $0x200] sm:$0xff]
    %v4532 = vld [vmem:[%s4466 + $0x208] sm:$0xff]
    %v4533 = vld [vmem:[%s4466 + $0x210] sm:$0xff]
    %v4534 = vld [vmem:[%s4466 + $0x218] sm:$0xff]
    %v4535 = vld [vmem:[%s4466 + $0x220] sm:$0xff]
    %v4536 = vld [vmem:[%s4466 + $0x228] sm:$0xff]
    %v4537 = vld [vmem:[%s4466 + $0x230] sm:$0xff]
    %v4538 = vld [vmem:[%s4466 + $0x238] sm:$0xff]
    %v4539 = vld [vmem:[%s4466 + $0x240] sm:$0xff]
    %v4540 = vld [vmem:[%s4466 + $0x248] sm:$0xff]
    %v4541 = vld [vmem:[%s4466 + $0x250] sm:$0xff]
    %v4542 = vld [vmem:[%s4466 + $0x258] sm:$0xff]
    %v4543 = vld [vmem:[%s4466 + $0x260] sm:$0xff]
    %v4544 = vld [vmem:[%s4466 + $0x268] sm:$0xff]
    %v4545 = vld [vmem:[%s4466 + $0x270] sm:$0xff]
    %v4546 = vld [vmem:[%s4466 + $0x278] sm:$0xff]
    %v4547 = vld [vmem:[%s4466 + $0x280] sm:$0xff]
    %v4548 = vld [vmem:[%s4466 + $0x288] sm:$0xff]
    %v4549 = vld [vmem:[%s4466 + $0x290] sm:$0xff]
    %v4550 = vld [vmem:[%s4466 + $0x298] sm:$0xff]
    %v4551 = vld [vmem:[%s4466 + $0x2a0] sm:$0xff]
    %v4552 = vld [vmem:[%s4466 + $0x2a8] sm:$0xff]
    %v4553 = vld [vmem:[%s4466 + $0x2b0] sm:$0xff]
    %v4554 = vld [vmem:[%s4466 + $0x2b8] sm:$0xff]
    %v4555 = vld [vmem:[%s4466 + $0x2c0] sm:$0xff]
    %v4556 = vld [vmem:[%s4466 + $0x2c8] sm:$0xff]
    %v4557 = vld [vmem:[%s4466 + $0x2d0] sm:$0xff]
    %v4558 = vld [vmem:[%s4466 + $0x2d8] sm:$0xff]
    %v4559 = vld [vmem:[%s4466 + $0x2e0] sm:$0xff]
    %v4560 = vld [vmem:[%s4466 + $0x2e8] sm:$0xff]
    %v4561 = vld [vmem:[%s4466 + $0x2f0] sm:$0xff]
    %v4562 = vld [vmem:[%s4466 + $0x2f8] sm:$0xff]
    %v4563 = vld [vmem:[%s4466 + $0x300] sm:$0xff]
    %v4564 = vld [vmem:[%s4466 + $0x308] sm:$0xff]
    %v4565 = vld [vmem:[%s4466 + $0x310] sm:$0xff]
    %v4566 = vld [vmem:[%s4466 + $0x318] sm:$0xff]
    %v4567 = vld [vmem:[%s4466 + $0x320] sm:$0xff]
    %v4568 = vld [vmem:[%s4466 + $0x328] sm:$0xff]
    %v4569 = vld [vmem:[%s4466 + $0x330] sm:$0xff]
    %v4570 = vld [vmem:[%s4466 + $0x338] sm:$0xff]
    %v4571 = vld [vmem:[%s4466 + $0x340] sm:$0xff]
    %v4572 = vld [vmem:[%s4466 + $0x348] sm:$0xff]
    %v4573 = vld [vmem:[%s4466 + $0x350] sm:$0xff]
    %v4574 = vld [vmem:[%s4466 + $0x358] sm:$0xff]
    %v4575 = vld [vmem:[%s4466 + $0x360] sm:$0xff]
    %v4576 = vld [vmem:[%s4466 + $0x368] sm:$0xff]
    %v4577 = vld [vmem:[%s4466 + $0x370] sm:$0xff]
    %v4578 = vld [vmem:[%s4466 + $0x378] sm:$0xff]
    %v4580 = vsel %vm1151, %v4446, 0
    %v4583 = vsel %vm1151, %v4452, 0
    %v4586 = vsel %vm1151, %v4458, 0
    %v4589 = vsel %vm1151, %v4464, 0
    %4591 = vmatprep.subr.mxu0 %v4528
    %4592 = vmatpush1.msra.mxu0 %v4527
    %4593 = vmatprep.subr.mxu0 %v4524
    %4594 = vmatpush1.msra.mxu0 %v4523
    %4595 = vmatprep.subr.mxu0 %v4520
    %4596 = vmatpush1.msra.mxu0 %v4519
    %4597 = vmatprep.subr.mxu0 %v4516
    %4598 = vmatpush1.msra.mxu0 %v4515
    %4599 = vmatprep.subr.mxu0 %v4512
    %4600 = vmatpush1.msra.mxu0 %v4511
    %4601 = vmatprep.subr.mxu0 %v4508
    %4602 = vmatpush1.msra.mxu0 %v4507
    %4603 = vmatprep.subr.mxu0 %v4504
    %4604 = vmatpush1.msra.mxu0 %v4503
    %4605 = vmatprep.subr.mxu0 %v4500
    %4606 = vmatpush1.msra.mxu0 %v4499
    %4607 = vmatprep.subr.mxu0 %v4496
    %4608 = vmatpush1.msra.mxu0 %v4495
    %4609 = vmatprep.subr.mxu0 %v4492
    %4610 = vmatpush1.msra.mxu0 %v4491
    %4611 = vmatprep.subr.mxu0 %v4488
    %4612 = vmatpush1.msra.mxu0 %v4487
    %4613 = vmatprep.subr.mxu0 %v4484
    %4614 = vmatpush1.msra.mxu0 %v4483
    %4615 = vmatprep.subr.mxu0 %v4480
    %4616 = vmatpush1.msra.mxu0 %v4479
    %4617 = vmatprep.subr.mxu0 %v4476
    %4618 = vmatpush1.msra.mxu0 %v4475
    %4619 = vmatprep.subr.mxu0 %v4472
    %4620 = vmatpush1.msra.mxu0 %v4471
    %4621 = vmatprep.subr.mxu0 %v4468
    %4622 = vmatpush1.msra.mxu0 %v4467
    %4623 = vmatprep.subr.mxu0 0.0
    %4624 = vmatpush2.msra.mxu0 0.0
    %4625 = vmatprep.subr.mxu0 0.0
    %4626 = vmatpush2.msra.mxu0 0.0
    %4627 = vmatprep.subr.mxu0 0.0
    %4628 = vmatpush2.msra.mxu0 0.0
    %4629 = vmatprep.subr.mxu0 0.0
    %4630 = vmatpush2.msra.mxu0 0.0
    %4631 = vmatprep.subr.mxu0 %v4576
    %4632 = vmatpush2.msra.mxu0 %v4575
    %4633 = vmatprep.subr.mxu0 %v4572
    %4634 = vmatpush2.msra.mxu0 %v4571
    %4635 = vmatprep.subr.mxu0 %v4568
    %4636 = vmatpush2.msra.mxu0 %v4567
    %4637 = vmatprep.subr.mxu0 %v4564
    %4638 = vmatpush2.msra.mxu0 %v4563
    %4639 = vmatprep.subr.mxu0 %v4560
    %4640 = vmatpush2.msra.mxu0 %v4559
    %4641 = vmatprep.subr.mxu0 %v4556
    %4642 = vmatpush2.msra.mxu0 %v4555
    %4643 = vmatprep.subr.mxu0 %v4552
    %4644 = vmatpush2.msra.mxu0 %v4551
    %4645 = vmatprep.subr.mxu0 %v4548
    %4646 = vmatpush2.msra.mxu0 %v4547
    %4647 = vmatprep.subr.mxu0 %v4544
    %4648 = vmatpush2.msra.mxu0 %v4543
    %4649 = vmatprep.subr.mxu0 %v4540
    %4650 = vmatpush2.msra.mxu0 %v4539
    %4651 = vmatprep.subr.mxu0 %v4536
    %4652 = vmatpush2.msra.mxu0 %v4535
    %4653 = vmatprep.subr.mxu0 %v4532
    %4654 = vmatpush2.msra.mxu0 %v4531
    %4655 = vmatprep.mubr.f32.mxu0 %v4580
    %4656 = vmatmul.mubr.f32.gmra.mxu0 %v4444
    %v4657 = vpop.f32.mrf.mxu0
    %v4658 = vadd.f32 0.0, %v4657
    %v4659 = vpop.f32.mrf.mxu0
    %v4660 = vadd.f32 0.0, %v4659
    %4661 = vmatprep.mubr.f32.mxu0 %v4583
    %4662 = vmatmul.mubr.f32.gmra.mxu0 %v4450
    %v4663 = vpop.f32.mrf.mxu0
    %v4664 = vadd.f32 0.0, %v4663
    %v4665 = vpop.f32.mrf.mxu0
    %v4666 = vadd.f32 0.0, %v4665
    %4667 = vmatprep.mubr.f32.mxu0 %v4586
    %4668 = vmatmul.mubr.f32.gmra.mxu0 %v4456
    %v4669 = vpop.f32.mrf.mxu0
    %v4670 = vadd.f32 0.0, %v4669
    %v4671 = vpop.f32.mrf.mxu0
    %v4672 = vadd.f32 0.0, %v4671
    %4673 = vmatprep.mubr.f32.mxu0 %v4589
    %4674 = vmatmul.mubr.f32.gmra.mxu0 %v4462
    %v4675 = vpop.f32.mrf.mxu0
    %v4676 = vadd.f32 0.0, %v4675
    %v4677 = vpop.f32.mrf.mxu0
    %v4678 = vadd.f32 0.0, %v4677
    %4679 = vdwg.mxu0
    %4680 = vmatprep.subr.mxu0 %v4530
    %4681 = vmatpush1.msra.mxu0 %v4529
    %4682 = vmatprep.subr.mxu0 %v4526
    %4683 = vmatpush1.msra.mxu0 %v4525
    %4684 = vmatprep.subr.mxu0 %v4522
    %4685 = vmatpush1.msra.mxu0 %v4521
    %4686 = vmatprep.subr.mxu0 %v4518
    %4687 = vmatpush1.msra.mxu0 %v4517
    %4688 = vmatprep.subr.mxu0 %v4514
    %4689 = vmatpush1.msra.mxu0 %v4513
    %4690 = vmatprep.subr.mxu0 %v4510
    %4691 = vmatpush1.msra.mxu0 %v4509
    %4692 = vmatprep.subr.mxu0 %v4506
    %4693 = vmatpush1.msra.mxu0 %v4505
    %4694 = vmatprep.subr.mxu0 %v4502
    %4695 = vmatpush1.msra.mxu0 %v4501
    %4696 = vmatprep.subr.mxu0 %v4498
    %4697 = vmatpush1.msra.mxu0 %v4497
    %4698 = vmatprep.subr.mxu0 %v4494
    %4699 = vmatpush1.msra.mxu0 %v4493
    %4700 = vmatprep.subr.mxu0 %v4490
    %4701 = vmatpush1.msra.mxu0 %v4489
    %4702 = vmatprep.subr.mxu0 %v4486
    %4703 = vmatpush1.msra.mxu0 %v4485
    %4704 = vmatprep.subr.mxu0 %v4482
    %4705 = vmatpush1.msra.mxu0 %v4481
    %4706 = vmatprep.subr.mxu0 %v4478
    %4707 = vmatpush1.msra.mxu0 %v4477
    %4708 = vmatprep.subr.mxu0 %v4474
    %4709 = vmatpush1.msra.mxu0 %v4473
    %4710 = vmatprep.subr.mxu0 %v4470
    %4711 = vmatpush1.msra.mxu0 %v4469
    %4712 = vmatprep.subr.mxu0 0.0
    %4713 = vmatpush2.msra.mxu0 0.0
    %4714 = vmatprep.subr.mxu0 0.0
    %4715 = vmatpush2.msra.mxu0 0.0
    %4716 = vmatprep.subr.mxu0 0.0
    %4717 = vmatpush2.msra.mxu0 0.0
    %4718 = vmatprep.subr.mxu0 0.0
    %4719 = vmatpush2.msra.mxu0 0.0
    %4720 = vmatprep.subr.mxu0 %v4578
    %4721 = vmatpush2.msra.mxu0 %v4577
    %4722 = vmatprep.subr.mxu0 %v4574
    %4723 = vmatpush2.msra.mxu0 %v4573
    %4724 = vmatprep.subr.mxu0 %v4570
    %4725 = vmatpush2.msra.mxu0 %v4569
    %4726 = vmatprep.subr.mxu0 %v4566
    %4727 = vmatpush2.msra.mxu0 %v4565
    %4728 = vmatprep.subr.mxu0 %v4562
    %4729 = vmatpush2.msra.mxu0 %v4561
    %4730 = vmatprep.subr.mxu0 %v4558
    %4731 = vmatpush2.msra.mxu0 %v4557
    %4732 = vmatprep.subr.mxu0 %v4554
    %4733 = vmatpush2.msra.mxu0 %v4553
    %4734 = vmatprep.subr.mxu0 %v4550
    %4735 = vmatpush2.msra.mxu0 %v4549
    %4736 = vmatprep.subr.mxu0 %v4546
    %4737 = vmatpush2.msra.mxu0 %v4545
    %4738 = vmatprep.subr.mxu0 %v4542
    %4739 = vmatpush2.msra.mxu0 %v4541
    %4740 = vmatprep.subr.mxu0 %v4538
    %4741 = vmatpush2.msra.mxu0 %v4537
    %4742 = vmatprep.subr.mxu0 %v4534
    %4743 = vmatpush2.msra.mxu0 %v4533
    %4744 = vmatprep.mubr.f32.mxu0 %v4580
    %4745 = vmatmul.mubr.f32.gmra.mxu0 %v4444
    %v4746 = vpop.f32.mrf.mxu0
    %v4747 = vadd.f32 0.0, %v4746
    %v4748 = vpop.f32.mrf.mxu0
    %v4749 = vadd.f32 0.0, %v4748
    %4750 = vmatprep.mubr.f32.mxu0 %v4583
    %4751 = vmatmul.mubr.f32.gmra.mxu0 %v4450
    %v4752 = vpop.f32.mrf.mxu0
    %v4753 = vadd.f32 0.0, %v4752
    %v4754 = vpop.f32.mrf.mxu0
    %v4755 = vadd.f32 0.0, %v4754
    %4756 = vmatprep.mubr.f32.mxu0 %v4586
    %4757 = vmatmul.mubr.f32.gmra.mxu0 %v4456
    %v4758 = vpop.f32.mrf.mxu0
    %v4759 = vadd.f32 0.0, %v4758
    %v4760 = vpop.f32.mrf.mxu0
    %v4761 = vadd.f32 0.0, %v4760
    %4762 = vmatprep.mubr.f32.mxu0 %v4589
    %4763 = vmatmul.mubr.f32.gmra.mxu0 %v4462
    %v4764 = vpop.f32.mrf.mxu0
    %v4765 = vadd.f32 0.0, %v4764
    %v4766 = vpop.f32.mrf.mxu0
    %v4767 = vadd.f32 0.0, %v4766
    %4768 = vdwg.mxu0
    %v4769 = vadd.f32 %v4266, %v4658
    %v4770 = vadd.f32 %v4268, %v4660
    %v4771 = vadd.f32 %v4355, %v4747
    %v4772 = vadd.f32 %v4357, %v4749
    %v4773 = vadd.f32 %v4272, %v4664
    %v4774 = vadd.f32 %v4274, %v4666
    %v4775 = vadd.f32 %v4361, %v4753
    %v4776 = vadd.f32 %v4363, %v4755
    %v4777 = vadd.f32 %v4278, %v4670
    %v4778 = vadd.f32 %v4280, %v4672
    %v4779 = vadd.f32 %v4367, %v4759
    %v4780 = vadd.f32 %v4369, %v4761
    %v4781 = vadd.f32 %v4284, %v4676
    %v4782 = vadd.f32 %v4286, %v4678
    %v4783 = vadd.f32 %v4373, %v4765
    %v4784 = vadd.f32 %v4375, %v4767
    %v4785 = vadd.f32 %v4769, %v4773
    %v4786 = vadd.f32 %v4785, %v4777
    %v4787 = vsel %vm605, %v4781, 0.0
    %v4788 = vadd.f32 %v4786, %v4787
    %v4789 = vrot.slane %v4788, 4
    %v4790 = vadd.f32 %v4788, %v4789
    %v4791 = vrot.slane %v4790, 2
    %v4792 = vadd.f32 %v4790, %v4791
    %v4793 = vrot.slane %v4792, 1
    %v4794 = vadd.f32 %v4792, %v4793
    %v4795 = vadd.f32 %v4770, %v4774
    %v4796 = vadd.f32 %v4795, %v4778
    %v4797 = vsel %vm605, %v4782, 0.0
    %v4798 = vadd.f32 %v4796, %v4797
    %v4799 = vrot.slane %v4798, 4
    %v4800 = vadd.f32 %v4798, %v4799
    %v4801 = vrot.slane %v4800, 2
    %v4802 = vadd.f32 %v4800, %v4801
    %v4803 = vrot.slane %v4802, 1
    %v4804 = vadd.f32 %v4802, %v4803
    %v4805 = vadd.f32 %v4771, %v4775
    %v4806 = vadd.f32 %v4805, %v4779
    %v4807 = vsel %vm605, %v4783, 0.0
    %v4808 = vadd.f32 %v4806, %v4807
    %v4809 = vrot.slane %v4808, 4
    %v4810 = vadd.f32 %v4808, %v4809
    %v4811 = vrot.slane %v4810, 2
    %v4812 = vadd.f32 %v4810, %v4811
    %v4813 = vrot.slane %v4812, 1
    %v4814 = vadd.f32 %v4812, %v4813
    %vm4815 = vcmask 523264
    %v4816 = vsel %vm4815, %v4772, 0.0
    %v4817 = vsel %vm4815, %v4776, 0.0
    %v4818 = vadd.f32 %v4816, %v4817
    %v4819 = vsel %vm4815, %v4780, 0.0
    %v4820 = vadd.f32 %v4818, %v4819
    %vm4821 = vcmask 519168
    %v4822 = vsel %vm4821, %v4784, 0.0
    %v4823 = vadd.f32 %v4820, %v4822
    %v4824 = vrot.slane %v4823, 4
    %v4825 = vadd.f32 %v4823, %v4824
    %v4826 = vrot.slane %v4825, 2
    %v4827 = vadd.f32 %v4825, %v4826
    %v4828 = vrot.slane %v4827, 1
    %v4829 = vadd.f32 %v4827, %v4828
    %v4830 = vld [vmem:[%s18] sm:$0xff]
    %v4831 = vld [vmem:[%s18 + $0x8] sm:$0xff]
    %v4832 = vld [vmem:[%s18 + $0x10] sm:$0xff]
    %v4833 = vld [vmem:[%s18 + $0x18] sm:$0xff]
    %v4834 = vld [vmem:[%s18 + $0x20] sm:$0xff]
    %v4835 = vld [vmem:[%s18 + $0x28] sm:$0xff]
    %v4836 = vld [vmem:[%s18 + $0x30] sm:$0xff]
    %v4837 = vld [vmem:[%s18 + $0x38] sm:$0xff]
    %v4838 = vld [vmem:[%s18 + $0x40] sm:$0xff]
    %v4839 = vld [vmem:[%s18 + $0x48] sm:$0xff]
    %v4840 = vld [vmem:[%s18 + $0x50] sm:$0xff]
    %v4841 = vld [vmem:[%s18 + $0x58] sm:$0xff]
    %v4842 = vld [vmem:[%s18 + $0x60] sm:$0xff]
    %v4843 = vld [vmem:[%s18 + $0x68] sm:$0xff]
    %v4844 = vld [vmem:[%s18 + $0x70] sm:$0xff]
    %v4845 = vld [vmem:[%s18 + $0x78] sm:$0xff]
    %v4846 = vld [vmem:[%s18 + $0x80] sm:$0xff]
    %v4847 = vld [vmem:[%s18 + $0x88] sm:$0xff]
    %v4848 = vld [vmem:[%s18 + $0x90] sm:$0xff]
    %v4849 = vld [vmem:[%s18 + $0x98] sm:$0xff]
    %v4850 = vld [vmem:[%s18 + $0xa0] sm:$0xff]
    %v4851 = vld [vmem:[%s18 + $0xa8] sm:$0xff]
    %v4852 = vld [vmem:[%s18 + $0xb0] sm:$0xff]
    %v4853 = vld [vmem:[%s18 + $0xb8] sm:$0xff]
    %v4854 = vld [vmem:[%s18 + $0xc0] sm:$0xff]
    %v4855 = vld [vmem:[%s18 + $0xc8] sm:$0xff]
    %v4856 = vld [vmem:[%s18 + $0xd0] sm:$0xff]
    %v4857 = vld [vmem:[%s18 + $0xd8] sm:$0xff]
    %v4858 = vld [vmem:[%s18 + $0xe0] sm:$0xff]
    %v4859 = vld [vmem:[%s18 + $0xe8] sm:$0xff]
    %v4860 = vld [vmem:[%s18 + $0xf0] sm:$0xff]
    %v4861 = vld [vmem:[%s18 + $0xf8] sm:$0xff]
    %v4862 = vld [vmem:[%s18 + $0x100] sm:$0xff]
    %v4863 = vld [vmem:[%s18 + $0x108] sm:$0xff]
    %v4864 = vld [vmem:[%s18 + $0x110] sm:$0xff]
    %v4865 = vld [vmem:[%s18 + $0x118] sm:$0xff]
    %v4866 = vld [vmem:[%s18 + $0x120] sm:$0xff]
    %v4867 = vld [vmem:[%s18 + $0x128] sm:$0xff]
    %v4868 = vld [vmem:[%s18 + $0x130] sm:$0xff]
    %v4869 = vld [vmem:[%s18 + $0x138] sm:$0xff]
    %v4870 = vld [vmem:[%s18 + $0x140] sm:$0xff]
    %v4871 = vld [vmem:[%s18 + $0x148] sm:$0xff]
    %v4872 = vld [vmem:[%s18 + $0x150] sm:$0xff]
    %v4873 = vld [vmem:[%s18 + $0x158] sm:$0xff]
    %v4874 = vld [vmem:[%s18 + $0x160] sm:$0xff]
    %v4875 = vld [vmem:[%s18 + $0x168] sm:$0xff]
    %v4876 = vld [vmem:[%s18 + $0x170] sm:$0xff]
    %v4877 = vld [vmem:[%s18 + $0x178] sm:$0xff]
    %v4878 = vld [vmem:[%s18 + $0x180] sm:$0xff]
    %v4879 = vld [vmem:[%s18 + $0x188] sm:$0xff]
    %v4880 = vld [vmem:[%s18 + $0x190] sm:$0xff]
    %v4881 = vld [vmem:[%s18 + $0x198] sm:$0xff]
    %v4882 = vld [vmem:[%s18 + $0x1a0] sm:$0xff]
    %v4883 = vld [vmem:[%s18 + $0x1a8] sm:$0xff]
    %v4884 = vld [vmem:[%s18 + $0x1b0] sm:$0xff]
    %v4885 = vld [vmem:[%s18 + $0x1b8] sm:$0xff]
    %v4887 = vsel %vm4815, %v4829, 0
    %4889 = vmatprep.subr.mxu0 0.0
    %4890 = vmatpush1.msra.mxu0 %v4845
    %4891 = vmatprep.subr.mxu0 0.0
    %4892 = vmatpush1.msra.mxu0 %v4844
    %4893 = vmatprep.subr.mxu0 0.0
    %4894 = vmatpush1.msra.mxu0 %v4843
    %4895 = vmatprep.subr.mxu0 0.0
    %4896 = vmatpush1.msra.mxu0 %v4842
    %4897 = vmatprep.subr.mxu0 0.0
    %4898 = vmatpush1.msra.mxu0 %v4841
    %4899 = vmatprep.subr.mxu0 0.0
    %4900 = vmatpush1.msra.mxu0 %v4840
    %4901 = vmatprep.subr.mxu0 0.0
    %4902 = vmatpush1.msra.mxu0 %v4839
    %4903 = vmatprep.subr.mxu0 0.0
    %4904 = vmatpush1.msra.mxu0 %v4838
    %4905 = vmatprep.subr.mxu0 0.0
    %4906 = vmatpush1.msra.mxu0 %v4837
    %4907 = vmatprep.subr.mxu0 0.0
    %4908 = vmatpush1.msra.mxu0 %v4836
    %4909 = vmatprep.subr.mxu0 0.0
    %4910 = vmatpush1.msra.mxu0 %v4835
    %4911 = vmatprep.subr.mxu0 0.0
    %4912 = vmatpush1.msra.mxu0 %v4834
    %4913 = vmatprep.subr.mxu0 0.0
    %4914 = vmatpush1.msra.mxu0 %v4833
    %4915 = vmatprep.subr.mxu0 0.0
    %4916 = vmatpush1.msra.mxu0 %v4832
    %4917 = vmatprep.subr.mxu0 0.0
    %4918 = vmatpush1.msra.mxu0 %v4831
    %4919 = vmatprep.subr.mxu0 0.0
    %4920 = vmatpush1.msra.mxu0 %v4830
    %4921 = vmatprep.subr.mxu0 0.0
    %4922 = vmatpush2.msra.mxu0 %v4861
    %4923 = vmatprep.subr.mxu0 0.0
    %4924 = vmatpush2.msra.mxu0 %v4860
    %4925 = vmatprep.subr.mxu0 0.0
    %4926 = vmatpush2.msra.mxu0 %v4859
    %4927 = vmatprep.subr.mxu0 0.0
    %4928 = vmatpush2.msra.mxu0 %v4858
    %4929 = vmatprep.subr.mxu0 0.0
    %4930 = vmatpush2.msra.mxu0 %v4857
    %4931 = vmatprep.subr.mxu0 0.0
    %4932 = vmatpush2.msra.mxu0 %v4856
    %4933 = vmatprep.subr.mxu0 0.0
    %4934 = vmatpush2.msra.mxu0 %v4855
    %4935 = vmatprep.subr.mxu0 0.0
    %4936 = vmatpush2.msra.mxu0 %v4854
    %4937 = vmatprep.subr.mxu0 0.0
    %4938 = vmatpush2.msra.mxu0 %v4853
    %4939 = vmatprep.subr.mxu0 0.0
    %4940 = vmatpush2.msra.mxu0 %v4852
    %4941 = vmatprep.subr.mxu0 0.0
    %4942 = vmatpush2.msra.mxu0 %v4851
    %4943 = vmatprep.subr.mxu0 0.0
    %4944 = vmatpush2.msra.mxu0 %v4850
    %4945 = vmatprep.subr.mxu0 0.0
    %4946 = vmatpush2.msra.mxu0 %v4849
    %4947 = vmatprep.subr.mxu0 0.0
    %4948 = vmatpush2.msra.mxu0 %v4848
    %4949 = vmatprep.subr.mxu0 0.0
    %4950 = vmatpush2.msra.mxu0 %v4847
    %4951 = vmatprep.subr.mxu0 0.0
    %4952 = vmatpush2.msra.mxu0 %v4846
    %4953 = vmatprep.mubr.f32.mxu0 %v4804
    %4954 = vmatmul.mubr.f32.gmra.mxu0 %v4794
    %v4955 = vpop.f32.mrf.mxu0
    %v4956 = vadd.f32 0.0, %v4955
    %v4957 = vpop.f32.mrf.mxu0
    %4958 = vdwg.mxu0
    %4959 = vmatprep.subr.mxu0 0.0
    %4960 = vmatpush1.msra.mxu0 %v4877
    %4961 = vmatprep.subr.mxu0 0.0
    %4962 = vmatpush1.msra.mxu0 %v4876
    %4963 = vmatprep.subr.mxu0 0.0
    %4964 = vmatpush1.msra.mxu0 %v4875
    %4965 = vmatprep.subr.mxu0 0.0
    %4966 = vmatpush1.msra.mxu0 %v4874
    %4967 = vmatprep.subr.mxu0 0.0
    %4968 = vmatpush1.msra.mxu0 %v4873
    %4969 = vmatprep.subr.mxu0 0.0
    %4970 = vmatpush1.msra.mxu0 %v4872
    %4971 = vmatprep.subr.mxu0 0.0
    %4972 = vmatpush1.msra.mxu0 %v4871
    %4973 = vmatprep.subr.mxu0 0.0
    %4974 = vmatpush1.msra.mxu0 %v4870
    %4975 = vmatprep.subr.mxu0 0.0
    %4976 = vmatpush1.msra.mxu0 %v4869
    %4977 = vmatprep.subr.mxu0 0.0
    %4978 = vmatpush1.msra.mxu0 %v4868
    %4979 = vmatprep.subr.mxu0 0.0
    %4980 = vmatpush1.msra.mxu0 %v4867
    %4981 = vmatprep.subr.mxu0 0.0
    %4982 = vmatpush1.msra.mxu0 %v4866
    %4983 = vmatprep.subr.mxu0 0.0
    %4984 = vmatpush1.msra.mxu0 %v4865
    %4985 = vmatprep.subr.mxu0 0.0
    %4986 = vmatpush1.msra.mxu0 %v4864
    %4987 = vmatprep.subr.mxu0 0.0
    %4988 = vmatpush1.msra.mxu0 %v4863
    %4989 = vmatprep.subr.mxu0 0.0
    %4990 = vmatpush1.msra.mxu0 %v4862
    %4991 = vmatprep.subr.mxu0 0.0
    %4992 = vmatpush2.msra.mxu0 0.0
    %4993 = vmatprep.subr.mxu0 0.0
    %4994 = vmatpush2.msra.mxu0 0.0
    %4995 = vmatprep.subr.mxu0 0.0
    %4996 = vmatpush2.msra.mxu0 0.0
    %4997 = vmatprep.subr.mxu0 0.0
    %4998 = vmatpush2.msra.mxu0 0.0
    %4999 = vmatprep.subr.mxu0 0.0
    %5000 = vmatpush2.msra.mxu0 0.0
    %5001 = vmatprep.subr.mxu0 0.0
    %5002 = vmatpush2.msra.mxu0 0.0
    %5003 = vmatprep.subr.mxu0 0.0
    %5004 = vmatpush2.msra.mxu0 0.0
    %5005 = vmatprep.subr.mxu0 0.0
    %5006 = vmatpush2.msra.mxu0 0.0
    %5007 = vmatprep.subr.mxu0 0.0
    %5008 = vmatpush2.msra.mxu0 %v4885
    %5009 = vmatprep.subr.mxu0 0.0
    %5010 = vmatpush2.msra.mxu0 %v4884
    %5011 = vmatprep.subr.mxu0 0.0
    %5012 = vmatpush2.msra.mxu0 %v4883
    %5013 = vmatprep.subr.mxu0 0.0
    %5014 = vmatpush2.msra.mxu0 %v4882
    %5015 = vmatprep.subr.mxu0 0.0
    %5016 = vmatpush2.msra.mxu0 %v4881
    %5017 = vmatprep.subr.mxu0 0.0
    %5018 = vmatpush2.msra.mxu0 %v4880
    %5019 = vmatprep.subr.mxu0 0.0
    %5020 = vmatpush2.msra.mxu0 %v4879
    %5021 = vmatprep.subr.mxu0 0.0
    %5022 = vmatpush2.msra.mxu0 %v4878
    %5023 = vmatprep.mubr.f32.mxu0 %v4887
    %5024 = vmatmul.mubr.f32.gmra.mxu0 %v4814
    %v5025 = vpop.f32.mrf.mxu0
    %v5026 = vadd.f32 %v4956, %v5025
    %v5027 = vpop.f32.mrf.mxu0
    %5028 = vdwg.mxu0
    %v5029 = vmul.f32 %v5026, %v3262
    %v5030 = vmul.f32 %v4769, %v4769
    %v5031 = vmul.f32 %v4770, %v4770
    %v5032 = vmul.f32 %v4771, %v4771
    %v5033 = vmul.f32 %v4772, %v4772
    %v5034 = vmul.f32 %v4773, %v4773
    %v5035 = vmul.f32 %v4774, %v4774
    %v5036 = vmul.f32 %v4775, %v4775
    %v5037 = vmul.f32 %v4776, %v4776
    %v5038 = vmul.f32 %v4777, %v4777
    %v5039 = vmul.f32 %v4778, %v4778
    %v5040 = vmul.f32 %v4779, %v4779
    %v5041 = vmul.f32 %v4780, %v4780
    %v5042 = vmul.f32 %v4781, %v4781
    %v5043 = vmul.f32 %v4782, %v4782
    %v5044 = vmul.f32 %v4783, %v4783
    %v5045 = vmul.f32 %v4784, %v4784
    %v5046 = vadd.f32 %v5030, %v5034
    %v5047 = vadd.f32 %v5046, %v5038
    %v5048 = vsel %vm605, %v5042, 0.0
    %v5049 = vadd.f32 %v5047, %v5048
    %v5050 = vrot.slane %v5049, 4
    %v5051 = vadd.f32 %v5049, %v5050
    %v5052 = vrot.slane %v5051, 2
    %v5053 = vadd.f32 %v5051, %v5052
    %v5054 = vrot.slane %v5053, 1
    %v5055 = vadd.f32 %v5053, %v5054
    %v5056 = vadd.f32 %v5031, %v5035
    %v5057 = vadd.f32 %v5056, %v5039
    %v5058 = vsel %vm605, %v5043, 0.0
    %v5059 = vadd.f32 %v5057, %v5058
    %v5060 = vrot.slane %v5059, 4
    %v5061 = vadd.f32 %v5059, %v5060
    %v5062 = vrot.slane %v5061, 2
    %v5063 = vadd.f32 %v5061, %v5062
    %v5064 = vrot.slane %v5063, 1
    %v5065 = vadd.f32 %v5063, %v5064
    %v5066 = vadd.f32 %v5032, %v5036
    %v5067 = vadd.f32 %v5066, %v5040
    %v5068 = vsel %vm605, %v5044, 0.0
    %v5069 = vadd.f32 %v5067, %v5068
    %v5070 = vrot.slane %v5069, 4
    %v5071 = vadd.f32 %v5069, %v5070
    %v5072 = vrot.slane %v5071, 2
    %v5073 = vadd.f32 %v5071, %v5072
    %v5074 = vrot.slane %v5073, 1
    %v5075 = vadd.f32 %v5073, %v5074
    %v5076 = vsel %vm4815, %v5033, 0.0
    %v5077 = vsel %vm4815, %v5037, 0.0
    %v5078 = vadd.f32 %v5076, %v5077
    %v5079 = vsel %vm4815, %v5041, 0.0
    %v5080 = vadd.f32 %v5078, %v5079
    %v5081 = vsel %vm4821, %v5045, 0.0
    %v5082 = vadd.f32 %v5080, %v5081
    %v5083 = vrot.slane %v5082, 4
    %v5084 = vadd.f32 %v5082, %v5083
    %v5085 = vrot.slane %v5084, 2
    %v5086 = vadd.f32 %v5084, %v5085
    %v5087 = vrot.slane %v5086, 1
    %v5088 = vadd.f32 %v5086, %v5087
    %v5090 = vsel %vm4815, %v5088, 0
    %5092 = vmatprep.subr.mxu0 0.0
    %5093 = vmatpush1.msra.mxu0 %v4845
    %5094 = vmatprep.subr.mxu0 0.0
    %5095 = vmatpush1.msra.mxu0 %v4844
    %5096 = vmatprep.subr.mxu0 0.0
    %5097 = vmatpush1.msra.mxu0 %v4843
    %5098 = vmatprep.subr.mxu0 0.0
    %5099 = vmatpush1.msra.mxu0 %v4842
    %5100 = vmatprep.subr.mxu0 0.0
    %5101 = vmatpush1.msra.mxu0 %v4841
    %5102 = vmatprep.subr.mxu0 0.0
    %5103 = vmatpush1.msra.mxu0 %v4840
    %5104 = vmatprep.subr.mxu0 0.0
    %5105 = vmatpush1.msra.mxu0 %v4839
    %5106 = vmatprep.subr.mxu0 0.0
    %5107 = vmatpush1.msra.mxu0 %v4838
    %5108 = vmatprep.subr.mxu0 0.0
    %5109 = vmatpush1.msra.mxu0 %v4837
    %5110 = vmatprep.subr.mxu0 0.0
    %5111 = vmatpush1.msra.mxu0 %v4836
    %5112 = vmatprep.subr.mxu0 0.0
    %5113 = vmatpush1.msra.mxu0 %v4835
    %5114 = vmatprep.subr.mxu0 0.0
    %5115 = vmatpush1.msra.mxu0 %v4834
    %5116 = vmatprep.subr.mxu0 0.0
    %5117 = vmatpush1.msra.mxu0 %v4833
    %5118 = vmatprep.subr.mxu0 0.0
    %5119 = vmatpush1.msra.mxu0 %v4832
    %5120 = vmatprep.subr.mxu0 0.0
    %5121 = vmatpush1.msra.mxu0 %v4831
    %5122 = vmatprep.subr.mxu0 0.0
    %5123 = vmatpush1.msra.mxu0 %v4830
    %5124 = vmatprep.subr.mxu0 0.0
    %5125 = vmatpush2.msra.mxu0 %v4861
    %5126 = vmatprep.subr.mxu0 0.0
    %5127 = vmatpush2.msra.mxu0 %v4860
    %5128 = vmatprep.subr.mxu0 0.0
    %5129 = vmatpush2.msra.mxu0 %v4859
    %5130 = vmatprep.subr.mxu0 0.0
    %5131 = vmatpush2.msra.mxu0 %v4858
    %5132 = vmatprep.subr.mxu0 0.0
    %5133 = vmatpush2.msra.mxu0 %v4857
    %5134 = vmatprep.subr.mxu0 0.0
    %5135 = vmatpush2.msra.mxu0 %v4856
    %5136 = vmatprep.subr.mxu0 0.0
    %5137 = vmatpush2.msra.mxu0 %v4855
    %5138 = vmatprep.subr.mxu0 0.0
    %5139 = vmatpush2.msra.mxu0 %v4854
    %5140 = vmatprep.subr.mxu0 0.0
    %5141 = vmatpush2.msra.mxu0 %v4853
    %5142 = vmatprep.subr.mxu0 0.0
    %5143 = vmatpush2.msra.mxu0 %v4852
    %5144 = vmatprep.subr.mxu0 0.0
    %5145 = vmatpush2.msra.mxu0 %v4851
    %5146 = vmatprep.subr.mxu0 0.0
    %5147 = vmatpush2.msra.mxu0 %v4850
    %5148 = vmatprep.subr.mxu0 0.0
    %5149 = vmatpush2.msra.mxu0 %v4849
    %5150 = vmatprep.subr.mxu0 0.0
    %5151 = vmatpush2.msra.mxu0 %v4848
    %5152 = vmatprep.subr.mxu0 0.0
    %5153 = vmatpush2.msra.mxu0 %v4847
    %5154 = vmatprep.subr.mxu0 0.0
    %5155 = vmatpush2.msra.mxu0 %v4846
    %5156 = vmatprep.mubr.f32.mxu0 %v5065
    %5157 = vmatmul.mubr.f32.gmra.mxu0 %v5055
    %v5158 = vpop.f32.mrf.mxu0
    %v5159 = vadd.f32 0.0, %v5158
    %v5160 = vpop.f32.mrf.mxu0
    %5161 = vdwg.mxu0
    %5162 = vmatprep.subr.mxu0 0.0
    %5163 = vmatpush1.msra.mxu0 %v4877
    %5164 = vmatprep.subr.mxu0 0.0
    %5165 = vmatpush1.msra.mxu0 %v4876
    %5166 = vmatprep.subr.mxu0 0.0
    %5167 = vmatpush1.msra.mxu0 %v4875
    %5168 = vmatprep.subr.mxu0 0.0
    %5169 = vmatpush1.msra.mxu0 %v4874
    %5170 = vmatprep.subr.mxu0 0.0
    %5171 = vmatpush1.msra.mxu0 %v4873
    %5172 = vmatprep.subr.mxu0 0.0
    %5173 = vmatpush1.msra.mxu0 %v4872
    %5174 = vmatprep.subr.mxu0 0.0
    %5175 = vmatpush1.msra.mxu0 %v4871
    %5176 = vmatprep.subr.mxu0 0.0
    %5177 = vmatpush1.msra.mxu0 %v4870
    %5178 = vmatprep.subr.mxu0 0.0
    %5179 = vmatpush1.msra.mxu0 %v4869
    %5180 = vmatprep.subr.mxu0 0.0
    %5181 = vmatpush1.msra.mxu0 %v4868
    %5182 = vmatprep.subr.mxu0 0.0
    %5183 = vmatpush1.msra.mxu0 %v4867
    %5184 = vmatprep.subr.mxu0 0.0
    %5185 = vmatpush1.msra.mxu0 %v4866
    %5186 = vmatprep.subr.mxu0 0.0
    %5187 = vmatpush1.msra.mxu0 %v4865
    %5188 = vmatprep.subr.mxu0 0.0
    %5189 = vmatpush1.msra.mxu0 %v4864
    %5190 = vmatprep.subr.mxu0 0.0
    %5191 = vmatpush1.msra.mxu0 %v4863
    %5192 = vmatprep.subr.mxu0 0.0
    %5193 = vmatpush1.msra.mxu0 %v4862
    %5194 = vmatprep.subr.mxu0 0.0
    %5195 = vmatpush2.msra.mxu0 0.0
    %5196 = vmatprep.subr.mxu0 0.0
    %5197 = vmatpush2.msra.mxu0 0.0
    %5198 = vmatprep.subr.mxu0 0.0
    %5199 = vmatpush2.msra.mxu0 0.0
    %5200 = vmatprep.subr.mxu0 0.0
    %5201 = vmatpush2.msra.mxu0 0.0
    %5202 = vmatprep.subr.mxu0 0.0
    %5203 = vmatpush2.msra.mxu0 0.0
    %5204 = vmatprep.subr.mxu0 0.0
    %5205 = vmatpush2.msra.mxu0 0.0
    %5206 = vmatprep.subr.mxu0 0.0
    %5207 = vmatpush2.msra.mxu0 0.0
    %5208 = vmatprep.subr.mxu0 0.0
    %5209 = vmatpush2.msra.mxu0 0.0
    %5210 = vmatprep.subr.mxu0 0.0
    %5211 = vmatpush2.msra.mxu0 %v4885
    %5212 = vmatprep.subr.mxu0 0.0
    %5213 = vmatpush2.msra.mxu0 %v4884
    %5214 = vmatprep.subr.mxu0 0.0
    %5215 = vmatpush2.msra.mxu0 %v4883
    %5216 = vmatprep.subr.mxu0 0.0
    %5217 = vmatpush2.msra.mxu0 %v4882
    %5218 = vmatprep.subr.mxu0 0.0
    %5219 = vmatpush2.msra.mxu0 %v4881
    %5220 = vmatprep.subr.mxu0 0.0
    %5221 = vmatpush2.msra.mxu0 %v4880
    %5222 = vmatprep.subr.mxu0 0.0
    %5223 = vmatpush2.msra.mxu0 %v4879
    %5224 = vmatprep.subr.mxu0 0.0
    %5225 = vmatpush2.msra.mxu0 %v4878
    %5226 = vmatprep.mubr.f32.mxu0 %v5090
    %5227 = vmatmul.mubr.f32.gmra.mxu0 %v5075
    %v5228 = vpop.f32.mrf.mxu0
    %v5229 = vadd.f32 %v5159, %v5228
    %v5230 = vpop.f32.mrf.mxu0
    %5231 = vdwg.mxu0
    %v5232 = vmul.f32 %v5229, %v3262
    %v5233 = vmul.f32 %v5029, %v5029
    %v5234 = vsub.f32 %v5232, %v5233
    %v5235 = vmax.f32 %v5234, 0.0
    %v5236 = vld [vmem:[#allocation27] sm:$0x1]
    %v5237 = vadd.f32 %v5235, 1e-05
    %v5238 = vrsqrt.pop %v5237
    %v5239 = vmul.f32 %v5236, %v5238
    %v5240 = vld [vmem:[#allocation28] sm:$0x1]
    %v5241 = vmul.f32 %v5029, %v5239
    %v5242 = vsub.f32 %v5240, %v5241
    %v5243 = vld [vmem:[#allocation25] sm:$0xff]
    %v5244 = vld [vmem:[#allocation25 + $0x8] sm:$0xff]
    %v5245 = vld [vmem:[#allocation25 + $0x10] sm:$0xff]
    %v5246 = vld [vmem:[#allocation25 + $0x18] sm:$0xff]
    %v5247 = vld [vmem:[#allocation25 + $0x20] sm:$0xff]
    %v5248 = vld [vmem:[#allocation25 + $0x28] sm:$0xff]
    %v5249 = vld [vmem:[#allocation25 + $0x30] sm:$0xff]
    %v5250 = vld [vmem:[#allocation25 + $0x38] sm:$0xff]
    %v5251 = vld [vmem:[#allocation25 + $0x40] sm:$0xff]
    %v5252 = vld [vmem:[#allocation25 + $0x48] sm:$0xff]
    %v5253 = vld [vmem:[#allocation25 + $0x50] sm:$0xff]
    %v5254 = vld [vmem:[#allocation25 + $0x58] sm:$0xff]
    %v5255 = vld [vmem:[#allocation25 + $0x60] sm:$0xff]
    %v5256 = vld [vmem:[#allocation25 + $0x68] sm:$0xff]
    %v5257 = vld [vmem:[#allocation25 + $0x70] sm:$0xff]
    %v5258 = vld [vmem:[#allocation25 + $0x78] sm:$0xff]
    %vm5259 = vcmask 261120
    %v5261 = vsel %vm5259, %v5239, 0
    %5263 = vmatprep.subr.mxu0 0.0
    %5264 = vmatpush1.msra.mxu0 0.0
    %5265 = vmatprep.subr.mxu0 0.0
    %5266 = vmatpush1.msra.mxu0 0.0
    %5267 = vmatprep.subr.mxu0 0.0
    %5268 = vmatpush1.msra.mxu0 0.0
    %5269 = vmatprep.subr.mxu0 0.0
    %5270 = vmatpush1.msra.mxu0 0.0
    %5271 = vmatprep.subr.mxu0 0.0
    %5272 = vmatpush1.msra.mxu0 0.0
    %5273 = vmatprep.subr.mxu0 0.0
    %5274 = vmatpush1.msra.mxu0 0.0
    %5275 = vmatprep.subr.mxu0 0.0
    %5276 = vmatpush1.msra.mxu0 0.0
    %5277 = vmatprep.subr.mxu0 0.0
    %5278 = vmatpush1.msra.mxu0 0.0
    %5279 = vmatprep.subr.mxu0 0.0
    %5280 = vmatpush1.msra.mxu0 0.0
    %5281 = vmatprep.subr.mxu0 0.0
    %5282 = vmatpush1.msra.mxu0 0.0
    %5283 = vmatprep.subr.mxu0 0.0
    %5284 = vmatpush1.msra.mxu0 0.0
    %5285 = vmatprep.subr.mxu0 0.0
    %5286 = vmatpush1.msra.mxu0 0.0
    %5287 = vmatprep.subr.mxu0 %v5256
    %5288 = vmatpush1.msra.mxu0 %v5255
    %5289 = vmatprep.subr.mxu0 %v5252
    %5290 = vmatpush1.msra.mxu0 %v5251
    %5291 = vmatprep.subr.mxu0 %v5248
    %5292 = vmatpush1.msra.mxu0 %v5247
    %5293 = vmatprep.subr.mxu0 %v5244
    %5294 = vmatpush1.msra.mxu0 %v5243
    %5295 = vmatprep.subr.mxu0 0.0
    %5296 = vmatpush2.msra.mxu0 0.0
    %5297 = vmatprep.subr.mxu0 0.0
    %5298 = vmatpush2.msra.mxu0 0.0
    %5299 = vmatprep.subr.mxu0 0.0
    %5300 = vmatpush2.msra.mxu0 0.0
    %5301 = vmatprep.subr.mxu0 0.0
    %5302 = vmatpush2.msra.mxu0 0.0
    %5303 = vmatprep.subr.mxu0 0.0
    %5304 = vmatpush2.msra.mxu0 0.0
    %5305 = vmatprep.subr.mxu0 0.0
    %5306 = vmatpush2.msra.mxu0 0.0
    %5307 = vmatprep.subr.mxu0 0.0
    %5308 = vmatpush2.msra.mxu0 0.0
    %5309 = vmatprep.subr.mxu0 0.0
    %5310 = vmatpush2.msra.mxu0 0.0
    %5311 = vmatprep.subr.mxu0 0.0
    %5312 = vmatpush2.msra.mxu0 0.0
    %5313 = vmatprep.subr.mxu0 0.0
    %5314 = vmatpush2.msra.mxu0 0.0
    %5315 = vmatprep.subr.mxu0 0.0
    %5316 = vmatpush2.msra.mxu0 0.0
    %5317 = vmatprep.subr.mxu0 0.0
    %5318 = vmatpush2.msra.mxu0 0.0
    %5319 = vmatprep.subr.mxu0 0.0
    %5320 = vmatpush2.msra.mxu0 0.0
    %5321 = vmatprep.subr.mxu0 0.0
    %5322 = vmatpush2.msra.mxu0 0.0
    %5323 = vmatprep.subr.mxu0 0.0
    %5324 = vmatpush2.msra.mxu0 0.0
    %5325 = vmatprep.subr.mxu0 0.0
    %5326 = vmatpush2.msra.mxu0 0.0
    %5327 = vmatprep.mubr.f32.mxu0 0.0
    %5328 = vmatmul.mubr.f32.gmra.mxu0 %v5261
    %v5329 = vpop.f32.mrf.mxu0
    %v5330 = vadd.f32 0.0, %v5329
    %v5331 = vpop.f32.mrf.mxu0
    %v5332 = vadd.f32 0.0, %v5331
    %5333 = vdwg.mxu0
    %5334 = vmatprep.subr.mxu0 0.0
    %5335 = vmatpush1.msra.mxu0 0.0
    %5336 = vmatprep.subr.mxu0 0.0
    %5337 = vmatpush1.msra.mxu0 0.0
    %5338 = vmatprep.subr.mxu0 0.0
    %5339 = vmatpush1.msra.mxu0 0.0
    %5340 = vmatprep.subr.mxu0 0.0
    %5341 = vmatpush1.msra.mxu0 0.0
    %5342 = vmatprep.subr.mxu0 0.0
    %5343 = vmatpush1.msra.mxu0 0.0
    %5344 = vmatprep.subr.mxu0 0.0
    %5345 = vmatpush1.msra.mxu0 0.0
    %5346 = vmatprep.subr.mxu0 0.0
    %5347 = vmatpush1.msra.mxu0 0.0
    %5348 = vmatprep.subr.mxu0 0.0
    %5349 = vmatpush1.msra.mxu0 0.0
    %5350 = vmatprep.subr.mxu0 0.0
    %5351 = vmatpush1.msra.mxu0 0.0
    %5352 = vmatprep.subr.mxu0 0.0
    %5353 = vmatpush1.msra.mxu0 0.0
    %5354 = vmatprep.subr.mxu0 0.0
    %5355 = vmatpush1.msra.mxu0 0.0
    %5356 = vmatprep.subr.mxu0 0.0
    %5357 = vmatpush1.msra.mxu0 0.0
    %5358 = vmatprep.subr.mxu0 %v5258
    %5359 = vmatpush1.msra.mxu0 %v5257
    %5360 = vmatprep.subr.mxu0 %v5254
    %5361 = vmatpush1.msra.mxu0 %v5253
    %5362 = vmatprep.subr.mxu0 %v5250
    %5363 = vmatpush1.msra.mxu0 %v5249
    %5364 = vmatprep.subr.mxu0 %v5246
    %5365 = vmatpush1.msra.mxu0 %v5245
    %5366 = vmatprep.subr.mxu0 0.0
    %5367 = vmatpush2.msra.mxu0 0.0
    %5368 = vmatprep.subr.mxu0 0.0
    %5369 = vmatpush2.msra.mxu0 0.0
    %5370 = vmatprep.subr.mxu0 0.0
    %5371 = vmatpush2.msra.mxu0 0.0
    %5372 = vmatprep.subr.mxu0 0.0
    %5373 = vmatpush2.msra.mxu0 0.0
    %5374 = vmatprep.subr.mxu0 0.0
    %5375 = vmatpush2.msra.mxu0 0.0
    %5376 = vmatprep.subr.mxu0 0.0
    %5377 = vmatpush2.msra.mxu0 0.0
    %5378 = vmatprep.subr.mxu0 0.0
    %5379 = vmatpush2.msra.mxu0 0.0
    %5380 = vmatprep.subr.mxu0 0.0
    %5381 = vmatpush2.msra.mxu0 0.0
    %5382 = vmatprep.subr.mxu0 0.0
    %5383 = vmatpush2.msra.mxu0 0.0
    %5384 = vmatprep.subr.mxu0 0.0
    %5385 = vmatpush2.msra.mxu0 0.0
    %5386 = vmatprep.subr.mxu0 0.0
    %5387 = vmatpush2.msra.mxu0 0.0
    %5388 = vmatprep.subr.mxu0 0.0
    %5389 = vmatpush2.msra.mxu0 0.0
    %5390 = vmatprep.subr.mxu0 0.0
    %5391 = vmatpush2.msra.mxu0 0.0
    %5392 = vmatprep.subr.mxu0 0.0
    %5393 = vmatpush2.msra.mxu0 0.0
    %5394 = vmatprep.subr.mxu0 0.0
    %5395 = vmatpush2.msra.mxu0 0.0
    %5396 = vmatprep.subr.mxu0 0.0
    %5397 = vmatpush2.msra.mxu0 0.0
    %5398 = vmatprep.mubr.f32.mxu0 0.0
    %5399 = vmatmul.mubr.f32.gmra.mxu0 %v5261
    %v5400 = vpop.f32.mrf.mxu0
    %v5401 = vadd.f32 0.0, %v5400
    %v5402 = vpop.f32.mrf.mxu0
    %v5403 = vadd.f32 0.0, %v5402
    %5404 = vdwg.mxu0
    %v5406 = vsel %vm5259, %v5242, 0
    %5408 = vmatprep.subr.mxu0 0.0
    %5409 = vmatpush1.msra.mxu0 0.0
    %5410 = vmatprep.subr.mxu0 0.0
    %5411 = vmatpush1.msra.mxu0 0.0
    %5412 = vmatprep.subr.mxu0 0.0
    %5413 = vmatpush1.msra.mxu0 0.0
    %5414 = vmatprep.subr.mxu0 0.0
    %5415 = vmatpush1.msra.mxu0 0.0
    %5416 = vmatprep.subr.mxu0 0.0
    %5417 = vmatpush1.msra.mxu0 0.0
    %5418 = vmatprep.subr.mxu0 0.0
    %5419 = vmatpush1.msra.mxu0 0.0
    %5420 = vmatprep.subr.mxu0 0.0
    %5421 = vmatpush1.msra.mxu0 0.0
    %5422 = vmatprep.subr.mxu0 0.0
    %5423 = vmatpush1.msra.mxu0 0.0
    %5424 = vmatprep.subr.mxu0 0.0
    %5425 = vmatpush1.msra.mxu0 0.0
    %5426 = vmatprep.subr.mxu0 0.0
    %5427 = vmatpush1.msra.mxu0 0.0
    %5428 = vmatprep.subr.mxu0 0.0
    %5429 = vmatpush1.msra.mxu0 0.0
    %5430 = vmatprep.subr.mxu0 0.0
    %5431 = vmatpush1.msra.mxu0 0.0
    %5432 = vmatprep.subr.mxu0 %v5256
    %5433 = vmatpush1.msra.mxu0 %v5255
    %5434 = vmatprep.subr.mxu0 %v5252
    %5435 = vmatpush1.msra.mxu0 %v5251
    %5436 = vmatprep.subr.mxu0 %v5248
    %5437 = vmatpush1.msra.mxu0 %v5247
    %5438 = vmatprep.subr.mxu0 %v5244
    %5439 = vmatpush1.msra.mxu0 %v5243
    %5440 = vmatprep.subr.mxu0 0.0
    %5441 = vmatpush2.msra.mxu0 0.0
    %5442 = vmatprep.subr.mxu0 0.0
    %5443 = vmatpush2.msra.mxu0 0.0
    %5444 = vmatprep.subr.mxu0 0.0
    %5445 = vmatpush2.msra.mxu0 0.0
    %5446 = vmatprep.subr.mxu0 0.0
    %5447 = vmatpush2.msra.mxu0 0.0
    %5448 = vmatprep.subr.mxu0 0.0
    %5449 = vmatpush2.msra.mxu0 0.0
    %5450 = vmatprep.subr.mxu0 0.0
    %5451 = vmatpush2.msra.mxu0 0.0
    %5452 = vmatprep.subr.mxu0 0.0
    %5453 = vmatpush2.msra.mxu0 0.0
    %5454 = vmatprep.subr.mxu0 0.0
    %5455 = vmatpush2.msra.mxu0 0.0
    %5456 = vmatprep.subr.mxu0 0.0
    %5457 = vmatpush2.msra.mxu0 0.0
    %5458 = vmatprep.subr.mxu0 0.0
    %5459 = vmatpush2.msra.mxu0 0.0
    %5460 = vmatprep.subr.mxu0 0.0
    %5461 = vmatpush2.msra.mxu0 0.0
    %5462 = vmatprep.subr.mxu0 0.0
    %5463 = vmatpush2.msra.mxu0 0.0
    %5464 = vmatprep.subr.mxu0 0.0
    %5465 = vmatpush2.msra.mxu0 0.0
    %5466 = vmatprep.subr.mxu0 0.0
    %5467 = vmatpush2.msra.mxu0 0.0
    %5468 = vmatprep.subr.mxu0 0.0
    %5469 = vmatpush2.msra.mxu0 0.0
    %5470 = vmatprep.subr.mxu0 0.0
    %5471 = vmatpush2.msra.mxu0 0.0
    %5472 = vmatprep.mubr.f32.mxu0 0.0
    %5473 = vmatmul.mubr.f32.gmra.mxu0 %v5406
    %v5474 = vpop.f32.mrf.mxu0
    %v5475 = vadd.f32 0.0, %v5474
    %v5476 = vpop.f32.mrf.mxu0
    %v5477 = vadd.f32 0.0, %v5476
    %5478 = vdwg.mxu0
    %5479 = vmatprep.subr.mxu0 0.0
    %5480 = vmatpush1.msra.mxu0 0.0
    %5481 = vmatprep.subr.mxu0 0.0
    %5482 = vmatpush1.msra.mxu0 0.0
    %5483 = vmatprep.subr.mxu0 0.0
    %5484 = vmatpush1.msra.mxu0 0.0
    %5485 = vmatprep.subr.mxu0 0.0
    %5486 = vmatpush1.msra.mxu0 0.0
    %5487 = vmatprep.subr.mxu0 0.0
    %5488 = vmatpush1.msra.mxu0 0.0
    %5489 = vmatprep.subr.mxu0 0.0
    %5490 = vmatpush1.msra.mxu0 0.0
    %5491 = vmatprep.subr.mxu0 0.0
    %5492 = vmatpush1.msra.mxu0 0.0
    %5493 = vmatprep.subr.mxu0 0.0
    %5494 = vmatpush1.msra.mxu0 0.0
    %5495 = vmatprep.subr.mxu0 0.0
    %5496 = vmatpush1.msra.mxu0 0.0
    %5497 = vmatprep.subr.mxu0 0.0
    %5498 = vmatpush1.msra.mxu0 0.0
    %5499 = vmatprep.subr.mxu0 0.0
    %5500 = vmatpush1.msra.mxu0 0.0
    %5501 = vmatprep.subr.mxu0 0.0
    %5502 = vmatpush1.msra.mxu0 0.0
    %5503 = vmatprep.subr.mxu0 %v5258
    %5504 = vmatpush1.msra.mxu0 %v5257
    %5505 = vmatprep.subr.mxu0 %v5254
    %5506 = vmatpush1.msra.mxu0 %v5253
    %5507 = vmatprep.subr.mxu0 %v5250
    %5508 = vmatpush1.msra.mxu0 %v5249
    %5509 = vmatprep.subr.mxu0 %v5246
    %5510 = vmatpush1.msra.mxu0 %v5245
    %5511 = vmatprep.subr.mxu0 0.0
    %5512 = vmatpush2.msra.mxu0 0.0
    %5513 = vmatprep.subr.mxu0 0.0
    %5514 = vmatpush2.msra.mxu0 0.0
    %5515 = vmatprep.subr.mxu0 0.0
    %5516 = vmatpush2.msra.mxu0 0.0
    %5517 = vmatprep.subr.mxu0 0.0
    %5518 = vmatpush2.msra.mxu0 0.0
    %5519 = vmatprep.subr.mxu0 0.0
    %5520 = vmatpush2.msra.mxu0 0.0
    %5521 = vmatprep.subr.mxu0 0.0
    %5522 = vmatpush2.msra.mxu0 0.0
    %5523 = vmatprep.subr.mxu0 0.0
    %5524 = vmatpush2.msra.mxu0 0.0
    %5525 = vmatprep.subr.mxu0 0.0
    %5526 = vmatpush2.msra.mxu0 0.0
    %5527 = vmatprep.subr.mxu0 0.0
    %5528 = vmatpush2.msra.mxu0 0.0
    %5529 = vmatprep.subr.mxu0 0.0
    %5530 = vmatpush2.msra.mxu0 0.0
    %5531 = vmatprep.subr.mxu0 0.0
    %5532 = vmatpush2.msra.mxu0 0.0
    %5533 = vmatprep.subr.mxu0 0.0
    %5534 = vmatpush2.msra.mxu0 0.0
    %5535 = vmatprep.subr.mxu0 0.0
    %5536 = vmatpush2.msra.mxu0 0.0
    %5537 = vmatprep.subr.mxu0 0.0
    %5538 = vmatpush2.msra.mxu0 0.0
    %5539 = vmatprep.subr.mxu0 0.0
    %5540 = vmatpush2.msra.mxu0 0.0
    %5541 = vmatprep.subr.mxu0 0.0
    %5542 = vmatpush2.msra.mxu0 0.0
    %5543 = vmatprep.mubr.f32.mxu0 0.0
    %5544 = vmatmul.mubr.f32.gmra.mxu0 %v5406
    %v5545 = vpop.f32.mrf.mxu0
    %v5546 = vadd.f32 0.0, %v5545
    %v5547 = vpop.f32.mrf.mxu0
    %v5548 = vadd.f32 0.0, %v5547
    %5549 = vdwg.mxu0
    %v5550 = vlaneseq
    %v5551 = vshrl.u32 %v5550, 7
    %v5552 = vsub.s32 0, %v5551
    %v5553 = vrot.slane %v5330, %v5552
    %v5554 = vlaneseq
    %v5555 = vshrl.u32 %v5554, 7
    %v5556 = vsub.s32 0, %v5555
    %v5557 = vrot.slane %v5332, %v5556
    %v5558 = vlaneseq
    %v5559 = vshrl.u32 %v5558, 7
    %v5560 = vsub.s32 0, %v5559
    %v5561 = vrot.slane %v5401, %v5560
    %v5562 = vlaneseq
    %v5563 = vshrl.u32 %v5562, 7
    %v5564 = vsub.s32 0, %v5563
    %v5565 = vrot.slane %v5403, %v5564
    %v5566 = vmul.f32 %v4769, %v5553
    %v5567 = vmul.f32 %v4770, %v5557
    %v5568 = vmul.f32 %v4771, %v5561
    %v5569 = vmul.f32 %v4772, %v5565
    %v5570 = vmul.f32 %v4773, %v5553
    %v5571 = vmul.f32 %v4774, %v5557
    %v5572 = vmul.f32 %v4775, %v5561
    %v5573 = vmul.f32 %v4776, %v5565
    %v5574 = vmul.f32 %v4777, %v5553
    %v5575 = vmul.f32 %v4778, %v5557
    %v5576 = vmul.f32 %v4779, %v5561
    %v5577 = vmul.f32 %v4780, %v5565
    %v5578 = vmul.f32 %v4781, %v5553
    %v5579 = vmul.f32 %v4782, %v5557
    %v5580 = vmul.f32 %v4783, %v5561
    %v5581 = vmul.f32 %v4784, %v5565
    %v5582 = vlaneseq
    %v5583 = vshrl.u32 %v5582, 7
    %v5584 = vsub.s32 0, %v5583
    %v5585 = vrot.slane %v5475, %v5584
    %v5586 = vlaneseq
    %v5587 = vshrl.u32 %v5586, 7
    %v5588 = vsub.s32 0, %v5587
    %v5589 = vrot.slane %v5477, %v5588
    %v5590 = vlaneseq
    %v5591 = vshrl.u32 %v5590, 7
    %v5592 = vsub.s32 0, %v5591
    %v5593 = vrot.slane %v5546, %v5592
    %v5594 = vlaneseq
    %v5595 = vshrl.u32 %v5594, 7
    %v5596 = vsub.s32 0, %v5595
    %v5597 = vrot.slane %v5548, %v5596
    %v5598 = vadd.f32 %v5566, %v5585
    %v5599 = vadd.f32 %v5567, %v5589
    %v5600 = vadd.f32 %v5568, %v5593
    %v5601 = vadd.f32 %v5569, %v5597
    %v5602 = vadd.f32 %v5570, %v5585
    %v5603 = vadd.f32 %v5571, %v5589
    %v5604 = vadd.f32 %v5572, %v5593
    %v5605 = vadd.f32 %v5573, %v5597
    %v5606 = vadd.f32 %v5574, %v5585
    %v5607 = vadd.f32 %v5575, %v5589
    %v5608 = vadd.f32 %v5576, %v5593
    %v5609 = vadd.f32 %v5577, %v5597
    %v5610 = vadd.f32 %v5578, %v5585
    %v5611 = vadd.f32 %v5579, %v5589
    %v5612 = vadd.f32 %v5580, %v5593
    %v5613 = vadd.f32 %v5581, %v5597
    %vm5614 = vcmp.gt.f32.partialorder %v5598, 0.0
    %vm5615 = vcmp.gt.f32.partialorder %v5599, 0.0
    %vm5616 = vcmp.gt.f32.partialorder %v5600, 0.0
    %vm5617 = vcmp.gt.f32.partialorder %v5601, 0.0
    %vm5618 = vcmp.gt.f32.partialorder %v5602, 0.0
    %vm5619 = vcmp.gt.f32.partialorder %v5603, 0.0
    %vm5620 = vcmp.gt.f32.partialorder %v5604, 0.0
    %vm5621 = vcmp.gt.f32.partialorder %v5605, 0.0
    %vm5622 = vcmp.gt.f32.partialorder %v5606, 0.0
    %vm5623 = vcmp.gt.f32.partialorder %v5607, 0.0
    %vm5624 = vcmp.gt.f32.partialorder %v5608, 0.0
    %vm5625 = vcmp.gt.f32.partialorder %v5609, 0.0
    %vm5626 = vcmp.gt.f32.partialorder %v5610, 0.0
    %vm5627 = vcmp.gt.f32.partialorder %v5611, 0.0
    %vm5628 = vcmp.gt.f32.partialorder %v5612, 0.0
    %vm5629 = vcmp.gt.f32.partialorder %v5613, 0.0
    %v5630 = vmul.f32 %v5598, 0.2
    %v5631 = vmul.f32 %v5599, 0.2
    %v5632 = vmul.f32 %v5600, 0.2
    %v5633 = vmul.f32 %v5601, 0.2
    %v5634 = vmul.f32 %v5602, 0.2
    %v5635 = vmul.f32 %v5603, 0.2
    %v5636 = vmul.f32 %v5604, 0.2
    %v5637 = vmul.f32 %v5605, 0.2
    %v5638 = vmul.f32 %v5606, 0.2
    %v5639 = vmul.f32 %v5607, 0.2
    %v5640 = vmul.f32 %v5608, 0.2
    %v5641 = vmul.f32 %v5609, 0.2
    %v5642 = vmul.f32 %v5610, 0.2
    %v5643 = vmul.f32 %v5611, 0.2
    %v5644 = vmul.f32 %v5612, 0.2
    %v5645 = vmul.f32 %v5613, 0.2
    %v5646 = vsel %vm5614, %v5598, %v5630
    %v5647 = vsel %vm5615, %v5599, %v5631
    %v5648 = vsel %vm5616, %v5600, %v5632
    %v5649 = vsel %vm5617, %v5601, %v5633
    %v5650 = vsel %vm5618, %v5602, %v5634
    %v5651 = vsel %vm5619, %v5603, %v5635
    %v5652 = vsel %vm5620, %v5604, %v5636
    %v5653 = vsel %vm5621, %v5605, %v5637
    %v5654 = vsel %vm5622, %v5606, %v5638
    %v5655 = vsel %vm5623, %v5607, %v5639
    %v5656 = vsel %vm5624, %v5608, %v5640
    %v5657 = vsel %vm5625, %v5609, %v5641
    %v5658 = vsel %vm5626, %v5610, %v5642
    %v5659 = vsel %vm5627, %v5611, %v5643
    %v5660 = vsel %vm5628, %v5612, %v5644
    %v5661 = vsel %vm5629, %v5613, %v5645
    %v5662 = vpack.c.bf16 %v5650, %v5646
    %v5663 = vpack.c.bf16 %v5651, %v5647
    %v5664 = vpack.c.bf16 %v5652, %v5648
    %v5665 = vpack.c.bf16 %v5653, %v5649
    %v5666 = vpack.c.bf16 %v5658, %v5654
    %v5667 = vpack.c.bf16 %v5659, %v5655
    %v5668 = vpack.c.bf16 %v5660, %v5656
    %v5669 = vpack.c.bf16 %v5661, %v5657
    %v5678 = vunpack.c.l.b16 %v5662
    %v5679 = vunpack.c.l.b16 %v5663
    %v5680 = vunpack.c.l.b16 %v5664
    %v5681 = vunpack.c.l.b16 %v5665
    %v5682 = vunpack.c.h.b16 %v5662
    %v5683 = vunpack.c.h.b16 %v5663
    %v5684 = vunpack.c.h.b16 %v5664
    %v5685 = vunpack.c.h.b16 %v5665
    %v5686 = vunpack.c.l.b16 %v5666
    %v5687 = vunpack.c.l.b16 %v5667
    %v5688 = vunpack.c.l.b16 %v5668
    %v5689 = vunpack.c.l.b16 %v5669
    %v5690 = vunpack.c.h.b16 %v5666
    %v5691 = vunpack.c.h.b16 %v5667
    %v5692 = vunpack.c.h.b16 %v5668
    %v5693 = vunpack.c.h.b16 %v5669
    %v5694 = vpack.c.b16 %v5679, %v5678
    %v5695 = vpack.c.b16 %v5681, %v5680
    %v5696 = vpack.c.b16 %v5683, %v5682
    %v5697 = vpack.c.b16 %v5685, %v5684
    %v5698 = vpack.c.b16 %v5687, %v5686
    %v5699 = vpack.c.b16 %v5689, %v5688
    %v5700 = vpack.c.b16 %v5691, %v5690
    %v5701 = vpack.c.b16 %v5693, %v5692
    %5710 = vst [vmem:[%s22] sm:$0xff] %v5694
    %vm5711 = vcmask 523268
    %vm5712 = vmor %vm5711, %vm605
    %5713 = vst.msk [vmem:[%s22 + $0x8] sm:$0xff] %vm5712, %v5695
    %5714 = vst [vmem:[%s22 + $0x10] sm:$0xff] %v5696
    %5715 = vst.msk [vmem:[%s22 + $0x18] sm:$0xff] %vm5712, %v5697
    %5716 = vst [vmem:[%s22 + $0x20] sm:$0xff] %v5698
    %5717 = vst.msk [vmem:[%s22 + $0x28] sm:$0xff] %vm5712, %v5699
    %5718 = vst [vmem:[%s22 + $0x30] sm:$0x33] %v5700
    %vm5719 = vcmask 1041408
    %vm5720 = vcmask 521220
    %vm5721 = vmor %vm5720, %vm5719
    %5722 = vst.msk [vmem:[%s22 + $0x38] sm:$0x33] %vm5721, %v5701
    // Predicated region
    $region162: #{qy_x_forward.3} parent=1 // pred_check
      _
    $region163: #{qy_x_forward.3} parent=1 // pred_check_branch
      %5724 = sbr.rel (0) target = $region165
    $region164: #{qy_x_forward.3} parent=1 // pred_region
      _
    $region165: #{qy_x_forward.3} parent=1 // pred_fallthru
      _
    // Predicated region
    $region166: #{qy_x_forward.3} parent=1 // pred_check
      _
    $region167: #{qy_x_forward.3} parent=1 // pred_check_branch
      %5726 = sbr.rel (0) target = $region169
    $region168: #{qy_x_forward.3} parent=1 // pred_region
      _
    $region169: #{qy_x_forward.3} parent=1 // pred_fallthru
      _
    %5727 = vsyncpa [#allocation3], 1
    %5728 = vsyncpa [#allocation5], 1
    %5729 = vsyncpa [#allocation8], 1
    %5730 = vsyncpa [#allocation11], 1
    %5731 = vsyncpa [#allocation14], 1
    %5732 = vsyncpa [#allocation17], 1
    %5733 = vsyncpa [#allocation20], 1
    %5734 = vsyncpa [#allocation23], 1
    %5735 = vsyncpa [#allocation26], 1
    %5736 = vsyncpa [#allocation29], 1

</llo_original>
